<compile_context>
chip_gen: v7x
topology: tpu7x:2x2x1
jax: 0.10.0
libtpu: 0.0.40
codegen_flags: <defaults>
</compile_context>

<pallas_src>
import math

import jax
import jax.numpy as jnp
from jax.experimental import pallas as pl
from jax.experimental.pallas import tpu as pltpu

# Full-precision f32 matmuls on both the kernel path and the XLA reference so the
# correctness gate below can be tight (1e-3 instead of the old 5e-2).
jax.config.update("jax_default_matmul_precision", "highest")

# ----------------------------- model dims (small test config) -----------------------------
B = 2         # batch
S = 8         # sequence length
D = 32        # d_model
H = 4         # heads
DK = D // H   # d_k = 8   (note: D // DK == H, used by the head re-layout below)
HS = H * S    # 32 rows of the per-batch "head layout"
FF = 4 * D    # feed-forward hidden = 128
EPS = 1e-5
SCALE = math.sqrt(DK)


# ----------------------------- in-kernel helpers -----------------------------
def _gelu_exact(x):
    # F.gelu default: 0.5 * x * (1 + erf(x / sqrt(2)))
    return 0.5 * x * (1.0 + jax.lax.erf(x * (1.0 / math.sqrt(2.0))))


def _layernorm(x, gamma, beta):
    mean = jnp.mean(x, axis=-1, keepdims=True)
    var = jnp.mean((x - mean) ** 2, axis=-1, keepdims=True)
    return (x - mean) * jax.lax.rsqrt(var + EPS) * gamma + beta


# ----------------------------- the single fused kernel (per batch) -----------------------------
def encoder_kernel(xh_ref, x_ref,
                   wq_ref, bq_ref, wk_ref, bk_ref, wv_ref, bv_ref,
                   wo_ref, bo_ref, g1_ref, be1_ref,
                   w1_ref, b1_ref, w2_ref, b2_ref, g2_ref, be2_ref,
                   out_ref):
    f32 = jnp.float32
    xh = xh_ref[0]        # (HS, H*D) = (32, 128)  head-layout expanded input
    x = x_ref[0]          # (S, D)                 original activations (residual path)

    # --- Q/K/V projections, emitted directly in per-head row layout ---
    # rows [h*S, (h+1)*S) of q_r/k_r/v_r are exactly the (S, DK) matrices that torch's
    # `proj(x).view(B, H, -1, d_k)` produces for head h (including its seq/head mixing).
    # 1/sqrt(d_k) is already folded into wq/bq.
    q_r = jnp.dot(xh, wq_ref[...], preferred_element_type=f32) + bq_ref[...]   # (HS, DK)
    k_r = jnp.dot(xh, wk_ref[...], preferred_element_type=f32) + bk_ref[...]
    v_r = jnp.dot(xh, wv_ref[...], preferred_element_type=f32) + bv_ref[...]

    # --- attention: all H heads unrolled in one body ---
    # context.transpose(1,2).flatten(2) followed by the out projection equals
    # sum_h ctx_h @ Wo[h*DK:(h+1)*DK, :]  (exact linearity), so no lane re-packing.
    inter = jnp.zeros((S, D), f32)
    for h in range(H):
        r0 = h * S
        q_h = q_r[r0:r0 + S, :]     # (S, DK) -- one aligned 8-row sublane slice
        k_h = k_r[r0:r0 + S, :]
        v_h = v_r[r0:r0 + S, :]
        s_h = jax.lax.dot_general(q_h, k_h, (((1,), (1,)), ((), ())),
                                  preferred_element_type=f32)                  # (S, S)
        m = jnp.max(s_h, axis=-1, keepdims=True)
        e = jnp.exp(s_h - m)
        # exact reciprocal keeps the 1e-3 correctness gate honest at this toy size;
        # switch to pl.reciprocal(..., approx=True) (EUP slot) at production sizes.
        w = e * pl.reciprocal(jnp.sum(e, axis=-1, keepdims=True), approx=False)
        ctx_h = jnp.dot(w, v_h, preferred_element_type=f32)                    # (S, DK)
        inter = inter + jnp.dot(ctx_h, wo_ref[h * DK:(h + 1) * DK, :],
                                preferred_element_type=f32)

    interacted = inter + bo_ref[...]                    # dropout == identity (eval mode)
    h1 = _layernorm(interacted + x, g1_ref[...], be1_ref[...])

    # --- feed-forward + residual + LN2 ---
    f = jnp.dot(h1, w1_ref[...], preferred_element_type=f32) + b1_ref[...]
    f = _gelu_exact(f)
    f = jnp.dot(f, w2_ref[...], preferred_element_type=f32) + b2_ref[...]
    out_ref[0] = _layernorm(f + h1, g2_ref[...], be2_ref[...])


# ----------------------------- head-layout plumbing (pure XLA glue, outside the kernel) -----------------------------
def _head_layout_w(w):
    # (D, D) -> (H*D, DK):  W_hat[c*D + d, j] = w[d, c*DK + j]
    return w.reshape(D, H, DK).transpose(1, 0, 2).reshape(H * D, DK)


def _head_layout_b(b):
    # (1, D) -> (HS, DK):   B_hat[i, j] = b[0, (i % H)*DK + j]
    return jnp.tile(b.reshape(H, DK), (HS // H, 1))


def _expand_head_input(x):
    # X_hat[b, a*H + c, c'*D + d] = x[b, a, d] * (c == c'), so that
    # (X_hat @ W_hat)[i, j] = (x @ w)[i // H, DK*(i % H) + j]
    # i.e. the projection comes out directly in torch's `.view(B, H, -1, d_k)` row order.
    eye = jnp.eye(H, dtype=x.dtype)
    xh = x[:, :, None, None, :] * eye[None, None, :, :, None]   # (B, S, H, H, D)
    return xh.reshape(B, HS, H * D)


def _full_spec(shape):
    """BlockSpec for an un-tiled (broadcast across the grid) operand."""
    nd = len(shape)
    return pl.BlockSpec(shape, lambda *_: (0,) * nd)


@jax.jit
def encoder_layer(x, params):
    # Fold attention scaling + head re-layout into the weights once per call.
    inv_scale = jnp.float32(1.0 / SCALE)
    wq_h = _head_layout_w(params["wq"] * inv_scale)
    bq_h = _head_layout_b(params["bq"] * inv_scale)
    wk_h = _head_layout_w(params["wk"])
    bk_h = _head_layout_b(params["bk"])
    wv_h = _head_layout_w(params["wv"])
    bv_h = _head_layout_b(params["bv"])
    xh = _expand_head_input(x)

    per_batch = pl.BlockSpec((1, S, D), lambda b: (b, 0, 0))
    xh_spec = pl.BlockSpec((1, HS, H * D), lambda b: (b, 0, 0))

    # TODO(synk): at production d_model, tile the FFN matmuls over a K grid axis
    # ("arbitrary") with a VMEM accumulator and/or set vmem_limit_bytes — the untiled,
    # double-buffered weight blocks below only fit VMEM at this toy size (esp. v7x's
    # 64 MiB).  Likewise cast matmul operands to bf16 (f32 accumulation) at real sizes.
    return pl.pallas_call(
        encoder_kernel,
        out_shape=jax.ShapeDtypeStruct((B, S, D), jnp.float32),
        grid=(B,),
        in_specs=[xh_spec, per_batch,
                  _full_spec((H * D, DK)), _full_spec((HS, DK)),
                  _full_spec((H * D, DK)), _full_spec((HS, DK)),
                  _full_spec((H * D, DK)), _full_spec((HS, DK)),
                  _full_spec((D, D)), _full_spec((1, D)),
                  _full_spec((1, D)), _full_spec((1, D)),
                  _full_spec((D, FF)), _full_spec((1, FF)),
                  _full_spec((FF, D)), _full_spec((1, D)),
                  _full_spec((1, D)), _full_spec((1, D))],
        out_specs=per_batch,
        # "parallel" batch axis -> shards the 2 batches across v7x's 2 TensorCores.
        compiler_params=pltpu.CompilerParams(dimension_semantics=("parallel",)),
    )(xh, x, wq_h, bq_h, wk_h, bk_h, wv_h, bv_h,
      params["wo"], params["bo"], params["g1"], params["be1"],
      params["w1"], params["b1"], params["w2"], params["b2"],
      params["g2"], params["be2"])


# ----------------------------- pure-JAX reference (ground truth for the check) -----------------------------
def encoder_layer_ref(x, p):
    q = x @ p["wq"] + p["bq"]
    k = x @ p["wk"] + p["bk"]
    v = x @ p["wv"] + p["bv"]
    q = q.reshape(B, H, S, DK)          # exact torch .view(B, H, -1, d_k) semantics
    k = k.reshape(B, H, S, DK)
    v = v.reshape(B, H, S, DK)
    scores = jnp.einsum("bhqd,bhkd->bhqk", q, k) / SCALE
    w = jax.nn.softmax(scores, axis=-1)
    ctx = jnp.einsum("bhqk,bhkd->bhqd", w, v)
    ctx = jnp.transpose(ctx, (0, 2, 1, 3)).reshape(B, S, D)
    inter = ctx @ p["wo"] + p["bo"]

    def ln(t, g, b):
        m = jnp.mean(t, axis=-1, keepdims=True)
        var = jnp.mean((t - m) ** 2, axis=-1, keepdims=True)
        return (t - m) / jnp.sqrt(var + EPS) * g + b

    h1 = ln(inter + x, p["g1"], p["be1"])
    f = h1 @ p["w1"] + p["b1"]
    f = 0.5 * f * (1.0 + jax.lax.erf(f / math.sqrt(2.0)))
    f = f @ p["w2"] + p["b2"]
    return ln(f + h1, p["g2"], p["be2"])


# ----------------------------- deterministic parameter init -----------------------------
def init_params(key):
    ks = jax.random.split(key, 12)

    def w(k, shape, fan_in):
        return (jax.random.normal(k, shape, jnp.float32) / math.sqrt(fan_in)).astype(jnp.float32)

    return {
        # attention projections, stored as (in, out) — i.e. PyTorch weight.T
        "wq": w(ks[0], (D, D), D), "bq": w(ks[1], (1, D), D),
        "wk": w(ks[2], (D, D), D), "bk": w(ks[3], (1, D), D),
        "wv": w(ks[4], (D, D), D), "bv": w(ks[5], (1, D), D),
        "wo": w(ks[6], (D, D), D), "bo": w(ks[7], (1, D), D),
        # feed-forward
        "w1": w(ks[8], (D, FF), D), "b1": w(ks[9], (1, FF), D),
        "w2": w(ks[10], (FF, D), FF), "b2": w(ks[11], (1, D), FF),
        # LayerNorm affine params (PyTorch default init: weight=1, bias=0)
        "g1": jnp.ones((1, D), jnp.float32), "be1": jnp.zeros((1, D), jnp.float32),
        "g2": jnp.ones((1, D), jnp.float32), "be2": jnp.zeros((1, D), jnp.float32),
    }


if __name__ == "__main__":
    key = jax.random.PRNGKey(0)
    k_x, k_p = jax.random.split(key)
    x = jax.random.normal(k_x, (B, S, D), jnp.float32)
    params = init_params(k_p)

    out = jax.block_until_ready(encoder_layer(x, params))
    ref = jax.block_until_ready(encoder_layer_ref(x, params))

    assert out.shape == (B, S, D)
    err = float(jnp.max(jnp.abs(out - ref)))
    assert err < 1e-3, err   # tightened from 5e-2; true f32 error is ~1e-5

    print("KERNEL_OK")
</pallas_src>

<mosaic_0001>
module attributes {stable_mosaic.version = 11 : i64} {
  func.func @encoder_kernel(%arg0: i32, %arg1: memref<1x32x128xf32, #tpu.memory_space<vmem>>, %arg2: memref<1x8x32xf32, #tpu.memory_space<vmem>>, %arg3: memref<128x8xf32, #tpu.memory_space<vmem>>, %arg4: memref<32x8xf32, #tpu.memory_space<vmem>>, %arg5: memref<128x8xf32, #tpu.memory_space<vmem>>, %arg6: memref<32x8xf32, #tpu.memory_space<vmem>>, %arg7: memref<128x8xf32, #tpu.memory_space<vmem>>, %arg8: memref<32x8xf32, #tpu.memory_space<vmem>>, %arg9: memref<32x32xf32, #tpu.memory_space<vmem>>, %arg10: memref<1x32xf32, #tpu.memory_space<vmem>>, %arg11: memref<1x32xf32, #tpu.memory_space<vmem>>, %arg12: memref<1x32xf32, #tpu.memory_space<vmem>>, %arg13: memref<32x128xf32, #tpu.memory_space<vmem>>, %arg14: memref<1x128xf32, #tpu.memory_space<vmem>>, %arg15: memref<128x32xf32, #tpu.memory_space<vmem>>, %arg16: memref<1x32xf32, #tpu.memory_space<vmem>>, %arg17: memref<1x32xf32, #tpu.memory_space<vmem>>, %arg18: memref<1x32xf32, #tpu.memory_space<vmem>>, %arg19: memref<1x8x32xf32, #tpu.memory_space<vmem>>) attributes {dimension_semantics = [#tpu.dimension_semantics<parallel>], iteration_bounds = array<i64: 2>, scalar_prefetch = 0 : i64, scratch_operands = 0 : i64, tpu.core_type = #tpu.core_type<tc>, window_params = [{transform_indices = @transform_0, window_bounds = array<i64: 1, 32, 128>}, {transform_indices = @transform_1, window_bounds = array<i64: 1, 8, 32>}, {pipeline_mode = #tpu.pipeline_mode<synchronous>, transform_indices = @transform_2, window_bounds = array<i64: 128, 8>}, {pipeline_mode = #tpu.pipeline_mode<synchronous>, transform_indices = @transform_3, window_bounds = array<i64: 32, 8>}, {pipeline_mode = #tpu.pipeline_mode<synchronous>, transform_indices = @transform_4, window_bounds = array<i64: 128, 8>}, {pipeline_mode = #tpu.pipeline_mode<synchronous>, transform_indices = @transform_5, window_bounds = array<i64: 32, 8>}, {pipeline_mode = #tpu.pipeline_mode<synchronous>, transform_indices = @transform_6, window_bounds = array<i64: 128, 8>}, {pipeline_mode = #tpu.pipeline_mode<synchronous>, transform_indices = @transform_7, window_bounds = array<i64: 32, 8>}, {pipeline_mode = #tpu.pipeline_mode<synchronous>, transform_indices = @transform_8, window_bounds = array<i64: 32, 32>}, {pipeline_mode = #tpu.pipeline_mode<synchronous>, transform_indices = @transform_9, window_bounds = array<i64: 1, 32>}, {pipeline_mode = #tpu.pipeline_mode<synchronous>, transform_indices = @transform_10, window_bounds = array<i64: 1, 32>}, {pipeline_mode = #tpu.pipeline_mode<synchronous>, transform_indices = @transform_11, window_bounds = array<i64: 1, 32>}, {pipeline_mode = #tpu.pipeline_mode<synchronous>, transform_indices = @transform_12, window_bounds = array<i64: 32, 128>}, {pipeline_mode = #tpu.pipeline_mode<synchronous>, transform_indices = @transform_13, window_bounds = array<i64: 1, 128>}, {pipeline_mode = #tpu.pipeline_mode<synchronous>, transform_indices = @transform_14, window_bounds = array<i64: 128, 32>}, {pipeline_mode = #tpu.pipeline_mode<synchronous>, transform_indices = @transform_15, window_bounds = array<i64: 1, 32>}, {pipeline_mode = #tpu.pipeline_mode<synchronous>, transform_indices = @transform_16, window_bounds = array<i64: 1, 32>}, {pipeline_mode = #tpu.pipeline_mode<synchronous>, transform_indices = @transform_17, window_bounds = array<i64: 1, 32>}, {transform_indices = @transform_18, window_bounds = array<i64: 1, 8, 32>}]} {
    %c0 = arith.constant 0 : index
    %c0_0 = arith.constant 0 : index
    %c0_1 = arith.constant 0 : index
    %0 = vector.load %arg1[%c0, %c0_0, %c0_1] : memref<1x32x128xf32, #tpu.memory_space<vmem>>, vector<1x32x128xf32>
    %1 = vector.shape_cast %0 : vector<1x32x128xf32> to vector<32x128xf32>
    %c0_2 = arith.constant 0 : index
    %c0_3 = arith.constant 0 : index
    %c0_4 = arith.constant 0 : index
    %2 = vector.load %arg2[%c0_2, %c0_3, %c0_4] : memref<1x8x32xf32, #tpu.memory_space<vmem>>, vector<1x8x32xf32>
    %3 = vector.shape_cast %2 : vector<1x8x32xf32> to vector<8x32xf32>
    %c0_5 = arith.constant 0 : index
    %c0_6 = arith.constant 0 : index
    %4 = vector.load %arg3[%c0_5, %c0_6] : memref<128x8xf32, #tpu.memory_space<vmem>>, vector<128x8xf32>
    %cst = arith.constant dense<0.000000e+00> : vector<32x8xf32>
    %5 = tpu.matmul %1, %4, %cst {dimension_numbers = #tpu.dot_dimension_numbers<[1], [0], [0], [1], [0, 0, 1, 1], [], []>, precision = #tpu.contract_precision<fp32>} : vector<32x128xf32>, vector<128x8xf32>, vector<32x8xf32> -> vector<32x8xf32>
    %c0_7 = arith.constant 0 : index
    %c0_8 = arith.constant 0 : index
    %6 = vector.load %arg4[%c0_7, %c0_8] : memref<32x8xf32, #tpu.memory_space<vmem>>, vector<32x8xf32>
    %7 = arith.addf %5, %6 : vector<32x8xf32>
    %c0_9 = arith.constant 0 : index
    %c0_10 = arith.constant 0 : index
    %8 = vector.load %arg5[%c0_9, %c0_10] : memref<128x8xf32, #tpu.memory_space<vmem>>, vector<128x8xf32>
    %cst_11 = arith.constant dense<0.000000e+00> : vector<32x8xf32>
    %9 = tpu.matmul %1, %8, %cst_11 {dimension_numbers = #tpu.dot_dimension_numbers<[1], [0], [0], [1], [0, 0, 1, 1], [], []>, precision = #tpu.contract_precision<fp32>} : vector<32x128xf32>, vector<128x8xf32>, vector<32x8xf32> -> vector<32x8xf32>
    %c0_12 = arith.constant 0 : index
    %c0_13 = arith.constant 0 : index
    %10 = vector.load %arg6[%c0_12, %c0_13] : memref<32x8xf32, #tpu.memory_space<vmem>>, vector<32x8xf32>
    %11 = arith.addf %9, %10 : vector<32x8xf32>
    %c0_14 = arith.constant 0 : index
    %c0_15 = arith.constant 0 : index
    %12 = vector.load %arg7[%c0_14, %c0_15] : memref<128x8xf32, #tpu.memory_space<vmem>>, vector<128x8xf32>
    %cst_16 = arith.constant dense<0.000000e+00> : vector<32x8xf32>
    %13 = tpu.matmul %1, %12, %cst_16 {dimension_numbers = #tpu.dot_dimension_numbers<[1], [0], [0], [1], [0, 0, 1, 1], [], []>, precision = #tpu.contract_precision<fp32>} : vector<32x128xf32>, vector<128x8xf32>, vector<32x8xf32> -> vector<32x8xf32>
    %c0_17 = arith.constant 0 : index
    %c0_18 = arith.constant 0 : index
    %14 = vector.load %arg8[%c0_17, %c0_18] : memref<32x8xf32, #tpu.memory_space<vmem>>, vector<32x8xf32>
    %15 = arith.addf %13, %14 : vector<32x8xf32>
    %cst_19 = arith.constant 0.000000e+00 : f32
    %16 = vector.broadcast %cst_19 : f32 to vector<8x32xf32>
    %17 = vector.extract_strided_slice %7 {offsets = [0, 0], sizes = [8, 8], strides = [1, 1]} : vector<32x8xf32> to vector<8x8xf32>
    %18 = vector.extract_strided_slice %11 {offsets = [0, 0], sizes = [8, 8], strides = [1, 1]} : vector<32x8xf32> to vector<8x8xf32>
    %19 = vector.extract_strided_slice %15 {offsets = [0, 0], sizes = [8, 8], strides = [1, 1]} : vector<32x8xf32> to vector<8x8xf32>
    %cst_20 = arith.constant dense<0.000000e+00> : vector<8x8xf32>
    %20 = tpu.matmul %17, %18, %cst_20 {dimension_numbers = #tpu.dot_dimension_numbers<[1], [1], [0], [0], [0, 0, 1, 0], [], []>, precision = #tpu.contract_precision<fp32>} : vector<8x8xf32>, vector<8x8xf32>, vector<8x8xf32> -> vector<8x8xf32>
    %cst_21 = arith.constant dense<0xFF800000> : vector<8xf32>
    %21 = vector.multi_reduction <maximumf>, %20, %cst_21 [1] : vector<8x8xf32> to vector<8xf32>
    %22 = vector.shape_cast %21 : vector<8xf32> to vector<8x1xf32>
    %23 = vector.broadcast %22 : vector<8x1xf32> to vector<8x8xf32>
    %24 = arith.subf %20, %23 : vector<8x8xf32>
    %25 = math.exp %24 : vector<8x8xf32>
    %cst_22 = arith.constant dense<0.000000e+00> : vector<8xf32>
    %26 = vector.multi_reduction <add>, %25, %cst_22 [1] : vector<8x8xf32> to vector<8xf32>
    %27 = vector.shape_cast %26 : vector<8xf32> to vector<8x1xf32>
    %28 = tpu.reciprocal %27 : vector<8x1xf32> -> vector<8x1xf32>
    %29 = vector.broadcast %28 : vector<8x1xf32> to vector<8x8xf32>
    %30 = arith.mulf %25, %29 : vector<8x8xf32>
    %cst_23 = arith.constant dense<0.000000e+00> : vector<8x8xf32>
    %31 = tpu.matmul %30, %19, %cst_23 {dimension_numbers = #tpu.dot_dimension_numbers<[1], [0], [0], [1], [0, 0, 1, 1], [], []>, precision = #tpu.contract_precision<fp32>} : vector<8x8xf32>, vector<8x8xf32>, vector<8x8xf32> -> vector<8x8xf32>
    %c0_24 = arith.constant 0 : index
    %c0_25 = arith.constant 0 : index
    %32 = vector.load %arg9[%c0_24, %c0_25] : memref<32x32xf32, #tpu.memory_space<vmem>>, vector<8x32xf32>
    %cst_26 = arith.constant dense<0.000000e+00> : vector<8x32xf32>
    %33 = tpu.matmul %31, %32, %cst_26 {dimension_numbers = #tpu.dot_dimension_numbers<[1], [0], [0], [1], [0, 0, 1, 1], [], []>, precision = #tpu.contract_precision<fp32>} : vector<8x8xf32>, vector<8x32xf32>, vector<8x32xf32> -> vector<8x32xf32>
    %34 = arith.addf %16, %33 : vector<8x32xf32>
    %35 = vector.extract_strided_slice %7 {offsets = [8, 0], sizes = [8, 8], strides = [1, 1]} : vector<32x8xf32> to vector<8x8xf32>
    %36 = vector.extract_strided_slice %11 {offsets = [8, 0], sizes = [8, 8], strides = [1, 1]} : vector<32x8xf32> to vector<8x8xf32>
    %37 = vector.extract_strided_slice %15 {offsets = [8, 0], sizes = [8, 8], strides = [1, 1]} : vector<32x8xf32> to vector<8x8xf32>
    %cst_27 = arith.constant dense<0.000000e+00> : vector<8x8xf32>
    %38 = tpu.matmul %35, %36, %cst_27 {dimension_numbers = #tpu.dot_dimension_numbers<[1], [1], [0], [0], [0, 0, 1, 0], [], []>, precision = #tpu.contract_precision<fp32>} : vector<8x8xf32>, vector<8x8xf32>, vector<8x8xf32> -> vector<8x8xf32>
    %cst_28 = arith.constant dense<0xFF800000> : vector<8xf32>
    %39 = vector.multi_reduction <maximumf>, %38, %cst_28 [1] : vector<8x8xf32> to vector<8xf32>
    %40 = vector.shape_cast %39 : vector<8xf32> to vector<8x1xf32>
    %41 = vector.broadcast %40 : vector<8x1xf32> to vector<8x8xf32>
    %42 = arith.subf %38, %41 : vector<8x8xf32>
    %43 = math.exp %42 : vector<8x8xf32>
    %cst_29 = arith.constant dense<0.000000e+00> : vector<8xf32>
    %44 = vector.multi_reduction <add>, %43, %cst_29 [1] : vector<8x8xf32> to vector<8xf32>
    %45 = vector.shape_cast %44 : vector<8xf32> to vector<8x1xf32>
    %46 = tpu.reciprocal %45 : vector<8x1xf32> -> vector<8x1xf32>
    %47 = vector.broadcast %46 : vector<8x1xf32> to vector<8x8xf32>
    %48 = arith.mulf %43, %47 : vector<8x8xf32>
    %cst_30 = arith.constant dense<0.000000e+00> : vector<8x8xf32>
    %49 = tpu.matmul %48, %37, %cst_30 {dimension_numbers = #tpu.dot_dimension_numbers<[1], [0], [0], [1], [0, 0, 1, 1], [], []>, precision = #tpu.contract_precision<fp32>} : vector<8x8xf32>, vector<8x8xf32>, vector<8x8xf32> -> vector<8x8xf32>
    %c8 = arith.constant 8 : index
    %c0_31 = arith.constant 0 : index
    %50 = vector.load %arg9[%c8, %c0_31] : memref<32x32xf32, #tpu.memory_space<vmem>>, vector<8x32xf32>
    %cst_32 = arith.constant dense<0.000000e+00> : vector<8x32xf32>
    %51 = tpu.matmul %49, %50, %cst_32 {dimension_numbers = #tpu.dot_dimension_numbers<[1], [0], [0], [1], [0, 0, 1, 1], [], []>, precision = #tpu.contract_precision<fp32>} : vector<8x8xf32>, vector<8x32xf32>, vector<8x32xf32> -> vector<8x32xf32>
    %52 = arith.addf %34, %51 : vector<8x32xf32>
    %53 = vector.extract_strided_slice %7 {offsets = [16, 0], sizes = [8, 8], strides = [1, 1]} : vector<32x8xf32> to vector<8x8xf32>
    %54 = vector.extract_strided_slice %11 {offsets = [16, 0], sizes = [8, 8], strides = [1, 1]} : vector<32x8xf32> to vector<8x8xf32>
    %55 = vector.extract_strided_slice %15 {offsets = [16, 0], sizes = [8, 8], strides = [1, 1]} : vector<32x8xf32> to vector<8x8xf32>
    %cst_33 = arith.constant dense<0.000000e+00> : vector<8x8xf32>
    %56 = tpu.matmul %53, %54, %cst_33 {dimension_numbers = #tpu.dot_dimension_numbers<[1], [1], [0], [0], [0, 0, 1, 0], [], []>, precision = #tpu.contract_precision<fp32>} : vector<8x8xf32>, vector<8x8xf32>, vector<8x8xf32> -> vector<8x8xf32>
    %cst_34 = arith.constant dense<0xFF800000> : vector<8xf32>
    %57 = vector.multi_reduction <maximumf>, %56, %cst_34 [1] : vector<8x8xf32> to vector<8xf32>
    %58 = vector.shape_cast %57 : vector<8xf32> to vector<8x1xf32>
    %59 = vector.broadcast %58 : vector<8x1xf32> to vector<8x8xf32>
    %60 = arith.subf %56, %59 : vector<8x8xf32>
    %61 = math.exp %60 : vector<8x8xf32>
    %cst_35 = arith.constant dense<0.000000e+00> : vector<8xf32>
    %62 = vector.multi_reduction <add>, %61, %cst_35 [1] : vector<8x8xf32> to vector<8xf32>
    %63 = vector.shape_cast %62 : vector<8xf32> to vector<8x1xf32>
    %64 = tpu.reciprocal %63 : vector<8x1xf32> -> vector<8x1xf32>
    %65 = vector.broadcast %64 : vector<8x1xf32> to vector<8x8xf32>
    %66 = arith.mulf %61, %65 : vector<8x8xf32>
    %cst_36 = arith.constant dense<0.000000e+00> : vector<8x8xf32>
    %67 = tpu.matmul %66, %55, %cst_36 {dimension_numbers = #tpu.dot_dimension_numbers<[1], [0], [0], [1], [0, 0, 1, 1], [], []>, precision = #tpu.contract_precision<fp32>} : vector<8x8xf32>, vector<8x8xf32>, vector<8x8xf32> -> vector<8x8xf32>
    %c16 = arith.constant 16 : index
    %c0_37 = arith.constant 0 : index
    %68 = vector.load %arg9[%c16, %c0_37] : memref<32x32xf32, #tpu.memory_space<vmem>>, vector<8x32xf32>
    %cst_38 = arith.constant dense<0.000000e+00> : vector<8x32xf32>
    %69 = tpu.matmul %67, %68, %cst_38 {dimension_numbers = #tpu.dot_dimension_numbers<[1], [0], [0], [1], [0, 0, 1, 1], [], []>, precision = #tpu.contract_precision<fp32>} : vector<8x8xf32>, vector<8x32xf32>, vector<8x32xf32> -> vector<8x32xf32>
    %70 = arith.addf %52, %69 : vector<8x32xf32>
    %71 = vector.extract_strided_slice %7 {offsets = [24, 0], sizes = [8, 8], strides = [1, 1]} : vector<32x8xf32> to vector<8x8xf32>
    %72 = vector.extract_strided_slice %11 {offsets = [24, 0], sizes = [8, 8], strides = [1, 1]} : vector<32x8xf32> to vector<8x8xf32>
    %73 = vector.extract_strided_slice %15 {offsets = [24, 0], sizes = [8, 8], strides = [1, 1]} : vector<32x8xf32> to vector<8x8xf32>
    %cst_39 = arith.constant dense<0.000000e+00> : vector<8x8xf32>
    %74 = tpu.matmul %71, %72, %cst_39 {dimension_numbers = #tpu.dot_dimension_numbers<[1], [1], [0], [0], [0, 0, 1, 0], [], []>, precision = #tpu.contract_precision<fp32>} : vector<8x8xf32>, vector<8x8xf32>, vector<8x8xf32> -> vector<8x8xf32>
    %cst_40 = arith.constant dense<0xFF800000> : vector<8xf32>
    %75 = vector.multi_reduction <maximumf>, %74, %cst_40 [1] : vector<8x8xf32> to vector<8xf32>
    %76 = vector.shape_cast %75 : vector<8xf32> to vector<8x1xf32>
    %77 = vector.broadcast %76 : vector<8x1xf32> to vector<8x8xf32>
    %78 = arith.subf %74, %77 : vector<8x8xf32>
    %79 = math.exp %78 : vector<8x8xf32>
    %cst_41 = arith.constant dense<0.000000e+00> : vector<8xf32>
    %80 = vector.multi_reduction <add>, %79, %cst_41 [1] : vector<8x8xf32> to vector<8xf32>
    %81 = vector.shape_cast %80 : vector<8xf32> to vector<8x1xf32>
    %82 = tpu.reciprocal %81 : vector<8x1xf32> -> vector<8x1xf32>
    %83 = vector.broadcast %82 : vector<8x1xf32> to vector<8x8xf32>
    %84 = arith.mulf %79, %83 : vector<8x8xf32>
    %cst_42 = arith.constant dense<0.000000e+00> : vector<8x8xf32>
    %85 = tpu.matmul %84, %73, %cst_42 {dimension_numbers = #tpu.dot_dimension_numbers<[1], [0], [0], [1], [0, 0, 1, 1], [], []>, precision = #tpu.contract_precision<fp32>} : vector<8x8xf32>, vector<8x8xf32>, vector<8x8xf32> -> vector<8x8xf32>
    %c24 = arith.constant 24 : index
    %c0_43 = arith.constant 0 : index
    %86 = vector.load %arg9[%c24, %c0_43] : memref<32x32xf32, #tpu.memory_space<vmem>>, vector<8x32xf32>
    %cst_44 = arith.constant dense<0.000000e+00> : vector<8x32xf32>
    %87 = tpu.matmul %85, %86, %cst_44 {dimension_numbers = #tpu.dot_dimension_numbers<[1], [0], [0], [1], [0, 0, 1, 1], [], []>, precision = #tpu.contract_precision<fp32>} : vector<8x8xf32>, vector<8x32xf32>, vector<8x32xf32> -> vector<8x32xf32>
    %88 = arith.addf %70, %87 : vector<8x32xf32>
    %c0_45 = arith.constant 0 : index
    %c0_46 = arith.constant 0 : index
    %89 = vector.load %arg10[%c0_45, %c0_46] : memref<1x32xf32, #tpu.memory_space<vmem>>, vector<1x32xf32>
    %90 = vector.broadcast %89 : vector<1x32xf32> to vector<8x32xf32>
    %91 = arith.addf %88, %90 : vector<8x32xf32>
    %92 = arith.addf %91, %3 : vector<8x32xf32>
    %c0_47 = arith.constant 0 : index
    %c0_48 = arith.constant 0 : index
    %93 = vector.load %arg11[%c0_47, %c0_48] : memref<1x32xf32, #tpu.memory_space<vmem>>, vector<1x32xf32>
    %c0_49 = arith.constant 0 : index
    %c0_50 = arith.constant 0 : index
    %94 = vector.load %arg12[%c0_49, %c0_50] : memref<1x32xf32, #tpu.memory_space<vmem>>, vector<1x32xf32>
    %cst_51 = arith.constant dense<0.000000e+00> : vector<8xf32>
    %95 = vector.multi_reduction <add>, %92, %cst_51 [1] : vector<8x32xf32> to vector<8xf32>
    %96 = vector.shape_cast %95 : vector<8xf32> to vector<8x1xf32>
    %cst_52 = arith.constant 3.200000e+01 : f32
    %97 = vector.broadcast %cst_52 : f32 to vector<8x1xf32>
    %98 = arith.divf %96, %97 : vector<8x1xf32>
    %99 = vector.broadcast %98 : vector<8x1xf32> to vector<8x32xf32>
    %100 = arith.subf %92, %99 : vector<8x32xf32>
    %101 = arith.mulf %100, %100 : vector<8x32xf32>
    %cst_53 = arith.constant dense<0.000000e+00> : vector<8xf32>
    %102 = vector.multi_reduction <add>, %101, %cst_53 [1] : vector<8x32xf32> to vector<8xf32>
    %103 = vector.shape_cast %102 : vector<8xf32> to vector<8x1xf32>
    %cst_54 = arith.constant 3.200000e+01 : f32
    %104 = vector.broadcast %cst_54 : f32 to vector<8x1xf32>
    %105 = arith.divf %103, %104 : vector<8x1xf32>
    %106 = vector.broadcast %98 : vector<8x1xf32> to vector<8x32xf32>
    %107 = arith.subf %92, %106 : vector<8x32xf32>
    %cst_55 = arith.constant 9.99999974E-6 : f32
    %108 = vector.broadcast %cst_55 : f32 to vector<8x1xf32>
    %109 = arith.addf %105, %108 : vector<8x1xf32>
    %110 = math.rsqrt %109 : vector<8x1xf32>
    %111 = vector.broadcast %110 : vector<8x1xf32> to vector<8x32xf32>
    %112 = arith.mulf %107, %111 : vector<8x32xf32>
    %113 = vector.broadcast %93 : vector<1x32xf32> to vector<8x32xf32>
    %114 = arith.mulf %112, %113 : vector<8x32xf32>
    %115 = vector.broadcast %94 : vector<1x32xf32> to vector<8x32xf32>
    %116 = arith.addf %114, %115 : vector<8x32xf32>
    %c0_56 = arith.constant 0 : index
    %c0_57 = arith.constant 0 : index
    %117 = vector.load %arg13[%c0_56, %c0_57] : memref<32x128xf32, #tpu.memory_space<vmem>>, vector<32x128xf32>
    %cst_58 = arith.constant dense<0.000000e+00> : vector<8x128xf32>
    %118 = tpu.matmul %116, %117, %cst_58 {dimension_numbers = #tpu.dot_dimension_numbers<[1], [0], [0], [1], [0, 0, 1, 1], [], []>, precision = #tpu.contract_precision<fp32>} : vector<8x32xf32>, vector<32x128xf32>, vector<8x128xf32> -> vector<8x128xf32>
    %c0_59 = arith.constant 0 : index
    %c0_60 = arith.constant 0 : index
    %119 = vector.load %arg14[%c0_59, %c0_60] : memref<1x128xf32, #tpu.memory_space<vmem>>, vector<1x128xf32>
    %120 = vector.broadcast %119 : vector<1x128xf32> to vector<8x128xf32>
    %121 = arith.addf %118, %120 : vector<8x128xf32>
    %cst_61 = arith.constant 5.000000e-01 : f32
    %122 = vector.broadcast %cst_61 : f32 to vector<8x128xf32>
    %123 = arith.mulf %122, %121 : vector<8x128xf32>
    %cst_62 = arith.constant 0.707106769 : f32
    %124 = vector.broadcast %cst_62 : f32 to vector<8x128xf32>
    %125 = arith.mulf %121, %124 : vector<8x128xf32>
    %126 = math.erf %125 : vector<8x128xf32>
    %cst_63 = arith.constant 1.000000e+00 : f32
    %127 = vector.broadcast %cst_63 : f32 to vector<8x128xf32>
    %128 = arith.addf %127, %126 : vector<8x128xf32>
    %129 = arith.mulf %123, %128 : vector<8x128xf32>
    %c0_64 = arith.constant 0 : index
    %c0_65 = arith.constant 0 : index
    %130 = vector.load %arg15[%c0_64, %c0_65] : memref<128x32xf32, #tpu.memory_space<vmem>>, vector<128x32xf32>
    %cst_66 = arith.constant dense<0.000000e+00> : vector<8x32xf32>
    %131 = tpu.matmul %129, %130, %cst_66 {dimension_numbers = #tpu.dot_dimension_numbers<[1], [0], [0], [1], [0, 0, 1, 1], [], []>, precision = #tpu.contract_precision<fp32>} : vector<8x128xf32>, vector<128x32xf32>, vector<8x32xf32> -> vector<8x32xf32>
    %c0_67 = arith.constant 0 : index
    %c0_68 = arith.constant 0 : index
    %132 = vector.load %arg16[%c0_67, %c0_68] : memref<1x32xf32, #tpu.memory_space<vmem>>, vector<1x32xf32>
    %133 = vector.broadcast %132 : vector<1x32xf32> to vector<8x32xf32>
    %134 = arith.addf %131, %133 : vector<8x32xf32>
    %135 = arith.addf %134, %116 : vector<8x32xf32>
    %c0_69 = arith.constant 0 : index
    %c0_70 = arith.constant 0 : index
    %136 = vector.load %arg17[%c0_69, %c0_70] : memref<1x32xf32, #tpu.memory_space<vmem>>, vector<1x32xf32>
    %c0_71 = arith.constant 0 : index
    %c0_72 = arith.constant 0 : index
    %137 = vector.load %arg18[%c0_71, %c0_72] : memref<1x32xf32, #tpu.memory_space<vmem>>, vector<1x32xf32>
    %cst_73 = arith.constant dense<0.000000e+00> : vector<8xf32>
    %138 = vector.multi_reduction <add>, %135, %cst_73 [1] : vector<8x32xf32> to vector<8xf32>
    %139 = vector.shape_cast %138 : vector<8xf32> to vector<8x1xf32>
    %cst_74 = arith.constant 3.200000e+01 : f32
    %140 = vector.broadcast %cst_74 : f32 to vector<8x1xf32>
    %141 = arith.divf %139, %140 : vector<8x1xf32>
    %142 = vector.broadcast %141 : vector<8x1xf32> to vector<8x32xf32>
    %143 = arith.subf %135, %142 : vector<8x32xf32>
    %144 = arith.mulf %143, %143 : vector<8x32xf32>
    %cst_75 = arith.constant dense<0.000000e+00> : vector<8xf32>
    %145 = vector.multi_reduction <add>, %144, %cst_75 [1] : vector<8x32xf32> to vector<8xf32>
    %146 = vector.shape_cast %145 : vector<8xf32> to vector<8x1xf32>
    %cst_76 = arith.constant 3.200000e+01 : f32
    %147 = vector.broadcast %cst_76 : f32 to vector<8x1xf32>
    %148 = arith.divf %146, %147 : vector<8x1xf32>
    %149 = vector.broadcast %141 : vector<8x1xf32> to vector<8x32xf32>
    %150 = arith.subf %135, %149 : vector<8x32xf32>
    %cst_77 = arith.constant 9.99999974E-6 : f32
    %151 = vector.broadcast %cst_77 : f32 to vector<8x1xf32>
    %152 = arith.addf %148, %151 : vector<8x1xf32>
    %153 = math.rsqrt %152 : vector<8x1xf32>
    %154 = vector.broadcast %153 : vector<8x1xf32> to vector<8x32xf32>
    %155 = arith.mulf %150, %154 : vector<8x32xf32>
    %156 = vector.broadcast %136 : vector<1x32xf32> to vector<8x32xf32>
    %157 = arith.mulf %155, %156 : vector<8x32xf32>
    %158 = vector.broadcast %137 : vector<1x32xf32> to vector<8x32xf32>
    %159 = arith.addf %157, %158 : vector<8x32xf32>
    %c0_78 = arith.constant 0 : index
    %c0_79 = arith.constant 0 : index
    %c0_80 = arith.constant 0 : index
    %160 = vector.load %arg19[%c0_78, %c0_79, %c0_80] : memref<1x8x32xf32, #tpu.memory_space<vmem>>, vector<1x8x32xf32>
    %161 = vector.shape_cast %160 : vector<1x8x32xf32> to vector<8x32xf32>
    %162 = vector.shape_cast %159 : vector<8x32xf32> to vector<1x8x32xf32>
    tpu.vector_store %arg19[%c0_78, %c0_79, %c0_80], %162 {strides = array<i32>} : memref<1x8x32xf32, #tpu.memory_space<vmem>>, vector<1x8x32xf32>,
    return
  }
  func.func @transform_0(%arg0: i32) -> (i32, i32, i32) {
    %c0_i32 = arith.constant 0 : i32
    %c0_i32_0 = arith.constant 0 : i32
    %c0_i32_1 = arith.constant 0 : i32
    return %arg0, %c0_i32, %c0_i32_0 : i32, i32, i32
  }
  func.func @transform_1(%arg0: i32) -> (i32, i32, i32) {
    %c0_i32 = arith.constant 0 : i32
    %c0_i32_0 = arith.constant 0 : i32
    %c0_i32_1 = arith.constant 0 : i32
    return %arg0, %c0_i32, %c0_i32_0 : i32, i32, i32
  }
  func.func @transform_2(%arg0: i32) -> (i32, i32) {
    %c0_i32 = arith.constant 0 : i32
    %c0_i32_0 = arith.constant 0 : i32
    %c0_i32_1 = arith.constant 0 : i32
    return %c0_i32, %c0_i32_0 : i32, i32
  }
  func.func @transform_3(%arg0: i32) -> (i32, i32) {
    %c0_i32 = arith.constant 0 : i32
    %c0_i32_0 = arith.constant 0 : i32
    %c0_i32_1 = arith.constant 0 : i32
    return %c0_i32, %c0_i32_0 : i32, i32
  }
  func.func @transform_4(%arg0: i32) -> (i32, i32) {
    %c0_i32 = arith.constant 0 : i32
    %c0_i32_0 = arith.constant 0 : i32
    %c0_i32_1 = arith.constant 0 : i32
    return %c0_i32, %c0_i32_0 : i32, i32
  }
  func.func @transform_5(%arg0: i32) -> (i32, i32) {
    %c0_i32 = arith.constant 0 : i32
    %c0_i32_0 = arith.constant 0 : i32
    %c0_i32_1 = arith.constant 0 : i32
    return %c0_i32, %c0_i32_0 : i32, i32
  }
  func.func @transform_6(%arg0: i32) -> (i32, i32) {
    %c0_i32 = arith.constant 0 : i32
    %c0_i32_0 = arith.constant 0 : i32
    %c0_i32_1 = arith.constant 0 : i32
    return %c0_i32, %c0_i32_0 : i32, i32
  }
  func.func @transform_7(%arg0: i32) -> (i32, i32) {
    %c0_i32 = arith.constant 0 : i32
    %c0_i32_0 = arith.constant 0 : i32
    %c0_i32_1 = arith.constant 0 : i32
    return %c0_i32, %c0_i32_0 : i32, i32
  }
  func.func @transform_8(%arg0: i32) -> (i32, i32) {
    %c0_i32 = arith.constant 0 : i32
    %c0_i32_0 = arith.constant 0 : i32
    %c0_i32_1 = arith.constant 0 : i32
    return %c0_i32, %c0_i32_0 : i32, i32
  }
  func.func @transform_9(%arg0: i32) -> (i32, i32) {
    %c0_i32 = arith.constant 0 : i32
    %c0_i32_0 = arith.constant 0 : i32
    %c0_i32_1 = arith.constant 0 : i32
    return %c0_i32, %c0_i32_0 : i32, i32
  }
  func.func @transform_10(%arg0: i32) -> (i32, i32) {
    %c0_i32 = arith.constant 0 : i32
    %c0_i32_0 = arith.constant 0 : i32
    %c0_i32_1 = arith.constant 0 : i32
    return %c0_i32, %c0_i32_0 : i32, i32
  }
  func.func @transform_11(%arg0: i32) -> (i32, i32) {
    %c0_i32 = arith.constant 0 : i32
    %c0_i32_0 = arith.constant 0 : i32
    %c0_i32_1 = arith.constant 0 : i32
    return %c0_i32, %c0_i32_0 : i32, i32
  }
  func.func @transform_12(%arg0: i32) -> (i32, i32) {
    %c0_i32 = arith.constant 0 : i32
    %c0_i32_0 = arith.constant 0 : i32
    %c0_i32_1 = arith.constant 0 : i32
    return %c0_i32, %c0_i32_0 : i32, i32
  }
  func.func @transform_13(%arg0: i32) -> (i32, i32) {
    %c0_i32 = arith.constant 0 : i32
    %c0_i32_0 = arith.constant 0 : i32
    %c0_i32_1 = arith.constant 0 : i32
    return %c0_i32, %c0_i32_0 : i32, i32
  }
  func.func @transform_14(%arg0: i32) -> (i32, i32) {
    %c0_i32 = arith.constant 0 : i32
    %c0_i32_0 = arith.constant 0 : i32
    %c0_i32_1 = arith.constant 0 : i32
    return %c0_i32, %c0_i32_0 : i32, i32
  }
  func.func @transform_15(%arg0: i32) -> (i32, i32) {
    %c0_i32 = arith.constant 0 : i32
    %c0_i32_0 = arith.constant 0 : i32
    %c0_i32_1 = arith.constant 0 : i32
    return %c0_i32, %c0_i32_0 : i32, i32
  }
  func.func @transform_16(%arg0: i32) -> (i32, i32) {
    %c0_i32 = arith.constant 0 : i32
    %c0_i32_0 = arith.constant 0 : i32
    %c0_i32_1 = arith.constant 0 : i32
    return %c0_i32, %c0_i32_0 : i32, i32
  }
  func.func @transform_17(%arg0: i32) -> (i32, i32) {
    %c0_i32 = arith.constant 0 : i32
    %c0_i32_0 = arith.constant 0 : i32
    %c0_i32_1 = arith.constant 0 : i32
    return %c0_i32, %c0_i32_0 : i32, i32
  }
  func.func @transform_18(%arg0: i32) -> (i32, i32, i32) {
    %c0_i32 = arith.constant 0 : i32
    %c0_i32_0 = arith.constant 0 : i32
    %c0_i32_1 = arith.constant 0 : i32
    return %arg0, %c0_i32, %c0_i32_0 : i32, i32, i32
  }
}

</mosaic_0001>

<llo_original>
// kernel: encoder_layer.1
$region0: #{encoder_layer.1}
  #allocation0 [shape = 'u32[]', space=smem, size = 0x4, offset = 0x4, fixed_abs, tag = 'smem constant byte address 0x4 - core index']
  #allocation1 [shape = 'u32[144,128]{1,0:T(1,128)}', space=vmem, size = 0x12000, scoped, tag = 'internal scratch']
  %s0 = inlined_call_operand.vmem [shape: f32[2,32,128], index: 0, kind: input, shape index: {}]
  %s1 = inlined_call_operand.vmem [shape: f32[2,8,32], index: 1, kind: input, shape index: {}]
  %s2 = inlined_call_operand.vmem [shape: f32[128,8], index: 2, kind: input, shape index: {}]
  %s3 = inlined_call_operand.vmem [shape: f32[32,8], index: 3, kind: input, shape index: {}]
  %s4 = inlined_call_operand.vmem [shape: f32[128,8], index: 4, kind: input, shape index: {}]
  %s5 = inlined_call_operand.vmem [shape: f32[32,8], index: 5, kind: input, shape index: {}]
  %s6 = inlined_call_operand.vmem [shape: f32[128,8], index: 6, kind: input, shape index: {}]
  %s7 = inlined_call_operand.vmem [shape: f32[32,8], index: 7, kind: input, shape index: {}]
  %s8 = inlined_call_operand.vmem [shape: f32[32,32], index: 8, kind: input, shape index: {}]
  %s9 = inlined_call_operand.vmem [shape: f32[1,32], index: 9, kind: input, shape index: {}]
  %s10 = inlined_call_operand.vmem [shape: f32[1,32], index: 10, kind: input, shape index: {}]
  %s11 = inlined_call_operand.vmem [shape: f32[1,32], index: 11, kind: input, shape index: {}]
  %s12 = inlined_call_operand.vmem [shape: f32[32,128], index: 12, kind: input, shape index: {}]
  %s13 = inlined_call_operand.vmem [shape: f32[1,128], index: 13, kind: input, shape index: {}]
  %s14 = inlined_call_operand.vmem [shape: f32[128,32], index: 14, kind: input, shape index: {}]
  %s15 = inlined_call_operand.vmem [shape: f32[1,32], index: 15, kind: input, shape index: {}]
  %s16 = inlined_call_operand.vmem [shape: f32[1,32], index: 16, kind: input, shape index: {}]
  %s17 = inlined_call_operand.vmem [shape: f32[1,32], index: 17, kind: input, shape index: {}]
  %s18 = inlined_call_operand.hbm [shape: f32[2,8,32], index: 18, kind: output, shape index: {}]
  %s19 = sld [smem:[#allocation0]]
  $region105: #{encoder_layer.1} parent=0
    _
  %s21 = ssub.s32 1, %s19
  %s22 = scalar_select 0, %s21, %s19
  $region1: #{encoder_layer.1} parent=0
    #allocation2 [shape = 'u8[8192]{0}', space=vmem, size = 0x2000, scoped, tag = 'output window, operand 0']
    #allocation3 [shape = 's32[2]{0}', space=sflag, size = 0x8, scoped, tag = 'scoped memory for encoder_layer.1']
    %23 = vsyncpa [#allocation3], 0
    %s24 = scalar_lea.sflag [#allocation3], 1
    %25 = vsyncpa %s24, 0
    loop: start=0, step=1, limit=4
    $region2: #{encoder_layer.1} parent=1 // loop_pre_header
      _
    $region3: #{encoder_layer.1} parent=1 // loop_header
      %s27 = sphi 0, %s31
      %p28 = scmp.ge.s32.totalorder %s27, 4
      %s37 = sphi 0, %s39
      %s40 = sphi 0, %s37
      %s41 = sphi 0, %s40
      %s57 = sphi 0, %s41
      %s63 = sphi 0, %s65
      %s66 = sphi 0, %s63
      %s67 = sphi 0, %s66
      %s83 = sphi 0, %s67
      %s87 = sphi 0, %s87
      %s89 = sphi 0, %s87
      %s90 = sphi 0, %s89
      %s104 = sphi 0, %s90
      %s108 = sphi 0, %s108
      %s110 = sphi 0, %s108
      %s111 = sphi 0, %s110
      %s125 = sphi 0, %s111
      %s129 = sphi 0, %s129
      %s131 = sphi 0, %s129
      %s132 = sphi 0, %s131
      %s146 = sphi 0, %s132
      %s150 = sphi 0, %s150
      %s152 = sphi 0, %s150
      %s153 = sphi 0, %s152
      %s167 = sphi 0, %s153
      %s171 = sphi 0, %s171
      %s173 = sphi 0, %s171
      %s174 = sphi 0, %s173
      %s188 = sphi 0, %s174
      %s192 = sphi 0, %s192
      %s194 = sphi 0, %s192
      %s195 = sphi 0, %s194
      %s209 = sphi 0, %s195
      %s213 = sphi 0, %s213
      %s215 = sphi 0, %s213
      %s216 = sphi 0, %s215
      %s230 = sphi 0, %s216
      %s234 = sphi 0, %s234
      %s236 = sphi 0, %s234
      %s237 = sphi 0, %s236
      %s251 = sphi 0, %s237
      %s255 = sphi 0, %s255
      %s257 = sphi 0, %s255
      %s258 = sphi 0, %s257
      %s272 = sphi 0, %s258
      %s276 = sphi 0, %s276
      %s278 = sphi 0, %s276
      %s279 = sphi 0, %s278
      %s293 = sphi 0, %s279
      %s297 = sphi 0, %s297
      %s299 = sphi 0, %s297
      %s300 = sphi 0, %s299
      %s314 = sphi 0, %s300
      %s318 = sphi 0, %s318
      %s320 = sphi 0, %s318
      %s321 = sphi 0, %s320
      %s335 = sphi 0, %s321
      %s339 = sphi 0, %s339
      %s341 = sphi 0, %s339
      %s342 = sphi 0, %s341
      %s356 = sphi 0, %s342
      %s360 = sphi 0, %s360
      %s362 = sphi 0, %s360
      %s363 = sphi 0, %s362
      %s377 = sphi 0, %s363
      %s381 = sphi 0, %s381
      %s383 = sphi 0, %s381
      %s384 = sphi 0, %s383
      %s398 = sphi 0, %s384
      %s402 = sphi 0, %s402
      %s404 = sphi 0, %s402
      %s405 = sphi 0, %s404
      %s419 = sphi 0, %s405
      %s425 = sphi 0, %s427
      %s428 = sphi 0, %s425
      %s429 = sphi 0, %s428
      %s445 = sphi 0, %s429
    $region4: #{encoder_layer.1} parent=1 // loop_header_branch
      %30 = sbr.rel (%p28) target = $region8
    $region5: #{encoder_layer.1} parent=1 // loop_body
      %s32 = ssub.s32 %s27, 1
      %s33 = ssub.s32 %s27, 2
      %s34 = sadd.s32 %s27, 1
      %s35 = ssub.s32 %s27, %s34
      %p36 = scmp.eq.s32.totalorder %s35, 0
      %s38 = sadd.s32 %s37, 1
      %s39 = scalar_select %p36, %s37, %s38
      %p42 = pneg %p36
      %p43 = scmp.eq.s32.totalorder %s27, 1
      %p44 = por %p42, %p43
      %p45 = scmp.ne.s32.totalorder %s37, %s40
      %p46 = scmp.eq.s32.totalorder %s27, 0
      %p47 = por %p45, %p46
      %p48 = scmp.ne.s32.totalorder %s37, %s40
      %p49 = scmp.eq.s32.totalorder %s32, 1
      %p50 = por %p48, %p49
      %p51 = scmp.ne.s32.totalorder %s40, %s41
      %p52 = scmp.eq.s32.totalorder %s32, 0
      %p53 = por %p51, %p52
      %p54 = scmp.ne.s32.totalorder %s40, %s41
      %p55 = scmp.eq.s32.totalorder %s33, 1
      %p56 = por %p54, %p55
      %p58 = scmp.ne.s32.totalorder %s41, %s57
      %p59 = scmp.eq.s32.totalorder %s33, 0
      %p60 = por %p58, %p59
      %s61 = ssub.s32 %s27, %s34
      %p62 = scmp.eq.s32.totalorder %s61, 0
      %s64 = sadd.s32 %s63, 1
      %s65 = scalar_select %p62, %s63, %s64
      %p68 = pneg %p62
      %p69 = scmp.eq.s32.totalorder %s27, 1
      %p70 = por %p68, %p69
      %p71 = scmp.ne.s32.totalorder %s63, %s66
      %p72 = scmp.eq.s32.totalorder %s27, 0
      %p73 = por %p71, %p72
      %p74 = scmp.ne.s32.totalorder %s63, %s66
      %p75 = scmp.eq.s32.totalorder %s32, 1
      %p76 = por %p74, %p75
      %p77 = scmp.ne.s32.totalorder %s66, %s67
      %p78 = scmp.eq.s32.totalorder %s32, 0
      %p79 = por %p77, %p78
      %p80 = scmp.ne.s32.totalorder %s66, %s67
      %p81 = scmp.eq.s32.totalorder %s33, 1
      %p82 = por %p80, %p81
      %p84 = scmp.ne.s32.totalorder %s67, %s83
      %p85 = scmp.eq.s32.totalorder %s33, 0
      %p86 = por %p84, %p85
      %s88 = sadd.s32 %s87, 1
      %p91 = scmp.eq.s32.totalorder %s27, 1
      %p92 = scmp.ne.s32.totalorder %s87, %s89
      %p93 = scmp.eq.s32.totalorder %s27, 0
      %p94 = por %p92, %p93
      %p95 = scmp.ne.s32.totalorder %s87, %s89
      %p96 = scmp.eq.s32.totalorder %s32, 1
      %p97 = por %p95, %p96
      %p98 = scmp.ne.s32.totalorder %s89, %s90
      %p99 = scmp.eq.s32.totalorder %s32, 0
      %p100 = por %p98, %p99
      %p101 = scmp.ne.s32.totalorder %s89, %s90
      %p102 = scmp.eq.s32.totalorder %s33, 1
      %p103 = por %p101, %p102
      %p105 = scmp.ne.s32.totalorder %s90, %s104
      %p106 = scmp.eq.s32.totalorder %s33, 0
      %p107 = por %p105, %p106
      %s109 = sadd.s32 %s108, 1
      %p112 = scmp.eq.s32.totalorder %s27, 1
      %p113 = scmp.ne.s32.totalorder %s108, %s110
      %p114 = scmp.eq.s32.totalorder %s27, 0
      %p115 = por %p113, %p114
      %p116 = scmp.ne.s32.totalorder %s108, %s110
      %p117 = scmp.eq.s32.totalorder %s32, 1
      %p118 = por %p116, %p117
      %p119 = scmp.ne.s32.totalorder %s110, %s111
      %p120 = scmp.eq.s32.totalorder %s32, 0
      %p121 = por %p119, %p120
      %p122 = scmp.ne.s32.totalorder %s110, %s111
      %p123 = scmp.eq.s32.totalorder %s33, 1
      %p124 = por %p122, %p123
      %p126 = scmp.ne.s32.totalorder %s111, %s125
      %p127 = scmp.eq.s32.totalorder %s33, 0
      %p128 = por %p126, %p127
      %s130 = sadd.s32 %s129, 1
      %p133 = scmp.eq.s32.totalorder %s27, 1
      %p134 = scmp.ne.s32.totalorder %s129, %s131
      %p135 = scmp.eq.s32.totalorder %s27, 0
      %p136 = por %p134, %p135
      %p137 = scmp.ne.s32.totalorder %s129, %s131
      %p138 = scmp.eq.s32.totalorder %s32, 1
      %p139 = por %p137, %p138
      %p140 = scmp.ne.s32.totalorder %s131, %s132
      %p141 = scmp.eq.s32.totalorder %s32, 0
      %p142 = por %p140, %p141
      %p143 = scmp.ne.s32.totalorder %s131, %s132
      %p144 = scmp.eq.s32.totalorder %s33, 1
      %p145 = por %p143, %p144
      %p147 = scmp.ne.s32.totalorder %s132, %s146
      %p148 = scmp.eq.s32.totalorder %s33, 0
      %p149 = por %p147, %p148
      %s151 = sadd.s32 %s150, 1
      %p154 = scmp.eq.s32.totalorder %s27, 1
      %p155 = scmp.ne.s32.totalorder %s150, %s152
      %p156 = scmp.eq.s32.totalorder %s27, 0
      %p157 = por %p155, %p156
      %p158 = scmp.ne.s32.totalorder %s150, %s152
      %p159 = scmp.eq.s32.totalorder %s32, 1
      %p160 = por %p158, %p159
      %p161 = scmp.ne.s32.totalorder %s152, %s153
      %p162 = scmp.eq.s32.totalorder %s32, 0
      %p163 = por %p161, %p162
      %p164 = scmp.ne.s32.totalorder %s152, %s153
      %p165 = scmp.eq.s32.totalorder %s33, 1
      %p166 = por %p164, %p165
      %p168 = scmp.ne.s32.totalorder %s153, %s167
      %p169 = scmp.eq.s32.totalorder %s33, 0
      %p170 = por %p168, %p169
      %s172 = sadd.s32 %s171, 1
      %p175 = scmp.eq.s32.totalorder %s27, 1
      %p176 = scmp.ne.s32.totalorder %s171, %s173
      %p177 = scmp.eq.s32.totalorder %s27, 0
      %p178 = por %p176, %p177
      %p179 = scmp.ne.s32.totalorder %s171, %s173
      %p180 = scmp.eq.s32.totalorder %s32, 1
      %p181 = por %p179, %p180
      %p182 = scmp.ne.s32.totalorder %s173, %s174
      %p183 = scmp.eq.s32.totalorder %s32, 0
      %p184 = por %p182, %p183
      %p185 = scmp.ne.s32.totalorder %s173, %s174
      %p186 = scmp.eq.s32.totalorder %s33, 1
      %p187 = por %p185, %p186
      %p189 = scmp.ne.s32.totalorder %s174, %s188
      %p190 = scmp.eq.s32.totalorder %s33, 0
      %p191 = por %p189, %p190
      %s193 = sadd.s32 %s192, 1
      %p196 = scmp.eq.s32.totalorder %s27, 1
      %p197 = scmp.ne.s32.totalorder %s192, %s194
      %p198 = scmp.eq.s32.totalorder %s27, 0
      %p199 = por %p197, %p198
      %p200 = scmp.ne.s32.totalorder %s192, %s194
      %p201 = scmp.eq.s32.totalorder %s32, 1
      %p202 = por %p200, %p201
      %p203 = scmp.ne.s32.totalorder %s194, %s195
      %p204 = scmp.eq.s32.totalorder %s32, 0
      %p205 = por %p203, %p204
      %p206 = scmp.ne.s32.totalorder %s194, %s195
      %p207 = scmp.eq.s32.totalorder %s33, 1
      %p208 = por %p206, %p207
      %p210 = scmp.ne.s32.totalorder %s195, %s209
      %p211 = scmp.eq.s32.totalorder %s33, 0
      %p212 = por %p210, %p211
      %s214 = sadd.s32 %s213, 1
      %p217 = scmp.eq.s32.totalorder %s27, 1
      %p218 = scmp.ne.s32.totalorder %s213, %s215
      %p219 = scmp.eq.s32.totalorder %s27, 0
      %p220 = por %p218, %p219
      %p221 = scmp.ne.s32.totalorder %s213, %s215
      %p222 = scmp.eq.s32.totalorder %s32, 1
      %p223 = por %p221, %p222
      %p224 = scmp.ne.s32.totalorder %s215, %s216
      %p225 = scmp.eq.s32.totalorder %s32, 0
      %p226 = por %p224, %p225
      %p227 = scmp.ne.s32.totalorder %s215, %s216
      %p228 = scmp.eq.s32.totalorder %s33, 1
      %p229 = por %p227, %p228
      %p231 = scmp.ne.s32.totalorder %s216, %s230
      %p232 = scmp.eq.s32.totalorder %s33, 0
      %p233 = por %p231, %p232
      %s235 = sadd.s32 %s234, 1
      %p238 = scmp.eq.s32.totalorder %s27, 1
      %p239 = scmp.ne.s32.totalorder %s234, %s236
      %p240 = scmp.eq.s32.totalorder %s27, 0
      %p241 = por %p239, %p240
      %p242 = scmp.ne.s32.totalorder %s234, %s236
      %p243 = scmp.eq.s32.totalorder %s32, 1
      %p244 = por %p242, %p243
      %p245 = scmp.ne.s32.totalorder %s236, %s237
      %p246 = scmp.eq.s32.totalorder %s32, 0
      %p247 = por %p245, %p246
      %p248 = scmp.ne.s32.totalorder %s236, %s237
      %p249 = scmp.eq.s32.totalorder %s33, 1
      %p250 = por %p248, %p249
      %p252 = scmp.ne.s32.totalorder %s237, %s251
      %p253 = scmp.eq.s32.totalorder %s33, 0
      %p254 = por %p252, %p253
      %s256 = sadd.s32 %s255, 1
      %p259 = scmp.eq.s32.totalorder %s27, 1
      %p260 = scmp.ne.s32.totalorder %s255, %s257
      %p261 = scmp.eq.s32.totalorder %s27, 0
      %p262 = por %p260, %p261
      %p263 = scmp.ne.s32.totalorder %s255, %s257
      %p264 = scmp.eq.s32.totalorder %s32, 1
      %p265 = por %p263, %p264
      %p266 = scmp.ne.s32.totalorder %s257, %s258
      %p267 = scmp.eq.s32.totalorder %s32, 0
      %p268 = por %p266, %p267
      %p269 = scmp.ne.s32.totalorder %s257, %s258
      %p270 = scmp.eq.s32.totalorder %s33, 1
      %p271 = por %p269, %p270
      %p273 = scmp.ne.s32.totalorder %s258, %s272
      %p274 = scmp.eq.s32.totalorder %s33, 0
      %p275 = por %p273, %p274
      %s277 = sadd.s32 %s276, 1
      %p280 = scmp.eq.s32.totalorder %s27, 1
      %p281 = scmp.ne.s32.totalorder %s276, %s278
      %p282 = scmp.eq.s32.totalorder %s27, 0
      %p283 = por %p281, %p282
      %p284 = scmp.ne.s32.totalorder %s276, %s278
      %p285 = scmp.eq.s32.totalorder %s32, 1
      %p286 = por %p284, %p285
      %p287 = scmp.ne.s32.totalorder %s278, %s279
      %p288 = scmp.eq.s32.totalorder %s32, 0
      %p289 = por %p287, %p288
      %p290 = scmp.ne.s32.totalorder %s278, %s279
      %p291 = scmp.eq.s32.totalorder %s33, 1
      %p292 = por %p290, %p291
      %p294 = scmp.ne.s32.totalorder %s279, %s293
      %p295 = scmp.eq.s32.totalorder %s33, 0
      %p296 = por %p294, %p295
      %s298 = sadd.s32 %s297, 1
      %p301 = scmp.eq.s32.totalorder %s27, 1
      %p302 = scmp.ne.s32.totalorder %s297, %s299
      %p303 = scmp.eq.s32.totalorder %s27, 0
      %p304 = por %p302, %p303
      %p305 = scmp.ne.s32.totalorder %s297, %s299
      %p306 = scmp.eq.s32.totalorder %s32, 1
      %p307 = por %p305, %p306
      %p308 = scmp.ne.s32.totalorder %s299, %s300
      %p309 = scmp.eq.s32.totalorder %s32, 0
      %p310 = por %p308, %p309
      %p311 = scmp.ne.s32.totalorder %s299, %s300
      %p312 = scmp.eq.s32.totalorder %s33, 1
      %p313 = por %p311, %p312
      %p315 = scmp.ne.s32.totalorder %s300, %s314
      %p316 = scmp.eq.s32.totalorder %s33, 0
      %p317 = por %p315, %p316
      %s319 = sadd.s32 %s318, 1
      %p322 = scmp.eq.s32.totalorder %s27, 1
      %p323 = scmp.ne.s32.totalorder %s318, %s320
      %p324 = scmp.eq.s32.totalorder %s27, 0
      %p325 = por %p323, %p324
      %p326 = scmp.ne.s32.totalorder %s318, %s320
      %p327 = scmp.eq.s32.totalorder %s32, 1
      %p328 = por %p326, %p327
      %p329 = scmp.ne.s32.totalorder %s320, %s321
      %p330 = scmp.eq.s32.totalorder %s32, 0
      %p331 = por %p329, %p330
      %p332 = scmp.ne.s32.totalorder %s320, %s321
      %p333 = scmp.eq.s32.totalorder %s33, 1
      %p334 = por %p332, %p333
      %p336 = scmp.ne.s32.totalorder %s321, %s335
      %p337 = scmp.eq.s32.totalorder %s33, 0
      %p338 = por %p336, %p337
      %s340 = sadd.s32 %s339, 1
      %p343 = scmp.eq.s32.totalorder %s27, 1
      %p344 = scmp.ne.s32.totalorder %s339, %s341
      %p345 = scmp.eq.s32.totalorder %s27, 0
      %p346 = por %p344, %p345
      %p347 = scmp.ne.s32.totalorder %s339, %s341
      %p348 = scmp.eq.s32.totalorder %s32, 1
      %p349 = por %p347, %p348
      %p350 = scmp.ne.s32.totalorder %s341, %s342
      %p351 = scmp.eq.s32.totalorder %s32, 0
      %p352 = por %p350, %p351
      %p353 = scmp.ne.s32.totalorder %s341, %s342
      %p354 = scmp.eq.s32.totalorder %s33, 1
      %p355 = por %p353, %p354
      %p357 = scmp.ne.s32.totalorder %s342, %s356
      %p358 = scmp.eq.s32.totalorder %s33, 0
      %p359 = por %p357, %p358
      %s361 = sadd.s32 %s360, 1
      %p364 = scmp.eq.s32.totalorder %s27, 1
      %p365 = scmp.ne.s32.totalorder %s360, %s362
      %p366 = scmp.eq.s32.totalorder %s27, 0
      %p367 = por %p365, %p366
      %p368 = scmp.ne.s32.totalorder %s360, %s362
      %p369 = scmp.eq.s32.totalorder %s32, 1
      %p370 = por %p368, %p369
      %p371 = scmp.ne.s32.totalorder %s362, %s363
      %p372 = scmp.eq.s32.totalorder %s32, 0
      %p373 = por %p371, %p372
      %p374 = scmp.ne.s32.totalorder %s362, %s363
      %p375 = scmp.eq.s32.totalorder %s33, 1
      %p376 = por %p374, %p375
      %p378 = scmp.ne.s32.totalorder %s363, %s377
      %p379 = scmp.eq.s32.totalorder %s33, 0
      %p380 = por %p378, %p379
      %s382 = sadd.s32 %s381, 1
      %p385 = scmp.eq.s32.totalorder %s27, 1
      %p386 = scmp.ne.s32.totalorder %s381, %s383
      %p387 = scmp.eq.s32.totalorder %s27, 0
      %p388 = por %p386, %p387
      %p389 = scmp.ne.s32.totalorder %s381, %s383
      %p390 = scmp.eq.s32.totalorder %s32, 1
      %p391 = por %p389, %p390
      %p392 = scmp.ne.s32.totalorder %s383, %s384
      %p393 = scmp.eq.s32.totalorder %s32, 0
      %p394 = por %p392, %p393
      %p395 = scmp.ne.s32.totalorder %s383, %s384
      %p396 = scmp.eq.s32.totalorder %s33, 1
      %p397 = por %p395, %p396
      %p399 = scmp.ne.s32.totalorder %s384, %s398
      %p400 = scmp.eq.s32.totalorder %s33, 0
      %p401 = por %p399, %p400
      %s403 = sadd.s32 %s402, 1
      %p406 = scmp.eq.s32.totalorder %s27, 1
      %p407 = scmp.ne.s32.totalorder %s402, %s404
      %p408 = scmp.eq.s32.totalorder %s27, 0
      %p409 = por %p407, %p408
      %p410 = scmp.ne.s32.totalorder %s402, %s404
      %p411 = scmp.eq.s32.totalorder %s32, 1
      %p412 = por %p410, %p411
      %p413 = scmp.ne.s32.totalorder %s404, %s405
      %p414 = scmp.eq.s32.totalorder %s32, 0
      %p415 = por %p413, %p414
      %p416 = scmp.ne.s32.totalorder %s404, %s405
      %p417 = scmp.eq.s32.totalorder %s33, 1
      %p418 = por %p416, %p417
      %p420 = scmp.ne.s32.totalorder %s405, %s419
      %p421 = scmp.eq.s32.totalorder %s33, 0
      %p422 = por %p420, %p421
      %s423 = ssub.s32 %s27, %s34
      %p424 = scmp.eq.s32.totalorder %s423, 0
      %s426 = sadd.s32 %s425, 1
      %s427 = scalar_select %p424, %s425, %s426
      %p430 = pneg %p424
      %p431 = scmp.eq.s32.totalorder %s27, 1
      %p432 = por %p430, %p431
      %p433 = scmp.ne.s32.totalorder %s425, %s428
      %p434 = scmp.eq.s32.totalorder %s27, 0
      %p435 = por %p433, %p434
      %p436 = scmp.ne.s32.totalorder %s425, %s428
      %p437 = scmp.eq.s32.totalorder %s32, 1
      %p438 = por %p436, %p437
      %p439 = scmp.ne.s32.totalorder %s428, %s429
      %p440 = scmp.eq.s32.totalorder %s32, 0
      %p441 = por %p439, %p440
      %p442 = scmp.ne.s32.totalorder %s428, %s429
      %p443 = scmp.eq.s32.totalorder %s33, 1
      %p444 = por %p442, %p443
      %p446 = scmp.ne.s32.totalorder %s429, %s445
      %p447 = scmp.eq.s32.totalorder %s33, 0
      %p448 = por %p446, %p447
      %p449 = scmp.le.s32.totalorder 1, %s27
      %p450 = scmp.lt.s32.totalorder %s27, 3
      %p451 = pnand %p449, %p450
      %p452 = pneg %p451
      // Predicated region
      $region9: #{encoder_layer.1} parent=5 // pred_check
        _
      $region10: #{encoder_layer.1} parent=5 // pred_check_branch
        %454 = sbr.rel (%p451) target = $region12
      $region11: #{encoder_layer.1} parent=5 // pred_region
        %s455 = ssub.s32 %s27, 1
        // Predicated region
        $region13: #{encoder_layer.1} parent=11 // pred_check
          %p456 = pneg %p100
        $region14: #{encoder_layer.1} parent=11 // pred_check_branch
          %458 = sbr.rel (%p456) target = $region16
        $region15: #{encoder_layer.1} parent=11 // pred_region
          _
        $region16: #{encoder_layer.1} parent=11 // pred_fallthru
          _
        // Predicated region
        $region17: #{encoder_layer.1} parent=11 // pred_check
          %p459 = pneg %p121
        $region18: #{encoder_layer.1} parent=11 // pred_check_branch
          %461 = sbr.rel (%p459) target = $region20
        $region19: #{encoder_layer.1} parent=11 // pred_region
          _
        $region20: #{encoder_layer.1} parent=11 // pred_fallthru
          _
        // Predicated region
        $region21: #{encoder_layer.1} parent=11 // pred_check
          %p462 = pneg %p142
        $region22: #{encoder_layer.1} parent=11 // pred_check_branch
          %464 = sbr.rel (%p462) target = $region24
        $region23: #{encoder_layer.1} parent=11 // pred_region
          _
        $region24: #{encoder_layer.1} parent=11 // pred_fallthru
          _
        // Predicated region
        $region25: #{encoder_layer.1} parent=11 // pred_check
          %p465 = pneg %p163
        $region26: #{encoder_layer.1} parent=11 // pred_check_branch
          %467 = sbr.rel (%p465) target = $region28
        $region27: #{encoder_layer.1} parent=11 // pred_region
          _
        $region28: #{encoder_layer.1} parent=11 // pred_fallthru
          _
        // Predicated region
        $region29: #{encoder_layer.1} parent=11 // pred_check
          %p468 = pneg %p184
        $region30: #{encoder_layer.1} parent=11 // pred_check_branch
          %470 = sbr.rel (%p468) target = $region32
        $region31: #{encoder_layer.1} parent=11 // pred_region
          _
        $region32: #{encoder_layer.1} parent=11 // pred_fallthru
          _
        // Predicated region
        $region33: #{encoder_layer.1} parent=11 // pred_check
          %p471 = pneg %p205
        $region34: #{encoder_layer.1} parent=11 // pred_check_branch
          %473 = sbr.rel (%p471) target = $region36
        $region35: #{encoder_layer.1} parent=11 // pred_region
          _
        $region36: #{encoder_layer.1} parent=11 // pred_fallthru
          _
        // Predicated region
        $region37: #{encoder_layer.1} parent=11 // pred_check
          %p474 = pneg %p226
        $region38: #{encoder_layer.1} parent=11 // pred_check_branch
          %476 = sbr.rel (%p474) target = $region40
        $region39: #{encoder_layer.1} parent=11 // pred_region
          _
        $region40: #{encoder_layer.1} parent=11 // pred_fallthru
          _
        // Predicated region
        $region41: #{encoder_layer.1} parent=11 // pred_check
          %p477 = pneg %p247
        $region42: #{encoder_layer.1} parent=11 // pred_check_branch
          %479 = sbr.rel (%p477) target = $region44
        $region43: #{encoder_layer.1} parent=11 // pred_region
          _
        $region44: #{encoder_layer.1} parent=11 // pred_fallthru
          _
        // Predicated region
        $region45: #{encoder_layer.1} parent=11 // pred_check
          %p480 = pneg %p268
        $region46: #{encoder_layer.1} parent=11 // pred_check_branch
          %482 = sbr.rel (%p480) target = $region48
        $region47: #{encoder_layer.1} parent=11 // pred_region
          _
        $region48: #{encoder_layer.1} parent=11 // pred_fallthru
          _
        // Predicated region
        $region49: #{encoder_layer.1} parent=11 // pred_check
          %p483 = pneg %p289
        $region50: #{encoder_layer.1} parent=11 // pred_check_branch
          %485 = sbr.rel (%p483) target = $region52
        $region51: #{encoder_layer.1} parent=11 // pred_region
          _
        $region52: #{encoder_layer.1} parent=11 // pred_fallthru
          _
        // Predicated region
        $region53: #{encoder_layer.1} parent=11 // pred_check
          %p486 = pneg %p310
        $region54: #{encoder_layer.1} parent=11 // pred_check_branch
          %488 = sbr.rel (%p486) target = $region56
        $region55: #{encoder_layer.1} parent=11 // pred_region
          _
        $region56: #{encoder_layer.1} parent=11 // pred_fallthru
          _
        // Predicated region
        $region57: #{encoder_layer.1} parent=11 // pred_check
          %p489 = pneg %p331
        $region58: #{encoder_layer.1} parent=11 // pred_check_branch
          %491 = sbr.rel (%p489) target = $region60
        $region59: #{encoder_layer.1} parent=11 // pred_region
          _
        $region60: #{encoder_layer.1} parent=11 // pred_fallthru
          _
        // Predicated region
        $region61: #{encoder_layer.1} parent=11 // pred_check
          %p492 = pneg %p352
        $region62: #{encoder_layer.1} parent=11 // pred_check_branch
          %494 = sbr.rel (%p492) target = $region64
        $region63: #{encoder_layer.1} parent=11 // pred_region
          _
        $region64: #{encoder_layer.1} parent=11 // pred_fallthru
          _
        // Predicated region
        $region65: #{encoder_layer.1} parent=11 // pred_check
          %p495 = pneg %p373
        $region66: #{encoder_layer.1} parent=11 // pred_check_branch
          %497 = sbr.rel (%p495) target = $region68
        $region67: #{encoder_layer.1} parent=11 // pred_region
          _
        $region68: #{encoder_layer.1} parent=11 // pred_fallthru
          _
        // Predicated region
        $region69: #{encoder_layer.1} parent=11 // pred_check
          %p498 = pneg %p394
        $region70: #{encoder_layer.1} parent=11 // pred_check_branch
          %500 = sbr.rel (%p498) target = $region72
        $region71: #{encoder_layer.1} parent=11 // pred_region
          _
        $region72: #{encoder_layer.1} parent=11 // pred_fallthru
          _
        // Predicated region
        $region73: #{encoder_layer.1} parent=11 // pred_check
          %p501 = pneg %p415
        $region74: #{encoder_layer.1} parent=11 // pred_check_branch
          %503 = sbr.rel (%p501) target = $region76
        $region75: #{encoder_layer.1} parent=11 // pred_region
          _
        $region76: #{encoder_layer.1} parent=11 // pred_fallthru
          _
      $region12: #{encoder_layer.1} parent=5 // pred_fallthru
        _
      %p504 = scmp.lt.s32.totalorder %s27, 2
      // Predicated region
      $region77: #{encoder_layer.1} parent=5 // pred_check
        %p505 = pneg %p504
      $region78: #{encoder_layer.1} parent=5 // pred_check_branch
        %507 = sbr.rel (%p505) target = $region80
      $region79: #{encoder_layer.1} parent=5 // pred_region
        // Predicated region
        $region81: #{encoder_layer.1} parent=79 // pred_check
          %p508 = pneg %p47
        $region82: #{encoder_layer.1} parent=79 // pred_check_branch
          %510 = sbr.rel (%p508) target = $region84
        $region83: #{encoder_layer.1} parent=79 // pred_region
          %p511 = scmp.lt.s32.totalorder %s27, 1
          %s512 = scalar_select %p511, %s27, 1
          %s513 = smul.addr %s512, 4
          %s514 = smul.addr %s513, 8
          %s515 = scalar_lea.vmem %s0, %s514
        $region84: #{encoder_layer.1} parent=79 // pred_fallthru
          _
        // Predicated region
        $region85: #{encoder_layer.1} parent=79 // pred_check
          %p516 = pneg %p73
        $region86: #{encoder_layer.1} parent=79 // pred_check_branch
          %518 = sbr.rel (%p516) target = $region88
        $region87: #{encoder_layer.1} parent=79 // pred_region
          %p519 = scmp.lt.s32.totalorder %s27, 1
          %s520 = scalar_select %p519, %s27, 1
          %s521 = smul.addr %s520, 8
          %s522 = scalar_lea.vmem %s1, %s521
        $region88: #{encoder_layer.1} parent=79 // pred_fallthru
          _
      $region80: #{encoder_layer.1} parent=5 // pred_fallthru
        _
      %p523 = scmp.le.s32.totalorder 1, %s27
      %p524 = scmp.lt.s32.totalorder %s27, 3
      %p525 = pnand %p523, %p524
      %p526 = pneg %p525
      // Predicated region
      $region89: #{encoder_layer.1} parent=5 // pred_check
        _
      $region90: #{encoder_layer.1} parent=5 // pred_check_branch
        %528 = sbr.rel (%p525) target = $region92
      $region91: #{encoder_layer.1} parent=5 // pred_region
        %s529 = ssub.s32 %s27, 1
        %p530 = scmp.lt.s32.totalorder %s32, 1
        %s531 = scalar_select %p530, %s32, 1
        %s532 = smul.addr %s531, 4
        %s533 = smul.addr %s532, 8
        %s534 = scalar_lea.vmem %s0, %s533
        %p535 = pneg %p53
        %p536 = pneg %p50
        %p537 = scmp.lt.s32.totalorder %s32, 1
        %s538 = scalar_select %p537, %s32, 1
        %s539 = smul.addr %s538, 8
        %s540 = scalar_lea.vmem %s1, %s539
        %p541 = pneg %p79
        %p542 = pneg %p76
        %p543 = pneg %p100
        %p544 = pneg %p97
        %p545 = pneg %p121
        %p546 = pneg %p118
        %p547 = pneg %p142
        %p548 = pneg %p139
        %p549 = pneg %p163
        %p550 = pneg %p160
        %p551 = pneg %p184
        %p552 = pneg %p181
        %p553 = pneg %p205
        %p554 = pneg %p202
        %p555 = pneg %p226
        %p556 = pneg %p223
        %p557 = pneg %p247
        %p558 = pneg %p244
        %p559 = pneg %p268
        %p560 = pneg %p265
        %p561 = pneg %p289
        %p562 = pneg %p286
        %p563 = pneg %p310
        %p564 = pneg %p307
        %p565 = pneg %p331
        %p566 = pneg %p328
        %p567 = pneg %p352
        %p568 = pneg %p349
        %p569 = pneg %p373
        %p570 = pneg %p370
        %p571 = pneg %p394
        %p572 = pneg %p391
        %p573 = pneg %p415
        %p574 = pneg %p412
        %p575 = pneg %p441
        %p576 = pneg %p438
        %s577 = sand.u32 %s428, 1
        %s578 = scalar_lea.sflag [#allocation3], %s577
        %s579 = sand.u32 %s428, 1
        %s580 = smul.addr %s579, 8
        %s581 = scalar_lea.vmem [#allocation2], %s580
        %p582 = scmp.lt.s32.totalorder %s32, 1
        %s583 = scalar_select %p582, %s32, 1
        %s584 = smul.addr %s583, 4
        %s585 = smul.addr %s584, 8
        %s586 = scalar_lea.vmem %s0, %s585
        %p587 = scmp.lt.s32.totalorder %s32, 1
        %s588 = scalar_select %p587, %s32, 1
        %s589 = smul.addr %s588, 8
        %s590 = scalar_lea.vmem %s1, %s589
        %v591 = vld [vmem:[%s586] sm:$0xff]
        %v592 = vld [vmem:[%s586 + $0x8] sm:$0xff]
        %v593 = vld [vmem:[%s586 + $0x10] sm:$0xff]
        %v594 = vld [vmem:[%s586 + $0x18] sm:$0xff]
        %v595 = vld [vmem:[%s590] sm:$0xff]
        %v596 = vld [vmem:[%s2] sm:$0xff]
        %v597 = vld [vmem:[%s2 + $0x8] sm:$0xff]
        %v598 = vld [vmem:[%s2 + $0x10] sm:$0xff]
        %v599 = vld [vmem:[%s2 + $0x18] sm:$0xff]
        %v600 = vld [vmem:[%s2 + $0x20] sm:$0xff]
        %v601 = vld [vmem:[%s2 + $0x28] sm:$0xff]
        %v602 = vld [vmem:[%s2 + $0x30] sm:$0xff]
        %v603 = vld [vmem:[%s2 + $0x38] sm:$0xff]
        %v604 = vld [vmem:[%s2 + $0x40] sm:$0xff]
        %v605 = vld [vmem:[%s2 + $0x48] sm:$0xff]
        %v606 = vld [vmem:[%s2 + $0x50] sm:$0xff]
        %v607 = vld [vmem:[%s2 + $0x58] sm:$0xff]
        %v608 = vld [vmem:[%s2 + $0x60] sm:$0xff]
        %v609 = vld [vmem:[%s2 + $0x68] sm:$0xff]
        %v610 = vld [vmem:[%s2 + $0x70] sm:$0xff]
        %v611 = vld [vmem:[%s2 + $0x78] sm:$0xff]
        %v612 = vld [vmem:[%s3] sm:$0xff]
        %v613 = vld [vmem:[%s3 + $0x8] sm:$0xff]
        %v614 = vld [vmem:[%s3 + $0x10] sm:$0xff]
        %v615 = vld [vmem:[%s3 + $0x18] sm:$0xff]
        %616 = vmatprep.subr.mxu0 0.0
        %v617 = vand.u32 %v596, 4294901760
        %618 = vmatpush1.msra.mxu0 %v617
        %619 = vmatprep.subr.mxu0 0.0
        %v620 = vand.u32 %v597, 4294901760
        %621 = vmatpush1.msra.mxu0 %v620
        %622 = vmatprep.subr.mxu0 0.0
        %v623 = vand.u32 %v598, 4294901760
        %624 = vmatpush1.msra.mxu0 %v623
        %625 = vmatprep.subr.mxu0 0.0
        %v626 = vand.u32 %v599, 4294901760
        %627 = vmatpush1.msra.mxu0 %v626
        %628 = vmatprep.subr.mxu0 0.0
        %v629 = vand.u32 %v600, 4294901760
        %630 = vmatpush1.msra.mxu0 %v629
        %631 = vmatprep.subr.mxu0 0.0
        %v632 = vand.u32 %v601, 4294901760
        %633 = vmatpush1.msra.mxu0 %v632
        %634 = vmatprep.subr.mxu0 0.0
        %v635 = vand.u32 %v602, 4294901760
        %636 = vmatpush1.msra.mxu0 %v635
        %637 = vmatprep.subr.mxu0 0.0
        %v638 = vand.u32 %v603, 4294901760
        %639 = vmatpush1.msra.mxu0 %v638
        %640 = vmatprep.subr.mxu0 0.0
        %v641 = vand.u32 %v604, 4294901760
        %642 = vmatpush1.msra.mxu0 %v641
        %643 = vmatprep.subr.mxu0 0.0
        %v644 = vand.u32 %v605, 4294901760
        %645 = vmatpush1.msra.mxu0 %v644
        %646 = vmatprep.subr.mxu0 0.0
        %v647 = vand.u32 %v606, 4294901760
        %648 = vmatpush1.msra.mxu0 %v647
        %649 = vmatprep.subr.mxu0 0.0
        %v650 = vand.u32 %v607, 4294901760
        %651 = vmatpush1.msra.mxu0 %v650
        %652 = vmatprep.subr.mxu0 0.0
        %v653 = vand.u32 %v608, 4294901760
        %654 = vmatpush1.msra.mxu0 %v653
        %655 = vmatprep.subr.mxu0 0.0
        %v656 = vand.u32 %v609, 4294901760
        %657 = vmatpush1.msra.mxu0 %v656
        %658 = vmatprep.subr.mxu0 0.0
        %v659 = vand.u32 %v610, 4294901760
        %660 = vmatpush1.msra.mxu0 %v659
        %661 = vmatprep.subr.mxu0 0.0
        %v662 = vand.u32 %v611, 4294901760
        %663 = vmatpush1.msra.mxu0 %v662
        %664 = vmatprep.subr.mxu0 0.0
        %665 = vmatpush1.msra.mxu0 0.0
        %666 = vmatprep.subr.mxu0 0.0
        %667 = vmatpush1.msra.mxu0 0.0
        %668 = vmatprep.subr.mxu0 0.0
        %669 = vmatpush1.msra.mxu0 0.0
        %670 = vmatprep.subr.mxu0 0.0
        %671 = vmatpush1.msra.mxu0 0.0
        %672 = vmatprep.subr.mxu0 0.0
        %673 = vmatpush1.msra.mxu0 0.0
        %674 = vmatprep.subr.mxu0 0.0
        %675 = vmatpush1.msra.mxu0 0.0
        %676 = vmatprep.subr.mxu0 0.0
        %677 = vmatpush1.msra.mxu0 0.0
        %678 = vmatprep.subr.mxu0 0.0
        %679 = vmatpush1.msra.mxu0 0.0
        %680 = vmatprep.subr.mxu0 0.0
        %681 = vmatpush1.msra.mxu0 0.0
        %682 = vmatprep.subr.mxu0 0.0
        %683 = vmatpush1.msra.mxu0 0.0
        %684 = vmatprep.subr.mxu0 0.0
        %685 = vmatpush1.msra.mxu0 0.0
        %686 = vmatprep.subr.mxu0 0.0
        %687 = vmatpush1.msra.mxu0 0.0
        %688 = vmatprep.subr.mxu0 0.0
        %689 = vmatpush1.msra.mxu0 0.0
        %690 = vmatprep.subr.mxu0 0.0
        %691 = vmatpush1.msra.mxu0 0.0
        %692 = vmatprep.subr.mxu0 0.0
        %693 = vmatpush1.msra.mxu0 0.0
        %694 = vmatprep.subr.mxu0 0.0
        %695 = vmatpush1.msra.mxu0 0.0
        %696 = vmatprep.mubr.f32.mxu0 0.0
        %v697 = vand.u32 %v591, 4294901760
        %v698 = vsub.f32 %v591, %v697
        %v699 = vand.u32 %v698, 4294901760
        %v700 = vsub.f32 %v698, %v699
        %v701 = vand.u32 %v700, 4294901760
        %702 = vmatmul.mubr.f32.gmra.mrb[0].mxu0 %v701
        %v703 = vpop.f32.mrb[0].mxu0
        %v704 = vadd.f32 %v612, %v703
        %v705 = vpop.f32.mrb[0].mxu0
        %706 = vmatprep.mubr.f32.mxu0 0.0
        %v707 = vand.u32 %v592, 4294901760
        %v708 = vsub.f32 %v592, %v707
        %v709 = vand.u32 %v708, 4294901760
        %v710 = vsub.f32 %v708, %v709
        %v711 = vand.u32 %v710, 4294901760
        %712 = vmatmul.mubr.f32.gmra.mrb[0].mxu0 %v711
        %v713 = vpop.f32.mrb[0].mxu0
        %v714 = vadd.f32 %v613, %v713
        %v715 = vpop.f32.mrb[0].mxu0
        %716 = vmatprep.mubr.f32.mxu0 0.0
        %v717 = vand.u32 %v593, 4294901760
        %v718 = vsub.f32 %v593, %v717
        %v719 = vand.u32 %v718, 4294901760
        %v720 = vsub.f32 %v718, %v719
        %v721 = vand.u32 %v720, 4294901760
        %722 = vmatmul.mubr.f32.gmra.mrb[0].mxu0 %v721
        %v723 = vpop.f32.mrb[0].mxu0
        %v724 = vadd.f32 %v614, %v723
        %v725 = vpop.f32.mrb[0].mxu0
        %726 = vmatprep.mubr.f32.mxu0 0.0
        %v727 = vand.u32 %v594, 4294901760
        %v728 = vsub.f32 %v594, %v727
        %v729 = vand.u32 %v728, 4294901760
        %v730 = vsub.f32 %v728, %v729
        %v731 = vand.u32 %v730, 4294901760
        %732 = vmatmul.mubr.f32.gmra.mrb[0].mxu0 %v731
        %v733 = vpop.f32.mrb[0].mxu0
        %v734 = vadd.f32 %v615, %v733
        %v735 = vpop.f32.mrb[0].mxu0
        %736 = vdwg.mxu0
        %737 = vmatprep.subr.mxu0 0.0
        %v738 = vand.u32 %v596, 4294901760
        %v739 = vsub.f32 %v596, %v738
        %v740 = vand.u32 %v739, 4294901760
        %v741 = vsub.f32 %v739, %v740
        %v742 = vand.u32 %v741, 4294901760
        %743 = vmatpush1.msra.mxu0 %v742
        %744 = vmatprep.subr.mxu0 0.0
        %v745 = vand.u32 %v597, 4294901760
        %v746 = vsub.f32 %v597, %v745
        %v747 = vand.u32 %v746, 4294901760
        %v748 = vsub.f32 %v746, %v747
        %v749 = vand.u32 %v748, 4294901760
        %750 = vmatpush1.msra.mxu0 %v749
        %751 = vmatprep.subr.mxu0 0.0
        %v752 = vand.u32 %v598, 4294901760
        %v753 = vsub.f32 %v598, %v752
        %v754 = vand.u32 %v753, 4294901760
        %v755 = vsub.f32 %v753, %v754
        %v756 = vand.u32 %v755, 4294901760
        %757 = vmatpush1.msra.mxu0 %v756
        %758 = vmatprep.subr.mxu0 0.0
        %v759 = vand.u32 %v599, 4294901760
        %v760 = vsub.f32 %v599, %v759
        %v761 = vand.u32 %v760, 4294901760
        %v762 = vsub.f32 %v760, %v761
        %v763 = vand.u32 %v762, 4294901760
        %764 = vmatpush1.msra.mxu0 %v763
        %765 = vmatprep.subr.mxu0 0.0
        %v766 = vand.u32 %v600, 4294901760
        %v767 = vsub.f32 %v600, %v766
        %v768 = vand.u32 %v767, 4294901760
        %v769 = vsub.f32 %v767, %v768
        %v770 = vand.u32 %v769, 4294901760
        %771 = vmatpush1.msra.mxu0 %v770
        %772 = vmatprep.subr.mxu0 0.0
        %v773 = vand.u32 %v601, 4294901760
        %v774 = vsub.f32 %v601, %v773
        %v775 = vand.u32 %v774, 4294901760
        %v776 = vsub.f32 %v774, %v775
        %v777 = vand.u32 %v776, 4294901760
        %778 = vmatpush1.msra.mxu0 %v777
        %779 = vmatprep.subr.mxu0 0.0
        %v780 = vand.u32 %v602, 4294901760
        %v781 = vsub.f32 %v602, %v780
        %v782 = vand.u32 %v781, 4294901760
        %v783 = vsub.f32 %v781, %v782
        %v784 = vand.u32 %v783, 4294901760
        %785 = vmatpush1.msra.mxu0 %v784
        %786 = vmatprep.subr.mxu0 0.0
        %v787 = vand.u32 %v603, 4294901760
        %v788 = vsub.f32 %v603, %v787
        %v789 = vand.u32 %v788, 4294901760
        %v790 = vsub.f32 %v788, %v789
        %v791 = vand.u32 %v790, 4294901760
        %792 = vmatpush1.msra.mxu0 %v791
        %793 = vmatprep.subr.mxu0 0.0
        %v794 = vand.u32 %v604, 4294901760
        %v795 = vsub.f32 %v604, %v794
        %v796 = vand.u32 %v795, 4294901760
        %v797 = vsub.f32 %v795, %v796
        %v798 = vand.u32 %v797, 4294901760
        %799 = vmatpush1.msra.mxu0 %v798
        %800 = vmatprep.subr.mxu0 0.0
        %v801 = vand.u32 %v605, 4294901760
        %v802 = vsub.f32 %v605, %v801
        %v803 = vand.u32 %v802, 4294901760
        %v804 = vsub.f32 %v802, %v803
        %v805 = vand.u32 %v804, 4294901760
        %806 = vmatpush1.msra.mxu0 %v805
        %807 = vmatprep.subr.mxu0 0.0
        %v808 = vand.u32 %v606, 4294901760
        %v809 = vsub.f32 %v606, %v808
        %v810 = vand.u32 %v809, 4294901760
        %v811 = vsub.f32 %v809, %v810
        %v812 = vand.u32 %v811, 4294901760
        %813 = vmatpush1.msra.mxu0 %v812
        %814 = vmatprep.subr.mxu0 0.0
        %v815 = vand.u32 %v607, 4294901760
        %v816 = vsub.f32 %v607, %v815
        %v817 = vand.u32 %v816, 4294901760
        %v818 = vsub.f32 %v816, %v817
        %v819 = vand.u32 %v818, 4294901760
        %820 = vmatpush1.msra.mxu0 %v819
        %821 = vmatprep.subr.mxu0 0.0
        %v822 = vand.u32 %v608, 4294901760
        %v823 = vsub.f32 %v608, %v822
        %v824 = vand.u32 %v823, 4294901760
        %v825 = vsub.f32 %v823, %v824
        %v826 = vand.u32 %v825, 4294901760
        %827 = vmatpush1.msra.mxu0 %v826
        %828 = vmatprep.subr.mxu0 0.0
        %v829 = vand.u32 %v609, 4294901760
        %v830 = vsub.f32 %v609, %v829
        %v831 = vand.u32 %v830, 4294901760
        %v832 = vsub.f32 %v830, %v831
        %v833 = vand.u32 %v832, 4294901760
        %834 = vmatpush1.msra.mxu0 %v833
        %835 = vmatprep.subr.mxu0 0.0
        %v836 = vand.u32 %v610, 4294901760
        %v837 = vsub.f32 %v610, %v836
        %v838 = vand.u32 %v837, 4294901760
        %v839 = vsub.f32 %v837, %v838
        %v840 = vand.u32 %v839, 4294901760
        %841 = vmatpush1.msra.mxu0 %v840
        %842 = vmatprep.subr.mxu0 0.0
        %v843 = vand.u32 %v611, 4294901760
        %v844 = vsub.f32 %v611, %v843
        %v845 = vand.u32 %v844, 4294901760
        %v846 = vsub.f32 %v844, %v845
        %v847 = vand.u32 %v846, 4294901760
        %848 = vmatpush1.msra.mxu0 %v847
        %849 = vmatprep.subr.mxu0 0.0
        %850 = vmatpush1.msra.mxu0 0.0
        %851 = vmatprep.subr.mxu0 0.0
        %852 = vmatpush1.msra.mxu0 0.0
        %853 = vmatprep.subr.mxu0 0.0
        %854 = vmatpush1.msra.mxu0 0.0
        %855 = vmatprep.subr.mxu0 0.0
        %856 = vmatpush1.msra.mxu0 0.0
        %857 = vmatprep.subr.mxu0 0.0
        %858 = vmatpush1.msra.mxu0 0.0
        %859 = vmatprep.subr.mxu0 0.0
        %860 = vmatpush1.msra.mxu0 0.0
        %861 = vmatprep.subr.mxu0 0.0
        %862 = vmatpush1.msra.mxu0 0.0
        %863 = vmatprep.subr.mxu0 0.0
        %864 = vmatpush1.msra.mxu0 0.0
        %865 = vmatprep.subr.mxu0 0.0
        %866 = vmatpush1.msra.mxu0 0.0
        %867 = vmatprep.subr.mxu0 0.0
        %868 = vmatpush1.msra.mxu0 0.0
        %869 = vmatprep.subr.mxu0 0.0
        %870 = vmatpush1.msra.mxu0 0.0
        %871 = vmatprep.subr.mxu0 0.0
        %872 = vmatpush1.msra.mxu0 0.0
        %873 = vmatprep.subr.mxu0 0.0
        %874 = vmatpush1.msra.mxu0 0.0
        %875 = vmatprep.subr.mxu0 0.0
        %876 = vmatpush1.msra.mxu0 0.0
        %877 = vmatprep.subr.mxu0 0.0
        %878 = vmatpush1.msra.mxu0 0.0
        %879 = vmatprep.subr.mxu0 0.0
        %880 = vmatpush1.msra.mxu0 0.0
        %881 = vmatprep.mubr.f32.mxu0 0.0
        %v882 = vand.u32 %v591, 4294901760
        %883 = vmatmul.mubr.f32.gmra.mrb[0].mxu0 %v882
        %v884 = vpop.f32.mrb[0].mxu0
        %v885 = vadd.f32 %v704, %v884
        %v886 = vpop.f32.mrb[0].mxu0
        %887 = vmatprep.mubr.f32.mxu0 0.0
        %v888 = vand.u32 %v592, 4294901760
        %889 = vmatmul.mubr.f32.gmra.mrb[0].mxu0 %v888
        %v890 = vpop.f32.mrb[0].mxu0
        %v891 = vadd.f32 %v714, %v890
        %v892 = vpop.f32.mrb[0].mxu0
        %893 = vmatprep.mubr.f32.mxu0 0.0
        %v894 = vand.u32 %v593, 4294901760
        %895 = vmatmul.mubr.f32.gmra.mrb[0].mxu0 %v894
        %v896 = vpop.f32.mrb[0].mxu0
        %v897 = vadd.f32 %v724, %v896
        %v898 = vpop.f32.mrb[0].mxu0
        %899 = vmatprep.mubr.f32.mxu0 0.0
        %v900 = vand.u32 %v594, 4294901760
        %901 = vmatmul.mubr.f32.gmra.mrb[0].mxu0 %v900
        %v902 = vpop.f32.mrb[0].mxu0
        %v903 = vadd.f32 %v734, %v902
        %v904 = vpop.f32.mrb[0].mxu0
        %905 = vdwg.mxu0
        %906 = vmatprep.subr.mxu0 0.0
        %v907 = vand.u32 %v596, 4294901760
        %v908 = vsub.f32 %v596, %v907
        %909 = vmatpush1.msra.mxu0 %v908
        %910 = vmatprep.subr.mxu0 0.0
        %v911 = vand.u32 %v597, 4294901760
        %v912 = vsub.f32 %v597, %v911
        %913 = vmatpush1.msra.mxu0 %v912
        %914 = vmatprep.subr.mxu0 0.0
        %v915 = vand.u32 %v598, 4294901760
        %v916 = vsub.f32 %v598, %v915
        %917 = vmatpush1.msra.mxu0 %v916
        %918 = vmatprep.subr.mxu0 0.0
        %v919 = vand.u32 %v599, 4294901760
        %v920 = vsub.f32 %v599, %v919
        %921 = vmatpush1.msra.mxu0 %v920
        %922 = vmatprep.subr.mxu0 0.0
        %v923 = vand.u32 %v600, 4294901760
        %v924 = vsub.f32 %v600, %v923
        %925 = vmatpush1.msra.mxu0 %v924
        %926 = vmatprep.subr.mxu0 0.0
        %v927 = vand.u32 %v601, 4294901760
        %v928 = vsub.f32 %v601, %v927
        %929 = vmatpush1.msra.mxu0 %v928
        %930 = vmatprep.subr.mxu0 0.0
        %v931 = vand.u32 %v602, 4294901760
        %v932 = vsub.f32 %v602, %v931
        %933 = vmatpush1.msra.mxu0 %v932
        %934 = vmatprep.subr.mxu0 0.0
        %v935 = vand.u32 %v603, 4294901760
        %v936 = vsub.f32 %v603, %v935
        %937 = vmatpush1.msra.mxu0 %v936
        %938 = vmatprep.subr.mxu0 0.0
        %v939 = vand.u32 %v604, 4294901760
        %v940 = vsub.f32 %v604, %v939
        %941 = vmatpush1.msra.mxu0 %v940
        %942 = vmatprep.subr.mxu0 0.0
        %v943 = vand.u32 %v605, 4294901760
        %v944 = vsub.f32 %v605, %v943
        %945 = vmatpush1.msra.mxu0 %v944
        %946 = vmatprep.subr.mxu0 0.0
        %v947 = vand.u32 %v606, 4294901760
        %v948 = vsub.f32 %v606, %v947
        %949 = vmatpush1.msra.mxu0 %v948
        %950 = vmatprep.subr.mxu0 0.0
        %v951 = vand.u32 %v607, 4294901760
        %v952 = vsub.f32 %v607, %v951
        %953 = vmatpush1.msra.mxu0 %v952
        %954 = vmatprep.subr.mxu0 0.0
        %v955 = vand.u32 %v608, 4294901760
        %v956 = vsub.f32 %v608, %v955
        %957 = vmatpush1.msra.mxu0 %v956
        %958 = vmatprep.subr.mxu0 0.0
        %v959 = vand.u32 %v609, 4294901760
        %v960 = vsub.f32 %v609, %v959
        %961 = vmatpush1.msra.mxu0 %v960
        %962 = vmatprep.subr.mxu0 0.0
        %v963 = vand.u32 %v610, 4294901760
        %v964 = vsub.f32 %v610, %v963
        %965 = vmatpush1.msra.mxu0 %v964
        %966 = vmatprep.subr.mxu0 0.0
        %v967 = vand.u32 %v611, 4294901760
        %v968 = vsub.f32 %v611, %v967
        %969 = vmatpush1.msra.mxu0 %v968
        %970 = vmatprep.subr.mxu0 0.0
        %971 = vmatpush1.msra.mxu0 0.0
        %972 = vmatprep.subr.mxu0 0.0
        %973 = vmatpush1.msra.mxu0 0.0
        %974 = vmatprep.subr.mxu0 0.0
        %975 = vmatpush1.msra.mxu0 0.0
        %976 = vmatprep.subr.mxu0 0.0
        %977 = vmatpush1.msra.mxu0 0.0
        %978 = vmatprep.subr.mxu0 0.0
        %979 = vmatpush1.msra.mxu0 0.0
        %980 = vmatprep.subr.mxu0 0.0
        %981 = vmatpush1.msra.mxu0 0.0
        %982 = vmatprep.subr.mxu0 0.0
        %983 = vmatpush1.msra.mxu0 0.0
        %984 = vmatprep.subr.mxu0 0.0
        %985 = vmatpush1.msra.mxu0 0.0
        %986 = vmatprep.subr.mxu0 0.0
        %987 = vmatpush1.msra.mxu0 0.0
        %988 = vmatprep.subr.mxu0 0.0
        %989 = vmatpush1.msra.mxu0 0.0
        %990 = vmatprep.subr.mxu0 0.0
        %991 = vmatpush1.msra.mxu0 0.0
        %992 = vmatprep.subr.mxu0 0.0
        %993 = vmatpush1.msra.mxu0 0.0
        %994 = vmatprep.subr.mxu0 0.0
        %995 = vmatpush1.msra.mxu0 0.0
        %996 = vmatprep.subr.mxu0 0.0
        %997 = vmatpush1.msra.mxu0 0.0
        %998 = vmatprep.subr.mxu0 0.0
        %999 = vmatpush1.msra.mxu0 0.0
        %1000 = vmatprep.subr.mxu0 0.0
        %1001 = vmatpush1.msra.mxu0 0.0
        %1002 = vmatprep.mubr.f32.mxu0 0.0
        %v1003 = vand.u32 %v591, 4294901760
        %v1004 = vsub.f32 %v591, %v1003
        %1005 = vmatmul.mubr.f32.gmra.mrb[0].mxu0 %v1004
        %v1006 = vpop.f32.mrb[0].mxu0
        %v1007 = vadd.f32 %v885, %v1006
        %v1008 = vpop.f32.mrb[0].mxu0
        %1009 = vmatprep.mubr.f32.mxu0 0.0
        %v1010 = vand.u32 %v592, 4294901760
        %v1011 = vsub.f32 %v592, %v1010
        %1012 = vmatmul.mubr.f32.gmra.mrb[0].mxu0 %v1011
        %v1013 = vpop.f32.mrb[0].mxu0
        %v1014 = vadd.f32 %v891, %v1013
        %v1015 = vpop.f32.mrb[0].mxu0
        %1016 = vmatprep.mubr.f32.mxu0 0.0
        %v1017 = vand.u32 %v593, 4294901760
        %v1018 = vsub.f32 %v593, %v1017
        %1019 = vmatmul.mubr.f32.gmra.mrb[0].mxu0 %v1018
        %v1020 = vpop.f32.mrb[0].mxu0
        %v1021 = vadd.f32 %v897, %v1020
        %v1022 = vpop.f32.mrb[0].mxu0
        %1023 = vmatprep.mubr.f32.mxu0 0.0
        %v1024 = vand.u32 %v594, 4294901760
        %v1025 = vsub.f32 %v594, %v1024
        %1026 = vmatmul.mubr.f32.gmra.mrb[0].mxu0 %v1025
        %v1027 = vpop.f32.mrb[0].mxu0
        %v1028 = vadd.f32 %v903, %v1027
        %v1029 = vpop.f32.mrb[0].mxu0
        %1030 = vdwg.mxu0
        %1031 = vmatprep.subr.mxu0 0.0
        %v1032 = vand.u32 %v596, 4294901760
        %1033 = vmatpush1.msra.mxu0 %v1032
        %1034 = vmatprep.subr.mxu0 0.0
        %v1035 = vand.u32 %v597, 4294901760
        %1036 = vmatpush1.msra.mxu0 %v1035
        %1037 = vmatprep.subr.mxu0 0.0
        %v1038 = vand.u32 %v598, 4294901760
        %1039 = vmatpush1.msra.mxu0 %v1038
        %1040 = vmatprep.subr.mxu0 0.0
        %v1041 = vand.u32 %v599, 4294901760
        %1042 = vmatpush1.msra.mxu0 %v1041
        %1043 = vmatprep.subr.mxu0 0.0
        %v1044 = vand.u32 %v600, 4294901760
        %1045 = vmatpush1.msra.mxu0 %v1044
        %1046 = vmatprep.subr.mxu0 0.0
        %v1047 = vand.u32 %v601, 4294901760
        %1048 = vmatpush1.msra.mxu0 %v1047
        %1049 = vmatprep.subr.mxu0 0.0
        %v1050 = vand.u32 %v602, 4294901760
        %1051 = vmatpush1.msra.mxu0 %v1050
        %1052 = vmatprep.subr.mxu0 0.0
        %v1053 = vand.u32 %v603, 4294901760
        %1054 = vmatpush1.msra.mxu0 %v1053
        %1055 = vmatprep.subr.mxu0 0.0
        %v1056 = vand.u32 %v604, 4294901760
        %1057 = vmatpush1.msra.mxu0 %v1056
        %1058 = vmatprep.subr.mxu0 0.0
        %v1059 = vand.u32 %v605, 4294901760
        %1060 = vmatpush1.msra.mxu0 %v1059
        %1061 = vmatprep.subr.mxu0 0.0
        %v1062 = vand.u32 %v606, 4294901760
        %1063 = vmatpush1.msra.mxu0 %v1062
        %1064 = vmatprep.subr.mxu0 0.0
        %v1065 = vand.u32 %v607, 4294901760
        %1066 = vmatpush1.msra.mxu0 %v1065
        %1067 = vmatprep.subr.mxu0 0.0
        %v1068 = vand.u32 %v608, 4294901760
        %1069 = vmatpush1.msra.mxu0 %v1068
        %1070 = vmatprep.subr.mxu0 0.0
        %v1071 = vand.u32 %v609, 4294901760
        %1072 = vmatpush1.msra.mxu0 %v1071
        %1073 = vmatprep.subr.mxu0 0.0
        %v1074 = vand.u32 %v610, 4294901760
        %1075 = vmatpush1.msra.mxu0 %v1074
        %1076 = vmatprep.subr.mxu0 0.0
        %v1077 = vand.u32 %v611, 4294901760
        %1078 = vmatpush1.msra.mxu0 %v1077
        %1079 = vmatprep.subr.mxu0 0.0
        %1080 = vmatpush1.msra.mxu0 0.0
        %1081 = vmatprep.subr.mxu0 0.0
        %1082 = vmatpush1.msra.mxu0 0.0
        %1083 = vmatprep.subr.mxu0 0.0
        %1084 = vmatpush1.msra.mxu0 0.0
        %1085 = vmatprep.subr.mxu0 0.0
        %1086 = vmatpush1.msra.mxu0 0.0
        %1087 = vmatprep.subr.mxu0 0.0
        %1088 = vmatpush1.msra.mxu0 0.0
        %1089 = vmatprep.subr.mxu0 0.0
        %1090 = vmatpush1.msra.mxu0 0.0
        %1091 = vmatprep.subr.mxu0 0.0
        %1092 = vmatpush1.msra.mxu0 0.0
        %1093 = vmatprep.subr.mxu0 0.0
        %1094 = vmatpush1.msra.mxu0 0.0
        %1095 = vmatprep.subr.mxu0 0.0
        %1096 = vmatpush1.msra.mxu0 0.0
        %1097 = vmatprep.subr.mxu0 0.0
        %1098 = vmatpush1.msra.mxu0 0.0
        %1099 = vmatprep.subr.mxu0 0.0
        %1100 = vmatpush1.msra.mxu0 0.0
        %1101 = vmatprep.subr.mxu0 0.0
        %1102 = vmatpush1.msra.mxu0 0.0
        %1103 = vmatprep.subr.mxu0 0.0
        %1104 = vmatpush1.msra.mxu0 0.0
        %1105 = vmatprep.subr.mxu0 0.0
        %1106 = vmatpush1.msra.mxu0 0.0
        %1107 = vmatprep.subr.mxu0 0.0
        %1108 = vmatpush1.msra.mxu0 0.0
        %1109 = vmatprep.subr.mxu0 0.0
        %1110 = vmatpush1.msra.mxu0 0.0
        %1111 = vmatprep.mubr.f32.mxu0 0.0
        %v1112 = vand.u32 %v591, 4294901760
        %v1113 = vsub.f32 %v591, %v1112
        %v1114 = vand.u32 %v1113, 4294901760
        %1115 = vmatmul.mubr.f32.gmra.mrb[0].mxu0 %v1114
        %v1116 = vpop.f32.mrb[0].mxu0
        %v1117 = vadd.f32 %v1007, %v1116
        %v1118 = vpop.f32.mrb[0].mxu0
        %1119 = vmatprep.mubr.f32.mxu0 0.0
        %v1120 = vand.u32 %v592, 4294901760
        %v1121 = vsub.f32 %v592, %v1120
        %v1122 = vand.u32 %v1121, 4294901760
        %1123 = vmatmul.mubr.f32.gmra.mrb[0].mxu0 %v1122
        %v1124 = vpop.f32.mrb[0].mxu0
        %v1125 = vadd.f32 %v1014, %v1124
        %v1126 = vpop.f32.mrb[0].mxu0
        %1127 = vmatprep.mubr.f32.mxu0 0.0
        %v1128 = vand.u32 %v593, 4294901760
        %v1129 = vsub.f32 %v593, %v1128
        %v1130 = vand.u32 %v1129, 4294901760
        %1131 = vmatmul.mubr.f32.gmra.mrb[0].mxu0 %v1130
        %v1132 = vpop.f32.mrb[0].mxu0
        %v1133 = vadd.f32 %v1021, %v1132
        %v1134 = vpop.f32.mrb[0].mxu0
        %1135 = vmatprep.mubr.f32.mxu0 0.0
        %v1136 = vand.u32 %v594, 4294901760
        %v1137 = vsub.f32 %v594, %v1136
        %v1138 = vand.u32 %v1137, 4294901760
        %1139 = vmatmul.mubr.f32.gmra.mrb[0].mxu0 %v1138
        %v1140 = vpop.f32.mrb[0].mxu0
        %v1141 = vadd.f32 %v1028, %v1140
        %v1142 = vpop.f32.mrb[0].mxu0
        %1143 = vdwg.mxu0
        %1144 = vmatprep.subr.mxu0 0.0
        %v1145 = vand.u32 %v596, 4294901760
        %v1146 = vsub.f32 %v596, %v1145
        %v1147 = vand.u32 %v1146, 4294901760
        %1148 = vmatpush1.msra.mxu0 %v1147
        %1149 = vmatprep.subr.mxu0 0.0
        %v1150 = vand.u32 %v597, 4294901760
        %v1151 = vsub.f32 %v597, %v1150
        %v1152 = vand.u32 %v1151, 4294901760
        %1153 = vmatpush1.msra.mxu0 %v1152
        %1154 = vmatprep.subr.mxu0 0.0
        %v1155 = vand.u32 %v598, 4294901760
        %v1156 = vsub.f32 %v598, %v1155
        %v1157 = vand.u32 %v1156, 4294901760
        %1158 = vmatpush1.msra.mxu0 %v1157
        %1159 = vmatprep.subr.mxu0 0.0
        %v1160 = vand.u32 %v599, 4294901760
        %v1161 = vsub.f32 %v599, %v1160
        %v1162 = vand.u32 %v1161, 4294901760
        %1163 = vmatpush1.msra.mxu0 %v1162
        %1164 = vmatprep.subr.mxu0 0.0
        %v1165 = vand.u32 %v600, 4294901760
        %v1166 = vsub.f32 %v600, %v1165
        %v1167 = vand.u32 %v1166, 4294901760
        %1168 = vmatpush1.msra.mxu0 %v1167
        %1169 = vmatprep.subr.mxu0 0.0
        %v1170 = vand.u32 %v601, 4294901760
        %v1171 = vsub.f32 %v601, %v1170
        %v1172 = vand.u32 %v1171, 4294901760
        %1173 = vmatpush1.msra.mxu0 %v1172
        %1174 = vmatprep.subr.mxu0 0.0
        %v1175 = vand.u32 %v602, 4294901760
        %v1176 = vsub.f32 %v602, %v1175
        %v1177 = vand.u32 %v1176, 4294901760
        %1178 = vmatpush1.msra.mxu0 %v1177
        %1179 = vmatprep.subr.mxu0 0.0
        %v1180 = vand.u32 %v603, 4294901760
        %v1181 = vsub.f32 %v603, %v1180
        %v1182 = vand.u32 %v1181, 4294901760
        %1183 = vmatpush1.msra.mxu0 %v1182
        %1184 = vmatprep.subr.mxu0 0.0
        %v1185 = vand.u32 %v604, 4294901760
        %v1186 = vsub.f32 %v604, %v1185
        %v1187 = vand.u32 %v1186, 4294901760
        %1188 = vmatpush1.msra.mxu0 %v1187
        %1189 = vmatprep.subr.mxu0 0.0
        %v1190 = vand.u32 %v605, 4294901760
        %v1191 = vsub.f32 %v605, %v1190
        %v1192 = vand.u32 %v1191, 4294901760
        %1193 = vmatpush1.msra.mxu0 %v1192
        %1194 = vmatprep.subr.mxu0 0.0
        %v1195 = vand.u32 %v606, 4294901760
        %v1196 = vsub.f32 %v606, %v1195
        %v1197 = vand.u32 %v1196, 4294901760
        %1198 = vmatpush1.msra.mxu0 %v1197
        %1199 = vmatprep.subr.mxu0 0.0
        %v1200 = vand.u32 %v607, 4294901760
        %v1201 = vsub.f32 %v607, %v1200
        %v1202 = vand.u32 %v1201, 4294901760
        %1203 = vmatpush1.msra.mxu0 %v1202
        %1204 = vmatprep.subr.mxu0 0.0
        %v1205 = vand.u32 %v608, 4294901760
        %v1206 = vsub.f32 %v608, %v1205
        %v1207 = vand.u32 %v1206, 4294901760
        %1208 = vmatpush1.msra.mxu0 %v1207
        %1209 = vmatprep.subr.mxu0 0.0
        %v1210 = vand.u32 %v609, 4294901760
        %v1211 = vsub.f32 %v609, %v1210
        %v1212 = vand.u32 %v1211, 4294901760
        %1213 = vmatpush1.msra.mxu0 %v1212
        %1214 = vmatprep.subr.mxu0 0.0
        %v1215 = vand.u32 %v610, 4294901760
        %v1216 = vsub.f32 %v610, %v1215
        %v1217 = vand.u32 %v1216, 4294901760
        %1218 = vmatpush1.msra.mxu0 %v1217
        %1219 = vmatprep.subr.mxu0 0.0
        %v1220 = vand.u32 %v611, 4294901760
        %v1221 = vsub.f32 %v611, %v1220
        %v1222 = vand.u32 %v1221, 4294901760
        %1223 = vmatpush1.msra.mxu0 %v1222
        %1224 = vmatprep.subr.mxu0 0.0
        %1225 = vmatpush1.msra.mxu0 0.0
        %1226 = vmatprep.subr.mxu0 0.0
        %1227 = vmatpush1.msra.mxu0 0.0
        %1228 = vmatprep.subr.mxu0 0.0
        %1229 = vmatpush1.msra.mxu0 0.0
        %1230 = vmatprep.subr.mxu0 0.0
        %1231 = vmatpush1.msra.mxu0 0.0
        %1232 = vmatprep.subr.mxu0 0.0
        %1233 = vmatpush1.msra.mxu0 0.0
        %1234 = vmatprep.subr.mxu0 0.0
        %1235 = vmatpush1.msra.mxu0 0.0
        %1236 = vmatprep.subr.mxu0 0.0
        %1237 = vmatpush1.msra.mxu0 0.0
        %1238 = vmatprep.subr.mxu0 0.0
        %1239 = vmatpush1.msra.mxu0 0.0
        %1240 = vmatprep.subr.mxu0 0.0
        %1241 = vmatpush1.msra.mxu0 0.0
        %1242 = vmatprep.subr.mxu0 0.0
        %1243 = vmatpush1.msra.mxu0 0.0
        %1244 = vmatprep.subr.mxu0 0.0
        %1245 = vmatpush1.msra.mxu0 0.0
        %1246 = vmatprep.subr.mxu0 0.0
        %1247 = vmatpush1.msra.mxu0 0.0
        %1248 = vmatprep.subr.mxu0 0.0
        %1249 = vmatpush1.msra.mxu0 0.0
        %1250 = vmatprep.subr.mxu0 0.0
        %1251 = vmatpush1.msra.mxu0 0.0
        %1252 = vmatprep.subr.mxu0 0.0
        %1253 = vmatpush1.msra.mxu0 0.0
        %1254 = vmatprep.subr.mxu0 0.0
        %1255 = vmatpush1.msra.mxu0 0.0
        %1256 = vmatprep.mubr.f32.mxu0 0.0
        %v1257 = vand.u32 %v591, 4294901760
        %1258 = vmatmul.mubr.f32.gmra.mrb[0].mxu0 %v1257
        %v1259 = vpop.f32.mrb[0].mxu0
        %v1260 = vadd.f32 %v1117, %v1259
        %v1261 = vpop.f32.mrb[0].mxu0
        %1262 = vmatprep.mubr.f32.mxu0 0.0
        %v1263 = vand.u32 %v592, 4294901760
        %1264 = vmatmul.mubr.f32.gmra.mrb[0].mxu0 %v1263
        %v1265 = vpop.f32.mrb[0].mxu0
        %v1266 = vadd.f32 %v1125, %v1265
        %v1267 = vpop.f32.mrb[0].mxu0
        %1268 = vmatprep.mubr.f32.mxu0 0.0
        %v1269 = vand.u32 %v593, 4294901760
        %1270 = vmatmul.mubr.f32.gmra.mrb[0].mxu0 %v1269
        %v1271 = vpop.f32.mrb[0].mxu0
        %v1272 = vadd.f32 %v1133, %v1271
        %v1273 = vpop.f32.mrb[0].mxu0
        %1274 = vmatprep.mubr.f32.mxu0 0.0
        %v1275 = vand.u32 %v594, 4294901760
        %1276 = vmatmul.mubr.f32.gmra.mrb[0].mxu0 %v1275
        %v1277 = vpop.f32.mrb[0].mxu0
        %v1278 = vadd.f32 %v1141, %v1277
        %v1279 = vpop.f32.mrb[0].mxu0
        %1280 = vdwg.mxu0
        %1281 = vmatprep.subr.mxu0 0.0
        %v1282 = vand.u32 %v596, 4294901760
        %1283 = vmatpush1.msra.mxu0 %v1282
        %1284 = vmatprep.subr.mxu0 0.0
        %v1285 = vand.u32 %v597, 4294901760
        %1286 = vmatpush1.msra.mxu0 %v1285
        %1287 = vmatprep.subr.mxu0 0.0
        %v1288 = vand.u32 %v598, 4294901760
        %1289 = vmatpush1.msra.mxu0 %v1288
        %1290 = vmatprep.subr.mxu0 0.0
        %v1291 = vand.u32 %v599, 4294901760
        %1292 = vmatpush1.msra.mxu0 %v1291
        %1293 = vmatprep.subr.mxu0 0.0
        %v1294 = vand.u32 %v600, 4294901760
        %1295 = vmatpush1.msra.mxu0 %v1294
        %1296 = vmatprep.subr.mxu0 0.0
        %v1297 = vand.u32 %v601, 4294901760
        %1298 = vmatpush1.msra.mxu0 %v1297
        %1299 = vmatprep.subr.mxu0 0.0
        %v1300 = vand.u32 %v602, 4294901760
        %1301 = vmatpush1.msra.mxu0 %v1300
        %1302 = vmatprep.subr.mxu0 0.0
        %v1303 = vand.u32 %v603, 4294901760
        %1304 = vmatpush1.msra.mxu0 %v1303
        %1305 = vmatprep.subr.mxu0 0.0
        %v1306 = vand.u32 %v604, 4294901760
        %1307 = vmatpush1.msra.mxu0 %v1306
        %1308 = vmatprep.subr.mxu0 0.0
        %v1309 = vand.u32 %v605, 4294901760
        %1310 = vmatpush1.msra.mxu0 %v1309
        %1311 = vmatprep.subr.mxu0 0.0
        %v1312 = vand.u32 %v606, 4294901760
        %1313 = vmatpush1.msra.mxu0 %v1312
        %1314 = vmatprep.subr.mxu0 0.0
        %v1315 = vand.u32 %v607, 4294901760
        %1316 = vmatpush1.msra.mxu0 %v1315
        %1317 = vmatprep.subr.mxu0 0.0
        %v1318 = vand.u32 %v608, 4294901760
        %1319 = vmatpush1.msra.mxu0 %v1318
        %1320 = vmatprep.subr.mxu0 0.0
        %v1321 = vand.u32 %v609, 4294901760
        %1322 = vmatpush1.msra.mxu0 %v1321
        %1323 = vmatprep.subr.mxu0 0.0
        %v1324 = vand.u32 %v610, 4294901760
        %1325 = vmatpush1.msra.mxu0 %v1324
        %1326 = vmatprep.subr.mxu0 0.0
        %v1327 = vand.u32 %v611, 4294901760
        %1328 = vmatpush1.msra.mxu0 %v1327
        %1329 = vmatprep.subr.mxu0 0.0
        %1330 = vmatpush1.msra.mxu0 0.0
        %1331 = vmatprep.subr.mxu0 0.0
        %1332 = vmatpush1.msra.mxu0 0.0
        %1333 = vmatprep.subr.mxu0 0.0
        %1334 = vmatpush1.msra.mxu0 0.0
        %1335 = vmatprep.subr.mxu0 0.0
        %1336 = vmatpush1.msra.mxu0 0.0
        %1337 = vmatprep.subr.mxu0 0.0
        %1338 = vmatpush1.msra.mxu0 0.0
        %1339 = vmatprep.subr.mxu0 0.0
        %1340 = vmatpush1.msra.mxu0 0.0
        %1341 = vmatprep.subr.mxu0 0.0
        %1342 = vmatpush1.msra.mxu0 0.0
        %1343 = vmatprep.subr.mxu0 0.0
        %1344 = vmatpush1.msra.mxu0 0.0
        %1345 = vmatprep.subr.mxu0 0.0
        %1346 = vmatpush1.msra.mxu0 0.0
        %1347 = vmatprep.subr.mxu0 0.0
        %1348 = vmatpush1.msra.mxu0 0.0
        %1349 = vmatprep.subr.mxu0 0.0
        %1350 = vmatpush1.msra.mxu0 0.0
        %1351 = vmatprep.subr.mxu0 0.0
        %1352 = vmatpush1.msra.mxu0 0.0
        %1353 = vmatprep.subr.mxu0 0.0
        %1354 = vmatpush1.msra.mxu0 0.0
        %1355 = vmatprep.subr.mxu0 0.0
        %1356 = vmatpush1.msra.mxu0 0.0
        %1357 = vmatprep.subr.mxu0 0.0
        %1358 = vmatpush1.msra.mxu0 0.0
        %1359 = vmatprep.subr.mxu0 0.0
        %1360 = vmatpush1.msra.mxu0 0.0
        %1361 = vmatprep.mubr.f32.mxu0 0.0
        %v1362 = vand.u32 %v591, 4294901760
        %1363 = vmatmul.mubr.f32.gmra.mrb[0].mxu0 %v1362
        %v1364 = vpop.f32.mrb[0].mxu0
        %v1365 = vadd.f32 %v1260, %v1364
        %v1366 = vpop.f32.mrb[0].mxu0
        %1367 = vmatprep.mubr.f32.mxu0 0.0
        %v1368 = vand.u32 %v592, 4294901760
        %1369 = vmatmul.mubr.f32.gmra.mrb[0].mxu0 %v1368
        %v1370 = vpop.f32.mrb[0].mxu0
        %v1371 = vadd.f32 %v1266, %v1370
        %v1372 = vpop.f32.mrb[0].mxu0
        %1373 = vmatprep.mubr.f32.mxu0 0.0
        %v1374 = vand.u32 %v593, 4294901760
        %1375 = vmatmul.mubr.f32.gmra.mrb[0].mxu0 %v1374
        %v1376 = vpop.f32.mrb[0].mxu0
        %v1377 = vadd.f32 %v1272, %v1376
        %v1378 = vpop.f32.mrb[0].mxu0
        %1379 = vmatprep.mubr.f32.mxu0 0.0
        %v1380 = vand.u32 %v594, 4294901760
        %1381 = vmatmul.mubr.f32.gmra.mrb[0].mxu0 %v1380
        %v1382 = vpop.f32.mrb[0].mxu0
        %v1383 = vadd.f32 %v1278, %v1382
        %v1384 = vpop.f32.mrb[0].mxu0
        %1385 = vdwg.mxu0
        %v1386 = vld [vmem:[%s4] sm:$0xff]
        %v1387 = vld [vmem:[%s4 + $0x8] sm:$0xff]
        %v1388 = vld [vmem:[%s4 + $0x10] sm:$0xff]
        %v1389 = vld [vmem:[%s4 + $0x18] sm:$0xff]
        %v1390 = vld [vmem:[%s4 + $0x20] sm:$0xff]
        %v1391 = vld [vmem:[%s4 + $0x28] sm:$0xff]
        %v1392 = vld [vmem:[%s4 + $0x30] sm:$0xff]
        %v1393 = vld [vmem:[%s4 + $0x38] sm:$0xff]
        %v1394 = vld [vmem:[%s4 + $0x40] sm:$0xff]
        %v1395 = vld [vmem:[%s4 + $0x48] sm:$0xff]
        %v1396 = vld [vmem:[%s4 + $0x50] sm:$0xff]
        %v1397 = vld [vmem:[%s4 + $0x58] sm:$0xff]
        %v1398 = vld [vmem:[%s4 + $0x60] sm:$0xff]
        %v1399 = vld [vmem:[%s4 + $0x68] sm:$0xff]
        %v1400 = vld [vmem:[%s4 + $0x70] sm:$0xff]
        %v1401 = vld [vmem:[%s4 + $0x78] sm:$0xff]
        %v1402 = vld [vmem:[%s5] sm:$0xff]
        %v1403 = vld [vmem:[%s5 + $0x8] sm:$0xff]
        %v1404 = vld [vmem:[%s5 + $0x10] sm:$0xff]
        %v1405 = vld [vmem:[%s5 + $0x18] sm:$0xff]
        %1406 = vmatprep.subr.mxu0 0.0
        %v1407 = vand.u32 %v1386, 4294901760
        %1408 = vmatpush1.msra.mxu0 %v1407
        %1409 = vmatprep.subr.mxu0 0.0
        %v1410 = vand.u32 %v1387, 4294901760
        %1411 = vmatpush1.msra.mxu0 %v1410
        %1412 = vmatprep.subr.mxu0 0.0
        %v1413 = vand.u32 %v1388, 4294901760
        %1414 = vmatpush1.msra.mxu0 %v1413
        %1415 = vmatprep.subr.mxu0 0.0
        %v1416 = vand.u32 %v1389, 4294901760
        %1417 = vmatpush1.msra.mxu0 %v1416
        %1418 = vmatprep.subr.mxu0 0.0
        %v1419 = vand.u32 %v1390, 4294901760
        %1420 = vmatpush1.msra.mxu0 %v1419
        %1421 = vmatprep.subr.mxu0 0.0
        %v1422 = vand.u32 %v1391, 4294901760
        %1423 = vmatpush1.msra.mxu0 %v1422
        %1424 = vmatprep.subr.mxu0 0.0
        %v1425 = vand.u32 %v1392, 4294901760
        %1426 = vmatpush1.msra.mxu0 %v1425
        %1427 = vmatprep.subr.mxu0 0.0
        %v1428 = vand.u32 %v1393, 4294901760
        %1429 = vmatpush1.msra.mxu0 %v1428
        %1430 = vmatprep.subr.mxu0 0.0
        %v1431 = vand.u32 %v1394, 4294901760
        %1432 = vmatpush1.msra.mxu0 %v1431
        %1433 = vmatprep.subr.mxu0 0.0
        %v1434 = vand.u32 %v1395, 4294901760
        %1435 = vmatpush1.msra.mxu0 %v1434
        %1436 = vmatprep.subr.mxu0 0.0
        %v1437 = vand.u32 %v1396, 4294901760
        %1438 = vmatpush1.msra.mxu0 %v1437
        %1439 = vmatprep.subr.mxu0 0.0
        %v1440 = vand.u32 %v1397, 4294901760
        %1441 = vmatpush1.msra.mxu0 %v1440
        %1442 = vmatprep.subr.mxu0 0.0
        %v1443 = vand.u32 %v1398, 4294901760
        %1444 = vmatpush1.msra.mxu0 %v1443
        %1445 = vmatprep.subr.mxu0 0.0
        %v1446 = vand.u32 %v1399, 4294901760
        %1447 = vmatpush1.msra.mxu0 %v1446
        %1448 = vmatprep.subr.mxu0 0.0
        %v1449 = vand.u32 %v1400, 4294901760
        %1450 = vmatpush1.msra.mxu0 %v1449
        %1451 = vmatprep.subr.mxu0 0.0
        %v1452 = vand.u32 %v1401, 4294901760
        %1453 = vmatpush1.msra.mxu0 %v1452
        %1454 = vmatprep.subr.mxu0 0.0
        %1455 = vmatpush1.msra.mxu0 0.0
        %1456 = vmatprep.subr.mxu0 0.0
        %1457 = vmatpush1.msra.mxu0 0.0
        %1458 = vmatprep.subr.mxu0 0.0
        %1459 = vmatpush1.msra.mxu0 0.0
        %1460 = vmatprep.subr.mxu0 0.0
        %1461 = vmatpush1.msra.mxu0 0.0
        %1462 = vmatprep.subr.mxu0 0.0
        %1463 = vmatpush1.msra.mxu0 0.0
        %1464 = vmatprep.subr.mxu0 0.0
        %1465 = vmatpush1.msra.mxu0 0.0
        %1466 = vmatprep.subr.mxu0 0.0
        %1467 = vmatpush1.msra.mxu0 0.0
        %1468 = vmatprep.subr.mxu0 0.0
        %1469 = vmatpush1.msra.mxu0 0.0
        %1470 = vmatprep.subr.mxu0 0.0
        %1471 = vmatpush1.msra.mxu0 0.0
        %1472 = vmatprep.subr.mxu0 0.0
        %1473 = vmatpush1.msra.mxu0 0.0
        %1474 = vmatprep.subr.mxu0 0.0
        %1475 = vmatpush1.msra.mxu0 0.0
        %1476 = vmatprep.subr.mxu0 0.0
        %1477 = vmatpush1.msra.mxu0 0.0
        %1478 = vmatprep.subr.mxu0 0.0
        %1479 = vmatpush1.msra.mxu0 0.0
        %1480 = vmatprep.subr.mxu0 0.0
        %1481 = vmatpush1.msra.mxu0 0.0
        %1482 = vmatprep.subr.mxu0 0.0
        %1483 = vmatpush1.msra.mxu0 0.0
        %1484 = vmatprep.subr.mxu0 0.0
        %1485 = vmatpush1.msra.mxu0 0.0
        %1486 = vmatprep.mubr.f32.mxu0 0.0
        %v1487 = vand.u32 %v591, 4294901760
        %v1488 = vsub.f32 %v591, %v1487
        %v1489 = vand.u32 %v1488, 4294901760
        %v1490 = vsub.f32 %v1488, %v1489
        %v1491 = vand.u32 %v1490, 4294901760
        %1492 = vmatmul.mubr.f32.gmra.mrb[0].mxu0 %v1491
        %v1493 = vpop.f32.mrb[0].mxu0
        %v1494 = vadd.f32 %v1402, %v1493
        %v1495 = vpop.f32.mrb[0].mxu0
        %1496 = vmatprep.mubr.f32.mxu0 0.0
        %v1497 = vand.u32 %v592, 4294901760
        %v1498 = vsub.f32 %v592, %v1497
        %v1499 = vand.u32 %v1498, 4294901760
        %v1500 = vsub.f32 %v1498, %v1499
        %v1501 = vand.u32 %v1500, 4294901760
        %1502 = vmatmul.mubr.f32.gmra.mrb[0].mxu0 %v1501
        %v1503 = vpop.f32.mrb[0].mxu0
        %v1504 = vadd.f32 %v1403, %v1503
        %v1505 = vpop.f32.mrb[0].mxu0
        %1506 = vmatprep.mubr.f32.mxu0 0.0
        %v1507 = vand.u32 %v593, 4294901760
        %v1508 = vsub.f32 %v593, %v1507
        %v1509 = vand.u32 %v1508, 4294901760
        %v1510 = vsub.f32 %v1508, %v1509
        %v1511 = vand.u32 %v1510, 4294901760
        %1512 = vmatmul.mubr.f32.gmra.mrb[0].mxu0 %v1511
        %v1513 = vpop.f32.mrb[0].mxu0
        %v1514 = vadd.f32 %v1404, %v1513
        %v1515 = vpop.f32.mrb[0].mxu0
        %1516 = vmatprep.mubr.f32.mxu0 0.0
        %v1517 = vand.u32 %v594, 4294901760
        %v1518 = vsub.f32 %v594, %v1517
        %v1519 = vand.u32 %v1518, 4294901760
        %v1520 = vsub.f32 %v1518, %v1519
        %v1521 = vand.u32 %v1520, 4294901760
        %1522 = vmatmul.mubr.f32.gmra.mrb[0].mxu0 %v1521
        %v1523 = vpop.f32.mrb[0].mxu0
        %v1524 = vadd.f32 %v1405, %v1523
        %v1525 = vpop.f32.mrb[0].mxu0
        %1526 = vdwg.mxu0
        %1527 = vmatprep.subr.mxu0 0.0
        %v1528 = vand.u32 %v1386, 4294901760
        %v1529 = vsub.f32 %v1386, %v1528
        %v1530 = vand.u32 %v1529, 4294901760
        %v1531 = vsub.f32 %v1529, %v1530
        %v1532 = vand.u32 %v1531, 4294901760
        %1533 = vmatpush1.msra.mxu0 %v1532
        %1534 = vmatprep.subr.mxu0 0.0
        %v1535 = vand.u32 %v1387, 4294901760
        %v1536 = vsub.f32 %v1387, %v1535
        %v1537 = vand.u32 %v1536, 4294901760
        %v1538 = vsub.f32 %v1536, %v1537
        %v1539 = vand.u32 %v1538, 4294901760
        %1540 = vmatpush1.msra.mxu0 %v1539
        %1541 = vmatprep.subr.mxu0 0.0
        %v1542 = vand.u32 %v1388, 4294901760
        %v1543 = vsub.f32 %v1388, %v1542
        %v1544 = vand.u32 %v1543, 4294901760
        %v1545 = vsub.f32 %v1543, %v1544
        %v1546 = vand.u32 %v1545, 4294901760
        %1547 = vmatpush1.msra.mxu0 %v1546
        %1548 = vmatprep.subr.mxu0 0.0
        %v1549 = vand.u32 %v1389, 4294901760
        %v1550 = vsub.f32 %v1389, %v1549
        %v1551 = vand.u32 %v1550, 4294901760
        %v1552 = vsub.f32 %v1550, %v1551
        %v1553 = vand.u32 %v1552, 4294901760
        %1554 = vmatpush1.msra.mxu0 %v1553
        %1555 = vmatprep.subr.mxu0 0.0
        %v1556 = vand.u32 %v1390, 4294901760
        %v1557 = vsub.f32 %v1390, %v1556
        %v1558 = vand.u32 %v1557, 4294901760
        %v1559 = vsub.f32 %v1557, %v1558
        %v1560 = vand.u32 %v1559, 4294901760
        %1561 = vmatpush1.msra.mxu0 %v1560
        %1562 = vmatprep.subr.mxu0 0.0
        %v1563 = vand.u32 %v1391, 4294901760
        %v1564 = vsub.f32 %v1391, %v1563
        %v1565 = vand.u32 %v1564, 4294901760
        %v1566 = vsub.f32 %v1564, %v1565
        %v1567 = vand.u32 %v1566, 4294901760
        %1568 = vmatpush1.msra.mxu0 %v1567
        %1569 = vmatprep.subr.mxu0 0.0
        %v1570 = vand.u32 %v1392, 4294901760
        %v1571 = vsub.f32 %v1392, %v1570
        %v1572 = vand.u32 %v1571, 4294901760
        %v1573 = vsub.f32 %v1571, %v1572
        %v1574 = vand.u32 %v1573, 4294901760
        %1575 = vmatpush1.msra.mxu0 %v1574
        %1576 = vmatprep.subr.mxu0 0.0
        %v1577 = vand.u32 %v1393, 4294901760
        %v1578 = vsub.f32 %v1393, %v1577
        %v1579 = vand.u32 %v1578, 4294901760
        %v1580 = vsub.f32 %v1578, %v1579
        %v1581 = vand.u32 %v1580, 4294901760
        %1582 = vmatpush1.msra.mxu0 %v1581
        %1583 = vmatprep.subr.mxu0 0.0
        %v1584 = vand.u32 %v1394, 4294901760
        %v1585 = vsub.f32 %v1394, %v1584
        %v1586 = vand.u32 %v1585, 4294901760
        %v1587 = vsub.f32 %v1585, %v1586
        %v1588 = vand.u32 %v1587, 4294901760
        %1589 = vmatpush1.msra.mxu0 %v1588
        %1590 = vmatprep.subr.mxu0 0.0
        %v1591 = vand.u32 %v1395, 4294901760
        %v1592 = vsub.f32 %v1395, %v1591
        %v1593 = vand.u32 %v1592, 4294901760
        %v1594 = vsub.f32 %v1592, %v1593
        %v1595 = vand.u32 %v1594, 4294901760
        %1596 = vmatpush1.msra.mxu0 %v1595
        %1597 = vmatprep.subr.mxu0 0.0
        %v1598 = vand.u32 %v1396, 4294901760
        %v1599 = vsub.f32 %v1396, %v1598
        %v1600 = vand.u32 %v1599, 4294901760
        %v1601 = vsub.f32 %v1599, %v1600
        %v1602 = vand.u32 %v1601, 4294901760
        %1603 = vmatpush1.msra.mxu0 %v1602
        %1604 = vmatprep.subr.mxu0 0.0
        %v1605 = vand.u32 %v1397, 4294901760
        %v1606 = vsub.f32 %v1397, %v1605
        %v1607 = vand.u32 %v1606, 4294901760
        %v1608 = vsub.f32 %v1606, %v1607
        %v1609 = vand.u32 %v1608, 4294901760
        %1610 = vmatpush1.msra.mxu0 %v1609
        %1611 = vmatprep.subr.mxu0 0.0
        %v1612 = vand.u32 %v1398, 4294901760
        %v1613 = vsub.f32 %v1398, %v1612
        %v1614 = vand.u32 %v1613, 4294901760
        %v1615 = vsub.f32 %v1613, %v1614
        %v1616 = vand.u32 %v1615, 4294901760
        %1617 = vmatpush1.msra.mxu0 %v1616
        %1618 = vmatprep.subr.mxu0 0.0
        %v1619 = vand.u32 %v1399, 4294901760
        %v1620 = vsub.f32 %v1399, %v1619
        %v1621 = vand.u32 %v1620, 4294901760
        %v1622 = vsub.f32 %v1620, %v1621
        %v1623 = vand.u32 %v1622, 4294901760
        %1624 = vmatpush1.msra.mxu0 %v1623
        %1625 = vmatprep.subr.mxu0 0.0
        %v1626 = vand.u32 %v1400, 4294901760
        %v1627 = vsub.f32 %v1400, %v1626
        %v1628 = vand.u32 %v1627, 4294901760
        %v1629 = vsub.f32 %v1627, %v1628
        %v1630 = vand.u32 %v1629, 4294901760
        %1631 = vmatpush1.msra.mxu0 %v1630
        %1632 = vmatprep.subr.mxu0 0.0
        %v1633 = vand.u32 %v1401, 4294901760
        %v1634 = vsub.f32 %v1401, %v1633
        %v1635 = vand.u32 %v1634, 4294901760
        %v1636 = vsub.f32 %v1634, %v1635
        %v1637 = vand.u32 %v1636, 4294901760
        %1638 = vmatpush1.msra.mxu0 %v1637
        %1639 = vmatprep.subr.mxu0 0.0
        %1640 = vmatpush1.msra.mxu0 0.0
        %1641 = vmatprep.subr.mxu0 0.0
        %1642 = vmatpush1.msra.mxu0 0.0
        %1643 = vmatprep.subr.mxu0 0.0
        %1644 = vmatpush1.msra.mxu0 0.0
        %1645 = vmatprep.subr.mxu0 0.0
        %1646 = vmatpush1.msra.mxu0 0.0
        %1647 = vmatprep.subr.mxu0 0.0
        %1648 = vmatpush1.msra.mxu0 0.0
        %1649 = vmatprep.subr.mxu0 0.0
        %1650 = vmatpush1.msra.mxu0 0.0
        %1651 = vmatprep.subr.mxu0 0.0
        %1652 = vmatpush1.msra.mxu0 0.0
        %1653 = vmatprep.subr.mxu0 0.0
        %1654 = vmatpush1.msra.mxu0 0.0
        %1655 = vmatprep.subr.mxu0 0.0
        %1656 = vmatpush1.msra.mxu0 0.0
        %1657 = vmatprep.subr.mxu0 0.0
        %1658 = vmatpush1.msra.mxu0 0.0
        %1659 = vmatprep.subr.mxu0 0.0
        %1660 = vmatpush1.msra.mxu0 0.0
        %1661 = vmatprep.subr.mxu0 0.0
        %1662 = vmatpush1.msra.mxu0 0.0
        %1663 = vmatprep.subr.mxu0 0.0
        %1664 = vmatpush1.msra.mxu0 0.0
        %1665 = vmatprep.subr.mxu0 0.0
        %1666 = vmatpush1.msra.mxu0 0.0
        %1667 = vmatprep.subr.mxu0 0.0
        %1668 = vmatpush1.msra.mxu0 0.0
        %1669 = vmatprep.subr.mxu0 0.0
        %1670 = vmatpush1.msra.mxu0 0.0
        %1671 = vmatprep.mubr.f32.mxu0 0.0
        %v1672 = vand.u32 %v591, 4294901760
        %1673 = vmatmul.mubr.f32.gmra.mrb[0].mxu0 %v1672
        %v1674 = vpop.f32.mrb[0].mxu0
        %v1675 = vadd.f32 %v1494, %v1674
        %v1676 = vpop.f32.mrb[0].mxu0
        %1677 = vmatprep.mubr.f32.mxu0 0.0
        %v1678 = vand.u32 %v592, 4294901760
        %1679 = vmatmul.mubr.f32.gmra.mrb[0].mxu0 %v1678
        %v1680 = vpop.f32.mrb[0].mxu0
        %v1681 = vadd.f32 %v1504, %v1680
        %v1682 = vpop.f32.mrb[0].mxu0
        %1683 = vmatprep.mubr.f32.mxu0 0.0
        %v1684 = vand.u32 %v593, 4294901760
        %1685 = vmatmul.mubr.f32.gmra.mrb[0].mxu0 %v1684
        %v1686 = vpop.f32.mrb[0].mxu0
        %v1687 = vadd.f32 %v1514, %v1686
        %v1688 = vpop.f32.mrb[0].mxu0
        %1689 = vmatprep.mubr.f32.mxu0 0.0
        %v1690 = vand.u32 %v594, 4294901760
        %1691 = vmatmul.mubr.f32.gmra.mrb[0].mxu0 %v1690
        %v1692 = vpop.f32.mrb[0].mxu0
        %v1693 = vadd.f32 %v1524, %v1692
        %v1694 = vpop.f32.mrb[0].mxu0
        %1695 = vdwg.mxu0
        %1696 = vmatprep.subr.mxu0 0.0
        %v1697 = vand.u32 %v1386, 4294901760
        %v1698 = vsub.f32 %v1386, %v1697
        %1699 = vmatpush1.msra.mxu0 %v1698
        %1700 = vmatprep.subr.mxu0 0.0
        %v1701 = vand.u32 %v1387, 4294901760
        %v1702 = vsub.f32 %v1387, %v1701
        %1703 = vmatpush1.msra.mxu0 %v1702
        %1704 = vmatprep.subr.mxu0 0.0
        %v1705 = vand.u32 %v1388, 4294901760
        %v1706 = vsub.f32 %v1388, %v1705
        %1707 = vmatpush1.msra.mxu0 %v1706
        %1708 = vmatprep.subr.mxu0 0.0
        %v1709 = vand.u32 %v1389, 4294901760
        %v1710 = vsub.f32 %v1389, %v1709
        %1711 = vmatpush1.msra.mxu0 %v1710
        %1712 = vmatprep.subr.mxu0 0.0
        %v1713 = vand.u32 %v1390, 4294901760
        %v1714 = vsub.f32 %v1390, %v1713
        %1715 = vmatpush1.msra.mxu0 %v1714
        %1716 = vmatprep.subr.mxu0 0.0
        %v1717 = vand.u32 %v1391, 4294901760
        %v1718 = vsub.f32 %v1391, %v1717
        %1719 = vmatpush1.msra.mxu0 %v1718
        %1720 = vmatprep.subr.mxu0 0.0
        %v1721 = vand.u32 %v1392, 4294901760
        %v1722 = vsub.f32 %v1392, %v1721
        %1723 = vmatpush1.msra.mxu0 %v1722
        %1724 = vmatprep.subr.mxu0 0.0
        %v1725 = vand.u32 %v1393, 4294901760
        %v1726 = vsub.f32 %v1393, %v1725
        %1727 = vmatpush1.msra.mxu0 %v1726
        %1728 = vmatprep.subr.mxu0 0.0
        %v1729 = vand.u32 %v1394, 4294901760
        %v1730 = vsub.f32 %v1394, %v1729
        %1731 = vmatpush1.msra.mxu0 %v1730
        %1732 = vmatprep.subr.mxu0 0.0
        %v1733 = vand.u32 %v1395, 4294901760
        %v1734 = vsub.f32 %v1395, %v1733
        %1735 = vmatpush1.msra.mxu0 %v1734
        %1736 = vmatprep.subr.mxu0 0.0
        %v1737 = vand.u32 %v1396, 4294901760
        %v1738 = vsub.f32 %v1396, %v1737
        %1739 = vmatpush1.msra.mxu0 %v1738
        %1740 = vmatprep.subr.mxu0 0.0
        %v1741 = vand.u32 %v1397, 4294901760
        %v1742 = vsub.f32 %v1397, %v1741
        %1743 = vmatpush1.msra.mxu0 %v1742
        %1744 = vmatprep.subr.mxu0 0.0
        %v1745 = vand.u32 %v1398, 4294901760
        %v1746 = vsub.f32 %v1398, %v1745
        %1747 = vmatpush1.msra.mxu0 %v1746
        %1748 = vmatprep.subr.mxu0 0.0
        %v1749 = vand.u32 %v1399, 4294901760
        %v1750 = vsub.f32 %v1399, %v1749
        %1751 = vmatpush1.msra.mxu0 %v1750
        %1752 = vmatprep.subr.mxu0 0.0
        %v1753 = vand.u32 %v1400, 4294901760
        %v1754 = vsub.f32 %v1400, %v1753
        %1755 = vmatpush1.msra.mxu0 %v1754
        %1756 = vmatprep.subr.mxu0 0.0
        %v1757 = vand.u32 %v1401, 4294901760
        %v1758 = vsub.f32 %v1401, %v1757
        %1759 = vmatpush1.msra.mxu0 %v1758
        %1760 = vmatprep.subr.mxu0 0.0
        %1761 = vmatpush1.msra.mxu0 0.0
        %1762 = vmatprep.subr.mxu0 0.0
        %1763 = vmatpush1.msra.mxu0 0.0
        %1764 = vmatprep.subr.mxu0 0.0
        %1765 = vmatpush1.msra.mxu0 0.0
        %1766 = vmatprep.subr.mxu0 0.0
        %1767 = vmatpush1.msra.mxu0 0.0
        %1768 = vmatprep.subr.mxu0 0.0
        %1769 = vmatpush1.msra.mxu0 0.0
        %1770 = vmatprep.subr.mxu0 0.0
        %1771 = vmatpush1.msra.mxu0 0.0
        %1772 = vmatprep.subr.mxu0 0.0
        %1773 = vmatpush1.msra.mxu0 0.0
        %1774 = vmatprep.subr.mxu0 0.0
        %1775 = vmatpush1.msra.mxu0 0.0
        %1776 = vmatprep.subr.mxu0 0.0
        %1777 = vmatpush1.msra.mxu0 0.0
        %1778 = vmatprep.subr.mxu0 0.0
        %1779 = vmatpush1.msra.mxu0 0.0
        %1780 = vmatprep.subr.mxu0 0.0
        %1781 = vmatpush1.msra.mxu0 0.0
        %1782 = vmatprep.subr.mxu0 0.0
        %1783 = vmatpush1.msra.mxu0 0.0
        %1784 = vmatprep.subr.mxu0 0.0
        %1785 = vmatpush1.msra.mxu0 0.0
        %1786 = vmatprep.subr.mxu0 0.0
        %1787 = vmatpush1.msra.mxu0 0.0
        %1788 = vmatprep.subr.mxu0 0.0
        %1789 = vmatpush1.msra.mxu0 0.0
        %1790 = vmatprep.subr.mxu0 0.0
        %1791 = vmatpush1.msra.mxu0 0.0
        %1792 = vmatprep.mubr.f32.mxu0 0.0
        %v1793 = vand.u32 %v591, 4294901760
        %v1794 = vsub.f32 %v591, %v1793
        %1795 = vmatmul.mubr.f32.gmra.mrb[0].mxu0 %v1794
        %v1796 = vpop.f32.mrb[0].mxu0
        %v1797 = vadd.f32 %v1675, %v1796
        %v1798 = vpop.f32.mrb[0].mxu0
        %1799 = vmatprep.mubr.f32.mxu0 0.0
        %v1800 = vand.u32 %v592, 4294901760
        %v1801 = vsub.f32 %v592, %v1800
        %1802 = vmatmul.mubr.f32.gmra.mrb[0].mxu0 %v1801
        %v1803 = vpop.f32.mrb[0].mxu0
        %v1804 = vadd.f32 %v1681, %v1803
        %v1805 = vpop.f32.mrb[0].mxu0
        %1806 = vmatprep.mubr.f32.mxu0 0.0
        %v1807 = vand.u32 %v593, 4294901760
        %v1808 = vsub.f32 %v593, %v1807
        %1809 = vmatmul.mubr.f32.gmra.mrb[0].mxu0 %v1808
        %v1810 = vpop.f32.mrb[0].mxu0
        %v1811 = vadd.f32 %v1687, %v1810
        %v1812 = vpop.f32.mrb[0].mxu0
        %1813 = vmatprep.mubr.f32.mxu0 0.0
        %v1814 = vand.u32 %v594, 4294901760
        %v1815 = vsub.f32 %v594, %v1814
        %1816 = vmatmul.mubr.f32.gmra.mrb[0].mxu0 %v1815
        %v1817 = vpop.f32.mrb[0].mxu0
        %v1818 = vadd.f32 %v1693, %v1817
        %v1819 = vpop.f32.mrb[0].mxu0
        %1820 = vdwg.mxu0
        %1821 = vmatprep.subr.mxu0 0.0
        %v1822 = vand.u32 %v1386, 4294901760
        %1823 = vmatpush1.msra.mxu0 %v1822
        %1824 = vmatprep.subr.mxu0 0.0
        %v1825 = vand.u32 %v1387, 4294901760
        %1826 = vmatpush1.msra.mxu0 %v1825
        %1827 = vmatprep.subr.mxu0 0.0
        %v1828 = vand.u32 %v1388, 4294901760
        %1829 = vmatpush1.msra.mxu0 %v1828
        %1830 = vmatprep.subr.mxu0 0.0
        %v1831 = vand.u32 %v1389, 4294901760
        %1832 = vmatpush1.msra.mxu0 %v1831
        %1833 = vmatprep.subr.mxu0 0.0
        %v1834 = vand.u32 %v1390, 4294901760
        %1835 = vmatpush1.msra.mxu0 %v1834
        %1836 = vmatprep.subr.mxu0 0.0
        %v1837 = vand.u32 %v1391, 4294901760
        %1838 = vmatpush1.msra.mxu0 %v1837
        %1839 = vmatprep.subr.mxu0 0.0
        %v1840 = vand.u32 %v1392, 4294901760
        %1841 = vmatpush1.msra.mxu0 %v1840
        %1842 = vmatprep.subr.mxu0 0.0
        %v1843 = vand.u32 %v1393, 4294901760
        %1844 = vmatpush1.msra.mxu0 %v1843
        %1845 = vmatprep.subr.mxu0 0.0
        %v1846 = vand.u32 %v1394, 4294901760
        %1847 = vmatpush1.msra.mxu0 %v1846
        %1848 = vmatprep.subr.mxu0 0.0
        %v1849 = vand.u32 %v1395, 4294901760
        %1850 = vmatpush1.msra.mxu0 %v1849
        %1851 = vmatprep.subr.mxu0 0.0
        %v1852 = vand.u32 %v1396, 4294901760
        %1853 = vmatpush1.msra.mxu0 %v1852
        %1854 = vmatprep.subr.mxu0 0.0
        %v1855 = vand.u32 %v1397, 4294901760
        %1856 = vmatpush1.msra.mxu0 %v1855
        %1857 = vmatprep.subr.mxu0 0.0
        %v1858 = vand.u32 %v1398, 4294901760
        %1859 = vmatpush1.msra.mxu0 %v1858
        %1860 = vmatprep.subr.mxu0 0.0
        %v1861 = vand.u32 %v1399, 4294901760
        %1862 = vmatpush1.msra.mxu0 %v1861
        %1863 = vmatprep.subr.mxu0 0.0
        %v1864 = vand.u32 %v1400, 4294901760
        %1865 = vmatpush1.msra.mxu0 %v1864
        %1866 = vmatprep.subr.mxu0 0.0
        %v1867 = vand.u32 %v1401, 4294901760
        %1868 = vmatpush1.msra.mxu0 %v1867
        %1869 = vmatprep.subr.mxu0 0.0
        %1870 = vmatpush1.msra.mxu0 0.0
        %1871 = vmatprep.subr.mxu0 0.0
        %1872 = vmatpush1.msra.mxu0 0.0
        %1873 = vmatprep.subr.mxu0 0.0
        %1874 = vmatpush1.msra.mxu0 0.0
        %1875 = vmatprep.subr.mxu0 0.0
        %1876 = vmatpush1.msra.mxu0 0.0
        %1877 = vmatprep.subr.mxu0 0.0
        %1878 = vmatpush1.msra.mxu0 0.0
        %1879 = vmatprep.subr.mxu0 0.0
        %1880 = vmatpush1.msra.mxu0 0.0
        %1881 = vmatprep.subr.mxu0 0.0
        %1882 = vmatpush1.msra.mxu0 0.0
        %1883 = vmatprep.subr.mxu0 0.0
        %1884 = vmatpush1.msra.mxu0 0.0
        %1885 = vmatprep.subr.mxu0 0.0
        %1886 = vmatpush1.msra.mxu0 0.0
        %1887 = vmatprep.subr.mxu0 0.0
        %1888 = vmatpush1.msra.mxu0 0.0
        %1889 = vmatprep.subr.mxu0 0.0
        %1890 = vmatpush1.msra.mxu0 0.0
        %1891 = vmatprep.subr.mxu0 0.0
        %1892 = vmatpush1.msra.mxu0 0.0
        %1893 = vmatprep.subr.mxu0 0.0
        %1894 = vmatpush1.msra.mxu0 0.0
        %1895 = vmatprep.subr.mxu0 0.0
        %1896 = vmatpush1.msra.mxu0 0.0
        %1897 = vmatprep.subr.mxu0 0.0
        %1898 = vmatpush1.msra.mxu0 0.0
        %1899 = vmatprep.subr.mxu0 0.0
        %1900 = vmatpush1.msra.mxu0 0.0
        %1901 = vmatprep.mubr.f32.mxu0 0.0
        %v1902 = vand.u32 %v591, 4294901760
        %v1903 = vsub.f32 %v591, %v1902
        %v1904 = vand.u32 %v1903, 4294901760
        %1905 = vmatmul.mubr.f32.gmra.mrb[0].mxu0 %v1904
        %v1906 = vpop.f32.mrb[0].mxu0
        %v1907 = vadd.f32 %v1797, %v1906
        %v1908 = vpop.f32.mrb[0].mxu0
        %1909 = vmatprep.mubr.f32.mxu0 0.0
        %v1910 = vand.u32 %v592, 4294901760
        %v1911 = vsub.f32 %v592, %v1910
        %v1912 = vand.u32 %v1911, 4294901760
        %1913 = vmatmul.mubr.f32.gmra.mrb[0].mxu0 %v1912
        %v1914 = vpop.f32.mrb[0].mxu0
        %v1915 = vadd.f32 %v1804, %v1914
        %v1916 = vpop.f32.mrb[0].mxu0
        %1917 = vmatprep.mubr.f32.mxu0 0.0
        %v1918 = vand.u32 %v593, 4294901760
        %v1919 = vsub.f32 %v593, %v1918
        %v1920 = vand.u32 %v1919, 4294901760
        %1921 = vmatmul.mubr.f32.gmra.mrb[0].mxu0 %v1920
        %v1922 = vpop.f32.mrb[0].mxu0
        %v1923 = vadd.f32 %v1811, %v1922
        %v1924 = vpop.f32.mrb[0].mxu0
        %1925 = vmatprep.mubr.f32.mxu0 0.0
        %v1926 = vand.u32 %v594, 4294901760
        %v1927 = vsub.f32 %v594, %v1926
        %v1928 = vand.u32 %v1927, 4294901760
        %1929 = vmatmul.mubr.f32.gmra.mrb[0].mxu0 %v1928
        %v1930 = vpop.f32.mrb[0].mxu0
        %v1931 = vadd.f32 %v1818, %v1930
        %v1932 = vpop.f32.mrb[0].mxu0
        %1933 = vdwg.mxu0
        %1934 = vmatprep.subr.mxu0 0.0
        %v1935 = vand.u32 %v1386, 4294901760
        %v1936 = vsub.f32 %v1386, %v1935
        %v1937 = vand.u32 %v1936, 4294901760
        %1938 = vmatpush1.msra.mxu0 %v1937
        %1939 = vmatprep.subr.mxu0 0.0
        %v1940 = vand.u32 %v1387, 4294901760
        %v1941 = vsub.f32 %v1387, %v1940
        %v1942 = vand.u32 %v1941, 4294901760
        %1943 = vmatpush1.msra.mxu0 %v1942
        %1944 = vmatprep.subr.mxu0 0.0
        %v1945 = vand.u32 %v1388, 4294901760
        %v1946 = vsub.f32 %v1388, %v1945
        %v1947 = vand.u32 %v1946, 4294901760
        %1948 = vmatpush1.msra.mxu0 %v1947
        %1949 = vmatprep.subr.mxu0 0.0
        %v1950 = vand.u32 %v1389, 4294901760
        %v1951 = vsub.f32 %v1389, %v1950
        %v1952 = vand.u32 %v1951, 4294901760
        %1953 = vmatpush1.msra.mxu0 %v1952
        %1954 = vmatprep.subr.mxu0 0.0
        %v1955 = vand.u32 %v1390, 4294901760
        %v1956 = vsub.f32 %v1390, %v1955
        %v1957 = vand.u32 %v1956, 4294901760
        %1958 = vmatpush1.msra.mxu0 %v1957
        %1959 = vmatprep.subr.mxu0 0.0
        %v1960 = vand.u32 %v1391, 4294901760
        %v1961 = vsub.f32 %v1391, %v1960
        %v1962 = vand.u32 %v1961, 4294901760
        %1963 = vmatpush1.msra.mxu0 %v1962
        %1964 = vmatprep.subr.mxu0 0.0
        %v1965 = vand.u32 %v1392, 4294901760
        %v1966 = vsub.f32 %v1392, %v1965
        %v1967 = vand.u32 %v1966, 4294901760
        %1968 = vmatpush1.msra.mxu0 %v1967
        %1969 = vmatprep.subr.mxu0 0.0
        %v1970 = vand.u32 %v1393, 4294901760
        %v1971 = vsub.f32 %v1393, %v1970
        %v1972 = vand.u32 %v1971, 4294901760
        %1973 = vmatpush1.msra.mxu0 %v1972
        %1974 = vmatprep.subr.mxu0 0.0
        %v1975 = vand.u32 %v1394, 4294901760
        %v1976 = vsub.f32 %v1394, %v1975
        %v1977 = vand.u32 %v1976, 4294901760
        %1978 = vmatpush1.msra.mxu0 %v1977
        %1979 = vmatprep.subr.mxu0 0.0
        %v1980 = vand.u32 %v1395, 4294901760
        %v1981 = vsub.f32 %v1395, %v1980
        %v1982 = vand.u32 %v1981, 4294901760
        %1983 = vmatpush1.msra.mxu0 %v1982
        %1984 = vmatprep.subr.mxu0 0.0
        %v1985 = vand.u32 %v1396, 4294901760
        %v1986 = vsub.f32 %v1396, %v1985
        %v1987 = vand.u32 %v1986, 4294901760
        %1988 = vmatpush1.msra.mxu0 %v1987
        %1989 = vmatprep.subr.mxu0 0.0
        %v1990 = vand.u32 %v1397, 4294901760
        %v1991 = vsub.f32 %v1397, %v1990
        %v1992 = vand.u32 %v1991, 4294901760
        %1993 = vmatpush1.msra.mxu0 %v1992
        %1994 = vmatprep.subr.mxu0 0.0
        %v1995 = vand.u32 %v1398, 4294901760
        %v1996 = vsub.f32 %v1398, %v1995
        %v1997 = vand.u32 %v1996, 4294901760
        %1998 = vmatpush1.msra.mxu0 %v1997
        %1999 = vmatprep.subr.mxu0 0.0
        %v2000 = vand.u32 %v1399, 4294901760
        %v2001 = vsub.f32 %v1399, %v2000
        %v2002 = vand.u32 %v2001, 4294901760
        %2003 = vmatpush1.msra.mxu0 %v2002
        %2004 = vmatprep.subr.mxu0 0.0
        %v2005 = vand.u32 %v1400, 4294901760
        %v2006 = vsub.f32 %v1400, %v2005
        %v2007 = vand.u32 %v2006, 4294901760
        %2008 = vmatpush1.msra.mxu0 %v2007
        %2009 = vmatprep.subr.mxu0 0.0
        %v2010 = vand.u32 %v1401, 4294901760
        %v2011 = vsub.f32 %v1401, %v2010
        %v2012 = vand.u32 %v2011, 4294901760
        %2013 = vmatpush1.msra.mxu0 %v2012
        %2014 = vmatprep.subr.mxu0 0.0
        %2015 = vmatpush1.msra.mxu0 0.0
        %2016 = vmatprep.subr.mxu0 0.0
        %2017 = vmatpush1.msra.mxu0 0.0
        %2018 = vmatprep.subr.mxu0 0.0
        %2019 = vmatpush1.msra.mxu0 0.0
        %2020 = vmatprep.subr.mxu0 0.0
        %2021 = vmatpush1.msra.mxu0 0.0
        %2022 = vmatprep.subr.mxu0 0.0
        %2023 = vmatpush1.msra.mxu0 0.0
        %2024 = vmatprep.subr.mxu0 0.0
        %2025 = vmatpush1.msra.mxu0 0.0
        %2026 = vmatprep.subr.mxu0 0.0
        %2027 = vmatpush1.msra.mxu0 0.0
        %2028 = vmatprep.subr.mxu0 0.0
        %2029 = vmatpush1.msra.mxu0 0.0
        %2030 = vmatprep.subr.mxu0 0.0
        %2031 = vmatpush1.msra.mxu0 0.0
        %2032 = vmatprep.subr.mxu0 0.0
        %2033 = vmatpush1.msra.mxu0 0.0
        %2034 = vmatprep.subr.mxu0 0.0
        %2035 = vmatpush1.msra.mxu0 0.0
        %2036 = vmatprep.subr.mxu0 0.0
        %2037 = vmatpush1.msra.mxu0 0.0
        %2038 = vmatprep.subr.mxu0 0.0
        %2039 = vmatpush1.msra.mxu0 0.0
        %2040 = vmatprep.subr.mxu0 0.0
        %2041 = vmatpush1.msra.mxu0 0.0
        %2042 = vmatprep.subr.mxu0 0.0
        %2043 = vmatpush1.msra.mxu0 0.0
        %2044 = vmatprep.subr.mxu0 0.0
        %2045 = vmatpush1.msra.mxu0 0.0
        %2046 = vmatprep.mubr.f32.mxu0 0.0
        %v2047 = vand.u32 %v591, 4294901760
        %2048 = vmatmul.mubr.f32.gmra.mrb[0].mxu0 %v2047
        %v2049 = vpop.f32.mrb[0].mxu0
        %v2050 = vadd.f32 %v1907, %v2049
        %v2051 = vpop.f32.mrb[0].mxu0
        %2052 = vmatprep.mubr.f32.mxu0 0.0
        %v2053 = vand.u32 %v592, 4294901760
        %2054 = vmatmul.mubr.f32.gmra.mrb[0].mxu0 %v2053
        %v2055 = vpop.f32.mrb[0].mxu0
        %v2056 = vadd.f32 %v1915, %v2055
        %v2057 = vpop.f32.mrb[0].mxu0
        %2058 = vmatprep.mubr.f32.mxu0 0.0
        %v2059 = vand.u32 %v593, 4294901760
        %2060 = vmatmul.mubr.f32.gmra.mrb[0].mxu0 %v2059
        %v2061 = vpop.f32.mrb[0].mxu0
        %v2062 = vadd.f32 %v1923, %v2061
        %v2063 = vpop.f32.mrb[0].mxu0
        %2064 = vmatprep.mubr.f32.mxu0 0.0
        %v2065 = vand.u32 %v594, 4294901760
        %2066 = vmatmul.mubr.f32.gmra.mrb[0].mxu0 %v2065
        %v2067 = vpop.f32.mrb[0].mxu0
        %v2068 = vadd.f32 %v1931, %v2067
        %v2069 = vpop.f32.mrb[0].mxu0
        %2070 = vdwg.mxu0
        %2071 = vmatprep.subr.mxu0 0.0
        %v2072 = vand.u32 %v1386, 4294901760
        %2073 = vmatpush1.msra.mxu0 %v2072
        %2074 = vmatprep.subr.mxu0 0.0
        %v2075 = vand.u32 %v1387, 4294901760
        %2076 = vmatpush1.msra.mxu0 %v2075
        %2077 = vmatprep.subr.mxu0 0.0
        %v2078 = vand.u32 %v1388, 4294901760
        %2079 = vmatpush1.msra.mxu0 %v2078
        %2080 = vmatprep.subr.mxu0 0.0
        %v2081 = vand.u32 %v1389, 4294901760
        %2082 = vmatpush1.msra.mxu0 %v2081
        %2083 = vmatprep.subr.mxu0 0.0
        %v2084 = vand.u32 %v1390, 4294901760
        %2085 = vmatpush1.msra.mxu0 %v2084
        %2086 = vmatprep.subr.mxu0 0.0
        %v2087 = vand.u32 %v1391, 4294901760
        %2088 = vmatpush1.msra.mxu0 %v2087
        %2089 = vmatprep.subr.mxu0 0.0
        %v2090 = vand.u32 %v1392, 4294901760
        %2091 = vmatpush1.msra.mxu0 %v2090
        %2092 = vmatprep.subr.mxu0 0.0
        %v2093 = vand.u32 %v1393, 4294901760
        %2094 = vmatpush1.msra.mxu0 %v2093
        %2095 = vmatprep.subr.mxu0 0.0
        %v2096 = vand.u32 %v1394, 4294901760
        %2097 = vmatpush1.msra.mxu0 %v2096
        %2098 = vmatprep.subr.mxu0 0.0
        %v2099 = vand.u32 %v1395, 4294901760
        %2100 = vmatpush1.msra.mxu0 %v2099
        %2101 = vmatprep.subr.mxu0 0.0
        %v2102 = vand.u32 %v1396, 4294901760
        %2103 = vmatpush1.msra.mxu0 %v2102
        %2104 = vmatprep.subr.mxu0 0.0
        %v2105 = vand.u32 %v1397, 4294901760
        %2106 = vmatpush1.msra.mxu0 %v2105
        %2107 = vmatprep.subr.mxu0 0.0
        %v2108 = vand.u32 %v1398, 4294901760
        %2109 = vmatpush1.msra.mxu0 %v2108
        %2110 = vmatprep.subr.mxu0 0.0
        %v2111 = vand.u32 %v1399, 4294901760
        %2112 = vmatpush1.msra.mxu0 %v2111
        %2113 = vmatprep.subr.mxu0 0.0
        %v2114 = vand.u32 %v1400, 4294901760
        %2115 = vmatpush1.msra.mxu0 %v2114
        %2116 = vmatprep.subr.mxu0 0.0
        %v2117 = vand.u32 %v1401, 4294901760
        %2118 = vmatpush1.msra.mxu0 %v2117
        %2119 = vmatprep.subr.mxu0 0.0
        %2120 = vmatpush1.msra.mxu0 0.0
        %2121 = vmatprep.subr.mxu0 0.0
        %2122 = vmatpush1.msra.mxu0 0.0
        %2123 = vmatprep.subr.mxu0 0.0
        %2124 = vmatpush1.msra.mxu0 0.0
        %2125 = vmatprep.subr.mxu0 0.0
        %2126 = vmatpush1.msra.mxu0 0.0
        %2127 = vmatprep.subr.mxu0 0.0
        %2128 = vmatpush1.msra.mxu0 0.0
        %2129 = vmatprep.subr.mxu0 0.0
        %2130 = vmatpush1.msra.mxu0 0.0
        %2131 = vmatprep.subr.mxu0 0.0
        %2132 = vmatpush1.msra.mxu0 0.0
        %2133 = vmatprep.subr.mxu0 0.0
        %2134 = vmatpush1.msra.mxu0 0.0
        %2135 = vmatprep.subr.mxu0 0.0
        %2136 = vmatpush1.msra.mxu0 0.0
        %2137 = vmatprep.subr.mxu0 0.0
        %2138 = vmatpush1.msra.mxu0 0.0
        %2139 = vmatprep.subr.mxu0 0.0
        %2140 = vmatpush1.msra.mxu0 0.0
        %2141 = vmatprep.subr.mxu0 0.0
        %2142 = vmatpush1.msra.mxu0 0.0
        %2143 = vmatprep.subr.mxu0 0.0
        %2144 = vmatpush1.msra.mxu0 0.0
        %2145 = vmatprep.subr.mxu0 0.0
        %2146 = vmatpush1.msra.mxu0 0.0
        %2147 = vmatprep.subr.mxu0 0.0
        %2148 = vmatpush1.msra.mxu0 0.0
        %2149 = vmatprep.subr.mxu0 0.0
        %2150 = vmatpush1.msra.mxu0 0.0
        %2151 = vmatprep.mubr.f32.mxu0 0.0
        %v2152 = vand.u32 %v591, 4294901760
        %2153 = vmatmul.mubr.f32.gmra.mrb[0].mxu0 %v2152
        %v2154 = vpop.f32.mrb[0].mxu0
        %v2155 = vadd.f32 %v2050, %v2154
        %v2156 = vpop.f32.mrb[0].mxu0
        %2157 = vmatprep.mubr.f32.mxu0 0.0
        %v2158 = vand.u32 %v592, 4294901760
        %2159 = vmatmul.mubr.f32.gmra.mrb[0].mxu0 %v2158
        %v2160 = vpop.f32.mrb[0].mxu0
        %v2161 = vadd.f32 %v2056, %v2160
        %v2162 = vpop.f32.mrb[0].mxu0
        %2163 = vmatprep.mubr.f32.mxu0 0.0
        %v2164 = vand.u32 %v593, 4294901760
        %2165 = vmatmul.mubr.f32.gmra.mrb[0].mxu0 %v2164
        %v2166 = vpop.f32.mrb[0].mxu0
        %v2167 = vadd.f32 %v2062, %v2166
        %v2168 = vpop.f32.mrb[0].mxu0
        %2169 = vmatprep.mubr.f32.mxu0 0.0
        %v2170 = vand.u32 %v594, 4294901760
        %2171 = vmatmul.mubr.f32.gmra.mrb[0].mxu0 %v2170
        %v2172 = vpop.f32.mrb[0].mxu0
        %v2173 = vadd.f32 %v2068, %v2172
        %v2174 = vpop.f32.mrb[0].mxu0
        %2175 = vdwg.mxu0
        %v2176 = vld [vmem:[%s6] sm:$0xff]
        %v2177 = vld [vmem:[%s6 + $0x8] sm:$0xff]
        %v2178 = vld [vmem:[%s6 + $0x10] sm:$0xff]
        %v2179 = vld [vmem:[%s6 + $0x18] sm:$0xff]
        %v2180 = vld [vmem:[%s6 + $0x20] sm:$0xff]
        %v2181 = vld [vmem:[%s6 + $0x28] sm:$0xff]
        %v2182 = vld [vmem:[%s6 + $0x30] sm:$0xff]
        %v2183 = vld [vmem:[%s6 + $0x38] sm:$0xff]
        %v2184 = vld [vmem:[%s6 + $0x40] sm:$0xff]
        %v2185 = vld [vmem:[%s6 + $0x48] sm:$0xff]
        %v2186 = vld [vmem:[%s6 + $0x50] sm:$0xff]
        %v2187 = vld [vmem:[%s6 + $0x58] sm:$0xff]
        %v2188 = vld [vmem:[%s6 + $0x60] sm:$0xff]
        %v2189 = vld [vmem:[%s6 + $0x68] sm:$0xff]
        %v2190 = vld [vmem:[%s6 + $0x70] sm:$0xff]
        %v2191 = vld [vmem:[%s6 + $0x78] sm:$0xff]
        %v2192 = vld [vmem:[%s7] sm:$0xff]
        %v2193 = vld [vmem:[%s7 + $0x8] sm:$0xff]
        %v2194 = vld [vmem:[%s7 + $0x10] sm:$0xff]
        %v2195 = vld [vmem:[%s7 + $0x18] sm:$0xff]
        %2196 = vmatprep.subr.mxu0 0.0
        %v2197 = vand.u32 %v2176, 4294901760
        %2198 = vmatpush1.msra.mxu0 %v2197
        %2199 = vmatprep.subr.mxu0 0.0
        %v2200 = vand.u32 %v2177, 4294901760
        %2201 = vmatpush1.msra.mxu0 %v2200
        %2202 = vmatprep.subr.mxu0 0.0
        %v2203 = vand.u32 %v2178, 4294901760
        %2204 = vmatpush1.msra.mxu0 %v2203
        %2205 = vmatprep.subr.mxu0 0.0
        %v2206 = vand.u32 %v2179, 4294901760
        %2207 = vmatpush1.msra.mxu0 %v2206
        %2208 = vmatprep.subr.mxu0 0.0
        %v2209 = vand.u32 %v2180, 4294901760
        %2210 = vmatpush1.msra.mxu0 %v2209
        %2211 = vmatprep.subr.mxu0 0.0
        %v2212 = vand.u32 %v2181, 4294901760
        %2213 = vmatpush1.msra.mxu0 %v2212
        %2214 = vmatprep.subr.mxu0 0.0
        %v2215 = vand.u32 %v2182, 4294901760
        %2216 = vmatpush1.msra.mxu0 %v2215
        %2217 = vmatprep.subr.mxu0 0.0
        %v2218 = vand.u32 %v2183, 4294901760
        %2219 = vmatpush1.msra.mxu0 %v2218
        %2220 = vmatprep.subr.mxu0 0.0
        %v2221 = vand.u32 %v2184, 4294901760
        %2222 = vmatpush1.msra.mxu0 %v2221
        %2223 = vmatprep.subr.mxu0 0.0
        %v2224 = vand.u32 %v2185, 4294901760
        %2225 = vmatpush1.msra.mxu0 %v2224
        %2226 = vmatprep.subr.mxu0 0.0
        %v2227 = vand.u32 %v2186, 4294901760
        %2228 = vmatpush1.msra.mxu0 %v2227
        %2229 = vmatprep.subr.mxu0 0.0
        %v2230 = vand.u32 %v2187, 4294901760
        %2231 = vmatpush1.msra.mxu0 %v2230
        %2232 = vmatprep.subr.mxu0 0.0
        %v2233 = vand.u32 %v2188, 4294901760
        %2234 = vmatpush1.msra.mxu0 %v2233
        %2235 = vmatprep.subr.mxu0 0.0
        %v2236 = vand.u32 %v2189, 4294901760
        %2237 = vmatpush1.msra.mxu0 %v2236
        %2238 = vmatprep.subr.mxu0 0.0
        %v2239 = vand.u32 %v2190, 4294901760
        %2240 = vmatpush1.msra.mxu0 %v2239
        %2241 = vmatprep.subr.mxu0 0.0
        %v2242 = vand.u32 %v2191, 4294901760
        %2243 = vmatpush1.msra.mxu0 %v2242
        %2244 = vmatprep.subr.mxu0 0.0
        %2245 = vmatpush1.msra.mxu0 0.0
        %2246 = vmatprep.subr.mxu0 0.0
        %2247 = vmatpush1.msra.mxu0 0.0
        %2248 = vmatprep.subr.mxu0 0.0
        %2249 = vmatpush1.msra.mxu0 0.0
        %2250 = vmatprep.subr.mxu0 0.0
        %2251 = vmatpush1.msra.mxu0 0.0
        %2252 = vmatprep.subr.mxu0 0.0
        %2253 = vmatpush1.msra.mxu0 0.0
        %2254 = vmatprep.subr.mxu0 0.0
        %2255 = vmatpush1.msra.mxu0 0.0
        %2256 = vmatprep.subr.mxu0 0.0
        %2257 = vmatpush1.msra.mxu0 0.0
        %2258 = vmatprep.subr.mxu0 0.0
        %2259 = vmatpush1.msra.mxu0 0.0
        %2260 = vmatprep.subr.mxu0 0.0
        %2261 = vmatpush1.msra.mxu0 0.0
        %2262 = vmatprep.subr.mxu0 0.0
        %2263 = vmatpush1.msra.mxu0 0.0
        %2264 = vmatprep.subr.mxu0 0.0
        %2265 = vmatpush1.msra.mxu0 0.0
        %2266 = vmatprep.subr.mxu0 0.0
        %2267 = vmatpush1.msra.mxu0 0.0
        %2268 = vmatprep.subr.mxu0 0.0
        %2269 = vmatpush1.msra.mxu0 0.0
        %2270 = vmatprep.subr.mxu0 0.0
        %2271 = vmatpush1.msra.mxu0 0.0
        %2272 = vmatprep.subr.mxu0 0.0
        %2273 = vmatpush1.msra.mxu0 0.0
        %2274 = vmatprep.subr.mxu0 0.0
        %2275 = vmatpush1.msra.mxu0 0.0
        %2276 = vmatprep.mubr.f32.mxu0 0.0
        %v2277 = vand.u32 %v591, 4294901760
        %v2278 = vsub.f32 %v591, %v2277
        %v2279 = vand.u32 %v2278, 4294901760
        %v2280 = vsub.f32 %v2278, %v2279
        %v2281 = vand.u32 %v2280, 4294901760
        %2282 = vmatmul.mubr.f32.gmra.mrb[0].mxu0 %v2281
        %v2283 = vpop.f32.mrb[0].mxu0
        %v2284 = vadd.f32 %v2192, %v2283
        %v2285 = vpop.f32.mrb[0].mxu0
        %2286 = vmatprep.mubr.f32.mxu0 0.0
        %v2287 = vand.u32 %v592, 4294901760
        %v2288 = vsub.f32 %v592, %v2287
        %v2289 = vand.u32 %v2288, 4294901760
        %v2290 = vsub.f32 %v2288, %v2289
        %v2291 = vand.u32 %v2290, 4294901760
        %2292 = vmatmul.mubr.f32.gmra.mrb[0].mxu0 %v2291
        %v2293 = vpop.f32.mrb[0].mxu0
        %v2294 = vadd.f32 %v2193, %v2293
        %v2295 = vpop.f32.mrb[0].mxu0
        %2296 = vmatprep.mubr.f32.mxu0 0.0
        %v2297 = vand.u32 %v593, 4294901760
        %v2298 = vsub.f32 %v593, %v2297
        %v2299 = vand.u32 %v2298, 4294901760
        %v2300 = vsub.f32 %v2298, %v2299
        %v2301 = vand.u32 %v2300, 4294901760
        %2302 = vmatmul.mubr.f32.gmra.mrb[0].mxu0 %v2301
        %v2303 = vpop.f32.mrb[0].mxu0
        %v2304 = vadd.f32 %v2194, %v2303
        %v2305 = vpop.f32.mrb[0].mxu0
        %2306 = vmatprep.mubr.f32.mxu0 0.0
        %v2307 = vand.u32 %v594, 4294901760
        %v2308 = vsub.f32 %v594, %v2307
        %v2309 = vand.u32 %v2308, 4294901760
        %v2310 = vsub.f32 %v2308, %v2309
        %v2311 = vand.u32 %v2310, 4294901760
        %2312 = vmatmul.mubr.f32.gmra.mrb[0].mxu0 %v2311
        %v2313 = vpop.f32.mrb[0].mxu0
        %v2314 = vadd.f32 %v2195, %v2313
        %v2315 = vpop.f32.mrb[0].mxu0
        %2316 = vdwg.mxu0
        %2317 = vmatprep.subr.mxu0 0.0
        %v2318 = vand.u32 %v2176, 4294901760
        %v2319 = vsub.f32 %v2176, %v2318
        %v2320 = vand.u32 %v2319, 4294901760
        %v2321 = vsub.f32 %v2319, %v2320
        %v2322 = vand.u32 %v2321, 4294901760
        %2323 = vmatpush1.msra.mxu0 %v2322
        %2324 = vmatprep.subr.mxu0 0.0
        %v2325 = vand.u32 %v2177, 4294901760
        %v2326 = vsub.f32 %v2177, %v2325
        %v2327 = vand.u32 %v2326, 4294901760
        %v2328 = vsub.f32 %v2326, %v2327
        %v2329 = vand.u32 %v2328, 4294901760
        %2330 = vmatpush1.msra.mxu0 %v2329
        %2331 = vmatprep.subr.mxu0 0.0
        %v2332 = vand.u32 %v2178, 4294901760
        %v2333 = vsub.f32 %v2178, %v2332
        %v2334 = vand.u32 %v2333, 4294901760
        %v2335 = vsub.f32 %v2333, %v2334
        %v2336 = vand.u32 %v2335, 4294901760
        %2337 = vmatpush1.msra.mxu0 %v2336
        %2338 = vmatprep.subr.mxu0 0.0
        %v2339 = vand.u32 %v2179, 4294901760
        %v2340 = vsub.f32 %v2179, %v2339
        %v2341 = vand.u32 %v2340, 4294901760
        %v2342 = vsub.f32 %v2340, %v2341
        %v2343 = vand.u32 %v2342, 4294901760
        %2344 = vmatpush1.msra.mxu0 %v2343
        %2345 = vmatprep.subr.mxu0 0.0
        %v2346 = vand.u32 %v2180, 4294901760
        %v2347 = vsub.f32 %v2180, %v2346
        %v2348 = vand.u32 %v2347, 4294901760
        %v2349 = vsub.f32 %v2347, %v2348
        %v2350 = vand.u32 %v2349, 4294901760
        %2351 = vmatpush1.msra.mxu0 %v2350
        %2352 = vmatprep.subr.mxu0 0.0
        %v2353 = vand.u32 %v2181, 4294901760
        %v2354 = vsub.f32 %v2181, %v2353
        %v2355 = vand.u32 %v2354, 4294901760
        %v2356 = vsub.f32 %v2354, %v2355
        %v2357 = vand.u32 %v2356, 4294901760
        %2358 = vmatpush1.msra.mxu0 %v2357
        %2359 = vmatprep.subr.mxu0 0.0
        %v2360 = vand.u32 %v2182, 4294901760
        %v2361 = vsub.f32 %v2182, %v2360
        %v2362 = vand.u32 %v2361, 4294901760
        %v2363 = vsub.f32 %v2361, %v2362
        %v2364 = vand.u32 %v2363, 4294901760
        %2365 = vmatpush1.msra.mxu0 %v2364
        %2366 = vmatprep.subr.mxu0 0.0
        %v2367 = vand.u32 %v2183, 4294901760
        %v2368 = vsub.f32 %v2183, %v2367
        %v2369 = vand.u32 %v2368, 4294901760
        %v2370 = vsub.f32 %v2368, %v2369
        %v2371 = vand.u32 %v2370, 4294901760
        %2372 = vmatpush1.msra.mxu0 %v2371
        %2373 = vmatprep.subr.mxu0 0.0
        %v2374 = vand.u32 %v2184, 4294901760
        %v2375 = vsub.f32 %v2184, %v2374
        %v2376 = vand.u32 %v2375, 4294901760
        %v2377 = vsub.f32 %v2375, %v2376
        %v2378 = vand.u32 %v2377, 4294901760
        %2379 = vmatpush1.msra.mxu0 %v2378
        %2380 = vmatprep.subr.mxu0 0.0
        %v2381 = vand.u32 %v2185, 4294901760
        %v2382 = vsub.f32 %v2185, %v2381
        %v2383 = vand.u32 %v2382, 4294901760
        %v2384 = vsub.f32 %v2382, %v2383
        %v2385 = vand.u32 %v2384, 4294901760
        %2386 = vmatpush1.msra.mxu0 %v2385
        %2387 = vmatprep.subr.mxu0 0.0
        %v2388 = vand.u32 %v2186, 4294901760
        %v2389 = vsub.f32 %v2186, %v2388
        %v2390 = vand.u32 %v2389, 4294901760
        %v2391 = vsub.f32 %v2389, %v2390
        %v2392 = vand.u32 %v2391, 4294901760
        %2393 = vmatpush1.msra.mxu0 %v2392
        %2394 = vmatprep.subr.mxu0 0.0
        %v2395 = vand.u32 %v2187, 4294901760
        %v2396 = vsub.f32 %v2187, %v2395
        %v2397 = vand.u32 %v2396, 4294901760
        %v2398 = vsub.f32 %v2396, %v2397
        %v2399 = vand.u32 %v2398, 4294901760
        %2400 = vmatpush1.msra.mxu0 %v2399
        %2401 = vmatprep.subr.mxu0 0.0
        %v2402 = vand.u32 %v2188, 4294901760
        %v2403 = vsub.f32 %v2188, %v2402
        %v2404 = vand.u32 %v2403, 4294901760
        %v2405 = vsub.f32 %v2403, %v2404
        %v2406 = vand.u32 %v2405, 4294901760
        %2407 = vmatpush1.msra.mxu0 %v2406
        %2408 = vmatprep.subr.mxu0 0.0
        %v2409 = vand.u32 %v2189, 4294901760
        %v2410 = vsub.f32 %v2189, %v2409
        %v2411 = vand.u32 %v2410, 4294901760
        %v2412 = vsub.f32 %v2410, %v2411
        %v2413 = vand.u32 %v2412, 4294901760
        %2414 = vmatpush1.msra.mxu0 %v2413
        %2415 = vmatprep.subr.mxu0 0.0
        %v2416 = vand.u32 %v2190, 4294901760
        %v2417 = vsub.f32 %v2190, %v2416
        %v2418 = vand.u32 %v2417, 4294901760
        %v2419 = vsub.f32 %v2417, %v2418
        %v2420 = vand.u32 %v2419, 4294901760
        %2421 = vmatpush1.msra.mxu0 %v2420
        %2422 = vmatprep.subr.mxu0 0.0
        %v2423 = vand.u32 %v2191, 4294901760
        %v2424 = vsub.f32 %v2191, %v2423
        %v2425 = vand.u32 %v2424, 4294901760
        %v2426 = vsub.f32 %v2424, %v2425
        %v2427 = vand.u32 %v2426, 4294901760
        %2428 = vmatpush1.msra.mxu0 %v2427
        %2429 = vmatprep.subr.mxu0 0.0
        %2430 = vmatpush1.msra.mxu0 0.0
        %2431 = vmatprep.subr.mxu0 0.0
        %2432 = vmatpush1.msra.mxu0 0.0
        %2433 = vmatprep.subr.mxu0 0.0
        %2434 = vmatpush1.msra.mxu0 0.0
        %2435 = vmatprep.subr.mxu0 0.0
        %2436 = vmatpush1.msra.mxu0 0.0
        %2437 = vmatprep.subr.mxu0 0.0
        %2438 = vmatpush1.msra.mxu0 0.0
        %2439 = vmatprep.subr.mxu0 0.0
        %2440 = vmatpush1.msra.mxu0 0.0
        %2441 = vmatprep.subr.mxu0 0.0
        %2442 = vmatpush1.msra.mxu0 0.0
        %2443 = vmatprep.subr.mxu0 0.0
        %2444 = vmatpush1.msra.mxu0 0.0
        %2445 = vmatprep.subr.mxu0 0.0
        %2446 = vmatpush1.msra.mxu0 0.0
        %2447 = vmatprep.subr.mxu0 0.0
        %2448 = vmatpush1.msra.mxu0 0.0
        %2449 = vmatprep.subr.mxu0 0.0
        %2450 = vmatpush1.msra.mxu0 0.0
        %2451 = vmatprep.subr.mxu0 0.0
        %2452 = vmatpush1.msra.mxu0 0.0
        %2453 = vmatprep.subr.mxu0 0.0
        %2454 = vmatpush1.msra.mxu0 0.0
        %2455 = vmatprep.subr.mxu0 0.0
        %2456 = vmatpush1.msra.mxu0 0.0
        %2457 = vmatprep.subr.mxu0 0.0
        %2458 = vmatpush1.msra.mxu0 0.0
        %2459 = vmatprep.subr.mxu0 0.0
        %2460 = vmatpush1.msra.mxu0 0.0
        %2461 = vmatprep.mubr.f32.mxu0 0.0
        %v2462 = vand.u32 %v591, 4294901760
        %2463 = vmatmul.mubr.f32.gmra.mrb[0].mxu0 %v2462
        %v2464 = vpop.f32.mrb[0].mxu0
        %v2465 = vadd.f32 %v2284, %v2464
        %v2466 = vpop.f32.mrb[0].mxu0
        %2467 = vmatprep.mubr.f32.mxu0 0.0
        %v2468 = vand.u32 %v592, 4294901760
        %2469 = vmatmul.mubr.f32.gmra.mrb[0].mxu0 %v2468
        %v2470 = vpop.f32.mrb[0].mxu0
        %v2471 = vadd.f32 %v2294, %v2470
        %v2472 = vpop.f32.mrb[0].mxu0
        %2473 = vmatprep.mubr.f32.mxu0 0.0
        %v2474 = vand.u32 %v593, 4294901760
        %2475 = vmatmul.mubr.f32.gmra.mrb[0].mxu0 %v2474
        %v2476 = vpop.f32.mrb[0].mxu0
        %v2477 = vadd.f32 %v2304, %v2476
        %v2478 = vpop.f32.mrb[0].mxu0
        %2479 = vmatprep.mubr.f32.mxu0 0.0
        %v2480 = vand.u32 %v594, 4294901760
        %2481 = vmatmul.mubr.f32.gmra.mrb[0].mxu0 %v2480
        %v2482 = vpop.f32.mrb[0].mxu0
        %v2483 = vadd.f32 %v2314, %v2482
        %v2484 = vpop.f32.mrb[0].mxu0
        %2485 = vdwg.mxu0
        %2486 = vmatprep.subr.mxu0 0.0
        %v2487 = vand.u32 %v2176, 4294901760
        %v2488 = vsub.f32 %v2176, %v2487
        %2489 = vmatpush1.msra.mxu0 %v2488
        %2490 = vmatprep.subr.mxu0 0.0
        %v2491 = vand.u32 %v2177, 4294901760
        %v2492 = vsub.f32 %v2177, %v2491
        %2493 = vmatpush1.msra.mxu0 %v2492
        %2494 = vmatprep.subr.mxu0 0.0
        %v2495 = vand.u32 %v2178, 4294901760
        %v2496 = vsub.f32 %v2178, %v2495
        %2497 = vmatpush1.msra.mxu0 %v2496
        %2498 = vmatprep.subr.mxu0 0.0
        %v2499 = vand.u32 %v2179, 4294901760
        %v2500 = vsub.f32 %v2179, %v2499
        %2501 = vmatpush1.msra.mxu0 %v2500
        %2502 = vmatprep.subr.mxu0 0.0
        %v2503 = vand.u32 %v2180, 4294901760
        %v2504 = vsub.f32 %v2180, %v2503
        %2505 = vmatpush1.msra.mxu0 %v2504
        %2506 = vmatprep.subr.mxu0 0.0
        %v2507 = vand.u32 %v2181, 4294901760
        %v2508 = vsub.f32 %v2181, %v2507
        %2509 = vmatpush1.msra.mxu0 %v2508
        %2510 = vmatprep.subr.mxu0 0.0
        %v2511 = vand.u32 %v2182, 4294901760
        %v2512 = vsub.f32 %v2182, %v2511
        %2513 = vmatpush1.msra.mxu0 %v2512
        %2514 = vmatprep.subr.mxu0 0.0
        %v2515 = vand.u32 %v2183, 4294901760
        %v2516 = vsub.f32 %v2183, %v2515
        %2517 = vmatpush1.msra.mxu0 %v2516
        %2518 = vmatprep.subr.mxu0 0.0
        %v2519 = vand.u32 %v2184, 4294901760
        %v2520 = vsub.f32 %v2184, %v2519
        %2521 = vmatpush1.msra.mxu0 %v2520
        %2522 = vmatprep.subr.mxu0 0.0
        %v2523 = vand.u32 %v2185, 4294901760
        %v2524 = vsub.f32 %v2185, %v2523
        %2525 = vmatpush1.msra.mxu0 %v2524
        %2526 = vmatprep.subr.mxu0 0.0
        %v2527 = vand.u32 %v2186, 4294901760
        %v2528 = vsub.f32 %v2186, %v2527
        %2529 = vmatpush1.msra.mxu0 %v2528
        %2530 = vmatprep.subr.mxu0 0.0
        %v2531 = vand.u32 %v2187, 4294901760
        %v2532 = vsub.f32 %v2187, %v2531
        %2533 = vmatpush1.msra.mxu0 %v2532
        %2534 = vmatprep.subr.mxu0 0.0
        %v2535 = vand.u32 %v2188, 4294901760
        %v2536 = vsub.f32 %v2188, %v2535
        %2537 = vmatpush1.msra.mxu0 %v2536
        %2538 = vmatprep.subr.mxu0 0.0
        %v2539 = vand.u32 %v2189, 4294901760
        %v2540 = vsub.f32 %v2189, %v2539
        %2541 = vmatpush1.msra.mxu0 %v2540
        %2542 = vmatprep.subr.mxu0 0.0
        %v2543 = vand.u32 %v2190, 4294901760
        %v2544 = vsub.f32 %v2190, %v2543
        %2545 = vmatpush1.msra.mxu0 %v2544
        %2546 = vmatprep.subr.mxu0 0.0
        %v2547 = vand.u32 %v2191, 4294901760
        %v2548 = vsub.f32 %v2191, %v2547
        %2549 = vmatpush1.msra.mxu0 %v2548
        %2550 = vmatprep.subr.mxu0 0.0
        %2551 = vmatpush1.msra.mxu0 0.0
        %2552 = vmatprep.subr.mxu0 0.0
        %2553 = vmatpush1.msra.mxu0 0.0
        %2554 = vmatprep.subr.mxu0 0.0
        %2555 = vmatpush1.msra.mxu0 0.0
        %2556 = vmatprep.subr.mxu0 0.0
        %2557 = vmatpush1.msra.mxu0 0.0
        %2558 = vmatprep.subr.mxu0 0.0
        %2559 = vmatpush1.msra.mxu0 0.0
        %2560 = vmatprep.subr.mxu0 0.0
        %2561 = vmatpush1.msra.mxu0 0.0
        %2562 = vmatprep.subr.mxu0 0.0
        %2563 = vmatpush1.msra.mxu0 0.0
        %2564 = vmatprep.subr.mxu0 0.0
        %2565 = vmatpush1.msra.mxu0 0.0
        %2566 = vmatprep.subr.mxu0 0.0
        %2567 = vmatpush1.msra.mxu0 0.0
        %2568 = vmatprep.subr.mxu0 0.0
        %2569 = vmatpush1.msra.mxu0 0.0
        %2570 = vmatprep.subr.mxu0 0.0
        %2571 = vmatpush1.msra.mxu0 0.0
        %2572 = vmatprep.subr.mxu0 0.0
        %2573 = vmatpush1.msra.mxu0 0.0
        %2574 = vmatprep.subr.mxu0 0.0
        %2575 = vmatpush1.msra.mxu0 0.0
        %2576 = vmatprep.subr.mxu0 0.0
        %2577 = vmatpush1.msra.mxu0 0.0
        %2578 = vmatprep.subr.mxu0 0.0
        %2579 = vmatpush1.msra.mxu0 0.0
        %2580 = vmatprep.subr.mxu0 0.0
        %2581 = vmatpush1.msra.mxu0 0.0
        %2582 = vmatprep.mubr.f32.mxu0 0.0
        %v2583 = vand.u32 %v591, 4294901760
        %v2584 = vsub.f32 %v591, %v2583
        %2585 = vmatmul.mubr.f32.gmra.mrb[0].mxu0 %v2584
        %v2586 = vpop.f32.mrb[0].mxu0
        %v2587 = vadd.f32 %v2465, %v2586
        %v2588 = vpop.f32.mrb[0].mxu0
        %2589 = vmatprep.mubr.f32.mxu0 0.0
        %v2590 = vand.u32 %v592, 4294901760
        %v2591 = vsub.f32 %v592, %v2590
        %2592 = vmatmul.mubr.f32.gmra.mrb[0].mxu0 %v2591
        %v2593 = vpop.f32.mrb[0].mxu0
        %v2594 = vadd.f32 %v2471, %v2593
        %v2595 = vpop.f32.mrb[0].mxu0
        %2596 = vmatprep.mubr.f32.mxu0 0.0
        %v2597 = vand.u32 %v593, 4294901760
        %v2598 = vsub.f32 %v593, %v2597
        %2599 = vmatmul.mubr.f32.gmra.mrb[0].mxu0 %v2598
        %v2600 = vpop.f32.mrb[0].mxu0
        %v2601 = vadd.f32 %v2477, %v2600
        %v2602 = vpop.f32.mrb[0].mxu0
        %2603 = vmatprep.mubr.f32.mxu0 0.0
        %v2604 = vand.u32 %v594, 4294901760
        %v2605 = vsub.f32 %v594, %v2604
        %2606 = vmatmul.mubr.f32.gmra.mrb[0].mxu0 %v2605
        %v2607 = vpop.f32.mrb[0].mxu0
        %v2608 = vadd.f32 %v2483, %v2607
        %v2609 = vpop.f32.mrb[0].mxu0
        %2610 = vdwg.mxu0
        %2611 = vmatprep.subr.mxu0 0.0
        %v2612 = vand.u32 %v2176, 4294901760
        %2613 = vmatpush1.msra.mxu0 %v2612
        %2614 = vmatprep.subr.mxu0 0.0
        %v2615 = vand.u32 %v2177, 4294901760
        %2616 = vmatpush1.msra.mxu0 %v2615
        %2617 = vmatprep.subr.mxu0 0.0
        %v2618 = vand.u32 %v2178, 4294901760
        %2619 = vmatpush1.msra.mxu0 %v2618
        %2620 = vmatprep.subr.mxu0 0.0
        %v2621 = vand.u32 %v2179, 4294901760
        %2622 = vmatpush1.msra.mxu0 %v2621
        %2623 = vmatprep.subr.mxu0 0.0
        %v2624 = vand.u32 %v2180, 4294901760
        %2625 = vmatpush1.msra.mxu0 %v2624
        %2626 = vmatprep.subr.mxu0 0.0
        %v2627 = vand.u32 %v2181, 4294901760
        %2628 = vmatpush1.msra.mxu0 %v2627
        %2629 = vmatprep.subr.mxu0 0.0
        %v2630 = vand.u32 %v2182, 4294901760
        %2631 = vmatpush1.msra.mxu0 %v2630
        %2632 = vmatprep.subr.mxu0 0.0
        %v2633 = vand.u32 %v2183, 4294901760
        %2634 = vmatpush1.msra.mxu0 %v2633
        %2635 = vmatprep.subr.mxu0 0.0
        %v2636 = vand.u32 %v2184, 4294901760
        %2637 = vmatpush1.msra.mxu0 %v2636
        %2638 = vmatprep.subr.mxu0 0.0
        %v2639 = vand.u32 %v2185, 4294901760
        %2640 = vmatpush1.msra.mxu0 %v2639
        %2641 = vmatprep.subr.mxu0 0.0
        %v2642 = vand.u32 %v2186, 4294901760
        %2643 = vmatpush1.msra.mxu0 %v2642
        %2644 = vmatprep.subr.mxu0 0.0
        %v2645 = vand.u32 %v2187, 4294901760
        %2646 = vmatpush1.msra.mxu0 %v2645
        %2647 = vmatprep.subr.mxu0 0.0
        %v2648 = vand.u32 %v2188, 4294901760
        %2649 = vmatpush1.msra.mxu0 %v2648
        %2650 = vmatprep.subr.mxu0 0.0
        %v2651 = vand.u32 %v2189, 4294901760
        %2652 = vmatpush1.msra.mxu0 %v2651
        %2653 = vmatprep.subr.mxu0 0.0
        %v2654 = vand.u32 %v2190, 4294901760
        %2655 = vmatpush1.msra.mxu0 %v2654
        %2656 = vmatprep.subr.mxu0 0.0
        %v2657 = vand.u32 %v2191, 4294901760
        %2658 = vmatpush1.msra.mxu0 %v2657
        %2659 = vmatprep.subr.mxu0 0.0
        %2660 = vmatpush1.msra.mxu0 0.0
        %2661 = vmatprep.subr.mxu0 0.0
        %2662 = vmatpush1.msra.mxu0 0.0
        %2663 = vmatprep.subr.mxu0 0.0
        %2664 = vmatpush1.msra.mxu0 0.0
        %2665 = vmatprep.subr.mxu0 0.0
        %2666 = vmatpush1.msra.mxu0 0.0
        %2667 = vmatprep.subr.mxu0 0.0
        %2668 = vmatpush1.msra.mxu0 0.0
        %2669 = vmatprep.subr.mxu0 0.0
        %2670 = vmatpush1.msra.mxu0 0.0
        %2671 = vmatprep.subr.mxu0 0.0
        %2672 = vmatpush1.msra.mxu0 0.0
        %2673 = vmatprep.subr.mxu0 0.0
        %2674 = vmatpush1.msra.mxu0 0.0
        %2675 = vmatprep.subr.mxu0 0.0
        %2676 = vmatpush1.msra.mxu0 0.0
        %2677 = vmatprep.subr.mxu0 0.0
        %2678 = vmatpush1.msra.mxu0 0.0
        %2679 = vmatprep.subr.mxu0 0.0
        %2680 = vmatpush1.msra.mxu0 0.0
        %2681 = vmatprep.subr.mxu0 0.0
        %2682 = vmatpush1.msra.mxu0 0.0
        %2683 = vmatprep.subr.mxu0 0.0
        %2684 = vmatpush1.msra.mxu0 0.0
        %2685 = vmatprep.subr.mxu0 0.0
        %2686 = vmatpush1.msra.mxu0 0.0
        %2687 = vmatprep.subr.mxu0 0.0
        %2688 = vmatpush1.msra.mxu0 0.0
        %2689 = vmatprep.subr.mxu0 0.0
        %2690 = vmatpush1.msra.mxu0 0.0
        %2691 = vmatprep.mubr.f32.mxu0 0.0
        %v2692 = vand.u32 %v591, 4294901760
        %v2693 = vsub.f32 %v591, %v2692
        %v2694 = vand.u32 %v2693, 4294901760
        %2695 = vmatmul.mubr.f32.gmra.mrb[0].mxu0 %v2694
        %v2696 = vpop.f32.mrb[0].mxu0
        %v2697 = vadd.f32 %v2587, %v2696
        %v2698 = vpop.f32.mrb[0].mxu0
        %2699 = vmatprep.mubr.f32.mxu0 0.0
        %v2700 = vand.u32 %v592, 4294901760
        %v2701 = vsub.f32 %v592, %v2700
        %v2702 = vand.u32 %v2701, 4294901760
        %2703 = vmatmul.mubr.f32.gmra.mrb[0].mxu0 %v2702
        %v2704 = vpop.f32.mrb[0].mxu0
        %v2705 = vadd.f32 %v2594, %v2704
        %v2706 = vpop.f32.mrb[0].mxu0
        %2707 = vmatprep.mubr.f32.mxu0 0.0
        %v2708 = vand.u32 %v593, 4294901760
        %v2709 = vsub.f32 %v593, %v2708
        %v2710 = vand.u32 %v2709, 4294901760
        %2711 = vmatmul.mubr.f32.gmra.mrb[0].mxu0 %v2710
        %v2712 = vpop.f32.mrb[0].mxu0
        %v2713 = vadd.f32 %v2601, %v2712
        %v2714 = vpop.f32.mrb[0].mxu0
        %2715 = vmatprep.mubr.f32.mxu0 0.0
        %v2716 = vand.u32 %v594, 4294901760
        %v2717 = vsub.f32 %v594, %v2716
        %v2718 = vand.u32 %v2717, 4294901760
        %2719 = vmatmul.mubr.f32.gmra.mrb[0].mxu0 %v2718
        %v2720 = vpop.f32.mrb[0].mxu0
        %v2721 = vadd.f32 %v2608, %v2720
        %v2722 = vpop.f32.mrb[0].mxu0
        %2723 = vdwg.mxu0
        %2724 = vmatprep.subr.mxu0 0.0
        %v2725 = vand.u32 %v2176, 4294901760
        %v2726 = vsub.f32 %v2176, %v2725
        %v2727 = vand.u32 %v2726, 4294901760
        %2728 = vmatpush1.msra.mxu0 %v2727
        %2729 = vmatprep.subr.mxu0 0.0
        %v2730 = vand.u32 %v2177, 4294901760
        %v2731 = vsub.f32 %v2177, %v2730
        %v2732 = vand.u32 %v2731, 4294901760
        %2733 = vmatpush1.msra.mxu0 %v2732
        %2734 = vmatprep.subr.mxu0 0.0
        %v2735 = vand.u32 %v2178, 4294901760
        %v2736 = vsub.f32 %v2178, %v2735
        %v2737 = vand.u32 %v2736, 4294901760
        %2738 = vmatpush1.msra.mxu0 %v2737
        %2739 = vmatprep.subr.mxu0 0.0
        %v2740 = vand.u32 %v2179, 4294901760
        %v2741 = vsub.f32 %v2179, %v2740
        %v2742 = vand.u32 %v2741, 4294901760
        %2743 = vmatpush1.msra.mxu0 %v2742
        %2744 = vmatprep.subr.mxu0 0.0
        %v2745 = vand.u32 %v2180, 4294901760
        %v2746 = vsub.f32 %v2180, %v2745
        %v2747 = vand.u32 %v2746, 4294901760
        %2748 = vmatpush1.msra.mxu0 %v2747
        %2749 = vmatprep.subr.mxu0 0.0
        %v2750 = vand.u32 %v2181, 4294901760
        %v2751 = vsub.f32 %v2181, %v2750
        %v2752 = vand.u32 %v2751, 4294901760
        %2753 = vmatpush1.msra.mxu0 %v2752
        %2754 = vmatprep.subr.mxu0 0.0
        %v2755 = vand.u32 %v2182, 4294901760
        %v2756 = vsub.f32 %v2182, %v2755
        %v2757 = vand.u32 %v2756, 4294901760
        %2758 = vmatpush1.msra.mxu0 %v2757
        %2759 = vmatprep.subr.mxu0 0.0
        %v2760 = vand.u32 %v2183, 4294901760
        %v2761 = vsub.f32 %v2183, %v2760
        %v2762 = vand.u32 %v2761, 4294901760
        %2763 = vmatpush1.msra.mxu0 %v2762
        %2764 = vmatprep.subr.mxu0 0.0
        %v2765 = vand.u32 %v2184, 4294901760
        %v2766 = vsub.f32 %v2184, %v2765
        %v2767 = vand.u32 %v2766, 4294901760
        %2768 = vmatpush1.msra.mxu0 %v2767
        %2769 = vmatprep.subr.mxu0 0.0
        %v2770 = vand.u32 %v2185, 4294901760
        %v2771 = vsub.f32 %v2185, %v2770
        %v2772 = vand.u32 %v2771, 4294901760
        %2773 = vmatpush1.msra.mxu0 %v2772
        %2774 = vmatprep.subr.mxu0 0.0
        %v2775 = vand.u32 %v2186, 4294901760
        %v2776 = vsub.f32 %v2186, %v2775
        %v2777 = vand.u32 %v2776, 4294901760
        %2778 = vmatpush1.msra.mxu0 %v2777
        %2779 = vmatprep.subr.mxu0 0.0
        %v2780 = vand.u32 %v2187, 4294901760
        %v2781 = vsub.f32 %v2187, %v2780
        %v2782 = vand.u32 %v2781, 4294901760
        %2783 = vmatpush1.msra.mxu0 %v2782
        %2784 = vmatprep.subr.mxu0 0.0
        %v2785 = vand.u32 %v2188, 4294901760
        %v2786 = vsub.f32 %v2188, %v2785
        %v2787 = vand.u32 %v2786, 4294901760
        %2788 = vmatpush1.msra.mxu0 %v2787
        %2789 = vmatprep.subr.mxu0 0.0
        %v2790 = vand.u32 %v2189, 4294901760
        %v2791 = vsub.f32 %v2189, %v2790
        %v2792 = vand.u32 %v2791, 4294901760
        %2793 = vmatpush1.msra.mxu0 %v2792
        %2794 = vmatprep.subr.mxu0 0.0
        %v2795 = vand.u32 %v2190, 4294901760
        %v2796 = vsub.f32 %v2190, %v2795
        %v2797 = vand.u32 %v2796, 4294901760
        %2798 = vmatpush1.msra.mxu0 %v2797
        %2799 = vmatprep.subr.mxu0 0.0
        %v2800 = vand.u32 %v2191, 4294901760
        %v2801 = vsub.f32 %v2191, %v2800
        %v2802 = vand.u32 %v2801, 4294901760
        %2803 = vmatpush1.msra.mxu0 %v2802
        %2804 = vmatprep.subr.mxu0 0.0
        %2805 = vmatpush1.msra.mxu0 0.0
        %2806 = vmatprep.subr.mxu0 0.0
        %2807 = vmatpush1.msra.mxu0 0.0
        %2808 = vmatprep.subr.mxu0 0.0
        %2809 = vmatpush1.msra.mxu0 0.0
        %2810 = vmatprep.subr.mxu0 0.0
        %2811 = vmatpush1.msra.mxu0 0.0
        %2812 = vmatprep.subr.mxu0 0.0
        %2813 = vmatpush1.msra.mxu0 0.0
        %2814 = vmatprep.subr.mxu0 0.0
        %2815 = vmatpush1.msra.mxu0 0.0
        %2816 = vmatprep.subr.mxu0 0.0
        %2817 = vmatpush1.msra.mxu0 0.0
        %2818 = vmatprep.subr.mxu0 0.0
        %2819 = vmatpush1.msra.mxu0 0.0
        %2820 = vmatprep.subr.mxu0 0.0
        %2821 = vmatpush1.msra.mxu0 0.0
        %2822 = vmatprep.subr.mxu0 0.0
        %2823 = vmatpush1.msra.mxu0 0.0
        %2824 = vmatprep.subr.mxu0 0.0
        %2825 = vmatpush1.msra.mxu0 0.0
        %2826 = vmatprep.subr.mxu0 0.0
        %2827 = vmatpush1.msra.mxu0 0.0
        %2828 = vmatprep.subr.mxu0 0.0
        %2829 = vmatpush1.msra.mxu0 0.0
        %2830 = vmatprep.subr.mxu0 0.0
        %2831 = vmatpush1.msra.mxu0 0.0
        %2832 = vmatprep.subr.mxu0 0.0
        %2833 = vmatpush1.msra.mxu0 0.0
        %2834 = vmatprep.subr.mxu0 0.0
        %2835 = vmatpush1.msra.mxu0 0.0
        %2836 = vmatprep.mubr.f32.mxu0 0.0
        %v2837 = vand.u32 %v591, 4294901760
        %2838 = vmatmul.mubr.f32.gmra.mrb[0].mxu0 %v2837
        %v2839 = vpop.f32.mrb[0].mxu0
        %v2840 = vadd.f32 %v2697, %v2839
        %v2841 = vpop.f32.mrb[0].mxu0
        %2842 = vmatprep.mubr.f32.mxu0 0.0
        %v2843 = vand.u32 %v592, 4294901760
        %2844 = vmatmul.mubr.f32.gmra.mrb[0].mxu0 %v2843
        %v2845 = vpop.f32.mrb[0].mxu0
        %v2846 = vadd.f32 %v2705, %v2845
        %v2847 = vpop.f32.mrb[0].mxu0
        %2848 = vmatprep.mubr.f32.mxu0 0.0
        %v2849 = vand.u32 %v593, 4294901760
        %2850 = vmatmul.mubr.f32.gmra.mrb[0].mxu0 %v2849
        %v2851 = vpop.f32.mrb[0].mxu0
        %v2852 = vadd.f32 %v2713, %v2851
        %v2853 = vpop.f32.mrb[0].mxu0
        %2854 = vmatprep.mubr.f32.mxu0 0.0
        %v2855 = vand.u32 %v594, 4294901760
        %2856 = vmatmul.mubr.f32.gmra.mrb[0].mxu0 %v2855
        %v2857 = vpop.f32.mrb[0].mxu0
        %v2858 = vadd.f32 %v2721, %v2857
        %v2859 = vpop.f32.mrb[0].mxu0
        %2860 = vdwg.mxu0
        %2861 = vmatprep.subr.mxu0 0.0
        %v2862 = vand.u32 %v2176, 4294901760
        %2863 = vmatpush1.msra.mxu0 %v2862
        %2864 = vmatprep.subr.mxu0 0.0
        %v2865 = vand.u32 %v2177, 4294901760
        %2866 = vmatpush1.msra.mxu0 %v2865
        %2867 = vmatprep.subr.mxu0 0.0
        %v2868 = vand.u32 %v2178, 4294901760
        %2869 = vmatpush1.msra.mxu0 %v2868
        %2870 = vmatprep.subr.mxu0 0.0
        %v2871 = vand.u32 %v2179, 4294901760
        %2872 = vmatpush1.msra.mxu0 %v2871
        %2873 = vmatprep.subr.mxu0 0.0
        %v2874 = vand.u32 %v2180, 4294901760
        %2875 = vmatpush1.msra.mxu0 %v2874
        %2876 = vmatprep.subr.mxu0 0.0
        %v2877 = vand.u32 %v2181, 4294901760
        %2878 = vmatpush1.msra.mxu0 %v2877
        %2879 = vmatprep.subr.mxu0 0.0
        %v2880 = vand.u32 %v2182, 4294901760
        %2881 = vmatpush1.msra.mxu0 %v2880
        %2882 = vmatprep.subr.mxu0 0.0
        %v2883 = vand.u32 %v2183, 4294901760
        %2884 = vmatpush1.msra.mxu0 %v2883
        %2885 = vmatprep.subr.mxu0 0.0
        %v2886 = vand.u32 %v2184, 4294901760
        %2887 = vmatpush1.msra.mxu0 %v2886
        %2888 = vmatprep.subr.mxu0 0.0
        %v2889 = vand.u32 %v2185, 4294901760
        %2890 = vmatpush1.msra.mxu0 %v2889
        %2891 = vmatprep.subr.mxu0 0.0
        %v2892 = vand.u32 %v2186, 4294901760
        %2893 = vmatpush1.msra.mxu0 %v2892
        %2894 = vmatprep.subr.mxu0 0.0
        %v2895 = vand.u32 %v2187, 4294901760
        %2896 = vmatpush1.msra.mxu0 %v2895
        %2897 = vmatprep.subr.mxu0 0.0
        %v2898 = vand.u32 %v2188, 4294901760
        %2899 = vmatpush1.msra.mxu0 %v2898
        %2900 = vmatprep.subr.mxu0 0.0
        %v2901 = vand.u32 %v2189, 4294901760
        %2902 = vmatpush1.msra.mxu0 %v2901
        %2903 = vmatprep.subr.mxu0 0.0
        %v2904 = vand.u32 %v2190, 4294901760
        %2905 = vmatpush1.msra.mxu0 %v2904
        %2906 = vmatprep.subr.mxu0 0.0
        %v2907 = vand.u32 %v2191, 4294901760
        %2908 = vmatpush1.msra.mxu0 %v2907
        %2909 = vmatprep.subr.mxu0 0.0
        %2910 = vmatpush1.msra.mxu0 0.0
        %2911 = vmatprep.subr.mxu0 0.0
        %2912 = vmatpush1.msra.mxu0 0.0
        %2913 = vmatprep.subr.mxu0 0.0
        %2914 = vmatpush1.msra.mxu0 0.0
        %2915 = vmatprep.subr.mxu0 0.0
        %2916 = vmatpush1.msra.mxu0 0.0
        %2917 = vmatprep.subr.mxu0 0.0
        %2918 = vmatpush1.msra.mxu0 0.0
        %2919 = vmatprep.subr.mxu0 0.0
        %2920 = vmatpush1.msra.mxu0 0.0
        %2921 = vmatprep.subr.mxu0 0.0
        %2922 = vmatpush1.msra.mxu0 0.0
        %2923 = vmatprep.subr.mxu0 0.0
        %2924 = vmatpush1.msra.mxu0 0.0
        %2925 = vmatprep.subr.mxu0 0.0
        %2926 = vmatpush1.msra.mxu0 0.0
        %2927 = vmatprep.subr.mxu0 0.0
        %2928 = vmatpush1.msra.mxu0 0.0
        %2929 = vmatprep.subr.mxu0 0.0
        %2930 = vmatpush1.msra.mxu0 0.0
        %2931 = vmatprep.subr.mxu0 0.0
        %2932 = vmatpush1.msra.mxu0 0.0
        %2933 = vmatprep.subr.mxu0 0.0
        %2934 = vmatpush1.msra.mxu0 0.0
        %2935 = vmatprep.subr.mxu0 0.0
        %2936 = vmatpush1.msra.mxu0 0.0
        %2937 = vmatprep.subr.mxu0 0.0
        %2938 = vmatpush1.msra.mxu0 0.0
        %2939 = vmatprep.subr.mxu0 0.0
        %2940 = vmatpush1.msra.mxu0 0.0
        %2941 = vmatprep.mubr.f32.mxu0 0.0
        %v2942 = vand.u32 %v591, 4294901760
        %2943 = vmatmul.mubr.f32.gmra.mrb[0].mxu0 %v2942
        %v2944 = vpop.f32.mrb[0].mxu0
        %v2945 = vadd.f32 %v2840, %v2944
        %v2946 = vpop.f32.mrb[0].mxu0
        %2947 = vmatprep.mubr.f32.mxu0 0.0
        %v2948 = vand.u32 %v592, 4294901760
        %2949 = vmatmul.mubr.f32.gmra.mrb[0].mxu0 %v2948
        %v2950 = vpop.f32.mrb[0].mxu0
        %v2951 = vadd.f32 %v2846, %v2950
        %v2952 = vpop.f32.mrb[0].mxu0
        %2953 = vmatprep.mubr.f32.mxu0 0.0
        %v2954 = vand.u32 %v593, 4294901760
        %2955 = vmatmul.mubr.f32.gmra.mrb[0].mxu0 %v2954
        %v2956 = vpop.f32.mrb[0].mxu0
        %v2957 = vadd.f32 %v2852, %v2956
        %v2958 = vpop.f32.mrb[0].mxu0
        %2959 = vmatprep.mubr.f32.mxu0 0.0
        %v2960 = vand.u32 %v594, 4294901760
        %2961 = vmatmul.mubr.f32.gmra.mrb[0].mxu0 %v2960
        %v2962 = vpop.f32.mrb[0].mxu0
        %v2963 = vadd.f32 %v2858, %v2962
        %v2964 = vpop.f32.mrb[0].mxu0
        %2965 = vdwg.mxu0
        %vm2966 = vcmask 64512
        %v2968 = vsel %vm2966, %v1365, 0
        %v2971 = vsel %vm2966, %v2155, 0
        %2973 = vmatprep.subr.mxu0 0.0
        %v2974 = vand.u32 %v2971, 4294901760
        %2975 = vmatpush1.xpose.msra.mxu0 %v2974
        %2976 = vmatprep.subr.mxu0 0.0
        %2977 = vmatpush1.xpose.msra.mxu0 0.0
        %2978 = vmatprep.subr.mxu0 0.0
        %2979 = vmatpush1.xpose.msra.mxu0 0.0
        %2980 = vmatprep.subr.mxu0 0.0
        %2981 = vmatpush1.xpose.msra.mxu0 0.0
        %2982 = vmatprep.subr.mxu0 0.0
        %2983 = vmatpush1.xpose.msra.mxu0 0.0
        %2984 = vmatprep.subr.mxu0 0.0
        %2985 = vmatpush1.xpose.msra.mxu0 0.0
        %2986 = vmatprep.subr.mxu0 0.0
        %2987 = vmatpush1.xpose.msra.mxu0 0.0
        %2988 = vmatprep.subr.mxu0 0.0
        %2989 = vmatpush1.xpose.msra.mxu0 0.0
        %2990 = vmatprep.subr.mxu0 0.0
        %2991 = vmatpush1.xpose.msra.mxu0 0.0
        %2992 = vmatprep.subr.mxu0 0.0
        %2993 = vmatpush1.xpose.msra.mxu0 0.0
        %2994 = vmatprep.subr.mxu0 0.0
        %2995 = vmatpush1.xpose.msra.mxu0 0.0
        %2996 = vmatprep.subr.mxu0 0.0
        %2997 = vmatpush1.xpose.msra.mxu0 0.0
        %2998 = vmatprep.subr.mxu0 0.0
        %2999 = vmatpush1.xpose.msra.mxu0 0.0
        %3000 = vmatprep.subr.mxu0 0.0
        %3001 = vmatpush1.xpose.msra.mxu0 0.0
        %3002 = vmatprep.subr.mxu0 0.0
        %3003 = vmatpush1.xpose.msra.mxu0 0.0
        %3004 = vmatprep.subr.mxu0 0.0
        %3005 = vmatpush1.xpose.msra.mxu0 0.0
        %3006 = vmatprep.subr.mxu0 0.0
        %3007 = vmatpush1.xpose.msra.mxu0 0.0
        %3008 = vmatprep.subr.mxu0 0.0
        %3009 = vmatpush1.xpose.msra.mxu0 0.0
        %3010 = vmatprep.subr.mxu0 0.0
        %3011 = vmatpush1.xpose.msra.mxu0 0.0
        %3012 = vmatprep.subr.mxu0 0.0
        %3013 = vmatpush1.xpose.msra.mxu0 0.0
        %3014 = vmatprep.subr.mxu0 0.0
        %3015 = vmatpush1.xpose.msra.mxu0 0.0
        %3016 = vmatprep.subr.mxu0 0.0
        %3017 = vmatpush1.xpose.msra.mxu0 0.0
        %3018 = vmatprep.subr.mxu0 0.0
        %3019 = vmatpush1.xpose.msra.mxu0 0.0
        %3020 = vmatprep.subr.mxu0 0.0
        %3021 = vmatpush1.xpose.msra.mxu0 0.0
        %3022 = vmatprep.subr.mxu0 0.0
        %3023 = vmatpush1.xpose.msra.mxu0 0.0
        %3024 = vmatprep.subr.mxu0 0.0
        %3025 = vmatpush1.xpose.msra.mxu0 0.0
        %3026 = vmatprep.subr.mxu0 0.0
        %3027 = vmatpush1.xpose.msra.mxu0 0.0
        %3028 = vmatprep.subr.mxu0 0.0
        %3029 = vmatpush1.xpose.msra.mxu0 0.0
        %3030 = vmatprep.subr.mxu0 0.0
        %3031 = vmatpush1.xpose.msra.mxu0 0.0
        %3032 = vmatprep.subr.mxu0 0.0
        %3033 = vmatpush1.xpose.msra.mxu0 0.0
        %3034 = vmatprep.subr.mxu0 0.0
        %3035 = vmatpush1.xpose.msra.mxu0 0.0
        %3036 = vmatprep.subr.mxu0 0.0
        %3037 = vmatpush1.xpose.msra.mxu0 0.0
        %3038 = vmatprep.mubr.f32.mxu0 0.0
        %v3039 = vand.u32 %v2968, 4294901760
        %v3040 = vsub.f32 %v2968, %v3039
        %v3041 = vand.u32 %v3040, 4294901760
        %v3042 = vsub.f32 %v3040, %v3041
        %v3043 = vand.u32 %v3042, 4294901760
        %3044 = vmatmul.mubr.f32.gmra.mrb[0].mxu0 %v3043
        %v3045 = vpop.f32.mrb[0].mxu0
        %v3046 = vadd.f32 0.0, %v3045
        %v3047 = vpop.f32.mrb[0].mxu0
        %3048 = vdwg.mxu0
        %3049 = vmatprep.subr.mxu0 0.0
        %v3050 = vand.u32 %v2971, 4294901760
        %v3051 = vsub.f32 %v2971, %v3050
        %v3052 = vand.u32 %v3051, 4294901760
        %v3053 = vsub.f32 %v3051, %v3052
        %v3054 = vand.u32 %v3053, 4294901760
        %3055 = vmatpush1.xpose.msra.mxu0 %v3054
        %3056 = vmatprep.subr.mxu0 0.0
        %3057 = vmatpush1.xpose.msra.mxu0 0.0
        %3058 = vmatprep.subr.mxu0 0.0
        %3059 = vmatpush1.xpose.msra.mxu0 0.0
        %3060 = vmatprep.subr.mxu0 0.0
        %3061 = vmatpush1.xpose.msra.mxu0 0.0
        %3062 = vmatprep.subr.mxu0 0.0
        %3063 = vmatpush1.xpose.msra.mxu0 0.0
        %3064 = vmatprep.subr.mxu0 0.0
        %3065 = vmatpush1.xpose.msra.mxu0 0.0
        %3066 = vmatprep.subr.mxu0 0.0
        %3067 = vmatpush1.xpose.msra.mxu0 0.0
        %3068 = vmatprep.subr.mxu0 0.0
        %3069 = vmatpush1.xpose.msra.mxu0 0.0
        %3070 = vmatprep.subr.mxu0 0.0
        %3071 = vmatpush1.xpose.msra.mxu0 0.0
        %3072 = vmatprep.subr.mxu0 0.0
        %3073 = vmatpush1.xpose.msra.mxu0 0.0
        %3074 = vmatprep.subr.mxu0 0.0
        %3075 = vmatpush1.xpose.msra.mxu0 0.0
        %3076 = vmatprep.subr.mxu0 0.0
        %3077 = vmatpush1.xpose.msra.mxu0 0.0
        %3078 = vmatprep.subr.mxu0 0.0
        %3079 = vmatpush1.xpose.msra.mxu0 0.0
        %3080 = vmatprep.subr.mxu0 0.0
        %3081 = vmatpush1.xpose.msra.mxu0 0.0
        %3082 = vmatprep.subr.mxu0 0.0
        %3083 = vmatpush1.xpose.msra.mxu0 0.0
        %3084 = vmatprep.subr.mxu0 0.0
        %3085 = vmatpush1.xpose.msra.mxu0 0.0
        %3086 = vmatprep.subr.mxu0 0.0
        %3087 = vmatpush1.xpose.msra.mxu0 0.0
        %3088 = vmatprep.subr.mxu0 0.0
        %3089 = vmatpush1.xpose.msra.mxu0 0.0
        %3090 = vmatprep.subr.mxu0 0.0
        %3091 = vmatpush1.xpose.msra.mxu0 0.0
        %3092 = vmatprep.subr.mxu0 0.0
        %3093 = vmatpush1.xpose.msra.mxu0 0.0
        %3094 = vmatprep.subr.mxu0 0.0
        %3095 = vmatpush1.xpose.msra.mxu0 0.0
        %3096 = vmatprep.subr.mxu0 0.0
        %3097 = vmatpush1.xpose.msra.mxu0 0.0
        %3098 = vmatprep.subr.mxu0 0.0
        %3099 = vmatpush1.xpose.msra.mxu0 0.0
        %3100 = vmatprep.subr.mxu0 0.0
        %3101 = vmatpush1.xpose.msra.mxu0 0.0
        %3102 = vmatprep.subr.mxu0 0.0
        %3103 = vmatpush1.xpose.msra.mxu0 0.0
        %3104 = vmatprep.subr.mxu0 0.0
        %3105 = vmatpush1.xpose.msra.mxu0 0.0
        %3106 = vmatprep.subr.mxu0 0.0
        %3107 = vmatpush1.xpose.msra.mxu0 0.0
        %3108 = vmatprep.subr.mxu0 0.0
        %3109 = vmatpush1.xpose.msra.mxu0 0.0
        %3110 = vmatprep.subr.mxu0 0.0
        %3111 = vmatpush1.xpose.msra.mxu0 0.0
        %3112 = vmatprep.subr.mxu0 0.0
        %3113 = vmatpush1.xpose.msra.mxu0 0.0
        %3114 = vmatprep.subr.mxu0 0.0
        %3115 = vmatpush1.xpose.msra.mxu0 0.0
        %3116 = vmatprep.subr.mxu0 0.0
        %3117 = vmatpush1.xpose.msra.mxu0 0.0
        %3118 = vmatprep.mubr.f32.mxu0 0.0
        %v3119 = vand.u32 %v2968, 4294901760
        %3120 = vmatmul.mubr.f32.gmra.mrb[0].mxu0 %v3119
        %v3121 = vpop.f32.mrb[0].mxu0
        %v3122 = vadd.f32 %v3046, %v3121
        %v3123 = vpop.f32.mrb[0].mxu0
        %3124 = vdwg.mxu0
        %3125 = vmatprep.subr.mxu0 0.0
        %v3126 = vand.u32 %v2971, 4294901760
        %v3127 = vsub.f32 %v2971, %v3126
        %3128 = vmatpush1.xpose.msra.mxu0 %v3127
        %3129 = vmatprep.subr.mxu0 0.0
        %3130 = vmatpush1.xpose.msra.mxu0 0.0
        %3131 = vmatprep.subr.mxu0 0.0
        %3132 = vmatpush1.xpose.msra.mxu0 0.0
        %3133 = vmatprep.subr.mxu0 0.0
        %3134 = vmatpush1.xpose.msra.mxu0 0.0
        %3135 = vmatprep.subr.mxu0 0.0
        %3136 = vmatpush1.xpose.msra.mxu0 0.0
        %3137 = vmatprep.subr.mxu0 0.0
        %3138 = vmatpush1.xpose.msra.mxu0 0.0
        %3139 = vmatprep.subr.mxu0 0.0
        %3140 = vmatpush1.xpose.msra.mxu0 0.0
        %3141 = vmatprep.subr.mxu0 0.0
        %3142 = vmatpush1.xpose.msra.mxu0 0.0
        %3143 = vmatprep.subr.mxu0 0.0
        %3144 = vmatpush1.xpose.msra.mxu0 0.0
        %3145 = vmatprep.subr.mxu0 0.0
        %3146 = vmatpush1.xpose.msra.mxu0 0.0
        %3147 = vmatprep.subr.mxu0 0.0
        %3148 = vmatpush1.xpose.msra.mxu0 0.0
        %3149 = vmatprep.subr.mxu0 0.0
        %3150 = vmatpush1.xpose.msra.mxu0 0.0
        %3151 = vmatprep.subr.mxu0 0.0
        %3152 = vmatpush1.xpose.msra.mxu0 0.0
        %3153 = vmatprep.subr.mxu0 0.0
        %3154 = vmatpush1.xpose.msra.mxu0 0.0
        %3155 = vmatprep.subr.mxu0 0.0
        %3156 = vmatpush1.xpose.msra.mxu0 0.0
        %3157 = vmatprep.subr.mxu0 0.0
        %3158 = vmatpush1.xpose.msra.mxu0 0.0
        %3159 = vmatprep.subr.mxu0 0.0
        %3160 = vmatpush1.xpose.msra.mxu0 0.0
        %3161 = vmatprep.subr.mxu0 0.0
        %3162 = vmatpush1.xpose.msra.mxu0 0.0
        %3163 = vmatprep.subr.mxu0 0.0
        %3164 = vmatpush1.xpose.msra.mxu0 0.0
        %3165 = vmatprep.subr.mxu0 0.0
        %3166 = vmatpush1.xpose.msra.mxu0 0.0
        %3167 = vmatprep.subr.mxu0 0.0
        %3168 = vmatpush1.xpose.msra.mxu0 0.0
        %3169 = vmatprep.subr.mxu0 0.0
        %3170 = vmatpush1.xpose.msra.mxu0 0.0
        %3171 = vmatprep.subr.mxu0 0.0
        %3172 = vmatpush1.xpose.msra.mxu0 0.0
        %3173 = vmatprep.subr.mxu0 0.0
        %3174 = vmatpush1.xpose.msra.mxu0 0.0
        %3175 = vmatprep.subr.mxu0 0.0
        %3176 = vmatpush1.xpose.msra.mxu0 0.0
        %3177 = vmatprep.subr.mxu0 0.0
        %3178 = vmatpush1.xpose.msra.mxu0 0.0
        %3179 = vmatprep.subr.mxu0 0.0
        %3180 = vmatpush1.xpose.msra.mxu0 0.0
        %3181 = vmatprep.subr.mxu0 0.0
        %3182 = vmatpush1.xpose.msra.mxu0 0.0
        %3183 = vmatprep.subr.mxu0 0.0
        %3184 = vmatpush1.xpose.msra.mxu0 0.0
        %3185 = vmatprep.subr.mxu0 0.0
        %3186 = vmatpush1.xpose.msra.mxu0 0.0
        %3187 = vmatprep.subr.mxu0 0.0
        %3188 = vmatpush1.xpose.msra.mxu0 0.0
        %3189 = vmatprep.subr.mxu0 0.0
        %3190 = vmatpush1.xpose.msra.mxu0 0.0
        %3191 = vmatprep.mubr.f32.mxu0 0.0
        %v3192 = vand.u32 %v2968, 4294901760
        %v3193 = vsub.f32 %v2968, %v3192
        %3194 = vmatmul.mubr.f32.gmra.mrb[0].mxu0 %v3193
        %v3195 = vpop.f32.mrb[0].mxu0
        %v3196 = vadd.f32 %v3122, %v3195
        %v3197 = vpop.f32.mrb[0].mxu0
        %3198 = vdwg.mxu0
        %3199 = vmatprep.subr.mxu0 0.0
        %v3200 = vand.u32 %v2971, 4294901760
        %3201 = vmatpush1.xpose.msra.mxu0 %v3200
        %3202 = vmatprep.subr.mxu0 0.0
        %3203 = vmatpush1.xpose.msra.mxu0 0.0
        %3204 = vmatprep.subr.mxu0 0.0
        %3205 = vmatpush1.xpose.msra.mxu0 0.0
        %3206 = vmatprep.subr.mxu0 0.0
        %3207 = vmatpush1.xpose.msra.mxu0 0.0
        %3208 = vmatprep.subr.mxu0 0.0
        %3209 = vmatpush1.xpose.msra.mxu0 0.0
        %3210 = vmatprep.subr.mxu0 0.0
        %3211 = vmatpush1.xpose.msra.mxu0 0.0
        %3212 = vmatprep.subr.mxu0 0.0
        %3213 = vmatpush1.xpose.msra.mxu0 0.0
        %3214 = vmatprep.subr.mxu0 0.0
        %3215 = vmatpush1.xpose.msra.mxu0 0.0
        %3216 = vmatprep.subr.mxu0 0.0
        %3217 = vmatpush1.xpose.msra.mxu0 0.0
        %3218 = vmatprep.subr.mxu0 0.0
        %3219 = vmatpush1.xpose.msra.mxu0 0.0
        %3220 = vmatprep.subr.mxu0 0.0
        %3221 = vmatpush1.xpose.msra.mxu0 0.0
        %3222 = vmatprep.subr.mxu0 0.0
        %3223 = vmatpush1.xpose.msra.mxu0 0.0
        %3224 = vmatprep.subr.mxu0 0.0
        %3225 = vmatpush1.xpose.msra.mxu0 0.0
        %3226 = vmatprep.subr.mxu0 0.0
        %3227 = vmatpush1.xpose.msra.mxu0 0.0
        %3228 = vmatprep.subr.mxu0 0.0
        %3229 = vmatpush1.xpose.msra.mxu0 0.0
        %3230 = vmatprep.subr.mxu0 0.0
        %3231 = vmatpush1.xpose.msra.mxu0 0.0
        %3232 = vmatprep.subr.mxu0 0.0
        %3233 = vmatpush1.xpose.msra.mxu0 0.0
        %3234 = vmatprep.subr.mxu0 0.0
        %3235 = vmatpush1.xpose.msra.mxu0 0.0
        %3236 = vmatprep.subr.mxu0 0.0
        %3237 = vmatpush1.xpose.msra.mxu0 0.0
        %3238 = vmatprep.subr.mxu0 0.0
        %3239 = vmatpush1.xpose.msra.mxu0 0.0
        %3240 = vmatprep.subr.mxu0 0.0
        %3241 = vmatpush1.xpose.msra.mxu0 0.0
        %3242 = vmatprep.subr.mxu0 0.0
        %3243 = vmatpush1.xpose.msra.mxu0 0.0
        %3244 = vmatprep.subr.mxu0 0.0
        %3245 = vmatpush1.xpose.msra.mxu0 0.0
        %3246 = vmatprep.subr.mxu0 0.0
        %3247 = vmatpush1.xpose.msra.mxu0 0.0
        %3248 = vmatprep.subr.mxu0 0.0
        %3249 = vmatpush1.xpose.msra.mxu0 0.0
        %3250 = vmatprep.subr.mxu0 0.0
        %3251 = vmatpush1.xpose.msra.mxu0 0.0
        %3252 = vmatprep.subr.mxu0 0.0
        %3253 = vmatpush1.xpose.msra.mxu0 0.0
        %3254 = vmatprep.subr.mxu0 0.0
        %3255 = vmatpush1.xpose.msra.mxu0 0.0
        %3256 = vmatprep.subr.mxu0 0.0
        %3257 = vmatpush1.xpose.msra.mxu0 0.0
        %3258 = vmatprep.subr.mxu0 0.0
        %3259 = vmatpush1.xpose.msra.mxu0 0.0
        %3260 = vmatprep.subr.mxu0 0.0
        %3261 = vmatpush1.xpose.msra.mxu0 0.0
        %3262 = vmatprep.subr.mxu0 0.0
        %3263 = vmatpush1.xpose.msra.mxu0 0.0
        %3264 = vmatprep.mubr.f32.mxu0 0.0
        %v3265 = vand.u32 %v2968, 4294901760
        %v3266 = vsub.f32 %v2968, %v3265
        %v3267 = vand.u32 %v3266, 4294901760
        %3268 = vmatmul.mubr.f32.gmra.mrb[0].mxu0 %v3267
        %v3269 = vpop.f32.mrb[0].mxu0
        %v3270 = vadd.f32 %v3196, %v3269
        %v3271 = vpop.f32.mrb[0].mxu0
        %3272 = vdwg.mxu0
        %3273 = vmatprep.subr.mxu0 0.0
        %v3274 = vand.u32 %v2971, 4294901760
        %v3275 = vsub.f32 %v2971, %v3274
        %v3276 = vand.u32 %v3275, 4294901760
        %3277 = vmatpush1.xpose.msra.mxu0 %v3276
        %3278 = vmatprep.subr.mxu0 0.0
        %3279 = vmatpush1.xpose.msra.mxu0 0.0
        %3280 = vmatprep.subr.mxu0 0.0
        %3281 = vmatpush1.xpose.msra.mxu0 0.0
        %3282 = vmatprep.subr.mxu0 0.0
        %3283 = vmatpush1.xpose.msra.mxu0 0.0
        %3284 = vmatprep.subr.mxu0 0.0
        %3285 = vmatpush1.xpose.msra.mxu0 0.0
        %3286 = vmatprep.subr.mxu0 0.0
        %3287 = vmatpush1.xpose.msra.mxu0 0.0
        %3288 = vmatprep.subr.mxu0 0.0
        %3289 = vmatpush1.xpose.msra.mxu0 0.0
        %3290 = vmatprep.subr.mxu0 0.0
        %3291 = vmatpush1.xpose.msra.mxu0 0.0
        %3292 = vmatprep.subr.mxu0 0.0
        %3293 = vmatpush1.xpose.msra.mxu0 0.0
        %3294 = vmatprep.subr.mxu0 0.0
        %3295 = vmatpush1.xpose.msra.mxu0 0.0
        %3296 = vmatprep.subr.mxu0 0.0
        %3297 = vmatpush1.xpose.msra.mxu0 0.0
        %3298 = vmatprep.subr.mxu0 0.0
        %3299 = vmatpush1.xpose.msra.mxu0 0.0
        %3300 = vmatprep.subr.mxu0 0.0
        %3301 = vmatpush1.xpose.msra.mxu0 0.0
        %3302 = vmatprep.subr.mxu0 0.0
        %3303 = vmatpush1.xpose.msra.mxu0 0.0
        %3304 = vmatprep.subr.mxu0 0.0
        %3305 = vmatpush1.xpose.msra.mxu0 0.0
        %3306 = vmatprep.subr.mxu0 0.0
        %3307 = vmatpush1.xpose.msra.mxu0 0.0
        %3308 = vmatprep.subr.mxu0 0.0
        %3309 = vmatpush1.xpose.msra.mxu0 0.0
        %3310 = vmatprep.subr.mxu0 0.0
        %3311 = vmatpush1.xpose.msra.mxu0 0.0
        %3312 = vmatprep.subr.mxu0 0.0
        %3313 = vmatpush1.xpose.msra.mxu0 0.0
        %3314 = vmatprep.subr.mxu0 0.0
        %3315 = vmatpush1.xpose.msra.mxu0 0.0
        %3316 = vmatprep.subr.mxu0 0.0
        %3317 = vmatpush1.xpose.msra.mxu0 0.0
        %3318 = vmatprep.subr.mxu0 0.0
        %3319 = vmatpush1.xpose.msra.mxu0 0.0
        %3320 = vmatprep.subr.mxu0 0.0
        %3321 = vmatpush1.xpose.msra.mxu0 0.0
        %3322 = vmatprep.subr.mxu0 0.0
        %3323 = vmatpush1.xpose.msra.mxu0 0.0
        %3324 = vmatprep.subr.mxu0 0.0
        %3325 = vmatpush1.xpose.msra.mxu0 0.0
        %3326 = vmatprep.subr.mxu0 0.0
        %3327 = vmatpush1.xpose.msra.mxu0 0.0
        %3328 = vmatprep.subr.mxu0 0.0
        %3329 = vmatpush1.xpose.msra.mxu0 0.0
        %3330 = vmatprep.subr.mxu0 0.0
        %3331 = vmatpush1.xpose.msra.mxu0 0.0
        %3332 = vmatprep.subr.mxu0 0.0
        %3333 = vmatpush1.xpose.msra.mxu0 0.0
        %3334 = vmatprep.subr.mxu0 0.0
        %3335 = vmatpush1.xpose.msra.mxu0 0.0
        %3336 = vmatprep.subr.mxu0 0.0
        %3337 = vmatpush1.xpose.msra.mxu0 0.0
        %3338 = vmatprep.subr.mxu0 0.0
        %3339 = vmatpush1.xpose.msra.mxu0 0.0
        %3340 = vmatprep.mubr.f32.mxu0 0.0
        %v3341 = vand.u32 %v2968, 4294901760
        %3342 = vmatmul.mubr.f32.gmra.mrb[0].mxu0 %v3341
        %v3343 = vpop.f32.mrb[0].mxu0
        %v3344 = vadd.f32 %v3270, %v3343
        %v3345 = vpop.f32.mrb[0].mxu0
        %3346 = vdwg.mxu0
        %3347 = vmatprep.subr.mxu0 0.0
        %v3348 = vand.u32 %v2971, 4294901760
        %3349 = vmatpush1.xpose.msra.mxu0 %v3348
        %3350 = vmatprep.subr.mxu0 0.0
        %3351 = vmatpush1.xpose.msra.mxu0 0.0
        %3352 = vmatprep.subr.mxu0 0.0
        %3353 = vmatpush1.xpose.msra.mxu0 0.0
        %3354 = vmatprep.subr.mxu0 0.0
        %3355 = vmatpush1.xpose.msra.mxu0 0.0
        %3356 = vmatprep.subr.mxu0 0.0
        %3357 = vmatpush1.xpose.msra.mxu0 0.0
        %3358 = vmatprep.subr.mxu0 0.0
        %3359 = vmatpush1.xpose.msra.mxu0 0.0
        %3360 = vmatprep.subr.mxu0 0.0
        %3361 = vmatpush1.xpose.msra.mxu0 0.0
        %3362 = vmatprep.subr.mxu0 0.0
        %3363 = vmatpush1.xpose.msra.mxu0 0.0
        %3364 = vmatprep.subr.mxu0 0.0
        %3365 = vmatpush1.xpose.msra.mxu0 0.0
        %3366 = vmatprep.subr.mxu0 0.0
        %3367 = vmatpush1.xpose.msra.mxu0 0.0
        %3368 = vmatprep.subr.mxu0 0.0
        %3369 = vmatpush1.xpose.msra.mxu0 0.0
        %3370 = vmatprep.subr.mxu0 0.0
        %3371 = vmatpush1.xpose.msra.mxu0 0.0
        %3372 = vmatprep.subr.mxu0 0.0
        %3373 = vmatpush1.xpose.msra.mxu0 0.0
        %3374 = vmatprep.subr.mxu0 0.0
        %3375 = vmatpush1.xpose.msra.mxu0 0.0
        %3376 = vmatprep.subr.mxu0 0.0
        %3377 = vmatpush1.xpose.msra.mxu0 0.0
        %3378 = vmatprep.subr.mxu0 0.0
        %3379 = vmatpush1.xpose.msra.mxu0 0.0
        %3380 = vmatprep.subr.mxu0 0.0
        %3381 = vmatpush1.xpose.msra.mxu0 0.0
        %3382 = vmatprep.subr.mxu0 0.0
        %3383 = vmatpush1.xpose.msra.mxu0 0.0
        %3384 = vmatprep.subr.mxu0 0.0
        %3385 = vmatpush1.xpose.msra.mxu0 0.0
        %3386 = vmatprep.subr.mxu0 0.0
        %3387 = vmatpush1.xpose.msra.mxu0 0.0
        %3388 = vmatprep.subr.mxu0 0.0
        %3389 = vmatpush1.xpose.msra.mxu0 0.0
        %3390 = vmatprep.subr.mxu0 0.0
        %3391 = vmatpush1.xpose.msra.mxu0 0.0
        %3392 = vmatprep.subr.mxu0 0.0
        %3393 = vmatpush1.xpose.msra.mxu0 0.0
        %3394 = vmatprep.subr.mxu0 0.0
        %3395 = vmatpush1.xpose.msra.mxu0 0.0
        %3396 = vmatprep.subr.mxu0 0.0
        %3397 = vmatpush1.xpose.msra.mxu0 0.0
        %3398 = vmatprep.subr.mxu0 0.0
        %3399 = vmatpush1.xpose.msra.mxu0 0.0
        %3400 = vmatprep.subr.mxu0 0.0
        %3401 = vmatpush1.xpose.msra.mxu0 0.0
        %3402 = vmatprep.subr.mxu0 0.0
        %3403 = vmatpush1.xpose.msra.mxu0 0.0
        %3404 = vmatprep.subr.mxu0 0.0
        %3405 = vmatpush1.xpose.msra.mxu0 0.0
        %3406 = vmatprep.subr.mxu0 0.0
        %3407 = vmatpush1.xpose.msra.mxu0 0.0
        %3408 = vmatprep.subr.mxu0 0.0
        %3409 = vmatpush1.xpose.msra.mxu0 0.0
        %3410 = vmatprep.subr.mxu0 0.0
        %3411 = vmatpush1.xpose.msra.mxu0 0.0
        %3412 = vmatprep.mubr.f32.mxu0 0.0
        %v3413 = vand.u32 %v2968, 4294901760
        %3414 = vmatmul.mubr.f32.gmra.mrb[0].mxu0 %v3413
        %v3415 = vpop.f32.mrb[0].mxu0
        %v3416 = vadd.f32 %v3344, %v3415
        %v3417 = vpop.f32.mrb[0].mxu0
        %3418 = vdwg.mxu0
        %v3419 = vsel %vm2966, %v3416, -inf
        %3420 = vmax.xlane.f32.xlu0 %v3419
        %v3421 = vpop.xlane.xlu0 %3420
        %v3422 = vsub.f32 %v3416, %v3421
        %v3423 = vmul.f32 %v3422, 1.442695
        %v3424 = vpow.pop %v3423
        %v3425 = vsel %vm2966, %v3424, 0.0
        %3426 = vadd.xlane.f32.xlu0 %v3425
        %v3427 = vpop.xlane.xlu0 %3426
        %v3428 = vrcp.pop %v3427
        %v3429 = vmul.f32 %v3424, %v3428
        %v3431 = vsel %vm2966, %v3429, 0
        %3433 = vmatprep.subr.mxu0 0.0
        %v3434 = vand.u32 %v2945, 4294901760
        %3435 = vmatpush1.msra.mxu0 %v3434
        %3436 = vmatprep.subr.mxu0 0.0
        %3437 = vmatpush1.msra.mxu0 0.0
        %3438 = vmatprep.subr.mxu0 0.0
        %3439 = vmatpush1.msra.mxu0 0.0
        %3440 = vmatprep.subr.mxu0 0.0
        %3441 = vmatpush1.msra.mxu0 0.0
        %3442 = vmatprep.subr.mxu0 0.0
        %3443 = vmatpush1.msra.mxu0 0.0
        %3444 = vmatprep.subr.mxu0 0.0
        %3445 = vmatpush1.msra.mxu0 0.0
        %3446 = vmatprep.subr.mxu0 0.0
        %3447 = vmatpush1.msra.mxu0 0.0
        %3448 = vmatprep.subr.mxu0 0.0
        %3449 = vmatpush1.msra.mxu0 0.0
        %3450 = vmatprep.subr.mxu0 0.0
        %3451 = vmatpush1.msra.mxu0 0.0
        %3452 = vmatprep.subr.mxu0 0.0
        %3453 = vmatpush1.msra.mxu0 0.0
        %3454 = vmatprep.subr.mxu0 0.0
        %3455 = vmatpush1.msra.mxu0 0.0
        %3456 = vmatprep.subr.mxu0 0.0
        %3457 = vmatpush1.msra.mxu0 0.0
        %3458 = vmatprep.subr.mxu0 0.0
        %3459 = vmatpush1.msra.mxu0 0.0
        %3460 = vmatprep.subr.mxu0 0.0
        %3461 = vmatpush1.msra.mxu0 0.0
        %3462 = vmatprep.subr.mxu0 0.0
        %3463 = vmatpush1.msra.mxu0 0.0
        %3464 = vmatprep.subr.mxu0 0.0
        %3465 = vmatpush1.msra.mxu0 0.0
        %3466 = vmatprep.subr.mxu0 0.0
        %3467 = vmatpush1.msra.mxu0 0.0
        %3468 = vmatprep.subr.mxu0 0.0
        %3469 = vmatpush1.msra.mxu0 0.0
        %3470 = vmatprep.subr.mxu0 0.0
        %3471 = vmatpush1.msra.mxu0 0.0
        %3472 = vmatprep.subr.mxu0 0.0
        %3473 = vmatpush1.msra.mxu0 0.0
        %3474 = vmatprep.subr.mxu0 0.0
        %3475 = vmatpush1.msra.mxu0 0.0
        %3476 = vmatprep.subr.mxu0 0.0
        %3477 = vmatpush1.msra.mxu0 0.0
        %3478 = vmatprep.subr.mxu0 0.0
        %3479 = vmatpush1.msra.mxu0 0.0
        %3480 = vmatprep.subr.mxu0 0.0
        %3481 = vmatpush1.msra.mxu0 0.0
        %3482 = vmatprep.subr.mxu0 0.0
        %3483 = vmatpush1.msra.mxu0 0.0
        %3484 = vmatprep.subr.mxu0 0.0
        %3485 = vmatpush1.msra.mxu0 0.0
        %3486 = vmatprep.subr.mxu0 0.0
        %3487 = vmatpush1.msra.mxu0 0.0
        %3488 = vmatprep.subr.mxu0 0.0
        %3489 = vmatpush1.msra.mxu0 0.0
        %3490 = vmatprep.subr.mxu0 0.0
        %3491 = vmatpush1.msra.mxu0 0.0
        %3492 = vmatprep.subr.mxu0 0.0
        %3493 = vmatpush1.msra.mxu0 0.0
        %3494 = vmatprep.subr.mxu0 0.0
        %3495 = vmatpush1.msra.mxu0 0.0
        %3496 = vmatprep.subr.mxu0 0.0
        %3497 = vmatpush1.msra.mxu0 0.0
        %3498 = vmatprep.mubr.f32.mxu0 0.0
        %v3499 = vand.u32 %v3431, 4294901760
        %v3500 = vsub.f32 %v3431, %v3499
        %v3501 = vand.u32 %v3500, 4294901760
        %v3502 = vsub.f32 %v3500, %v3501
        %v3503 = vand.u32 %v3502, 4294901760
        %3504 = vmatmul.mubr.f32.gmra.mrb[0].mxu0 %v3503
        %v3505 = vpop.f32.mrb[0].mxu0
        %v3506 = vadd.f32 0.0, %v3505
        %v3507 = vpop.f32.mrb[0].mxu0
        %3508 = vdwg.mxu0
        %3509 = vmatprep.subr.mxu0 0.0
        %v3510 = vand.u32 %v2945, 4294901760
        %v3511 = vsub.f32 %v2945, %v3510
        %v3512 = vand.u32 %v3511, 4294901760
        %v3513 = vsub.f32 %v3511, %v3512
        %v3514 = vand.u32 %v3513, 4294901760
        %3515 = vmatpush1.msra.mxu0 %v3514
        %3516 = vmatprep.subr.mxu0 0.0
        %3517 = vmatpush1.msra.mxu0 0.0
        %3518 = vmatprep.subr.mxu0 0.0
        %3519 = vmatpush1.msra.mxu0 0.0
        %3520 = vmatprep.subr.mxu0 0.0
        %3521 = vmatpush1.msra.mxu0 0.0
        %3522 = vmatprep.subr.mxu0 0.0
        %3523 = vmatpush1.msra.mxu0 0.0
        %3524 = vmatprep.subr.mxu0 0.0
        %3525 = vmatpush1.msra.mxu0 0.0
        %3526 = vmatprep.subr.mxu0 0.0
        %3527 = vmatpush1.msra.mxu0 0.0
        %3528 = vmatprep.subr.mxu0 0.0
        %3529 = vmatpush1.msra.mxu0 0.0
        %3530 = vmatprep.subr.mxu0 0.0
        %3531 = vmatpush1.msra.mxu0 0.0
        %3532 = vmatprep.subr.mxu0 0.0
        %3533 = vmatpush1.msra.mxu0 0.0
        %3534 = vmatprep.subr.mxu0 0.0
        %3535 = vmatpush1.msra.mxu0 0.0
        %3536 = vmatprep.subr.mxu0 0.0
        %3537 = vmatpush1.msra.mxu0 0.0
        %3538 = vmatprep.subr.mxu0 0.0
        %3539 = vmatpush1.msra.mxu0 0.0
        %3540 = vmatprep.subr.mxu0 0.0
        %3541 = vmatpush1.msra.mxu0 0.0
        %3542 = vmatprep.subr.mxu0 0.0
        %3543 = vmatpush1.msra.mxu0 0.0
        %3544 = vmatprep.subr.mxu0 0.0
        %3545 = vmatpush1.msra.mxu0 0.0
        %3546 = vmatprep.subr.mxu0 0.0
        %3547 = vmatpush1.msra.mxu0 0.0
        %3548 = vmatprep.subr.mxu0 0.0
        %3549 = vmatpush1.msra.mxu0 0.0
        %3550 = vmatprep.subr.mxu0 0.0
        %3551 = vmatpush1.msra.mxu0 0.0
        %3552 = vmatprep.subr.mxu0 0.0
        %3553 = vmatpush1.msra.mxu0 0.0
        %3554 = vmatprep.subr.mxu0 0.0
        %3555 = vmatpush1.msra.mxu0 0.0
        %3556 = vmatprep.subr.mxu0 0.0
        %3557 = vmatpush1.msra.mxu0 0.0
        %3558 = vmatprep.subr.mxu0 0.0
        %3559 = vmatpush1.msra.mxu0 0.0
        %3560 = vmatprep.subr.mxu0 0.0
        %3561 = vmatpush1.msra.mxu0 0.0
        %3562 = vmatprep.subr.mxu0 0.0
        %3563 = vmatpush1.msra.mxu0 0.0
        %3564 = vmatprep.subr.mxu0 0.0
        %3565 = vmatpush1.msra.mxu0 0.0
        %3566 = vmatprep.subr.mxu0 0.0
        %3567 = vmatpush1.msra.mxu0 0.0
        %3568 = vmatprep.subr.mxu0 0.0
        %3569 = vmatpush1.msra.mxu0 0.0
        %3570 = vmatprep.subr.mxu0 0.0
        %3571 = vmatpush1.msra.mxu0 0.0
        %3572 = vmatprep.subr.mxu0 0.0
        %3573 = vmatpush1.msra.mxu0 0.0
        %3574 = vmatprep.subr.mxu0 0.0
        %3575 = vmatpush1.msra.mxu0 0.0
        %3576 = vmatprep.subr.mxu0 0.0
        %3577 = vmatpush1.msra.mxu0 0.0
        %3578 = vmatprep.mubr.f32.mxu0 0.0
        %v3579 = vand.u32 %v3431, 4294901760
        %3580 = vmatmul.mubr.f32.gmra.mrb[0].mxu0 %v3579
        %v3581 = vpop.f32.mrb[0].mxu0
        %v3582 = vadd.f32 %v3506, %v3581
        %v3583 = vpop.f32.mrb[0].mxu0
        %3584 = vdwg.mxu0
        %3585 = vmatprep.subr.mxu0 0.0
        %v3586 = vand.u32 %v2945, 4294901760
        %v3587 = vsub.f32 %v2945, %v3586
        %3588 = vmatpush1.msra.mxu0 %v3587
        %3589 = vmatprep.subr.mxu0 0.0
        %3590 = vmatpush1.msra.mxu0 0.0
        %3591 = vmatprep.subr.mxu0 0.0
        %3592 = vmatpush1.msra.mxu0 0.0
        %3593 = vmatprep.subr.mxu0 0.0
        %3594 = vmatpush1.msra.mxu0 0.0
        %3595 = vmatprep.subr.mxu0 0.0
        %3596 = vmatpush1.msra.mxu0 0.0
        %3597 = vmatprep.subr.mxu0 0.0
        %3598 = vmatpush1.msra.mxu0 0.0
        %3599 = vmatprep.subr.mxu0 0.0
        %3600 = vmatpush1.msra.mxu0 0.0
        %3601 = vmatprep.subr.mxu0 0.0
        %3602 = vmatpush1.msra.mxu0 0.0
        %3603 = vmatprep.subr.mxu0 0.0
        %3604 = vmatpush1.msra.mxu0 0.0
        %3605 = vmatprep.subr.mxu0 0.0
        %3606 = vmatpush1.msra.mxu0 0.0
        %3607 = vmatprep.subr.mxu0 0.0
        %3608 = vmatpush1.msra.mxu0 0.0
        %3609 = vmatprep.subr.mxu0 0.0
        %3610 = vmatpush1.msra.mxu0 0.0
        %3611 = vmatprep.subr.mxu0 0.0
        %3612 = vmatpush1.msra.mxu0 0.0
        %3613 = vmatprep.subr.mxu0 0.0
        %3614 = vmatpush1.msra.mxu0 0.0
        %3615 = vmatprep.subr.mxu0 0.0
        %3616 = vmatpush1.msra.mxu0 0.0
        %3617 = vmatprep.subr.mxu0 0.0
        %3618 = vmatpush1.msra.mxu0 0.0
        %3619 = vmatprep.subr.mxu0 0.0
        %3620 = vmatpush1.msra.mxu0 0.0
        %3621 = vmatprep.subr.mxu0 0.0
        %3622 = vmatpush1.msra.mxu0 0.0
        %3623 = vmatprep.subr.mxu0 0.0
        %3624 = vmatpush1.msra.mxu0 0.0
        %3625 = vmatprep.subr.mxu0 0.0
        %3626 = vmatpush1.msra.mxu0 0.0
        %3627 = vmatprep.subr.mxu0 0.0
        %3628 = vmatpush1.msra.mxu0 0.0
        %3629 = vmatprep.subr.mxu0 0.0
        %3630 = vmatpush1.msra.mxu0 0.0
        %3631 = vmatprep.subr.mxu0 0.0
        %3632 = vmatpush1.msra.mxu0 0.0
        %3633 = vmatprep.subr.mxu0 0.0
        %3634 = vmatpush1.msra.mxu0 0.0
        %3635 = vmatprep.subr.mxu0 0.0
        %3636 = vmatpush1.msra.mxu0 0.0
        %3637 = vmatprep.subr.mxu0 0.0
        %3638 = vmatpush1.msra.mxu0 0.0
        %3639 = vmatprep.subr.mxu0 0.0
        %3640 = vmatpush1.msra.mxu0 0.0
        %3641 = vmatprep.subr.mxu0 0.0
        %3642 = vmatpush1.msra.mxu0 0.0
        %3643 = vmatprep.subr.mxu0 0.0
        %3644 = vmatpush1.msra.mxu0 0.0
        %3645 = vmatprep.subr.mxu0 0.0
        %3646 = vmatpush1.msra.mxu0 0.0
        %3647 = vmatprep.subr.mxu0 0.0
        %3648 = vmatpush1.msra.mxu0 0.0
        %3649 = vmatprep.subr.mxu0 0.0
        %3650 = vmatpush1.msra.mxu0 0.0
        %3651 = vmatprep.mubr.f32.mxu0 0.0
        %v3652 = vand.u32 %v3431, 4294901760
        %v3653 = vsub.f32 %v3431, %v3652
        %3654 = vmatmul.mubr.f32.gmra.mrb[0].mxu0 %v3653
        %v3655 = vpop.f32.mrb[0].mxu0
        %v3656 = vadd.f32 %v3582, %v3655
        %v3657 = vpop.f32.mrb[0].mxu0
        %3658 = vdwg.mxu0
        %3659 = vmatprep.subr.mxu0 0.0
        %v3660 = vand.u32 %v2945, 4294901760
        %3661 = vmatpush1.msra.mxu0 %v3660
        %3662 = vmatprep.subr.mxu0 0.0
        %3663 = vmatpush1.msra.mxu0 0.0
        %3664 = vmatprep.subr.mxu0 0.0
        %3665 = vmatpush1.msra.mxu0 0.0
        %3666 = vmatprep.subr.mxu0 0.0
        %3667 = vmatpush1.msra.mxu0 0.0
        %3668 = vmatprep.subr.mxu0 0.0
        %3669 = vmatpush1.msra.mxu0 0.0
        %3670 = vmatprep.subr.mxu0 0.0
        %3671 = vmatpush1.msra.mxu0 0.0
        %3672 = vmatprep.subr.mxu0 0.0
        %3673 = vmatpush1.msra.mxu0 0.0
        %3674 = vmatprep.subr.mxu0 0.0
        %3675 = vmatpush1.msra.mxu0 0.0
        %3676 = vmatprep.subr.mxu0 0.0
        %3677 = vmatpush1.msra.mxu0 0.0
        %3678 = vmatprep.subr.mxu0 0.0
        %3679 = vmatpush1.msra.mxu0 0.0
        %3680 = vmatprep.subr.mxu0 0.0
        %3681 = vmatpush1.msra.mxu0 0.0
        %3682 = vmatprep.subr.mxu0 0.0
        %3683 = vmatpush1.msra.mxu0 0.0
        %3684 = vmatprep.subr.mxu0 0.0
        %3685 = vmatpush1.msra.mxu0 0.0
        %3686 = vmatprep.subr.mxu0 0.0
        %3687 = vmatpush1.msra.mxu0 0.0
        %3688 = vmatprep.subr.mxu0 0.0
        %3689 = vmatpush1.msra.mxu0 0.0
        %3690 = vmatprep.subr.mxu0 0.0
        %3691 = vmatpush1.msra.mxu0 0.0
        %3692 = vmatprep.subr.mxu0 0.0
        %3693 = vmatpush1.msra.mxu0 0.0
        %3694 = vmatprep.subr.mxu0 0.0
        %3695 = vmatpush1.msra.mxu0 0.0
        %3696 = vmatprep.subr.mxu0 0.0
        %3697 = vmatpush1.msra.mxu0 0.0
        %3698 = vmatprep.subr.mxu0 0.0
        %3699 = vmatpush1.msra.mxu0 0.0
        %3700 = vmatprep.subr.mxu0 0.0
        %3701 = vmatpush1.msra.mxu0 0.0
        %3702 = vmatprep.subr.mxu0 0.0
        %3703 = vmatpush1.msra.mxu0 0.0
        %3704 = vmatprep.subr.mxu0 0.0
        %3705 = vmatpush1.msra.mxu0 0.0
        %3706 = vmatprep.subr.mxu0 0.0
        %3707 = vmatpush1.msra.mxu0 0.0
        %3708 = vmatprep.subr.mxu0 0.0
        %3709 = vmatpush1.msra.mxu0 0.0
        %3710 = vmatprep.subr.mxu0 0.0
        %3711 = vmatpush1.msra.mxu0 0.0
        %3712 = vmatprep.subr.mxu0 0.0
        %3713 = vmatpush1.msra.mxu0 0.0
        %3714 = vmatprep.subr.mxu0 0.0
        %3715 = vmatpush1.msra.mxu0 0.0
        %3716 = vmatprep.subr.mxu0 0.0
        %3717 = vmatpush1.msra.mxu0 0.0
        %3718 = vmatprep.subr.mxu0 0.0
        %3719 = vmatpush1.msra.mxu0 0.0
        %3720 = vmatprep.subr.mxu0 0.0
        %3721 = vmatpush1.msra.mxu0 0.0
        %3722 = vmatprep.subr.mxu0 0.0
        %3723 = vmatpush1.msra.mxu0 0.0
        %3724 = vmatprep.mubr.f32.mxu0 0.0
        %v3725 = vand.u32 %v3431, 4294901760
        %v3726 = vsub.f32 %v3431, %v3725
        %v3727 = vand.u32 %v3726, 4294901760
        %3728 = vmatmul.mubr.f32.gmra.mrb[0].mxu0 %v3727
        %v3729 = vpop.f32.mrb[0].mxu0
        %v3730 = vadd.f32 %v3656, %v3729
        %v3731 = vpop.f32.mrb[0].mxu0
        %3732 = vdwg.mxu0
        %3733 = vmatprep.subr.mxu0 0.0
        %v3734 = vand.u32 %v2945, 4294901760
        %v3735 = vsub.f32 %v2945, %v3734
        %v3736 = vand.u32 %v3735, 4294901760
        %3737 = vmatpush1.msra.mxu0 %v3736
        %3738 = vmatprep.subr.mxu0 0.0
        %3739 = vmatpush1.msra.mxu0 0.0
        %3740 = vmatprep.subr.mxu0 0.0
        %3741 = vmatpush1.msra.mxu0 0.0
        %3742 = vmatprep.subr.mxu0 0.0
        %3743 = vmatpush1.msra.mxu0 0.0
        %3744 = vmatprep.subr.mxu0 0.0
        %3745 = vmatpush1.msra.mxu0 0.0
        %3746 = vmatprep.subr.mxu0 0.0
        %3747 = vmatpush1.msra.mxu0 0.0
        %3748 = vmatprep.subr.mxu0 0.0
        %3749 = vmatpush1.msra.mxu0 0.0
        %3750 = vmatprep.subr.mxu0 0.0
        %3751 = vmatpush1.msra.mxu0 0.0
        %3752 = vmatprep.subr.mxu0 0.0
        %3753 = vmatpush1.msra.mxu0 0.0
        %3754 = vmatprep.subr.mxu0 0.0
        %3755 = vmatpush1.msra.mxu0 0.0
        %3756 = vmatprep.subr.mxu0 0.0
        %3757 = vmatpush1.msra.mxu0 0.0
        %3758 = vmatprep.subr.mxu0 0.0
        %3759 = vmatpush1.msra.mxu0 0.0
        %3760 = vmatprep.subr.mxu0 0.0
        %3761 = vmatpush1.msra.mxu0 0.0
        %3762 = vmatprep.subr.mxu0 0.0
        %3763 = vmatpush1.msra.mxu0 0.0
        %3764 = vmatprep.subr.mxu0 0.0
        %3765 = vmatpush1.msra.mxu0 0.0
        %3766 = vmatprep.subr.mxu0 0.0
        %3767 = vmatpush1.msra.mxu0 0.0
        %3768 = vmatprep.subr.mxu0 0.0
        %3769 = vmatpush1.msra.mxu0 0.0
        %3770 = vmatprep.subr.mxu0 0.0
        %3771 = vmatpush1.msra.mxu0 0.0
        %3772 = vmatprep.subr.mxu0 0.0
        %3773 = vmatpush1.msra.mxu0 0.0
        %3774 = vmatprep.subr.mxu0 0.0
        %3775 = vmatpush1.msra.mxu0 0.0
        %3776 = vmatprep.subr.mxu0 0.0
        %3777 = vmatpush1.msra.mxu0 0.0
        %3778 = vmatprep.subr.mxu0 0.0
        %3779 = vmatpush1.msra.mxu0 0.0
        %3780 = vmatprep.subr.mxu0 0.0
        %3781 = vmatpush1.msra.mxu0 0.0
        %3782 = vmatprep.subr.mxu0 0.0
        %3783 = vmatpush1.msra.mxu0 0.0
        %3784 = vmatprep.subr.mxu0 0.0
        %3785 = vmatpush1.msra.mxu0 0.0
        %3786 = vmatprep.subr.mxu0 0.0
        %3787 = vmatpush1.msra.mxu0 0.0
        %3788 = vmatprep.subr.mxu0 0.0
        %3789 = vmatpush1.msra.mxu0 0.0
        %3790 = vmatprep.subr.mxu0 0.0
        %3791 = vmatpush1.msra.mxu0 0.0
        %3792 = vmatprep.subr.mxu0 0.0
        %3793 = vmatpush1.msra.mxu0 0.0
        %3794 = vmatprep.subr.mxu0 0.0
        %3795 = vmatpush1.msra.mxu0 0.0
        %3796 = vmatprep.subr.mxu0 0.0
        %3797 = vmatpush1.msra.mxu0 0.0
        %3798 = vmatprep.subr.mxu0 0.0
        %3799 = vmatpush1.msra.mxu0 0.0
        %3800 = vmatprep.mubr.f32.mxu0 0.0
        %v3801 = vand.u32 %v3431, 4294901760
        %3802 = vmatmul.mubr.f32.gmra.mrb[0].mxu0 %v3801
        %v3803 = vpop.f32.mrb[0].mxu0
        %v3804 = vadd.f32 %v3730, %v3803
        %v3805 = vpop.f32.mrb[0].mxu0
        %3806 = vdwg.mxu0
        %3807 = vmatprep.subr.mxu0 0.0
        %v3808 = vand.u32 %v2945, 4294901760
        %3809 = vmatpush1.msra.mxu0 %v3808
        %3810 = vmatprep.subr.mxu0 0.0
        %3811 = vmatpush1.msra.mxu0 0.0
        %3812 = vmatprep.subr.mxu0 0.0
        %3813 = vmatpush1.msra.mxu0 0.0
        %3814 = vmatprep.subr.mxu0 0.0
        %3815 = vmatpush1.msra.mxu0 0.0
        %3816 = vmatprep.subr.mxu0 0.0
        %3817 = vmatpush1.msra.mxu0 0.0
        %3818 = vmatprep.subr.mxu0 0.0
        %3819 = vmatpush1.msra.mxu0 0.0
        %3820 = vmatprep.subr.mxu0 0.0
        %3821 = vmatpush1.msra.mxu0 0.0
        %3822 = vmatprep.subr.mxu0 0.0
        %3823 = vmatpush1.msra.mxu0 0.0
        %3824 = vmatprep.subr.mxu0 0.0
        %3825 = vmatpush1.msra.mxu0 0.0
        %3826 = vmatprep.subr.mxu0 0.0
        %3827 = vmatpush1.msra.mxu0 0.0
        %3828 = vmatprep.subr.mxu0 0.0
        %3829 = vmatpush1.msra.mxu0 0.0
        %3830 = vmatprep.subr.mxu0 0.0
        %3831 = vmatpush1.msra.mxu0 0.0
        %3832 = vmatprep.subr.mxu0 0.0
        %3833 = vmatpush1.msra.mxu0 0.0
        %3834 = vmatprep.subr.mxu0 0.0
        %3835 = vmatpush1.msra.mxu0 0.0
        %3836 = vmatprep.subr.mxu0 0.0
        %3837 = vmatpush1.msra.mxu0 0.0
        %3838 = vmatprep.subr.mxu0 0.0
        %3839 = vmatpush1.msra.mxu0 0.0
        %3840 = vmatprep.subr.mxu0 0.0
        %3841 = vmatpush1.msra.mxu0 0.0
        %3842 = vmatprep.subr.mxu0 0.0
        %3843 = vmatpush1.msra.mxu0 0.0
        %3844 = vmatprep.subr.mxu0 0.0
        %3845 = vmatpush1.msra.mxu0 0.0
        %3846 = vmatprep.subr.mxu0 0.0
        %3847 = vmatpush1.msra.mxu0 0.0
        %3848 = vmatprep.subr.mxu0 0.0
        %3849 = vmatpush1.msra.mxu0 0.0
        %3850 = vmatprep.subr.mxu0 0.0
        %3851 = vmatpush1.msra.mxu0 0.0
        %3852 = vmatprep.subr.mxu0 0.0
        %3853 = vmatpush1.msra.mxu0 0.0
        %3854 = vmatprep.subr.mxu0 0.0
        %3855 = vmatpush1.msra.mxu0 0.0
        %3856 = vmatprep.subr.mxu0 0.0
        %3857 = vmatpush1.msra.mxu0 0.0
        %3858 = vmatprep.subr.mxu0 0.0
        %3859 = vmatpush1.msra.mxu0 0.0
        %3860 = vmatprep.subr.mxu0 0.0
        %3861 = vmatpush1.msra.mxu0 0.0
        %3862 = vmatprep.subr.mxu0 0.0
        %3863 = vmatpush1.msra.mxu0 0.0
        %3864 = vmatprep.subr.mxu0 0.0
        %3865 = vmatpush1.msra.mxu0 0.0
        %3866 = vmatprep.subr.mxu0 0.0
        %3867 = vmatpush1.msra.mxu0 0.0
        %3868 = vmatprep.subr.mxu0 0.0
        %3869 = vmatpush1.msra.mxu0 0.0
        %3870 = vmatprep.subr.mxu0 0.0
        %3871 = vmatpush1.msra.mxu0 0.0
        %3872 = vmatprep.mubr.f32.mxu0 0.0
        %v3873 = vand.u32 %v3431, 4294901760
        %3874 = vmatmul.mubr.f32.gmra.mrb[0].mxu0 %v3873
        %v3875 = vpop.f32.mrb[0].mxu0
        %v3876 = vadd.f32 %v3804, %v3875
        %v3877 = vpop.f32.mrb[0].mxu0
        %3878 = vdwg.mxu0
        %v3879 = vld [vmem:[%s8] sm:$0xff]
        %v3881 = vsel %vm2966, %v1371, 0
        %v3884 = vsel %vm2966, %v2161, 0
        %3886 = vmatprep.subr.mxu0 0.0
        %v3887 = vand.u32 %v3884, 4294901760
        %3888 = vmatpush1.xpose.msra.mxu0 %v3887
        %3889 = vmatprep.subr.mxu0 0.0
        %3890 = vmatpush1.xpose.msra.mxu0 0.0
        %3891 = vmatprep.subr.mxu0 0.0
        %3892 = vmatpush1.xpose.msra.mxu0 0.0
        %3893 = vmatprep.subr.mxu0 0.0
        %3894 = vmatpush1.xpose.msra.mxu0 0.0
        %3895 = vmatprep.subr.mxu0 0.0
        %3896 = vmatpush1.xpose.msra.mxu0 0.0
        %3897 = vmatprep.subr.mxu0 0.0
        %3898 = vmatpush1.xpose.msra.mxu0 0.0
        %3899 = vmatprep.subr.mxu0 0.0
        %3900 = vmatpush1.xpose.msra.mxu0 0.0
        %3901 = vmatprep.subr.mxu0 0.0
        %3902 = vmatpush1.xpose.msra.mxu0 0.0
        %3903 = vmatprep.subr.mxu0 0.0
        %3904 = vmatpush1.xpose.msra.mxu0 0.0
        %3905 = vmatprep.subr.mxu0 0.0
        %3906 = vmatpush1.xpose.msra.mxu0 0.0
        %3907 = vmatprep.subr.mxu0 0.0
        %3908 = vmatpush1.xpose.msra.mxu0 0.0
        %3909 = vmatprep.subr.mxu0 0.0
        %3910 = vmatpush1.xpose.msra.mxu0 0.0
        %3911 = vmatprep.subr.mxu0 0.0
        %3912 = vmatpush1.xpose.msra.mxu0 0.0
        %3913 = vmatprep.subr.mxu0 0.0
        %3914 = vmatpush1.xpose.msra.mxu0 0.0
        %3915 = vmatprep.subr.mxu0 0.0
        %3916 = vmatpush1.xpose.msra.mxu0 0.0
        %3917 = vmatprep.subr.mxu0 0.0
        %3918 = vmatpush1.xpose.msra.mxu0 0.0
        %3919 = vmatprep.subr.mxu0 0.0
        %3920 = vmatpush1.xpose.msra.mxu0 0.0
        %3921 = vmatprep.subr.mxu0 0.0
        %3922 = vmatpush1.xpose.msra.mxu0 0.0
        %3923 = vmatprep.subr.mxu0 0.0
        %3924 = vmatpush1.xpose.msra.mxu0 0.0
        %3925 = vmatprep.subr.mxu0 0.0
        %3926 = vmatpush1.xpose.msra.mxu0 0.0
        %3927 = vmatprep.subr.mxu0 0.0
        %3928 = vmatpush1.xpose.msra.mxu0 0.0
        %3929 = vmatprep.subr.mxu0 0.0
        %3930 = vmatpush1.xpose.msra.mxu0 0.0
        %3931 = vmatprep.subr.mxu0 0.0
        %3932 = vmatpush1.xpose.msra.mxu0 0.0
        %3933 = vmatprep.subr.mxu0 0.0
        %3934 = vmatpush1.xpose.msra.mxu0 0.0
        %3935 = vmatprep.subr.mxu0 0.0
        %3936 = vmatpush1.xpose.msra.mxu0 0.0
        %3937 = vmatprep.subr.mxu0 0.0
        %3938 = vmatpush1.xpose.msra.mxu0 0.0
        %3939 = vmatprep.subr.mxu0 0.0
        %3940 = vmatpush1.xpose.msra.mxu0 0.0
        %3941 = vmatprep.subr.mxu0 0.0
        %3942 = vmatpush1.xpose.msra.mxu0 0.0
        %3943 = vmatprep.subr.mxu0 0.0
        %3944 = vmatpush1.xpose.msra.mxu0 0.0
        %3945 = vmatprep.subr.mxu0 0.0
        %3946 = vmatpush1.xpose.msra.mxu0 0.0
        %3947 = vmatprep.subr.mxu0 0.0
        %3948 = vmatpush1.xpose.msra.mxu0 0.0
        %3949 = vmatprep.subr.mxu0 0.0
        %3950 = vmatpush1.xpose.msra.mxu0 0.0
        %3951 = vmatprep.mubr.f32.mxu0 0.0
        %v3952 = vand.u32 %v3881, 4294901760
        %v3953 = vsub.f32 %v3881, %v3952
        %v3954 = vand.u32 %v3953, 4294901760
        %v3955 = vsub.f32 %v3953, %v3954
        %v3956 = vand.u32 %v3955, 4294901760
        %3957 = vmatmul.mubr.f32.gmra.mrb[0].mxu0 %v3956
        %v3958 = vpop.f32.mrb[0].mxu0
        %v3959 = vadd.f32 0.0, %v3958
        %v3960 = vpop.f32.mrb[0].mxu0
        %3961 = vdwg.mxu0
        %3962 = vmatprep.subr.mxu0 0.0
        %v3963 = vand.u32 %v3884, 4294901760
        %v3964 = vsub.f32 %v3884, %v3963
        %v3965 = vand.u32 %v3964, 4294901760
        %v3966 = vsub.f32 %v3964, %v3965
        %v3967 = vand.u32 %v3966, 4294901760
        %3968 = vmatpush1.xpose.msra.mxu0 %v3967
        %3969 = vmatprep.subr.mxu0 0.0
        %3970 = vmatpush1.xpose.msra.mxu0 0.0
        %3971 = vmatprep.subr.mxu0 0.0
        %3972 = vmatpush1.xpose.msra.mxu0 0.0
        %3973 = vmatprep.subr.mxu0 0.0
        %3974 = vmatpush1.xpose.msra.mxu0 0.0
        %3975 = vmatprep.subr.mxu0 0.0
        %3976 = vmatpush1.xpose.msra.mxu0 0.0
        %3977 = vmatprep.subr.mxu0 0.0
        %3978 = vmatpush1.xpose.msra.mxu0 0.0
        %3979 = vmatprep.subr.mxu0 0.0
        %3980 = vmatpush1.xpose.msra.mxu0 0.0
        %3981 = vmatprep.subr.mxu0 0.0
        %3982 = vmatpush1.xpose.msra.mxu0 0.0
        %3983 = vmatprep.subr.mxu0 0.0
        %3984 = vmatpush1.xpose.msra.mxu0 0.0
        %3985 = vmatprep.subr.mxu0 0.0
        %3986 = vmatpush1.xpose.msra.mxu0 0.0
        %3987 = vmatprep.subr.mxu0 0.0
        %3988 = vmatpush1.xpose.msra.mxu0 0.0
        %3989 = vmatprep.subr.mxu0 0.0
        %3990 = vmatpush1.xpose.msra.mxu0 0.0
        %3991 = vmatprep.subr.mxu0 0.0
        %3992 = vmatpush1.xpose.msra.mxu0 0.0
        %3993 = vmatprep.subr.mxu0 0.0
        %3994 = vmatpush1.xpose.msra.mxu0 0.0
        %3995 = vmatprep.subr.mxu0 0.0
        %3996 = vmatpush1.xpose.msra.mxu0 0.0
        %3997 = vmatprep.subr.mxu0 0.0
        %3998 = vmatpush1.xpose.msra.mxu0 0.0
        %3999 = vmatprep.subr.mxu0 0.0
        %4000 = vmatpush1.xpose.msra.mxu0 0.0
        %4001 = vmatprep.subr.mxu0 0.0
        %4002 = vmatpush1.xpose.msra.mxu0 0.0
        %4003 = vmatprep.subr.mxu0 0.0
        %4004 = vmatpush1.xpose.msra.mxu0 0.0
        %4005 = vmatprep.subr.mxu0 0.0
        %4006 = vmatpush1.xpose.msra.mxu0 0.0
        %4007 = vmatprep.subr.mxu0 0.0
        %4008 = vmatpush1.xpose.msra.mxu0 0.0
        %4009 = vmatprep.subr.mxu0 0.0
        %4010 = vmatpush1.xpose.msra.mxu0 0.0
        %4011 = vmatprep.subr.mxu0 0.0
        %4012 = vmatpush1.xpose.msra.mxu0 0.0
        %4013 = vmatprep.subr.mxu0 0.0
        %4014 = vmatpush1.xpose.msra.mxu0 0.0
        %4015 = vmatprep.subr.mxu0 0.0
        %4016 = vmatpush1.xpose.msra.mxu0 0.0
        %4017 = vmatprep.subr.mxu0 0.0
        %4018 = vmatpush1.xpose.msra.mxu0 0.0
        %4019 = vmatprep.subr.mxu0 0.0
        %4020 = vmatpush1.xpose.msra.mxu0 0.0
        %4021 = vmatprep.subr.mxu0 0.0
        %4022 = vmatpush1.xpose.msra.mxu0 0.0
        %4023 = vmatprep.subr.mxu0 0.0
        %4024 = vmatpush1.xpose.msra.mxu0 0.0
        %4025 = vmatprep.subr.mxu0 0.0
        %4026 = vmatpush1.xpose.msra.mxu0 0.0
        %4027 = vmatprep.subr.mxu0 0.0
        %4028 = vmatpush1.xpose.msra.mxu0 0.0
        %4029 = vmatprep.subr.mxu0 0.0
        %4030 = vmatpush1.xpose.msra.mxu0 0.0
        %4031 = vmatprep.mubr.f32.mxu0 0.0
        %v4032 = vand.u32 %v3881, 4294901760
        %4033 = vmatmul.mubr.f32.gmra.mrb[0].mxu0 %v4032
        %v4034 = vpop.f32.mrb[0].mxu0
        %v4035 = vadd.f32 %v3959, %v4034
        %v4036 = vpop.f32.mrb[0].mxu0
        %4037 = vdwg.mxu0
        %4038 = vmatprep.subr.mxu0 0.0
        %v4039 = vand.u32 %v3884, 4294901760
        %v4040 = vsub.f32 %v3884, %v4039
        %4041 = vmatpush1.xpose.msra.mxu0 %v4040
        %4042 = vmatprep.subr.mxu0 0.0
        %4043 = vmatpush1.xpose.msra.mxu0 0.0
        %4044 = vmatprep.subr.mxu0 0.0
        %4045 = vmatpush1.xpose.msra.mxu0 0.0
        %4046 = vmatprep.subr.mxu0 0.0
        %4047 = vmatpush1.xpose.msra.mxu0 0.0
        %4048 = vmatprep.subr.mxu0 0.0
        %4049 = vmatpush1.xpose.msra.mxu0 0.0
        %4050 = vmatprep.subr.mxu0 0.0
        %4051 = vmatpush1.xpose.msra.mxu0 0.0
        %4052 = vmatprep.subr.mxu0 0.0
        %4053 = vmatpush1.xpose.msra.mxu0 0.0
        %4054 = vmatprep.subr.mxu0 0.0
        %4055 = vmatpush1.xpose.msra.mxu0 0.0
        %4056 = vmatprep.subr.mxu0 0.0
        %4057 = vmatpush1.xpose.msra.mxu0 0.0
        %4058 = vmatprep.subr.mxu0 0.0
        %4059 = vmatpush1.xpose.msra.mxu0 0.0
        %4060 = vmatprep.subr.mxu0 0.0
        %4061 = vmatpush1.xpose.msra.mxu0 0.0
        %4062 = vmatprep.subr.mxu0 0.0
        %4063 = vmatpush1.xpose.msra.mxu0 0.0
        %4064 = vmatprep.subr.mxu0 0.0
        %4065 = vmatpush1.xpose.msra.mxu0 0.0
        %4066 = vmatprep.subr.mxu0 0.0
        %4067 = vmatpush1.xpose.msra.mxu0 0.0
        %4068 = vmatprep.subr.mxu0 0.0
        %4069 = vmatpush1.xpose.msra.mxu0 0.0
        %4070 = vmatprep.subr.mxu0 0.0
        %4071 = vmatpush1.xpose.msra.mxu0 0.0
        %4072 = vmatprep.subr.mxu0 0.0
        %4073 = vmatpush1.xpose.msra.mxu0 0.0
        %4074 = vmatprep.subr.mxu0 0.0
        %4075 = vmatpush1.xpose.msra.mxu0 0.0
        %4076 = vmatprep.subr.mxu0 0.0
        %4077 = vmatpush1.xpose.msra.mxu0 0.0
        %4078 = vmatprep.subr.mxu0 0.0
        %4079 = vmatpush1.xpose.msra.mxu0 0.0
        %4080 = vmatprep.subr.mxu0 0.0
        %4081 = vmatpush1.xpose.msra.mxu0 0.0
        %4082 = vmatprep.subr.mxu0 0.0
        %4083 = vmatpush1.xpose.msra.mxu0 0.0
        %4084 = vmatprep.subr.mxu0 0.0
        %4085 = vmatpush1.xpose.msra.mxu0 0.0
        %4086 = vmatprep.subr.mxu0 0.0
        %4087 = vmatpush1.xpose.msra.mxu0 0.0
        %4088 = vmatprep.subr.mxu0 0.0
        %4089 = vmatpush1.xpose.msra.mxu0 0.0
        %4090 = vmatprep.subr.mxu0 0.0
        %4091 = vmatpush1.xpose.msra.mxu0 0.0
        %4092 = vmatprep.subr.mxu0 0.0
        %4093 = vmatpush1.xpose.msra.mxu0 0.0
        %4094 = vmatprep.subr.mxu0 0.0
        %4095 = vmatpush1.xpose.msra.mxu0 0.0
        %4096 = vmatprep.subr.mxu0 0.0
        %4097 = vmatpush1.xpose.msra.mxu0 0.0
        %4098 = vmatprep.subr.mxu0 0.0
        %4099 = vmatpush1.xpose.msra.mxu0 0.0
        %4100 = vmatprep.subr.mxu0 0.0
        %4101 = vmatpush1.xpose.msra.mxu0 0.0
        %4102 = vmatprep.subr.mxu0 0.0
        %4103 = vmatpush1.xpose.msra.mxu0 0.0
        %4104 = vmatprep.mubr.f32.mxu0 0.0
        %v4105 = vand.u32 %v3881, 4294901760
        %v4106 = vsub.f32 %v3881, %v4105
        %4107 = vmatmul.mubr.f32.gmra.mrb[0].mxu0 %v4106
        %v4108 = vpop.f32.mrb[0].mxu0
        %v4109 = vadd.f32 %v4035, %v4108
        %v4110 = vpop.f32.mrb[0].mxu0
        %4111 = vdwg.mxu0
        %4112 = vmatprep.subr.mxu0 0.0
        %v4113 = vand.u32 %v3884, 4294901760
        %4114 = vmatpush1.xpose.msra.mxu0 %v4113
        %4115 = vmatprep.subr.mxu0 0.0
        %4116 = vmatpush1.xpose.msra.mxu0 0.0
        %4117 = vmatprep.subr.mxu0 0.0
        %4118 = vmatpush1.xpose.msra.mxu0 0.0
        %4119 = vmatprep.subr.mxu0 0.0
        %4120 = vmatpush1.xpose.msra.mxu0 0.0
        %4121 = vmatprep.subr.mxu0 0.0
        %4122 = vmatpush1.xpose.msra.mxu0 0.0
        %4123 = vmatprep.subr.mxu0 0.0
        %4124 = vmatpush1.xpose.msra.mxu0 0.0
        %4125 = vmatprep.subr.mxu0 0.0
        %4126 = vmatpush1.xpose.msra.mxu0 0.0
        %4127 = vmatprep.subr.mxu0 0.0
        %4128 = vmatpush1.xpose.msra.mxu0 0.0
        %4129 = vmatprep.subr.mxu0 0.0
        %4130 = vmatpush1.xpose.msra.mxu0 0.0
        %4131 = vmatprep.subr.mxu0 0.0
        %4132 = vmatpush1.xpose.msra.mxu0 0.0
        %4133 = vmatprep.subr.mxu0 0.0
        %4134 = vmatpush1.xpose.msra.mxu0 0.0
        %4135 = vmatprep.subr.mxu0 0.0
        %4136 = vmatpush1.xpose.msra.mxu0 0.0
        %4137 = vmatprep.subr.mxu0 0.0
        %4138 = vmatpush1.xpose.msra.mxu0 0.0
        %4139 = vmatprep.subr.mxu0 0.0
        %4140 = vmatpush1.xpose.msra.mxu0 0.0
        %4141 = vmatprep.subr.mxu0 0.0
        %4142 = vmatpush1.xpose.msra.mxu0 0.0
        %4143 = vmatprep.subr.mxu0 0.0
        %4144 = vmatpush1.xpose.msra.mxu0 0.0
        %4145 = vmatprep.subr.mxu0 0.0
        %4146 = vmatpush1.xpose.msra.mxu0 0.0
        %4147 = vmatprep.subr.mxu0 0.0
        %4148 = vmatpush1.xpose.msra.mxu0 0.0
        %4149 = vmatprep.subr.mxu0 0.0
        %4150 = vmatpush1.xpose.msra.mxu0 0.0
        %4151 = vmatprep.subr.mxu0 0.0
        %4152 = vmatpush1.xpose.msra.mxu0 0.0
        %4153 = vmatprep.subr.mxu0 0.0
        %4154 = vmatpush1.xpose.msra.mxu0 0.0
        %4155 = vmatprep.subr.mxu0 0.0
        %4156 = vmatpush1.xpose.msra.mxu0 0.0
        %4157 = vmatprep.subr.mxu0 0.0
        %4158 = vmatpush1.xpose.msra.mxu0 0.0
        %4159 = vmatprep.subr.mxu0 0.0
        %4160 = vmatpush1.xpose.msra.mxu0 0.0
        %4161 = vmatprep.subr.mxu0 0.0
        %4162 = vmatpush1.xpose.msra.mxu0 0.0
        %4163 = vmatprep.subr.mxu0 0.0
        %4164 = vmatpush1.xpose.msra.mxu0 0.0
        %4165 = vmatprep.subr.mxu0 0.0
        %4166 = vmatpush1.xpose.msra.mxu0 0.0
        %4167 = vmatprep.subr.mxu0 0.0
        %4168 = vmatpush1.xpose.msra.mxu0 0.0
        %4169 = vmatprep.subr.mxu0 0.0
        %4170 = vmatpush1.xpose.msra.mxu0 0.0
        %4171 = vmatprep.subr.mxu0 0.0
        %4172 = vmatpush1.xpose.msra.mxu0 0.0
        %4173 = vmatprep.subr.mxu0 0.0
        %4174 = vmatpush1.xpose.msra.mxu0 0.0
        %4175 = vmatprep.subr.mxu0 0.0
        %4176 = vmatpush1.xpose.msra.mxu0 0.0
        %4177 = vmatprep.mubr.f32.mxu0 0.0
        %v4178 = vand.u32 %v3881, 4294901760
        %v4179 = vsub.f32 %v3881, %v4178
        %v4180 = vand.u32 %v4179, 4294901760
        %4181 = vmatmul.mubr.f32.gmra.mrb[0].mxu0 %v4180
        %v4182 = vpop.f32.mrb[0].mxu0
        %v4183 = vadd.f32 %v4109, %v4182
        %v4184 = vpop.f32.mrb[0].mxu0
        %4185 = vdwg.mxu0
        %4186 = vmatprep.subr.mxu0 0.0
        %v4187 = vand.u32 %v3884, 4294901760
        %v4188 = vsub.f32 %v3884, %v4187
        %v4189 = vand.u32 %v4188, 4294901760
        %4190 = vmatpush1.xpose.msra.mxu0 %v4189
        %4191 = vmatprep.subr.mxu0 0.0
        %4192 = vmatpush1.xpose.msra.mxu0 0.0
        %4193 = vmatprep.subr.mxu0 0.0
        %4194 = vmatpush1.xpose.msra.mxu0 0.0
        %4195 = vmatprep.subr.mxu0 0.0
        %4196 = vmatpush1.xpose.msra.mxu0 0.0
        %4197 = vmatprep.subr.mxu0 0.0
        %4198 = vmatpush1.xpose.msra.mxu0 0.0
        %4199 = vmatprep.subr.mxu0 0.0
        %4200 = vmatpush1.xpose.msra.mxu0 0.0
        %4201 = vmatprep.subr.mxu0 0.0
        %4202 = vmatpush1.xpose.msra.mxu0 0.0
        %4203 = vmatprep.subr.mxu0 0.0
        %4204 = vmatpush1.xpose.msra.mxu0 0.0
        %4205 = vmatprep.subr.mxu0 0.0
        %4206 = vmatpush1.xpose.msra.mxu0 0.0
        %4207 = vmatprep.subr.mxu0 0.0
        %4208 = vmatpush1.xpose.msra.mxu0 0.0
        %4209 = vmatprep.subr.mxu0 0.0
        %4210 = vmatpush1.xpose.msra.mxu0 0.0
        %4211 = vmatprep.subr.mxu0 0.0
        %4212 = vmatpush1.xpose.msra.mxu0 0.0
        %4213 = vmatprep.subr.mxu0 0.0
        %4214 = vmatpush1.xpose.msra.mxu0 0.0
        %4215 = vmatprep.subr.mxu0 0.0
        %4216 = vmatpush1.xpose.msra.mxu0 0.0
        %4217 = vmatprep.subr.mxu0 0.0
        %4218 = vmatpush1.xpose.msra.mxu0 0.0
        %4219 = vmatprep.subr.mxu0 0.0
        %4220 = vmatpush1.xpose.msra.mxu0 0.0
        %4221 = vmatprep.subr.mxu0 0.0
        %4222 = vmatpush1.xpose.msra.mxu0 0.0
        %4223 = vmatprep.subr.mxu0 0.0
        %4224 = vmatpush1.xpose.msra.mxu0 0.0
        %4225 = vmatprep.subr.mxu0 0.0
        %4226 = vmatpush1.xpose.msra.mxu0 0.0
        %4227 = vmatprep.subr.mxu0 0.0
        %4228 = vmatpush1.xpose.msra.mxu0 0.0
        %4229 = vmatprep.subr.mxu0 0.0
        %4230 = vmatpush1.xpose.msra.mxu0 0.0
        %4231 = vmatprep.subr.mxu0 0.0
        %4232 = vmatpush1.xpose.msra.mxu0 0.0
        %4233 = vmatprep.subr.mxu0 0.0
        %4234 = vmatpush1.xpose.msra.mxu0 0.0
        %4235 = vmatprep.subr.mxu0 0.0
        %4236 = vmatpush1.xpose.msra.mxu0 0.0
        %4237 = vmatprep.subr.mxu0 0.0
        %4238 = vmatpush1.xpose.msra.mxu0 0.0
        %4239 = vmatprep.subr.mxu0 0.0
        %4240 = vmatpush1.xpose.msra.mxu0 0.0
        %4241 = vmatprep.subr.mxu0 0.0
        %4242 = vmatpush1.xpose.msra.mxu0 0.0
        %4243 = vmatprep.subr.mxu0 0.0
        %4244 = vmatpush1.xpose.msra.mxu0 0.0
        %4245 = vmatprep.subr.mxu0 0.0
        %4246 = vmatpush1.xpose.msra.mxu0 0.0
        %4247 = vmatprep.subr.mxu0 0.0
        %4248 = vmatpush1.xpose.msra.mxu0 0.0
        %4249 = vmatprep.subr.mxu0 0.0
        %4250 = vmatpush1.xpose.msra.mxu0 0.0
        %4251 = vmatprep.subr.mxu0 0.0
        %4252 = vmatpush1.xpose.msra.mxu0 0.0
        %4253 = vmatprep.mubr.f32.mxu0 0.0
        %v4254 = vand.u32 %v3881, 4294901760
        %4255 = vmatmul.mubr.f32.gmra.mrb[0].mxu0 %v4254
        %v4256 = vpop.f32.mrb[0].mxu0
        %v4257 = vadd.f32 %v4183, %v4256
        %v4258 = vpop.f32.mrb[0].mxu0
        %4259 = vdwg.mxu0
        %4260 = vmatprep.subr.mxu0 0.0
        %v4261 = vand.u32 %v3884, 4294901760
        %4262 = vmatpush1.xpose.msra.mxu0 %v4261
        %4263 = vmatprep.subr.mxu0 0.0
        %4264 = vmatpush1.xpose.msra.mxu0 0.0
        %4265 = vmatprep.subr.mxu0 0.0
        %4266 = vmatpush1.xpose.msra.mxu0 0.0
        %4267 = vmatprep.subr.mxu0 0.0
        %4268 = vmatpush1.xpose.msra.mxu0 0.0
        %4269 = vmatprep.subr.mxu0 0.0
        %4270 = vmatpush1.xpose.msra.mxu0 0.0
        %4271 = vmatprep.subr.mxu0 0.0
        %4272 = vmatpush1.xpose.msra.mxu0 0.0
        %4273 = vmatprep.subr.mxu0 0.0
        %4274 = vmatpush1.xpose.msra.mxu0 0.0
        %4275 = vmatprep.subr.mxu0 0.0
        %4276 = vmatpush1.xpose.msra.mxu0 0.0
        %4277 = vmatprep.subr.mxu0 0.0
        %4278 = vmatpush1.xpose.msra.mxu0 0.0
        %4279 = vmatprep.subr.mxu0 0.0
        %4280 = vmatpush1.xpose.msra.mxu0 0.0
        %4281 = vmatprep.subr.mxu0 0.0
        %4282 = vmatpush1.xpose.msra.mxu0 0.0
        %4283 = vmatprep.subr.mxu0 0.0
        %4284 = vmatpush1.xpose.msra.mxu0 0.0
        %4285 = vmatprep.subr.mxu0 0.0
        %4286 = vmatpush1.xpose.msra.mxu0 0.0
        %4287 = vmatprep.subr.mxu0 0.0
        %4288 = vmatpush1.xpose.msra.mxu0 0.0
        %4289 = vmatprep.subr.mxu0 0.0
        %4290 = vmatpush1.xpose.msra.mxu0 0.0
        %4291 = vmatprep.subr.mxu0 0.0
        %4292 = vmatpush1.xpose.msra.mxu0 0.0
        %4293 = vmatprep.subr.mxu0 0.0
        %4294 = vmatpush1.xpose.msra.mxu0 0.0
        %4295 = vmatprep.subr.mxu0 0.0
        %4296 = vmatpush1.xpose.msra.mxu0 0.0
        %4297 = vmatprep.subr.mxu0 0.0
        %4298 = vmatpush1.xpose.msra.mxu0 0.0
        %4299 = vmatprep.subr.mxu0 0.0
        %4300 = vmatpush1.xpose.msra.mxu0 0.0
        %4301 = vmatprep.subr.mxu0 0.0
        %4302 = vmatpush1.xpose.msra.mxu0 0.0
        %4303 = vmatprep.subr.mxu0 0.0
        %4304 = vmatpush1.xpose.msra.mxu0 0.0
        %4305 = vmatprep.subr.mxu0 0.0
        %4306 = vmatpush1.xpose.msra.mxu0 0.0
        %4307 = vmatprep.subr.mxu0 0.0
        %4308 = vmatpush1.xpose.msra.mxu0 0.0
        %4309 = vmatprep.subr.mxu0 0.0
        %4310 = vmatpush1.xpose.msra.mxu0 0.0
        %4311 = vmatprep.subr.mxu0 0.0
        %4312 = vmatpush1.xpose.msra.mxu0 0.0
        %4313 = vmatprep.subr.mxu0 0.0
        %4314 = vmatpush1.xpose.msra.mxu0 0.0
        %4315 = vmatprep.subr.mxu0 0.0
        %4316 = vmatpush1.xpose.msra.mxu0 0.0
        %4317 = vmatprep.subr.mxu0 0.0
        %4318 = vmatpush1.xpose.msra.mxu0 0.0
        %4319 = vmatprep.subr.mxu0 0.0
        %4320 = vmatpush1.xpose.msra.mxu0 0.0
        %4321 = vmatprep.subr.mxu0 0.0
        %4322 = vmatpush1.xpose.msra.mxu0 0.0
        %4323 = vmatprep.subr.mxu0 0.0
        %4324 = vmatpush1.xpose.msra.mxu0 0.0
        %4325 = vmatprep.mubr.f32.mxu0 0.0
        %v4326 = vand.u32 %v3881, 4294901760
        %4327 = vmatmul.mubr.f32.gmra.mrb[0].mxu0 %v4326
        %v4328 = vpop.f32.mrb[0].mxu0
        %v4329 = vadd.f32 %v4257, %v4328
        %v4330 = vpop.f32.mrb[0].mxu0
        %4331 = vdwg.mxu0
        %v4332 = vsel %vm2966, %v4329, -inf
        %4333 = vmax.xlane.f32.xlu0 %v4332
        %v4334 = vpop.xlane.xlu0 %4333
        %v4335 = vsub.f32 %v4329, %v4334
        %v4336 = vmul.f32 %v4335, 1.442695
        %v4337 = vpow.pop %v4336
        %v4338 = vsel %vm2966, %v4337, 0.0
        %4339 = vadd.xlane.f32.xlu0 %v4338
        %v4340 = vpop.xlane.xlu0 %4339
        %v4341 = vrcp.pop %v4340
        %v4342 = vmul.f32 %v4337, %v4341
        %v4344 = vsel %vm2966, %v4342, 0
        %4346 = vmatprep.subr.mxu0 0.0
        %v4347 = vand.u32 %v2951, 4294901760
        %4348 = vmatpush1.msra.mxu0 %v4347
        %4349 = vmatprep.subr.mxu0 0.0
        %4350 = vmatpush1.msra.mxu0 0.0
        %4351 = vmatprep.subr.mxu0 0.0
        %4352 = vmatpush1.msra.mxu0 0.0
        %4353 = vmatprep.subr.mxu0 0.0
        %4354 = vmatpush1.msra.mxu0 0.0
        %4355 = vmatprep.subr.mxu0 0.0
        %4356 = vmatpush1.msra.mxu0 0.0
        %4357 = vmatprep.subr.mxu0 0.0
        %4358 = vmatpush1.msra.mxu0 0.0
        %4359 = vmatprep.subr.mxu0 0.0
        %4360 = vmatpush1.msra.mxu0 0.0
        %4361 = vmatprep.subr.mxu0 0.0
        %4362 = vmatpush1.msra.mxu0 0.0
        %4363 = vmatprep.subr.mxu0 0.0
        %4364 = vmatpush1.msra.mxu0 0.0
        %4365 = vmatprep.subr.mxu0 0.0
        %4366 = vmatpush1.msra.mxu0 0.0
        %4367 = vmatprep.subr.mxu0 0.0
        %4368 = vmatpush1.msra.mxu0 0.0
        %4369 = vmatprep.subr.mxu0 0.0
        %4370 = vmatpush1.msra.mxu0 0.0
        %4371 = vmatprep.subr.mxu0 0.0
        %4372 = vmatpush1.msra.mxu0 0.0
        %4373 = vmatprep.subr.mxu0 0.0
        %4374 = vmatpush1.msra.mxu0 0.0
        %4375 = vmatprep.subr.mxu0 0.0
        %4376 = vmatpush1.msra.mxu0 0.0
        %4377 = vmatprep.subr.mxu0 0.0
        %4378 = vmatpush1.msra.mxu0 0.0
        %4379 = vmatprep.subr.mxu0 0.0
        %4380 = vmatpush1.msra.mxu0 0.0
        %4381 = vmatprep.subr.mxu0 0.0
        %4382 = vmatpush1.msra.mxu0 0.0
        %4383 = vmatprep.subr.mxu0 0.0
        %4384 = vmatpush1.msra.mxu0 0.0
        %4385 = vmatprep.subr.mxu0 0.0
        %4386 = vmatpush1.msra.mxu0 0.0
        %4387 = vmatprep.subr.mxu0 0.0
        %4388 = vmatpush1.msra.mxu0 0.0
        %4389 = vmatprep.subr.mxu0 0.0
        %4390 = vmatpush1.msra.mxu0 0.0
        %4391 = vmatprep.subr.mxu0 0.0
        %4392 = vmatpush1.msra.mxu0 0.0
        %4393 = vmatprep.subr.mxu0 0.0
        %4394 = vmatpush1.msra.mxu0 0.0
        %4395 = vmatprep.subr.mxu0 0.0
        %4396 = vmatpush1.msra.mxu0 0.0
        %4397 = vmatprep.subr.mxu0 0.0
        %4398 = vmatpush1.msra.mxu0 0.0
        %4399 = vmatprep.subr.mxu0 0.0
        %4400 = vmatpush1.msra.mxu0 0.0
        %4401 = vmatprep.subr.mxu0 0.0
        %4402 = vmatpush1.msra.mxu0 0.0
        %4403 = vmatprep.subr.mxu0 0.0
        %4404 = vmatpush1.msra.mxu0 0.0
        %4405 = vmatprep.subr.mxu0 0.0
        %4406 = vmatpush1.msra.mxu0 0.0
        %4407 = vmatprep.subr.mxu0 0.0
        %4408 = vmatpush1.msra.mxu0 0.0
        %4409 = vmatprep.subr.mxu0 0.0
        %4410 = vmatpush1.msra.mxu0 0.0
        %4411 = vmatprep.mubr.f32.mxu0 0.0
        %v4412 = vand.u32 %v4344, 4294901760
        %v4413 = vsub.f32 %v4344, %v4412
        %v4414 = vand.u32 %v4413, 4294901760
        %v4415 = vsub.f32 %v4413, %v4414
        %v4416 = vand.u32 %v4415, 4294901760
        %4417 = vmatmul.mubr.f32.gmra.mrb[0].mxu0 %v4416
        %v4418 = vpop.f32.mrb[0].mxu0
        %v4419 = vadd.f32 0.0, %v4418
        %v4420 = vpop.f32.mrb[0].mxu0
        %4421 = vdwg.mxu0
        %4422 = vmatprep.subr.mxu0 0.0
        %v4423 = vand.u32 %v2951, 4294901760
        %v4424 = vsub.f32 %v2951, %v4423
        %v4425 = vand.u32 %v4424, 4294901760
        %v4426 = vsub.f32 %v4424, %v4425
        %v4427 = vand.u32 %v4426, 4294901760
        %4428 = vmatpush1.msra.mxu0 %v4427
        %4429 = vmatprep.subr.mxu0 0.0
        %4430 = vmatpush1.msra.mxu0 0.0
        %4431 = vmatprep.subr.mxu0 0.0
        %4432 = vmatpush1.msra.mxu0 0.0
        %4433 = vmatprep.subr.mxu0 0.0
        %4434 = vmatpush1.msra.mxu0 0.0
        %4435 = vmatprep.subr.mxu0 0.0
        %4436 = vmatpush1.msra.mxu0 0.0
        %4437 = vmatprep.subr.mxu0 0.0
        %4438 = vmatpush1.msra.mxu0 0.0
        %4439 = vmatprep.subr.mxu0 0.0
        %4440 = vmatpush1.msra.mxu0 0.0
        %4441 = vmatprep.subr.mxu0 0.0
        %4442 = vmatpush1.msra.mxu0 0.0
        %4443 = vmatprep.subr.mxu0 0.0
        %4444 = vmatpush1.msra.mxu0 0.0
        %4445 = vmatprep.subr.mxu0 0.0
        %4446 = vmatpush1.msra.mxu0 0.0
        %4447 = vmatprep.subr.mxu0 0.0
        %4448 = vmatpush1.msra.mxu0 0.0
        %4449 = vmatprep.subr.mxu0 0.0
        %4450 = vmatpush1.msra.mxu0 0.0
        %4451 = vmatprep.subr.mxu0 0.0
        %4452 = vmatpush1.msra.mxu0 0.0
        %4453 = vmatprep.subr.mxu0 0.0
        %4454 = vmatpush1.msra.mxu0 0.0
        %4455 = vmatprep.subr.mxu0 0.0
        %4456 = vmatpush1.msra.mxu0 0.0
        %4457 = vmatprep.subr.mxu0 0.0
        %4458 = vmatpush1.msra.mxu0 0.0
        %4459 = vmatprep.subr.mxu0 0.0
        %4460 = vmatpush1.msra.mxu0 0.0
        %4461 = vmatprep.subr.mxu0 0.0
        %4462 = vmatpush1.msra.mxu0 0.0
        %4463 = vmatprep.subr.mxu0 0.0
        %4464 = vmatpush1.msra.mxu0 0.0
        %4465 = vmatprep.subr.mxu0 0.0
        %4466 = vmatpush1.msra.mxu0 0.0
        %4467 = vmatprep.subr.mxu0 0.0
        %4468 = vmatpush1.msra.mxu0 0.0
        %4469 = vmatprep.subr.mxu0 0.0
        %4470 = vmatpush1.msra.mxu0 0.0
        %4471 = vmatprep.subr.mxu0 0.0
        %4472 = vmatpush1.msra.mxu0 0.0
        %4473 = vmatprep.subr.mxu0 0.0
        %4474 = vmatpush1.msra.mxu0 0.0
        %4475 = vmatprep.subr.mxu0 0.0
        %4476 = vmatpush1.msra.mxu0 0.0
        %4477 = vmatprep.subr.mxu0 0.0
        %4478 = vmatpush1.msra.mxu0 0.0
        %4479 = vmatprep.subr.mxu0 0.0
        %4480 = vmatpush1.msra.mxu0 0.0
        %4481 = vmatprep.subr.mxu0 0.0
        %4482 = vmatpush1.msra.mxu0 0.0
        %4483 = vmatprep.subr.mxu0 0.0
        %4484 = vmatpush1.msra.mxu0 0.0
        %4485 = vmatprep.subr.mxu0 0.0
        %4486 = vmatpush1.msra.mxu0 0.0
        %4487 = vmatprep.subr.mxu0 0.0
        %4488 = vmatpush1.msra.mxu0 0.0
        %4489 = vmatprep.subr.mxu0 0.0
        %4490 = vmatpush1.msra.mxu0 0.0
        %4491 = vmatprep.mubr.f32.mxu0 0.0
        %v4492 = vand.u32 %v4344, 4294901760
        %4493 = vmatmul.mubr.f32.gmra.mrb[0].mxu0 %v4492
        %v4494 = vpop.f32.mrb[0].mxu0
        %v4495 = vadd.f32 %v4419, %v4494
        %v4496 = vpop.f32.mrb[0].mxu0
        %4497 = vdwg.mxu0
        %4498 = vmatprep.subr.mxu0 0.0
        %v4499 = vand.u32 %v2951, 4294901760
        %v4500 = vsub.f32 %v2951, %v4499
        %4501 = vmatpush1.msra.mxu0 %v4500
        %4502 = vmatprep.subr.mxu0 0.0
        %4503 = vmatpush1.msra.mxu0 0.0
        %4504 = vmatprep.subr.mxu0 0.0
        %4505 = vmatpush1.msra.mxu0 0.0
        %4506 = vmatprep.subr.mxu0 0.0
        %4507 = vmatpush1.msra.mxu0 0.0
        %4508 = vmatprep.subr.mxu0 0.0
        %4509 = vmatpush1.msra.mxu0 0.0
        %4510 = vmatprep.subr.mxu0 0.0
        %4511 = vmatpush1.msra.mxu0 0.0
        %4512 = vmatprep.subr.mxu0 0.0
        %4513 = vmatpush1.msra.mxu0 0.0
        %4514 = vmatprep.subr.mxu0 0.0
        %4515 = vmatpush1.msra.mxu0 0.0
        %4516 = vmatprep.subr.mxu0 0.0
        %4517 = vmatpush1.msra.mxu0 0.0
        %4518 = vmatprep.subr.mxu0 0.0
        %4519 = vmatpush1.msra.mxu0 0.0
        %4520 = vmatprep.subr.mxu0 0.0
        %4521 = vmatpush1.msra.mxu0 0.0
        %4522 = vmatprep.subr.mxu0 0.0
        %4523 = vmatpush1.msra.mxu0 0.0
        %4524 = vmatprep.subr.mxu0 0.0
        %4525 = vmatpush1.msra.mxu0 0.0
        %4526 = vmatprep.subr.mxu0 0.0
        %4527 = vmatpush1.msra.mxu0 0.0
        %4528 = vmatprep.subr.mxu0 0.0
        %4529 = vmatpush1.msra.mxu0 0.0
        %4530 = vmatprep.subr.mxu0 0.0
        %4531 = vmatpush1.msra.mxu0 0.0
        %4532 = vmatprep.subr.mxu0 0.0
        %4533 = vmatpush1.msra.mxu0 0.0
        %4534 = vmatprep.subr.mxu0 0.0
        %4535 = vmatpush1.msra.mxu0 0.0
        %4536 = vmatprep.subr.mxu0 0.0
        %4537 = vmatpush1.msra.mxu0 0.0
        %4538 = vmatprep.subr.mxu0 0.0
        %4539 = vmatpush1.msra.mxu0 0.0
        %4540 = vmatprep.subr.mxu0 0.0
        %4541 = vmatpush1.msra.mxu0 0.0
        %4542 = vmatprep.subr.mxu0 0.0
        %4543 = vmatpush1.msra.mxu0 0.0
        %4544 = vmatprep.subr.mxu0 0.0
        %4545 = vmatpush1.msra.mxu0 0.0
        %4546 = vmatprep.subr.mxu0 0.0
        %4547 = vmatpush1.msra.mxu0 0.0
        %4548 = vmatprep.subr.mxu0 0.0
        %4549 = vmatpush1.msra.mxu0 0.0
        %4550 = vmatprep.subr.mxu0 0.0
        %4551 = vmatpush1.msra.mxu0 0.0
        %4552 = vmatprep.subr.mxu0 0.0
        %4553 = vmatpush1.msra.mxu0 0.0
        %4554 = vmatprep.subr.mxu0 0.0
        %4555 = vmatpush1.msra.mxu0 0.0
        %4556 = vmatprep.subr.mxu0 0.0
        %4557 = vmatpush1.msra.mxu0 0.0
        %4558 = vmatprep.subr.mxu0 0.0
        %4559 = vmatpush1.msra.mxu0 0.0
        %4560 = vmatprep.subr.mxu0 0.0
        %4561 = vmatpush1.msra.mxu0 0.0
        %4562 = vmatprep.subr.mxu0 0.0
        %4563 = vmatpush1.msra.mxu0 0.0
        %4564 = vmatprep.mubr.f32.mxu0 0.0
        %v4565 = vand.u32 %v4344, 4294901760
        %v4566 = vsub.f32 %v4344, %v4565
        %4567 = vmatmul.mubr.f32.gmra.mrb[0].mxu0 %v4566
        %v4568 = vpop.f32.mrb[0].mxu0
        %v4569 = vadd.f32 %v4495, %v4568
        %v4570 = vpop.f32.mrb[0].mxu0
        %4571 = vdwg.mxu0
        %4572 = vmatprep.subr.mxu0 0.0
        %v4573 = vand.u32 %v2951, 4294901760
        %4574 = vmatpush1.msra.mxu0 %v4573
        %4575 = vmatprep.subr.mxu0 0.0
        %4576 = vmatpush1.msra.mxu0 0.0
        %4577 = vmatprep.subr.mxu0 0.0
        %4578 = vmatpush1.msra.mxu0 0.0
        %4579 = vmatprep.subr.mxu0 0.0
        %4580 = vmatpush1.msra.mxu0 0.0
        %4581 = vmatprep.subr.mxu0 0.0
        %4582 = vmatpush1.msra.mxu0 0.0
        %4583 = vmatprep.subr.mxu0 0.0
        %4584 = vmatpush1.msra.mxu0 0.0
        %4585 = vmatprep.subr.mxu0 0.0
        %4586 = vmatpush1.msra.mxu0 0.0
        %4587 = vmatprep.subr.mxu0 0.0
        %4588 = vmatpush1.msra.mxu0 0.0
        %4589 = vmatprep.subr.mxu0 0.0
        %4590 = vmatpush1.msra.mxu0 0.0
        %4591 = vmatprep.subr.mxu0 0.0
        %4592 = vmatpush1.msra.mxu0 0.0
        %4593 = vmatprep.subr.mxu0 0.0
        %4594 = vmatpush1.msra.mxu0 0.0
        %4595 = vmatprep.subr.mxu0 0.0
        %4596 = vmatpush1.msra.mxu0 0.0
        %4597 = vmatprep.subr.mxu0 0.0
        %4598 = vmatpush1.msra.mxu0 0.0
        %4599 = vmatprep.subr.mxu0 0.0
        %4600 = vmatpush1.msra.mxu0 0.0
        %4601 = vmatprep.subr.mxu0 0.0
        %4602 = vmatpush1.msra.mxu0 0.0
        %4603 = vmatprep.subr.mxu0 0.0
        %4604 = vmatpush1.msra.mxu0 0.0
        %4605 = vmatprep.subr.mxu0 0.0
        %4606 = vmatpush1.msra.mxu0 0.0
        %4607 = vmatprep.subr.mxu0 0.0
        %4608 = vmatpush1.msra.mxu0 0.0
        %4609 = vmatprep.subr.mxu0 0.0
        %4610 = vmatpush1.msra.mxu0 0.0
        %4611 = vmatprep.subr.mxu0 0.0
        %4612 = vmatpush1.msra.mxu0 0.0
        %4613 = vmatprep.subr.mxu0 0.0
        %4614 = vmatpush1.msra.mxu0 0.0
        %4615 = vmatprep.subr.mxu0 0.0
        %4616 = vmatpush1.msra.mxu0 0.0
        %4617 = vmatprep.subr.mxu0 0.0
        %4618 = vmatpush1.msra.mxu0 0.0
        %4619 = vmatprep.subr.mxu0 0.0
        %4620 = vmatpush1.msra.mxu0 0.0
        %4621 = vmatprep.subr.mxu0 0.0
        %4622 = vmatpush1.msra.mxu0 0.0
        %4623 = vmatprep.subr.mxu0 0.0
        %4624 = vmatpush1.msra.mxu0 0.0
        %4625 = vmatprep.subr.mxu0 0.0
        %4626 = vmatpush1.msra.mxu0 0.0
        %4627 = vmatprep.subr.mxu0 0.0
        %4628 = vmatpush1.msra.mxu0 0.0
        %4629 = vmatprep.subr.mxu0 0.0
        %4630 = vmatpush1.msra.mxu0 0.0
        %4631 = vmatprep.subr.mxu0 0.0
        %4632 = vmatpush1.msra.mxu0 0.0
        %4633 = vmatprep.subr.mxu0 0.0
        %4634 = vmatpush1.msra.mxu0 0.0
        %4635 = vmatprep.subr.mxu0 0.0
        %4636 = vmatpush1.msra.mxu0 0.0
        %4637 = vmatprep.mubr.f32.mxu0 0.0
        %v4638 = vand.u32 %v4344, 4294901760
        %v4639 = vsub.f32 %v4344, %v4638
        %v4640 = vand.u32 %v4639, 4294901760
        %4641 = vmatmul.mubr.f32.gmra.mrb[0].mxu0 %v4640
        %v4642 = vpop.f32.mrb[0].mxu0
        %v4643 = vadd.f32 %v4569, %v4642
        %v4644 = vpop.f32.mrb[0].mxu0
        %4645 = vdwg.mxu0
        %4646 = vmatprep.subr.mxu0 0.0
        %v4647 = vand.u32 %v2951, 4294901760
        %v4648 = vsub.f32 %v2951, %v4647
        %v4649 = vand.u32 %v4648, 4294901760
        %4650 = vmatpush1.msra.mxu0 %v4649
        %4651 = vmatprep.subr.mxu0 0.0
        %4652 = vmatpush1.msra.mxu0 0.0
        %4653 = vmatprep.subr.mxu0 0.0
        %4654 = vmatpush1.msra.mxu0 0.0
        %4655 = vmatprep.subr.mxu0 0.0
        %4656 = vmatpush1.msra.mxu0 0.0
        %4657 = vmatprep.subr.mxu0 0.0
        %4658 = vmatpush1.msra.mxu0 0.0
        %4659 = vmatprep.subr.mxu0 0.0
        %4660 = vmatpush1.msra.mxu0 0.0
        %4661 = vmatprep.subr.mxu0 0.0
        %4662 = vmatpush1.msra.mxu0 0.0
        %4663 = vmatprep.subr.mxu0 0.0
        %4664 = vmatpush1.msra.mxu0 0.0
        %4665 = vmatprep.subr.mxu0 0.0
        %4666 = vmatpush1.msra.mxu0 0.0
        %4667 = vmatprep.subr.mxu0 0.0
        %4668 = vmatpush1.msra.mxu0 0.0
        %4669 = vmatprep.subr.mxu0 0.0
        %4670 = vmatpush1.msra.mxu0 0.0
        %4671 = vmatprep.subr.mxu0 0.0
        %4672 = vmatpush1.msra.mxu0 0.0
        %4673 = vmatprep.subr.mxu0 0.0
        %4674 = vmatpush1.msra.mxu0 0.0
        %4675 = vmatprep.subr.mxu0 0.0
        %4676 = vmatpush1.msra.mxu0 0.0
        %4677 = vmatprep.subr.mxu0 0.0
        %4678 = vmatpush1.msra.mxu0 0.0
        %4679 = vmatprep.subr.mxu0 0.0
        %4680 = vmatpush1.msra.mxu0 0.0
        %4681 = vmatprep.subr.mxu0 0.0
        %4682 = vmatpush1.msra.mxu0 0.0
        %4683 = vmatprep.subr.mxu0 0.0
        %4684 = vmatpush1.msra.mxu0 0.0
        %4685 = vmatprep.subr.mxu0 0.0
        %4686 = vmatpush1.msra.mxu0 0.0
        %4687 = vmatprep.subr.mxu0 0.0
        %4688 = vmatpush1.msra.mxu0 0.0
        %4689 = vmatprep.subr.mxu0 0.0
        %4690 = vmatpush1.msra.mxu0 0.0
        %4691 = vmatprep.subr.mxu0 0.0
        %4692 = vmatpush1.msra.mxu0 0.0
        %4693 = vmatprep.subr.mxu0 0.0
        %4694 = vmatpush1.msra.mxu0 0.0
        %4695 = vmatprep.subr.mxu0 0.0
        %4696 = vmatpush1.msra.mxu0 0.0
        %4697 = vmatprep.subr.mxu0 0.0
        %4698 = vmatpush1.msra.mxu0 0.0
        %4699 = vmatprep.subr.mxu0 0.0
        %4700 = vmatpush1.msra.mxu0 0.0
        %4701 = vmatprep.subr.mxu0 0.0
        %4702 = vmatpush1.msra.mxu0 0.0
        %4703 = vmatprep.subr.mxu0 0.0
        %4704 = vmatpush1.msra.mxu0 0.0
        %4705 = vmatprep.subr.mxu0 0.0
        %4706 = vmatpush1.msra.mxu0 0.0
        %4707 = vmatprep.subr.mxu0 0.0
        %4708 = vmatpush1.msra.mxu0 0.0
        %4709 = vmatprep.subr.mxu0 0.0
        %4710 = vmatpush1.msra.mxu0 0.0
        %4711 = vmatprep.subr.mxu0 0.0
        %4712 = vmatpush1.msra.mxu0 0.0
        %4713 = vmatprep.mubr.f32.mxu0 0.0
        %v4714 = vand.u32 %v4344, 4294901760
        %4715 = vmatmul.mubr.f32.gmra.mrb[0].mxu0 %v4714
        %v4716 = vpop.f32.mrb[0].mxu0
        %v4717 = vadd.f32 %v4643, %v4716
        %v4718 = vpop.f32.mrb[0].mxu0
        %4719 = vdwg.mxu0
        %4720 = vmatprep.subr.mxu0 0.0
        %v4721 = vand.u32 %v2951, 4294901760
        %4722 = vmatpush1.msra.mxu0 %v4721
        %4723 = vmatprep.subr.mxu0 0.0
        %4724 = vmatpush1.msra.mxu0 0.0
        %4725 = vmatprep.subr.mxu0 0.0
        %4726 = vmatpush1.msra.mxu0 0.0
        %4727 = vmatprep.subr.mxu0 0.0
        %4728 = vmatpush1.msra.mxu0 0.0
        %4729 = vmatprep.subr.mxu0 0.0
        %4730 = vmatpush1.msra.mxu0 0.0
        %4731 = vmatprep.subr.mxu0 0.0
        %4732 = vmatpush1.msra.mxu0 0.0
        %4733 = vmatprep.subr.mxu0 0.0
        %4734 = vmatpush1.msra.mxu0 0.0
        %4735 = vmatprep.subr.mxu0 0.0
        %4736 = vmatpush1.msra.mxu0 0.0
        %4737 = vmatprep.subr.mxu0 0.0
        %4738 = vmatpush1.msra.mxu0 0.0
        %4739 = vmatprep.subr.mxu0 0.0
        %4740 = vmatpush1.msra.mxu0 0.0
        %4741 = vmatprep.subr.mxu0 0.0
        %4742 = vmatpush1.msra.mxu0 0.0
        %4743 = vmatprep.subr.mxu0 0.0
        %4744 = vmatpush1.msra.mxu0 0.0
        %4745 = vmatprep.subr.mxu0 0.0
        %4746 = vmatpush1.msra.mxu0 0.0
        %4747 = vmatprep.subr.mxu0 0.0
        %4748 = vmatpush1.msra.mxu0 0.0
        %4749 = vmatprep.subr.mxu0 0.0
        %4750 = vmatpush1.msra.mxu0 0.0
        %4751 = vmatprep.subr.mxu0 0.0
        %4752 = vmatpush1.msra.mxu0 0.0
        %4753 = vmatprep.subr.mxu0 0.0
        %4754 = vmatpush1.msra.mxu0 0.0
        %4755 = vmatprep.subr.mxu0 0.0
        %4756 = vmatpush1.msra.mxu0 0.0
        %4757 = vmatprep.subr.mxu0 0.0
        %4758 = vmatpush1.msra.mxu0 0.0
        %4759 = vmatprep.subr.mxu0 0.0
        %4760 = vmatpush1.msra.mxu0 0.0
        %4761 = vmatprep.subr.mxu0 0.0
        %4762 = vmatpush1.msra.mxu0 0.0
        %4763 = vmatprep.subr.mxu0 0.0
        %4764 = vmatpush1.msra.mxu0 0.0
        %4765 = vmatprep.subr.mxu0 0.0
        %4766 = vmatpush1.msra.mxu0 0.0
        %4767 = vmatprep.subr.mxu0 0.0
        %4768 = vmatpush1.msra.mxu0 0.0
        %4769 = vmatprep.subr.mxu0 0.0
        %4770 = vmatpush1.msra.mxu0 0.0
        %4771 = vmatprep.subr.mxu0 0.0
        %4772 = vmatpush1.msra.mxu0 0.0
        %4773 = vmatprep.subr.mxu0 0.0
        %4774 = vmatpush1.msra.mxu0 0.0
        %4775 = vmatprep.subr.mxu0 0.0
        %4776 = vmatpush1.msra.mxu0 0.0
        %4777 = vmatprep.subr.mxu0 0.0
        %4778 = vmatpush1.msra.mxu0 0.0
        %4779 = vmatprep.subr.mxu0 0.0
        %4780 = vmatpush1.msra.mxu0 0.0
        %4781 = vmatprep.subr.mxu0 0.0
        %4782 = vmatpush1.msra.mxu0 0.0
        %4783 = vmatprep.subr.mxu0 0.0
        %4784 = vmatpush1.msra.mxu0 0.0
        %4785 = vmatprep.mubr.f32.mxu0 0.0
        %v4786 = vand.u32 %v4344, 4294901760
        %4787 = vmatmul.mubr.f32.gmra.mrb[0].mxu0 %v4786
        %v4788 = vpop.f32.mrb[0].mxu0
        %v4789 = vadd.f32 %v4717, %v4788
        %v4790 = vpop.f32.mrb[0].mxu0
        %4791 = vdwg.mxu0
        %v4792 = vld [vmem:[%s8 + $0x8] sm:$0xff]
        %v4794 = vsel %vm2966, %v4789, 0
        %4796 = vmatprep.subr.mxu0 0.0
        %v4797 = vand.u32 %v4792, 4294901760
        %4798 = vmatpush1.msra.mxu0 %v4797
        %4799 = vmatprep.subr.mxu0 0.0
        %4800 = vmatpush1.msra.mxu0 0.0
        %4801 = vmatprep.subr.mxu0 0.0
        %4802 = vmatpush1.msra.mxu0 0.0
        %4803 = vmatprep.subr.mxu0 0.0
        %4804 = vmatpush1.msra.mxu0 0.0
        %4805 = vmatprep.subr.mxu0 0.0
        %4806 = vmatpush1.msra.mxu0 0.0
        %4807 = vmatprep.subr.mxu0 0.0
        %4808 = vmatpush1.msra.mxu0 0.0
        %4809 = vmatprep.subr.mxu0 0.0
        %4810 = vmatpush1.msra.mxu0 0.0
        %4811 = vmatprep.subr.mxu0 0.0
        %4812 = vmatpush1.msra.mxu0 0.0
        %4813 = vmatprep.subr.mxu0 0.0
        %4814 = vmatpush1.msra.mxu0 0.0
        %4815 = vmatprep.subr.mxu0 0.0
        %4816 = vmatpush1.msra.mxu0 0.0
        %4817 = vmatprep.subr.mxu0 0.0
        %4818 = vmatpush1.msra.mxu0 0.0
        %4819 = vmatprep.subr.mxu0 0.0
        %4820 = vmatpush1.msra.mxu0 0.0
        %4821 = vmatprep.subr.mxu0 0.0
        %4822 = vmatpush1.msra.mxu0 0.0
        %4823 = vmatprep.subr.mxu0 0.0
        %4824 = vmatpush1.msra.mxu0 0.0
        %4825 = vmatprep.subr.mxu0 0.0
        %4826 = vmatpush1.msra.mxu0 0.0
        %4827 = vmatprep.subr.mxu0 0.0
        %4828 = vmatpush1.msra.mxu0 0.0
        %4829 = vmatprep.subr.mxu0 0.0
        %4830 = vmatpush1.msra.mxu0 0.0
        %4831 = vmatprep.subr.mxu0 0.0
        %4832 = vmatpush1.msra.mxu0 0.0
        %4833 = vmatprep.subr.mxu0 0.0
        %4834 = vmatpush1.msra.mxu0 0.0
        %4835 = vmatprep.subr.mxu0 0.0
        %4836 = vmatpush1.msra.mxu0 0.0
        %4837 = vmatprep.subr.mxu0 0.0
        %4838 = vmatpush1.msra.mxu0 0.0
        %4839 = vmatprep.subr.mxu0 0.0
        %4840 = vmatpush1.msra.mxu0 0.0
        %4841 = vmatprep.subr.mxu0 0.0
        %4842 = vmatpush1.msra.mxu0 0.0
        %4843 = vmatprep.subr.mxu0 0.0
        %4844 = vmatpush1.msra.mxu0 0.0
        %4845 = vmatprep.subr.mxu0 0.0
        %4846 = vmatpush1.msra.mxu0 0.0
        %4847 = vmatprep.subr.mxu0 0.0
        %4848 = vmatpush1.msra.mxu0 0.0
        %4849 = vmatprep.subr.mxu0 0.0
        %4850 = vmatpush1.msra.mxu0 0.0
        %4851 = vmatprep.subr.mxu0 0.0
        %4852 = vmatpush1.msra.mxu0 0.0
        %4853 = vmatprep.subr.mxu0 0.0
        %4854 = vmatpush1.msra.mxu0 0.0
        %4855 = vmatprep.subr.mxu0 0.0
        %4856 = vmatpush1.msra.mxu0 0.0
        %4857 = vmatprep.subr.mxu0 0.0
        %4858 = vmatpush1.msra.mxu0 0.0
        %4859 = vmatprep.subr.mxu0 0.0
        %4860 = vmatpush1.msra.mxu0 0.0
        %4861 = vmatprep.mubr.f32.mxu0 0.0
        %v4862 = vand.u32 %v4794, 4294901760
        %v4863 = vsub.f32 %v4794, %v4862
        %v4864 = vand.u32 %v4863, 4294901760
        %v4865 = vsub.f32 %v4863, %v4864
        %v4866 = vand.u32 %v4865, 4294901760
        %4867 = vmatmul.mubr.f32.gmra.mrb[0].mxu0 %v4866
        %v4868 = vpop.f32.mrb[0].mxu0
        %v4869 = vadd.f32 0.0, %v4868
        %v4870 = vpop.f32.mrb[0].mxu0
        %4871 = vdwg.mxu0
        %4872 = vmatprep.subr.mxu0 0.0
        %v4873 = vand.u32 %v4792, 4294901760
        %v4874 = vsub.f32 %v4792, %v4873
        %v4875 = vand.u32 %v4874, 4294901760
        %v4876 = vsub.f32 %v4874, %v4875
        %v4877 = vand.u32 %v4876, 4294901760
        %4878 = vmatpush1.msra.mxu0 %v4877
        %4879 = vmatprep.subr.mxu0 0.0
        %4880 = vmatpush1.msra.mxu0 0.0
        %4881 = vmatprep.subr.mxu0 0.0
        %4882 = vmatpush1.msra.mxu0 0.0
        %4883 = vmatprep.subr.mxu0 0.0
        %4884 = vmatpush1.msra.mxu0 0.0
        %4885 = vmatprep.subr.mxu0 0.0
        %4886 = vmatpush1.msra.mxu0 0.0
        %4887 = vmatprep.subr.mxu0 0.0
        %4888 = vmatpush1.msra.mxu0 0.0
        %4889 = vmatprep.subr.mxu0 0.0
        %4890 = vmatpush1.msra.mxu0 0.0
        %4891 = vmatprep.subr.mxu0 0.0
        %4892 = vmatpush1.msra.mxu0 0.0
        %4893 = vmatprep.subr.mxu0 0.0
        %4894 = vmatpush1.msra.mxu0 0.0
        %4895 = vmatprep.subr.mxu0 0.0
        %4896 = vmatpush1.msra.mxu0 0.0
        %4897 = vmatprep.subr.mxu0 0.0
        %4898 = vmatpush1.msra.mxu0 0.0
        %4899 = vmatprep.subr.mxu0 0.0
        %4900 = vmatpush1.msra.mxu0 0.0
        %4901 = vmatprep.subr.mxu0 0.0
        %4902 = vmatpush1.msra.mxu0 0.0
        %4903 = vmatprep.subr.mxu0 0.0
        %4904 = vmatpush1.msra.mxu0 0.0
        %4905 = vmatprep.subr.mxu0 0.0
        %4906 = vmatpush1.msra.mxu0 0.0
        %4907 = vmatprep.subr.mxu0 0.0
        %4908 = vmatpush1.msra.mxu0 0.0
        %4909 = vmatprep.subr.mxu0 0.0
        %4910 = vmatpush1.msra.mxu0 0.0
        %4911 = vmatprep.subr.mxu0 0.0
        %4912 = vmatpush1.msra.mxu0 0.0
        %4913 = vmatprep.subr.mxu0 0.0
        %4914 = vmatpush1.msra.mxu0 0.0
        %4915 = vmatprep.subr.mxu0 0.0
        %4916 = vmatpush1.msra.mxu0 0.0
        %4917 = vmatprep.subr.mxu0 0.0
        %4918 = vmatpush1.msra.mxu0 0.0
        %4919 = vmatprep.subr.mxu0 0.0
        %4920 = vmatpush1.msra.mxu0 0.0
        %4921 = vmatprep.subr.mxu0 0.0
        %4922 = vmatpush1.msra.mxu0 0.0
        %4923 = vmatprep.subr.mxu0 0.0
        %4924 = vmatpush1.msra.mxu0 0.0
        %4925 = vmatprep.subr.mxu0 0.0
        %4926 = vmatpush1.msra.mxu0 0.0
        %4927 = vmatprep.subr.mxu0 0.0
        %4928 = vmatpush1.msra.mxu0 0.0
        %4929 = vmatprep.subr.mxu0 0.0
        %4930 = vmatpush1.msra.mxu0 0.0
        %4931 = vmatprep.subr.mxu0 0.0
        %4932 = vmatpush1.msra.mxu0 0.0
        %4933 = vmatprep.subr.mxu0 0.0
        %4934 = vmatpush1.msra.mxu0 0.0
        %4935 = vmatprep.subr.mxu0 0.0
        %4936 = vmatpush1.msra.mxu0 0.0
        %4937 = vmatprep.subr.mxu0 0.0
        %4938 = vmatpush1.msra.mxu0 0.0
        %4939 = vmatprep.subr.mxu0 0.0
        %4940 = vmatpush1.msra.mxu0 0.0
        %4941 = vmatprep.mubr.f32.mxu0 0.0
        %v4942 = vand.u32 %v4794, 4294901760
        %4943 = vmatmul.mubr.f32.gmra.mrb[0].mxu0 %v4942
        %v4944 = vpop.f32.mrb[0].mxu0
        %v4945 = vadd.f32 %v4869, %v4944
        %v4946 = vpop.f32.mrb[0].mxu0
        %4947 = vdwg.mxu0
        %4948 = vmatprep.subr.mxu0 0.0
        %v4949 = vand.u32 %v4792, 4294901760
        %v4950 = vsub.f32 %v4792, %v4949
        %4951 = vmatpush1.msra.mxu0 %v4950
        %4952 = vmatprep.subr.mxu0 0.0
        %4953 = vmatpush1.msra.mxu0 0.0
        %4954 = vmatprep.subr.mxu0 0.0
        %4955 = vmatpush1.msra.mxu0 0.0
        %4956 = vmatprep.subr.mxu0 0.0
        %4957 = vmatpush1.msra.mxu0 0.0
        %4958 = vmatprep.subr.mxu0 0.0
        %4959 = vmatpush1.msra.mxu0 0.0
        %4960 = vmatprep.subr.mxu0 0.0
        %4961 = vmatpush1.msra.mxu0 0.0
        %4962 = vmatprep.subr.mxu0 0.0
        %4963 = vmatpush1.msra.mxu0 0.0
        %4964 = vmatprep.subr.mxu0 0.0
        %4965 = vmatpush1.msra.mxu0 0.0
        %4966 = vmatprep.subr.mxu0 0.0
        %4967 = vmatpush1.msra.mxu0 0.0
        %4968 = vmatprep.subr.mxu0 0.0
        %4969 = vmatpush1.msra.mxu0 0.0
        %4970 = vmatprep.subr.mxu0 0.0
        %4971 = vmatpush1.msra.mxu0 0.0
        %4972 = vmatprep.subr.mxu0 0.0
        %4973 = vmatpush1.msra.mxu0 0.0
        %4974 = vmatprep.subr.mxu0 0.0
        %4975 = vmatpush1.msra.mxu0 0.0
        %4976 = vmatprep.subr.mxu0 0.0
        %4977 = vmatpush1.msra.mxu0 0.0
        %4978 = vmatprep.subr.mxu0 0.0
        %4979 = vmatpush1.msra.mxu0 0.0
        %4980 = vmatprep.subr.mxu0 0.0
        %4981 = vmatpush1.msra.mxu0 0.0
        %4982 = vmatprep.subr.mxu0 0.0
        %4983 = vmatpush1.msra.mxu0 0.0
        %4984 = vmatprep.subr.mxu0 0.0
        %4985 = vmatpush1.msra.mxu0 0.0
        %4986 = vmatprep.subr.mxu0 0.0
        %4987 = vmatpush1.msra.mxu0 0.0
        %4988 = vmatprep.subr.mxu0 0.0
        %4989 = vmatpush1.msra.mxu0 0.0
        %4990 = vmatprep.subr.mxu0 0.0
        %4991 = vmatpush1.msra.mxu0 0.0
        %4992 = vmatprep.subr.mxu0 0.0
        %4993 = vmatpush1.msra.mxu0 0.0
        %4994 = vmatprep.subr.mxu0 0.0
        %4995 = vmatpush1.msra.mxu0 0.0
        %4996 = vmatprep.subr.mxu0 0.0
        %4997 = vmatpush1.msra.mxu0 0.0
        %4998 = vmatprep.subr.mxu0 0.0
        %4999 = vmatpush1.msra.mxu0 0.0
        %5000 = vmatprep.subr.mxu0 0.0
        %5001 = vmatpush1.msra.mxu0 0.0
        %5002 = vmatprep.subr.mxu0 0.0
        %5003 = vmatpush1.msra.mxu0 0.0
        %5004 = vmatprep.subr.mxu0 0.0
        %5005 = vmatpush1.msra.mxu0 0.0
        %5006 = vmatprep.subr.mxu0 0.0
        %5007 = vmatpush1.msra.mxu0 0.0
        %5008 = vmatprep.subr.mxu0 0.0
        %5009 = vmatpush1.msra.mxu0 0.0
        %5010 = vmatprep.subr.mxu0 0.0
        %5011 = vmatpush1.msra.mxu0 0.0
        %5012 = vmatprep.subr.mxu0 0.0
        %5013 = vmatpush1.msra.mxu0 0.0
        %5014 = vmatprep.mubr.f32.mxu0 0.0
        %v5015 = vand.u32 %v4794, 4294901760
        %v5016 = vsub.f32 %v4794, %v5015
        %5017 = vmatmul.mubr.f32.gmra.mrb[0].mxu0 %v5016
        %v5018 = vpop.f32.mrb[0].mxu0
        %v5019 = vadd.f32 %v4945, %v5018
        %v5020 = vpop.f32.mrb[0].mxu0
        %5021 = vdwg.mxu0
        %5022 = vmatprep.subr.mxu0 0.0
        %v5023 = vand.u32 %v4792, 4294901760
        %5024 = vmatpush1.msra.mxu0 %v5023
        %5025 = vmatprep.subr.mxu0 0.0
        %5026 = vmatpush1.msra.mxu0 0.0
        %5027 = vmatprep.subr.mxu0 0.0
        %5028 = vmatpush1.msra.mxu0 0.0
        %5029 = vmatprep.subr.mxu0 0.0
        %5030 = vmatpush1.msra.mxu0 0.0
        %5031 = vmatprep.subr.mxu0 0.0
        %5032 = vmatpush1.msra.mxu0 0.0
        %5033 = vmatprep.subr.mxu0 0.0
        %5034 = vmatpush1.msra.mxu0 0.0
        %5035 = vmatprep.subr.mxu0 0.0
        %5036 = vmatpush1.msra.mxu0 0.0
        %5037 = vmatprep.subr.mxu0 0.0
        %5038 = vmatpush1.msra.mxu0 0.0
        %5039 = vmatprep.subr.mxu0 0.0
        %5040 = vmatpush1.msra.mxu0 0.0
        %5041 = vmatprep.subr.mxu0 0.0
        %5042 = vmatpush1.msra.mxu0 0.0
        %5043 = vmatprep.subr.mxu0 0.0
        %5044 = vmatpush1.msra.mxu0 0.0
        %5045 = vmatprep.subr.mxu0 0.0
        %5046 = vmatpush1.msra.mxu0 0.0
        %5047 = vmatprep.subr.mxu0 0.0
        %5048 = vmatpush1.msra.mxu0 0.0
        %5049 = vmatprep.subr.mxu0 0.0
        %5050 = vmatpush1.msra.mxu0 0.0
        %5051 = vmatprep.subr.mxu0 0.0
        %5052 = vmatpush1.msra.mxu0 0.0
        %5053 = vmatprep.subr.mxu0 0.0
        %5054 = vmatpush1.msra.mxu0 0.0
        %5055 = vmatprep.subr.mxu0 0.0
        %5056 = vmatpush1.msra.mxu0 0.0
        %5057 = vmatprep.subr.mxu0 0.0
        %5058 = vmatpush1.msra.mxu0 0.0
        %5059 = vmatprep.subr.mxu0 0.0
        %5060 = vmatpush1.msra.mxu0 0.0
        %5061 = vmatprep.subr.mxu0 0.0
        %5062 = vmatpush1.msra.mxu0 0.0
        %5063 = vmatprep.subr.mxu0 0.0
        %5064 = vmatpush1.msra.mxu0 0.0
        %5065 = vmatprep.subr.mxu0 0.0
        %5066 = vmatpush1.msra.mxu0 0.0
        %5067 = vmatprep.subr.mxu0 0.0
        %5068 = vmatpush1.msra.mxu0 0.0
        %5069 = vmatprep.subr.mxu0 0.0
        %5070 = vmatpush1.msra.mxu0 0.0
        %5071 = vmatprep.subr.mxu0 0.0
        %5072 = vmatpush1.msra.mxu0 0.0
        %5073 = vmatprep.subr.mxu0 0.0
        %5074 = vmatpush1.msra.mxu0 0.0
        %5075 = vmatprep.subr.mxu0 0.0
        %5076 = vmatpush1.msra.mxu0 0.0
        %5077 = vmatprep.subr.mxu0 0.0
        %5078 = vmatpush1.msra.mxu0 0.0
        %5079 = vmatprep.subr.mxu0 0.0
        %5080 = vmatpush1.msra.mxu0 0.0
        %5081 = vmatprep.subr.mxu0 0.0
        %5082 = vmatpush1.msra.mxu0 0.0
        %5083 = vmatprep.subr.mxu0 0.0
        %5084 = vmatpush1.msra.mxu0 0.0
        %5085 = vmatprep.subr.mxu0 0.0
        %5086 = vmatpush1.msra.mxu0 0.0
        %5087 = vmatprep.mubr.f32.mxu0 0.0
        %v5088 = vand.u32 %v4794, 4294901760
        %v5089 = vsub.f32 %v4794, %v5088
        %v5090 = vand.u32 %v5089, 4294901760
        %5091 = vmatmul.mubr.f32.gmra.mrb[0].mxu0 %v5090
        %v5092 = vpop.f32.mrb[0].mxu0
        %v5093 = vadd.f32 %v5019, %v5092
        %v5094 = vpop.f32.mrb[0].mxu0
        %5095 = vdwg.mxu0
        %5096 = vmatprep.subr.mxu0 0.0
        %v5097 = vand.u32 %v4792, 4294901760
        %v5098 = vsub.f32 %v4792, %v5097
        %v5099 = vand.u32 %v5098, 4294901760
        %5100 = vmatpush1.msra.mxu0 %v5099
        %5101 = vmatprep.subr.mxu0 0.0
        %5102 = vmatpush1.msra.mxu0 0.0
        %5103 = vmatprep.subr.mxu0 0.0
        %5104 = vmatpush1.msra.mxu0 0.0
        %5105 = vmatprep.subr.mxu0 0.0
        %5106 = vmatpush1.msra.mxu0 0.0
        %5107 = vmatprep.subr.mxu0 0.0
        %5108 = vmatpush1.msra.mxu0 0.0
        %5109 = vmatprep.subr.mxu0 0.0
        %5110 = vmatpush1.msra.mxu0 0.0
        %5111 = vmatprep.subr.mxu0 0.0
        %5112 = vmatpush1.msra.mxu0 0.0
        %5113 = vmatprep.subr.mxu0 0.0
        %5114 = vmatpush1.msra.mxu0 0.0
        %5115 = vmatprep.subr.mxu0 0.0
        %5116 = vmatpush1.msra.mxu0 0.0
        %5117 = vmatprep.subr.mxu0 0.0
        %5118 = vmatpush1.msra.mxu0 0.0
        %5119 = vmatprep.subr.mxu0 0.0
        %5120 = vmatpush1.msra.mxu0 0.0
        %5121 = vmatprep.subr.mxu0 0.0
        %5122 = vmatpush1.msra.mxu0 0.0
        %5123 = vmatprep.subr.mxu0 0.0
        %5124 = vmatpush1.msra.mxu0 0.0
        %5125 = vmatprep.subr.mxu0 0.0
        %5126 = vmatpush1.msra.mxu0 0.0
        %5127 = vmatprep.subr.mxu0 0.0
        %5128 = vmatpush1.msra.mxu0 0.0
        %5129 = vmatprep.subr.mxu0 0.0
        %5130 = vmatpush1.msra.mxu0 0.0
        %5131 = vmatprep.subr.mxu0 0.0
        %5132 = vmatpush1.msra.mxu0 0.0
        %5133 = vmatprep.subr.mxu0 0.0
        %5134 = vmatpush1.msra.mxu0 0.0
        %5135 = vmatprep.subr.mxu0 0.0
        %5136 = vmatpush1.msra.mxu0 0.0
        %5137 = vmatprep.subr.mxu0 0.0
        %5138 = vmatpush1.msra.mxu0 0.0
        %5139 = vmatprep.subr.mxu0 0.0
        %5140 = vmatpush1.msra.mxu0 0.0
        %5141 = vmatprep.subr.mxu0 0.0
        %5142 = vmatpush1.msra.mxu0 0.0
        %5143 = vmatprep.subr.mxu0 0.0
        %5144 = vmatpush1.msra.mxu0 0.0
        %5145 = vmatprep.subr.mxu0 0.0
        %5146 = vmatpush1.msra.mxu0 0.0
        %5147 = vmatprep.subr.mxu0 0.0
        %5148 = vmatpush1.msra.mxu0 0.0
        %5149 = vmatprep.subr.mxu0 0.0
        %5150 = vmatpush1.msra.mxu0 0.0
        %5151 = vmatprep.subr.mxu0 0.0
        %5152 = vmatpush1.msra.mxu0 0.0
        %5153 = vmatprep.subr.mxu0 0.0
        %5154 = vmatpush1.msra.mxu0 0.0
        %5155 = vmatprep.subr.mxu0 0.0
        %5156 = vmatpush1.msra.mxu0 0.0
        %5157 = vmatprep.subr.mxu0 0.0
        %5158 = vmatpush1.msra.mxu0 0.0
        %5159 = vmatprep.subr.mxu0 0.0
        %5160 = vmatpush1.msra.mxu0 0.0
        %5161 = vmatprep.subr.mxu0 0.0
        %5162 = vmatpush1.msra.mxu0 0.0
        %5163 = vmatprep.mubr.f32.mxu0 0.0
        %v5164 = vand.u32 %v4794, 4294901760
        %5165 = vmatmul.mubr.f32.gmra.mrb[0].mxu0 %v5164
        %v5166 = vpop.f32.mrb[0].mxu0
        %v5167 = vadd.f32 %v5093, %v5166
        %v5168 = vpop.f32.mrb[0].mxu0
        %5169 = vdwg.mxu0
        %5170 = vmatprep.subr.mxu0 0.0
        %v5171 = vand.u32 %v4792, 4294901760
        %5172 = vmatpush1.msra.mxu0 %v5171
        %5173 = vmatprep.subr.mxu0 0.0
        %5174 = vmatpush1.msra.mxu0 0.0
        %5175 = vmatprep.subr.mxu0 0.0
        %5176 = vmatpush1.msra.mxu0 0.0
        %5177 = vmatprep.subr.mxu0 0.0
        %5178 = vmatpush1.msra.mxu0 0.0
        %5179 = vmatprep.subr.mxu0 0.0
        %5180 = vmatpush1.msra.mxu0 0.0
        %5181 = vmatprep.subr.mxu0 0.0
        %5182 = vmatpush1.msra.mxu0 0.0
        %5183 = vmatprep.subr.mxu0 0.0
        %5184 = vmatpush1.msra.mxu0 0.0
        %5185 = vmatprep.subr.mxu0 0.0
        %5186 = vmatpush1.msra.mxu0 0.0
        %5187 = vmatprep.subr.mxu0 0.0
        %5188 = vmatpush1.msra.mxu0 0.0
        %5189 = vmatprep.subr.mxu0 0.0
        %5190 = vmatpush1.msra.mxu0 0.0
        %5191 = vmatprep.subr.mxu0 0.0
        %5192 = vmatpush1.msra.mxu0 0.0
        %5193 = vmatprep.subr.mxu0 0.0
        %5194 = vmatpush1.msra.mxu0 0.0
        %5195 = vmatprep.subr.mxu0 0.0
        %5196 = vmatpush1.msra.mxu0 0.0
        %5197 = vmatprep.subr.mxu0 0.0
        %5198 = vmatpush1.msra.mxu0 0.0
        %5199 = vmatprep.subr.mxu0 0.0
        %5200 = vmatpush1.msra.mxu0 0.0
        %5201 = vmatprep.subr.mxu0 0.0
        %5202 = vmatpush1.msra.mxu0 0.0
        %5203 = vmatprep.subr.mxu0 0.0
        %5204 = vmatpush1.msra.mxu0 0.0
        %5205 = vmatprep.subr.mxu0 0.0
        %5206 = vmatpush1.msra.mxu0 0.0
        %5207 = vmatprep.subr.mxu0 0.0
        %5208 = vmatpush1.msra.mxu0 0.0
        %5209 = vmatprep.subr.mxu0 0.0
        %5210 = vmatpush1.msra.mxu0 0.0
        %5211 = vmatprep.subr.mxu0 0.0
        %5212 = vmatpush1.msra.mxu0 0.0
        %5213 = vmatprep.subr.mxu0 0.0
        %5214 = vmatpush1.msra.mxu0 0.0
        %5215 = vmatprep.subr.mxu0 0.0
        %5216 = vmatpush1.msra.mxu0 0.0
        %5217 = vmatprep.subr.mxu0 0.0
        %5218 = vmatpush1.msra.mxu0 0.0
        %5219 = vmatprep.subr.mxu0 0.0
        %5220 = vmatpush1.msra.mxu0 0.0
        %5221 = vmatprep.subr.mxu0 0.0
        %5222 = vmatpush1.msra.mxu0 0.0
        %5223 = vmatprep.subr.mxu0 0.0
        %5224 = vmatpush1.msra.mxu0 0.0
        %5225 = vmatprep.subr.mxu0 0.0
        %5226 = vmatpush1.msra.mxu0 0.0
        %5227 = vmatprep.subr.mxu0 0.0
        %5228 = vmatpush1.msra.mxu0 0.0
        %5229 = vmatprep.subr.mxu0 0.0
        %5230 = vmatpush1.msra.mxu0 0.0
        %5231 = vmatprep.subr.mxu0 0.0
        %5232 = vmatpush1.msra.mxu0 0.0
        %5233 = vmatprep.subr.mxu0 0.0
        %5234 = vmatpush1.msra.mxu0 0.0
        %5235 = vmatprep.mubr.f32.mxu0 0.0
        %v5236 = vand.u32 %v4794, 4294901760
        %5237 = vmatmul.mubr.f32.gmra.mrb[0].mxu0 %v5236
        %v5238 = vpop.f32.mrb[0].mxu0
        %v5239 = vadd.f32 %v5167, %v5238
        %v5240 = vpop.f32.mrb[0].mxu0
        %5241 = vdwg.mxu0
        %v5243 = vsel %vm2966, %v3876, 0
        %5245 = vmatprep.subr.mxu0 0.0
        %v5246 = vand.u32 %v3879, 4294901760
        %5247 = vmatpush1.msra.mxu0 %v5246
        %5248 = vmatprep.subr.mxu0 0.0
        %5249 = vmatpush1.msra.mxu0 0.0
        %5250 = vmatprep.subr.mxu0 0.0
        %5251 = vmatpush1.msra.mxu0 0.0
        %5252 = vmatprep.subr.mxu0 0.0
        %5253 = vmatpush1.msra.mxu0 0.0
        %5254 = vmatprep.subr.mxu0 0.0
        %5255 = vmatpush1.msra.mxu0 0.0
        %5256 = vmatprep.subr.mxu0 0.0
        %5257 = vmatpush1.msra.mxu0 0.0
        %5258 = vmatprep.subr.mxu0 0.0
        %5259 = vmatpush1.msra.mxu0 0.0
        %5260 = vmatprep.subr.mxu0 0.0
        %5261 = vmatpush1.msra.mxu0 0.0
        %5262 = vmatprep.subr.mxu0 0.0
        %5263 = vmatpush1.msra.mxu0 0.0
        %5264 = vmatprep.subr.mxu0 0.0
        %5265 = vmatpush1.msra.mxu0 0.0
        %5266 = vmatprep.subr.mxu0 0.0
        %5267 = vmatpush1.msra.mxu0 0.0
        %5268 = vmatprep.subr.mxu0 0.0
        %5269 = vmatpush1.msra.mxu0 0.0
        %5270 = vmatprep.subr.mxu0 0.0
        %5271 = vmatpush1.msra.mxu0 0.0
        %5272 = vmatprep.subr.mxu0 0.0
        %5273 = vmatpush1.msra.mxu0 0.0
        %5274 = vmatprep.subr.mxu0 0.0
        %5275 = vmatpush1.msra.mxu0 0.0
        %5276 = vmatprep.subr.mxu0 0.0
        %5277 = vmatpush1.msra.mxu0 0.0
        %5278 = vmatprep.subr.mxu0 0.0
        %5279 = vmatpush1.msra.mxu0 0.0
        %5280 = vmatprep.subr.mxu0 0.0
        %5281 = vmatpush1.msra.mxu0 0.0
        %5282 = vmatprep.subr.mxu0 0.0
        %5283 = vmatpush1.msra.mxu0 0.0
        %5284 = vmatprep.subr.mxu0 0.0
        %5285 = vmatpush1.msra.mxu0 0.0
        %5286 = vmatprep.subr.mxu0 0.0
        %5287 = vmatpush1.msra.mxu0 0.0
        %5288 = vmatprep.subr.mxu0 0.0
        %5289 = vmatpush1.msra.mxu0 0.0
        %5290 = vmatprep.subr.mxu0 0.0
        %5291 = vmatpush1.msra.mxu0 0.0
        %5292 = vmatprep.subr.mxu0 0.0
        %5293 = vmatpush1.msra.mxu0 0.0
        %5294 = vmatprep.subr.mxu0 0.0
        %5295 = vmatpush1.msra.mxu0 0.0
        %5296 = vmatprep.subr.mxu0 0.0
        %5297 = vmatpush1.msra.mxu0 0.0
        %5298 = vmatprep.subr.mxu0 0.0
        %5299 = vmatpush1.msra.mxu0 0.0
        %5300 = vmatprep.subr.mxu0 0.0
        %5301 = vmatpush1.msra.mxu0 0.0
        %5302 = vmatprep.subr.mxu0 0.0
        %5303 = vmatpush1.msra.mxu0 0.0
        %5304 = vmatprep.subr.mxu0 0.0
        %5305 = vmatpush1.msra.mxu0 0.0
        %5306 = vmatprep.subr.mxu0 0.0
        %5307 = vmatpush1.msra.mxu0 0.0
        %5308 = vmatprep.subr.mxu0 0.0
        %5309 = vmatpush1.msra.mxu0 0.0
        %5310 = vmatprep.mubr.f32.mxu0 0.0
        %v5311 = vand.u32 %v5243, 4294901760
        %v5312 = vsub.f32 %v5243, %v5311
        %v5313 = vand.u32 %v5312, 4294901760
        %v5314 = vsub.f32 %v5312, %v5313
        %v5315 = vand.u32 %v5314, 4294901760
        %5316 = vmatmul.mubr.f32.gmra.mrb[0].mxu0 %v5315
        %v5317 = vpop.f32.mrb[0].mxu0
        %v5318 = vadd.f32 %v5239, %v5317
        %v5319 = vpop.f32.mrb[0].mxu0
        %5320 = vdwg.mxu0
        %5321 = vmatprep.subr.mxu0 0.0
        %v5322 = vand.u32 %v3879, 4294901760
        %v5323 = vsub.f32 %v3879, %v5322
        %v5324 = vand.u32 %v5323, 4294901760
        %v5325 = vsub.f32 %v5323, %v5324
        %v5326 = vand.u32 %v5325, 4294901760
        %5327 = vmatpush1.msra.mxu0 %v5326
        %5328 = vmatprep.subr.mxu0 0.0
        %5329 = vmatpush1.msra.mxu0 0.0
        %5330 = vmatprep.subr.mxu0 0.0
        %5331 = vmatpush1.msra.mxu0 0.0
        %5332 = vmatprep.subr.mxu0 0.0
        %5333 = vmatpush1.msra.mxu0 0.0
        %5334 = vmatprep.subr.mxu0 0.0
        %5335 = vmatpush1.msra.mxu0 0.0
        %5336 = vmatprep.subr.mxu0 0.0
        %5337 = vmatpush1.msra.mxu0 0.0
        %5338 = vmatprep.subr.mxu0 0.0
        %5339 = vmatpush1.msra.mxu0 0.0
        %5340 = vmatprep.subr.mxu0 0.0
        %5341 = vmatpush1.msra.mxu0 0.0
        %5342 = vmatprep.subr.mxu0 0.0
        %5343 = vmatpush1.msra.mxu0 0.0
        %5344 = vmatprep.subr.mxu0 0.0
        %5345 = vmatpush1.msra.mxu0 0.0
        %5346 = vmatprep.subr.mxu0 0.0
        %5347 = vmatpush1.msra.mxu0 0.0
        %5348 = vmatprep.subr.mxu0 0.0
        %5349 = vmatpush1.msra.mxu0 0.0
        %5350 = vmatprep.subr.mxu0 0.0
        %5351 = vmatpush1.msra.mxu0 0.0
        %5352 = vmatprep.subr.mxu0 0.0
        %5353 = vmatpush1.msra.mxu0 0.0
        %5354 = vmatprep.subr.mxu0 0.0
        %5355 = vmatpush1.msra.mxu0 0.0
        %5356 = vmatprep.subr.mxu0 0.0
        %5357 = vmatpush1.msra.mxu0 0.0
        %5358 = vmatprep.subr.mxu0 0.0
        %5359 = vmatpush1.msra.mxu0 0.0
        %5360 = vmatprep.subr.mxu0 0.0
        %5361 = vmatpush1.msra.mxu0 0.0
        %5362 = vmatprep.subr.mxu0 0.0
        %5363 = vmatpush1.msra.mxu0 0.0
        %5364 = vmatprep.subr.mxu0 0.0
        %5365 = vmatpush1.msra.mxu0 0.0
        %5366 = vmatprep.subr.mxu0 0.0
        %5367 = vmatpush1.msra.mxu0 0.0
        %5368 = vmatprep.subr.mxu0 0.0
        %5369 = vmatpush1.msra.mxu0 0.0
        %5370 = vmatprep.subr.mxu0 0.0
        %5371 = vmatpush1.msra.mxu0 0.0
        %5372 = vmatprep.subr.mxu0 0.0
        %5373 = vmatpush1.msra.mxu0 0.0
        %5374 = vmatprep.subr.mxu0 0.0
        %5375 = vmatpush1.msra.mxu0 0.0
        %5376 = vmatprep.subr.mxu0 0.0
        %5377 = vmatpush1.msra.mxu0 0.0
        %5378 = vmatprep.subr.mxu0 0.0
        %5379 = vmatpush1.msra.mxu0 0.0
        %5380 = vmatprep.subr.mxu0 0.0
        %5381 = vmatpush1.msra.mxu0 0.0
        %5382 = vmatprep.subr.mxu0 0.0
        %5383 = vmatpush1.msra.mxu0 0.0
        %5384 = vmatprep.subr.mxu0 0.0
        %5385 = vmatpush1.msra.mxu0 0.0
        %5386 = vmatprep.subr.mxu0 0.0
        %5387 = vmatpush1.msra.mxu0 0.0
        %5388 = vmatprep.subr.mxu0 0.0
        %5389 = vmatpush1.msra.mxu0 0.0
        %5390 = vmatprep.mubr.f32.mxu0 0.0
        %v5391 = vand.u32 %v5243, 4294901760
        %5392 = vmatmul.mubr.f32.gmra.mrb[0].mxu0 %v5391
        %v5393 = vpop.f32.mrb[0].mxu0
        %v5394 = vadd.f32 %v5318, %v5393
        %v5395 = vpop.f32.mrb[0].mxu0
        %5396 = vdwg.mxu0
        %5397 = vmatprep.subr.mxu0 0.0
        %v5398 = vand.u32 %v3879, 4294901760
        %v5399 = vsub.f32 %v3879, %v5398
        %5400 = vmatpush1.msra.mxu0 %v5399
        %5401 = vmatprep.subr.mxu0 0.0
        %5402 = vmatpush1.msra.mxu0 0.0
        %5403 = vmatprep.subr.mxu0 0.0
        %5404 = vmatpush1.msra.mxu0 0.0
        %5405 = vmatprep.subr.mxu0 0.0
        %5406 = vmatpush1.msra.mxu0 0.0
        %5407 = vmatprep.subr.mxu0 0.0
        %5408 = vmatpush1.msra.mxu0 0.0
        %5409 = vmatprep.subr.mxu0 0.0
        %5410 = vmatpush1.msra.mxu0 0.0
        %5411 = vmatprep.subr.mxu0 0.0
        %5412 = vmatpush1.msra.mxu0 0.0
        %5413 = vmatprep.subr.mxu0 0.0
        %5414 = vmatpush1.msra.mxu0 0.0
        %5415 = vmatprep.subr.mxu0 0.0
        %5416 = vmatpush1.msra.mxu0 0.0
        %5417 = vmatprep.subr.mxu0 0.0
        %5418 = vmatpush1.msra.mxu0 0.0
        %5419 = vmatprep.subr.mxu0 0.0
        %5420 = vmatpush1.msra.mxu0 0.0
        %5421 = vmatprep.subr.mxu0 0.0
        %5422 = vmatpush1.msra.mxu0 0.0
        %5423 = vmatprep.subr.mxu0 0.0
        %5424 = vmatpush1.msra.mxu0 0.0
        %5425 = vmatprep.subr.mxu0 0.0
        %5426 = vmatpush1.msra.mxu0 0.0
        %5427 = vmatprep.subr.mxu0 0.0
        %5428 = vmatpush1.msra.mxu0 0.0
        %5429 = vmatprep.subr.mxu0 0.0
        %5430 = vmatpush1.msra.mxu0 0.0
        %5431 = vmatprep.subr.mxu0 0.0
        %5432 = vmatpush1.msra.mxu0 0.0
        %5433 = vmatprep.subr.mxu0 0.0
        %5434 = vmatpush1.msra.mxu0 0.0
        %5435 = vmatprep.subr.mxu0 0.0
        %5436 = vmatpush1.msra.mxu0 0.0
        %5437 = vmatprep.subr.mxu0 0.0
        %5438 = vmatpush1.msra.mxu0 0.0
        %5439 = vmatprep.subr.mxu0 0.0
        %5440 = vmatpush1.msra.mxu0 0.0
        %5441 = vmatprep.subr.mxu0 0.0
        %5442 = vmatpush1.msra.mxu0 0.0
        %5443 = vmatprep.subr.mxu0 0.0
        %5444 = vmatpush1.msra.mxu0 0.0
        %5445 = vmatprep.subr.mxu0 0.0
        %5446 = vmatpush1.msra.mxu0 0.0
        %5447 = vmatprep.subr.mxu0 0.0
        %5448 = vmatpush1.msra.mxu0 0.0
        %5449 = vmatprep.subr.mxu0 0.0
        %5450 = vmatpush1.msra.mxu0 0.0
        %5451 = vmatprep.subr.mxu0 0.0
        %5452 = vmatpush1.msra.mxu0 0.0
        %5453 = vmatprep.subr.mxu0 0.0
        %5454 = vmatpush1.msra.mxu0 0.0
        %5455 = vmatprep.subr.mxu0 0.0
        %5456 = vmatpush1.msra.mxu0 0.0
        %5457 = vmatprep.subr.mxu0 0.0
        %5458 = vmatpush1.msra.mxu0 0.0
        %5459 = vmatprep.subr.mxu0 0.0
        %5460 = vmatpush1.msra.mxu0 0.0
        %5461 = vmatprep.subr.mxu0 0.0
        %5462 = vmatpush1.msra.mxu0 0.0
        %5463 = vmatprep.mubr.f32.mxu0 0.0
        %v5464 = vand.u32 %v5243, 4294901760
        %v5465 = vsub.f32 %v5243, %v5464
        %5466 = vmatmul.mubr.f32.gmra.mrb[0].mxu0 %v5465
        %v5467 = vpop.f32.mrb[0].mxu0
        %v5468 = vadd.f32 %v5394, %v5467
        %v5469 = vpop.f32.mrb[0].mxu0
        %5470 = vdwg.mxu0
        %5471 = vmatprep.subr.mxu0 0.0
        %v5472 = vand.u32 %v3879, 4294901760
        %5473 = vmatpush1.msra.mxu0 %v5472
        %5474 = vmatprep.subr.mxu0 0.0
        %5475 = vmatpush1.msra.mxu0 0.0
        %5476 = vmatprep.subr.mxu0 0.0
        %5477 = vmatpush1.msra.mxu0 0.0
        %5478 = vmatprep.subr.mxu0 0.0
        %5479 = vmatpush1.msra.mxu0 0.0
        %5480 = vmatprep.subr.mxu0 0.0
        %5481 = vmatpush1.msra.mxu0 0.0
        %5482 = vmatprep.subr.mxu0 0.0
        %5483 = vmatpush1.msra.mxu0 0.0
        %5484 = vmatprep.subr.mxu0 0.0
        %5485 = vmatpush1.msra.mxu0 0.0
        %5486 = vmatprep.subr.mxu0 0.0
        %5487 = vmatpush1.msra.mxu0 0.0
        %5488 = vmatprep.subr.mxu0 0.0
        %5489 = vmatpush1.msra.mxu0 0.0
        %5490 = vmatprep.subr.mxu0 0.0
        %5491 = vmatpush1.msra.mxu0 0.0
        %5492 = vmatprep.subr.mxu0 0.0
        %5493 = vmatpush1.msra.mxu0 0.0
        %5494 = vmatprep.subr.mxu0 0.0
        %5495 = vmatpush1.msra.mxu0 0.0
        %5496 = vmatprep.subr.mxu0 0.0
        %5497 = vmatpush1.msra.mxu0 0.0
        %5498 = vmatprep.subr.mxu0 0.0
        %5499 = vmatpush1.msra.mxu0 0.0
        %5500 = vmatprep.subr.mxu0 0.0
        %5501 = vmatpush1.msra.mxu0 0.0
        %5502 = vmatprep.subr.mxu0 0.0
        %5503 = vmatpush1.msra.mxu0 0.0
        %5504 = vmatprep.subr.mxu0 0.0
        %5505 = vmatpush1.msra.mxu0 0.0
        %5506 = vmatprep.subr.mxu0 0.0
        %5507 = vmatpush1.msra.mxu0 0.0
        %5508 = vmatprep.subr.mxu0 0.0
        %5509 = vmatpush1.msra.mxu0 0.0
        %5510 = vmatprep.subr.mxu0 0.0
        %5511 = vmatpush1.msra.mxu0 0.0
        %5512 = vmatprep.subr.mxu0 0.0
        %5513 = vmatpush1.msra.mxu0 0.0
        %5514 = vmatprep.subr.mxu0 0.0
        %5515 = vmatpush1.msra.mxu0 0.0
        %5516 = vmatprep.subr.mxu0 0.0
        %5517 = vmatpush1.msra.mxu0 0.0
        %5518 = vmatprep.subr.mxu0 0.0
        %5519 = vmatpush1.msra.mxu0 0.0
        %5520 = vmatprep.subr.mxu0 0.0
        %5521 = vmatpush1.msra.mxu0 0.0
        %5522 = vmatprep.subr.mxu0 0.0
        %5523 = vmatpush1.msra.mxu0 0.0
        %5524 = vmatprep.subr.mxu0 0.0
        %5525 = vmatpush1.msra.mxu0 0.0
        %5526 = vmatprep.subr.mxu0 0.0
        %5527 = vmatpush1.msra.mxu0 0.0
        %5528 = vmatprep.subr.mxu0 0.0
        %5529 = vmatpush1.msra.mxu0 0.0
        %5530 = vmatprep.subr.mxu0 0.0
        %5531 = vmatpush1.msra.mxu0 0.0
        %5532 = vmatprep.subr.mxu0 0.0
        %5533 = vmatpush1.msra.mxu0 0.0
        %5534 = vmatprep.subr.mxu0 0.0
        %5535 = vmatpush1.msra.mxu0 0.0
        %5536 = vmatprep.mubr.f32.mxu0 0.0
        %v5537 = vand.u32 %v5243, 4294901760
        %v5538 = vsub.f32 %v5243, %v5537
        %v5539 = vand.u32 %v5538, 4294901760
        %5540 = vmatmul.mubr.f32.gmra.mrb[0].mxu0 %v5539
        %v5541 = vpop.f32.mrb[0].mxu0
        %v5542 = vadd.f32 %v5468, %v5541
        %v5543 = vpop.f32.mrb[0].mxu0
        %5544 = vdwg.mxu0
        %5545 = vmatprep.subr.mxu0 0.0
        %v5546 = vand.u32 %v3879, 4294901760
        %v5547 = vsub.f32 %v3879, %v5546
        %v5548 = vand.u32 %v5547, 4294901760
        %5549 = vmatpush1.msra.mxu0 %v5548
        %5550 = vmatprep.subr.mxu0 0.0
        %5551 = vmatpush1.msra.mxu0 0.0
        %5552 = vmatprep.subr.mxu0 0.0
        %5553 = vmatpush1.msra.mxu0 0.0
        %5554 = vmatprep.subr.mxu0 0.0
        %5555 = vmatpush1.msra.mxu0 0.0
        %5556 = vmatprep.subr.mxu0 0.0
        %5557 = vmatpush1.msra.mxu0 0.0
        %5558 = vmatprep.subr.mxu0 0.0
        %5559 = vmatpush1.msra.mxu0 0.0
        %5560 = vmatprep.subr.mxu0 0.0
        %5561 = vmatpush1.msra.mxu0 0.0
        %5562 = vmatprep.subr.mxu0 0.0
        %5563 = vmatpush1.msra.mxu0 0.0
        %5564 = vmatprep.subr.mxu0 0.0
        %5565 = vmatpush1.msra.mxu0 0.0
        %5566 = vmatprep.subr.mxu0 0.0
        %5567 = vmatpush1.msra.mxu0 0.0
        %5568 = vmatprep.subr.mxu0 0.0
        %5569 = vmatpush1.msra.mxu0 0.0
        %5570 = vmatprep.subr.mxu0 0.0
        %5571 = vmatpush1.msra.mxu0 0.0
        %5572 = vmatprep.subr.mxu0 0.0
        %5573 = vmatpush1.msra.mxu0 0.0
        %5574 = vmatprep.subr.mxu0 0.0
        %5575 = vmatpush1.msra.mxu0 0.0
        %5576 = vmatprep.subr.mxu0 0.0
        %5577 = vmatpush1.msra.mxu0 0.0
        %5578 = vmatprep.subr.mxu0 0.0
        %5579 = vmatpush1.msra.mxu0 0.0
        %5580 = vmatprep.subr.mxu0 0.0
        %5581 = vmatpush1.msra.mxu0 0.0
        %5582 = vmatprep.subr.mxu0 0.0
        %5583 = vmatpush1.msra.mxu0 0.0
        %5584 = vmatprep.subr.mxu0 0.0
        %5585 = vmatpush1.msra.mxu0 0.0
        %5586 = vmatprep.subr.mxu0 0.0
        %5587 = vmatpush1.msra.mxu0 0.0
        %5588 = vmatprep.subr.mxu0 0.0
        %5589 = vmatpush1.msra.mxu0 0.0
        %5590 = vmatprep.subr.mxu0 0.0
        %5591 = vmatpush1.msra.mxu0 0.0
        %5592 = vmatprep.subr.mxu0 0.0
        %5593 = vmatpush1.msra.mxu0 0.0
        %5594 = vmatprep.subr.mxu0 0.0
        %5595 = vmatpush1.msra.mxu0 0.0
        %5596 = vmatprep.subr.mxu0 0.0
        %5597 = vmatpush1.msra.mxu0 0.0
        %5598 = vmatprep.subr.mxu0 0.0
        %5599 = vmatpush1.msra.mxu0 0.0
        %5600 = vmatprep.subr.mxu0 0.0
        %5601 = vmatpush1.msra.mxu0 0.0
        %5602 = vmatprep.subr.mxu0 0.0
        %5603 = vmatpush1.msra.mxu0 0.0
        %5604 = vmatprep.subr.mxu0 0.0
        %5605 = vmatpush1.msra.mxu0 0.0
        %5606 = vmatprep.subr.mxu0 0.0
        %5607 = vmatpush1.msra.mxu0 0.0
        %5608 = vmatprep.subr.mxu0 0.0
        %5609 = vmatpush1.msra.mxu0 0.0
        %5610 = vmatprep.subr.mxu0 0.0
        %5611 = vmatpush1.msra.mxu0 0.0
        %5612 = vmatprep.mubr.f32.mxu0 0.0
        %v5613 = vand.u32 %v5243, 4294901760
        %5614 = vmatmul.mubr.f32.gmra.mrb[0].mxu0 %v5613
        %v5615 = vpop.f32.mrb[0].mxu0
        %v5616 = vadd.f32 %v5542, %v5615
        %v5617 = vpop.f32.mrb[0].mxu0
        %5618 = vdwg.mxu0
        %5619 = vmatprep.subr.mxu0 0.0
        %v5620 = vand.u32 %v3879, 4294901760
        %5621 = vmatpush1.msra.mxu0 %v5620
        %5622 = vmatprep.subr.mxu0 0.0
        %5623 = vmatpush1.msra.mxu0 0.0
        %5624 = vmatprep.subr.mxu0 0.0
        %5625 = vmatpush1.msra.mxu0 0.0
        %5626 = vmatprep.subr.mxu0 0.0
        %5627 = vmatpush1.msra.mxu0 0.0
        %5628 = vmatprep.subr.mxu0 0.0
        %5629 = vmatpush1.msra.mxu0 0.0
        %5630 = vmatprep.subr.mxu0 0.0
        %5631 = vmatpush1.msra.mxu0 0.0
        %5632 = vmatprep.subr.mxu0 0.0
        %5633 = vmatpush1.msra.mxu0 0.0
        %5634 = vmatprep.subr.mxu0 0.0
        %5635 = vmatpush1.msra.mxu0 0.0
        %5636 = vmatprep.subr.mxu0 0.0
        %5637 = vmatpush1.msra.mxu0 0.0
        %5638 = vmatprep.subr.mxu0 0.0
        %5639 = vmatpush1.msra.mxu0 0.0
        %5640 = vmatprep.subr.mxu0 0.0
        %5641 = vmatpush1.msra.mxu0 0.0
        %5642 = vmatprep.subr.mxu0 0.0
        %5643 = vmatpush1.msra.mxu0 0.0
        %5644 = vmatprep.subr.mxu0 0.0
        %5645 = vmatpush1.msra.mxu0 0.0
        %5646 = vmatprep.subr.mxu0 0.0
        %5647 = vmatpush1.msra.mxu0 0.0
        %5648 = vmatprep.subr.mxu0 0.0
        %5649 = vmatpush1.msra.mxu0 0.0
        %5650 = vmatprep.subr.mxu0 0.0
        %5651 = vmatpush1.msra.mxu0 0.0
        %5652 = vmatprep.subr.mxu0 0.0
        %5653 = vmatpush1.msra.mxu0 0.0
        %5654 = vmatprep.subr.mxu0 0.0
        %5655 = vmatpush1.msra.mxu0 0.0
        %5656 = vmatprep.subr.mxu0 0.0
        %5657 = vmatpush1.msra.mxu0 0.0
        %5658 = vmatprep.subr.mxu0 0.0
        %5659 = vmatpush1.msra.mxu0 0.0
        %5660 = vmatprep.subr.mxu0 0.0
        %5661 = vmatpush1.msra.mxu0 0.0
        %5662 = vmatprep.subr.mxu0 0.0
        %5663 = vmatpush1.msra.mxu0 0.0
        %5664 = vmatprep.subr.mxu0 0.0
        %5665 = vmatpush1.msra.mxu0 0.0
        %5666 = vmatprep.subr.mxu0 0.0
        %5667 = vmatpush1.msra.mxu0 0.0
        %5668 = vmatprep.subr.mxu0 0.0
        %5669 = vmatpush1.msra.mxu0 0.0
        %5670 = vmatprep.subr.mxu0 0.0
        %5671 = vmatpush1.msra.mxu0 0.0
        %5672 = vmatprep.subr.mxu0 0.0
        %5673 = vmatpush1.msra.mxu0 0.0
        %5674 = vmatprep.subr.mxu0 0.0
        %5675 = vmatpush1.msra.mxu0 0.0
        %5676 = vmatprep.subr.mxu0 0.0
        %5677 = vmatpush1.msra.mxu0 0.0
        %5678 = vmatprep.subr.mxu0 0.0
        %5679 = vmatpush1.msra.mxu0 0.0
        %5680 = vmatprep.subr.mxu0 0.0
        %5681 = vmatpush1.msra.mxu0 0.0
        %5682 = vmatprep.subr.mxu0 0.0
        %5683 = vmatpush1.msra.mxu0 0.0
        %5684 = vmatprep.mubr.f32.mxu0 0.0
        %v5685 = vand.u32 %v5243, 4294901760
        %5686 = vmatmul.mubr.f32.gmra.mrb[0].mxu0 %v5685
        %v5687 = vpop.f32.mrb[0].mxu0
        %v5688 = vadd.f32 %v5616, %v5687
        %v5689 = vpop.f32.mrb[0].mxu0
        %5690 = vdwg.mxu0
        %v5692 = vsel %vm2966, %v1377, 0
        %v5695 = vsel %vm2966, %v2167, 0
        %5697 = vmatprep.subr.mxu0 0.0
        %v5698 = vand.u32 %v5695, 4294901760
        %5699 = vmatpush1.xpose.msra.mxu0 %v5698
        %5700 = vmatprep.subr.mxu0 0.0
        %5701 = vmatpush1.xpose.msra.mxu0 0.0
        %5702 = vmatprep.subr.mxu0 0.0
        %5703 = vmatpush1.xpose.msra.mxu0 0.0
        %5704 = vmatprep.subr.mxu0 0.0
        %5705 = vmatpush1.xpose.msra.mxu0 0.0
        %5706 = vmatprep.subr.mxu0 0.0
        %5707 = vmatpush1.xpose.msra.mxu0 0.0
        %5708 = vmatprep.subr.mxu0 0.0
        %5709 = vmatpush1.xpose.msra.mxu0 0.0
        %5710 = vmatprep.subr.mxu0 0.0
        %5711 = vmatpush1.xpose.msra.mxu0 0.0
        %5712 = vmatprep.subr.mxu0 0.0
        %5713 = vmatpush1.xpose.msra.mxu0 0.0
        %5714 = vmatprep.subr.mxu0 0.0
        %5715 = vmatpush1.xpose.msra.mxu0 0.0
        %5716 = vmatprep.subr.mxu0 0.0
        %5717 = vmatpush1.xpose.msra.mxu0 0.0
        %5718 = vmatprep.subr.mxu0 0.0
        %5719 = vmatpush1.xpose.msra.mxu0 0.0
        %5720 = vmatprep.subr.mxu0 0.0
        %5721 = vmatpush1.xpose.msra.mxu0 0.0
        %5722 = vmatprep.subr.mxu0 0.0
        %5723 = vmatpush1.xpose.msra.mxu0 0.0
        %5724 = vmatprep.subr.mxu0 0.0
        %5725 = vmatpush1.xpose.msra.mxu0 0.0
        %5726 = vmatprep.subr.mxu0 0.0
        %5727 = vmatpush1.xpose.msra.mxu0 0.0
        %5728 = vmatprep.subr.mxu0 0.0
        %5729 = vmatpush1.xpose.msra.mxu0 0.0
        %5730 = vmatprep.subr.mxu0 0.0
        %5731 = vmatpush1.xpose.msra.mxu0 0.0
        %5732 = vmatprep.subr.mxu0 0.0
        %5733 = vmatpush1.xpose.msra.mxu0 0.0
        %5734 = vmatprep.subr.mxu0 0.0
        %5735 = vmatpush1.xpose.msra.mxu0 0.0
        %5736 = vmatprep.subr.mxu0 0.0
        %5737 = vmatpush1.xpose.msra.mxu0 0.0
        %5738 = vmatprep.subr.mxu0 0.0
        %5739 = vmatpush1.xpose.msra.mxu0 0.0
        %5740 = vmatprep.subr.mxu0 0.0
        %5741 = vmatpush1.xpose.msra.mxu0 0.0
        %5742 = vmatprep.subr.mxu0 0.0
        %5743 = vmatpush1.xpose.msra.mxu0 0.0
        %5744 = vmatprep.subr.mxu0 0.0
        %5745 = vmatpush1.xpose.msra.mxu0 0.0
        %5746 = vmatprep.subr.mxu0 0.0
        %5747 = vmatpush1.xpose.msra.mxu0 0.0
        %5748 = vmatprep.subr.mxu0 0.0
        %5749 = vmatpush1.xpose.msra.mxu0 0.0
        %5750 = vmatprep.subr.mxu0 0.0
        %5751 = vmatpush1.xpose.msra.mxu0 0.0
        %5752 = vmatprep.subr.mxu0 0.0
        %5753 = vmatpush1.xpose.msra.mxu0 0.0
        %5754 = vmatprep.subr.mxu0 0.0
        %5755 = vmatpush1.xpose.msra.mxu0 0.0
        %5756 = vmatprep.subr.mxu0 0.0
        %5757 = vmatpush1.xpose.msra.mxu0 0.0
        %5758 = vmatprep.subr.mxu0 0.0
        %5759 = vmatpush1.xpose.msra.mxu0 0.0
        %5760 = vmatprep.subr.mxu0 0.0
        %5761 = vmatpush1.xpose.msra.mxu0 0.0
        %5762 = vmatprep.mubr.f32.mxu0 0.0
        %v5763 = vand.u32 %v5692, 4294901760
        %v5764 = vsub.f32 %v5692, %v5763
        %v5765 = vand.u32 %v5764, 4294901760
        %v5766 = vsub.f32 %v5764, %v5765
        %v5767 = vand.u32 %v5766, 4294901760
        %5768 = vmatmul.mubr.f32.gmra.mrb[0].mxu0 %v5767
        %v5769 = vpop.f32.mrb[0].mxu0
        %v5770 = vadd.f32 0.0, %v5769
        %v5771 = vpop.f32.mrb[0].mxu0
        %5772 = vdwg.mxu0
        %5773 = vmatprep.subr.mxu0 0.0
        %v5774 = vand.u32 %v5695, 4294901760
        %v5775 = vsub.f32 %v5695, %v5774
        %v5776 = vand.u32 %v5775, 4294901760
        %v5777 = vsub.f32 %v5775, %v5776
        %v5778 = vand.u32 %v5777, 4294901760
        %5779 = vmatpush1.xpose.msra.mxu0 %v5778
        %5780 = vmatprep.subr.mxu0 0.0
        %5781 = vmatpush1.xpose.msra.mxu0 0.0
        %5782 = vmatprep.subr.mxu0 0.0
        %5783 = vmatpush1.xpose.msra.mxu0 0.0
        %5784 = vmatprep.subr.mxu0 0.0
        %5785 = vmatpush1.xpose.msra.mxu0 0.0
        %5786 = vmatprep.subr.mxu0 0.0
        %5787 = vmatpush1.xpose.msra.mxu0 0.0
        %5788 = vmatprep.subr.mxu0 0.0
        %5789 = vmatpush1.xpose.msra.mxu0 0.0
        %5790 = vmatprep.subr.mxu0 0.0
        %5791 = vmatpush1.xpose.msra.mxu0 0.0
        %5792 = vmatprep.subr.mxu0 0.0
        %5793 = vmatpush1.xpose.msra.mxu0 0.0
        %5794 = vmatprep.subr.mxu0 0.0
        %5795 = vmatpush1.xpose.msra.mxu0 0.0
        %5796 = vmatprep.subr.mxu0 0.0
        %5797 = vmatpush1.xpose.msra.mxu0 0.0
        %5798 = vmatprep.subr.mxu0 0.0
        %5799 = vmatpush1.xpose.msra.mxu0 0.0
        %5800 = vmatprep.subr.mxu0 0.0
        %5801 = vmatpush1.xpose.msra.mxu0 0.0
        %5802 = vmatprep.subr.mxu0 0.0
        %5803 = vmatpush1.xpose.msra.mxu0 0.0
        %5804 = vmatprep.subr.mxu0 0.0
        %5805 = vmatpush1.xpose.msra.mxu0 0.0
        %5806 = vmatprep.subr.mxu0 0.0
        %5807 = vmatpush1.xpose.msra.mxu0 0.0
        %5808 = vmatprep.subr.mxu0 0.0
        %5809 = vmatpush1.xpose.msra.mxu0 0.0
        %5810 = vmatprep.subr.mxu0 0.0
        %5811 = vmatpush1.xpose.msra.mxu0 0.0
        %5812 = vmatprep.subr.mxu0 0.0
        %5813 = vmatpush1.xpose.msra.mxu0 0.0
        %5814 = vmatprep.subr.mxu0 0.0
        %5815 = vmatpush1.xpose.msra.mxu0 0.0
        %5816 = vmatprep.subr.mxu0 0.0
        %5817 = vmatpush1.xpose.msra.mxu0 0.0
        %5818 = vmatprep.subr.mxu0 0.0
        %5819 = vmatpush1.xpose.msra.mxu0 0.0
        %5820 = vmatprep.subr.mxu0 0.0
        %5821 = vmatpush1.xpose.msra.mxu0 0.0
        %5822 = vmatprep.subr.mxu0 0.0
        %5823 = vmatpush1.xpose.msra.mxu0 0.0
        %5824 = vmatprep.subr.mxu0 0.0
        %5825 = vmatpush1.xpose.msra.mxu0 0.0
        %5826 = vmatprep.subr.mxu0 0.0
        %5827 = vmatpush1.xpose.msra.mxu0 0.0
        %5828 = vmatprep.subr.mxu0 0.0
        %5829 = vmatpush1.xpose.msra.mxu0 0.0
        %5830 = vmatprep.subr.mxu0 0.0
        %5831 = vmatpush1.xpose.msra.mxu0 0.0
        %5832 = vmatprep.subr.mxu0 0.0
        %5833 = vmatpush1.xpose.msra.mxu0 0.0
        %5834 = vmatprep.subr.mxu0 0.0
        %5835 = vmatpush1.xpose.msra.mxu0 0.0
        %5836 = vmatprep.subr.mxu0 0.0
        %5837 = vmatpush1.xpose.msra.mxu0 0.0
        %5838 = vmatprep.subr.mxu0 0.0
        %5839 = vmatpush1.xpose.msra.mxu0 0.0
        %5840 = vmatprep.subr.mxu0 0.0
        %5841 = vmatpush1.xpose.msra.mxu0 0.0
        %5842 = vmatprep.mubr.f32.mxu0 0.0
        %v5843 = vand.u32 %v5692, 4294901760
        %5844 = vmatmul.mubr.f32.gmra.mrb[0].mxu0 %v5843
        %v5845 = vpop.f32.mrb[0].mxu0
        %v5846 = vadd.f32 %v5770, %v5845
        %v5847 = vpop.f32.mrb[0].mxu0
        %5848 = vdwg.mxu0
        %5849 = vmatprep.subr.mxu0 0.0
        %v5850 = vand.u32 %v5695, 4294901760
        %v5851 = vsub.f32 %v5695, %v5850
        %5852 = vmatpush1.xpose.msra.mxu0 %v5851
        %5853 = vmatprep.subr.mxu0 0.0
        %5854 = vmatpush1.xpose.msra.mxu0 0.0
        %5855 = vmatprep.subr.mxu0 0.0
        %5856 = vmatpush1.xpose.msra.mxu0 0.0
        %5857 = vmatprep.subr.mxu0 0.0
        %5858 = vmatpush1.xpose.msra.mxu0 0.0
        %5859 = vmatprep.subr.mxu0 0.0
        %5860 = vmatpush1.xpose.msra.mxu0 0.0
        %5861 = vmatprep.subr.mxu0 0.0
        %5862 = vmatpush1.xpose.msra.mxu0 0.0
        %5863 = vmatprep.subr.mxu0 0.0
        %5864 = vmatpush1.xpose.msra.mxu0 0.0
        %5865 = vmatprep.subr.mxu0 0.0
        %5866 = vmatpush1.xpose.msra.mxu0 0.0
        %5867 = vmatprep.subr.mxu0 0.0
        %5868 = vmatpush1.xpose.msra.mxu0 0.0
        %5869 = vmatprep.subr.mxu0 0.0
        %5870 = vmatpush1.xpose.msra.mxu0 0.0
        %5871 = vmatprep.subr.mxu0 0.0
        %5872 = vmatpush1.xpose.msra.mxu0 0.0
        %5873 = vmatprep.subr.mxu0 0.0
        %5874 = vmatpush1.xpose.msra.mxu0 0.0
        %5875 = vmatprep.subr.mxu0 0.0
        %5876 = vmatpush1.xpose.msra.mxu0 0.0
        %5877 = vmatprep.subr.mxu0 0.0
        %5878 = vmatpush1.xpose.msra.mxu0 0.0
        %5879 = vmatprep.subr.mxu0 0.0
        %5880 = vmatpush1.xpose.msra.mxu0 0.0
        %5881 = vmatprep.subr.mxu0 0.0
        %5882 = vmatpush1.xpose.msra.mxu0 0.0
        %5883 = vmatprep.subr.mxu0 0.0
        %5884 = vmatpush1.xpose.msra.mxu0 0.0
        %5885 = vmatprep.subr.mxu0 0.0
        %5886 = vmatpush1.xpose.msra.mxu0 0.0
        %5887 = vmatprep.subr.mxu0 0.0
        %5888 = vmatpush1.xpose.msra.mxu0 0.0
        %5889 = vmatprep.subr.mxu0 0.0
        %5890 = vmatpush1.xpose.msra.mxu0 0.0
        %5891 = vmatprep.subr.mxu0 0.0
        %5892 = vmatpush1.xpose.msra.mxu0 0.0
        %5893 = vmatprep.subr.mxu0 0.0
        %5894 = vmatpush1.xpose.msra.mxu0 0.0
        %5895 = vmatprep.subr.mxu0 0.0
        %5896 = vmatpush1.xpose.msra.mxu0 0.0
        %5897 = vmatprep.subr.mxu0 0.0
        %5898 = vmatpush1.xpose.msra.mxu0 0.0
        %5899 = vmatprep.subr.mxu0 0.0
        %5900 = vmatpush1.xpose.msra.mxu0 0.0
        %5901 = vmatprep.subr.mxu0 0.0
        %5902 = vmatpush1.xpose.msra.mxu0 0.0
        %5903 = vmatprep.subr.mxu0 0.0
        %5904 = vmatpush1.xpose.msra.mxu0 0.0
        %5905 = vmatprep.subr.mxu0 0.0
        %5906 = vmatpush1.xpose.msra.mxu0 0.0
        %5907 = vmatprep.subr.mxu0 0.0
        %5908 = vmatpush1.xpose.msra.mxu0 0.0
        %5909 = vmatprep.subr.mxu0 0.0
        %5910 = vmatpush1.xpose.msra.mxu0 0.0
        %5911 = vmatprep.subr.mxu0 0.0
        %5912 = vmatpush1.xpose.msra.mxu0 0.0
        %5913 = vmatprep.subr.mxu0 0.0
        %5914 = vmatpush1.xpose.msra.mxu0 0.0
        %5915 = vmatprep.mubr.f32.mxu0 0.0
        %v5916 = vand.u32 %v5692, 4294901760
        %v5917 = vsub.f32 %v5692, %v5916
        %5918 = vmatmul.mubr.f32.gmra.mrb[0].mxu0 %v5917
        %v5919 = vpop.f32.mrb[0].mxu0
        %v5920 = vadd.f32 %v5846, %v5919
        %v5921 = vpop.f32.mrb[0].mxu0
        %5922 = vdwg.mxu0
        %5923 = vmatprep.subr.mxu0 0.0
        %v5924 = vand.u32 %v5695, 4294901760
        %5925 = vmatpush1.xpose.msra.mxu0 %v5924
        %5926 = vmatprep.subr.mxu0 0.0
        %5927 = vmatpush1.xpose.msra.mxu0 0.0
        %5928 = vmatprep.subr.mxu0 0.0
        %5929 = vmatpush1.xpose.msra.mxu0 0.0
        %5930 = vmatprep.subr.mxu0 0.0
        %5931 = vmatpush1.xpose.msra.mxu0 0.0
        %5932 = vmatprep.subr.mxu0 0.0
        %5933 = vmatpush1.xpose.msra.mxu0 0.0
        %5934 = vmatprep.subr.mxu0 0.0
        %5935 = vmatpush1.xpose.msra.mxu0 0.0
        %5936 = vmatprep.subr.mxu0 0.0
        %5937 = vmatpush1.xpose.msra.mxu0 0.0
        %5938 = vmatprep.subr.mxu0 0.0
        %5939 = vmatpush1.xpose.msra.mxu0 0.0
        %5940 = vmatprep.subr.mxu0 0.0
        %5941 = vmatpush1.xpose.msra.mxu0 0.0
        %5942 = vmatprep.subr.mxu0 0.0
        %5943 = vmatpush1.xpose.msra.mxu0 0.0
        %5944 = vmatprep.subr.mxu0 0.0
        %5945 = vmatpush1.xpose.msra.mxu0 0.0
        %5946 = vmatprep.subr.mxu0 0.0
        %5947 = vmatpush1.xpose.msra.mxu0 0.0
        %5948 = vmatprep.subr.mxu0 0.0
        %5949 = vmatpush1.xpose.msra.mxu0 0.0
        %5950 = vmatprep.subr.mxu0 0.0
        %5951 = vmatpush1.xpose.msra.mxu0 0.0
        %5952 = vmatprep.subr.mxu0 0.0
        %5953 = vmatpush1.xpose.msra.mxu0 0.0
        %5954 = vmatprep.subr.mxu0 0.0
        %5955 = vmatpush1.xpose.msra.mxu0 0.0
        %5956 = vmatprep.subr.mxu0 0.0
        %5957 = vmatpush1.xpose.msra.mxu0 0.0
        %5958 = vmatprep.subr.mxu0 0.0
        %5959 = vmatpush1.xpose.msra.mxu0 0.0
        %5960 = vmatprep.subr.mxu0 0.0
        %5961 = vmatpush1.xpose.msra.mxu0 0.0
        %5962 = vmatprep.subr.mxu0 0.0
        %5963 = vmatpush1.xpose.msra.mxu0 0.0
        %5964 = vmatprep.subr.mxu0 0.0
        %5965 = vmatpush1.xpose.msra.mxu0 0.0
        %5966 = vmatprep.subr.mxu0 0.0
        %5967 = vmatpush1.xpose.msra.mxu0 0.0
        %5968 = vmatprep.subr.mxu0 0.0
        %5969 = vmatpush1.xpose.msra.mxu0 0.0
        %5970 = vmatprep.subr.mxu0 0.0
        %5971 = vmatpush1.xpose.msra.mxu0 0.0
        %5972 = vmatprep.subr.mxu0 0.0
        %5973 = vmatpush1.xpose.msra.mxu0 0.0
        %5974 = vmatprep.subr.mxu0 0.0
        %5975 = vmatpush1.xpose.msra.mxu0 0.0
        %5976 = vmatprep.subr.mxu0 0.0
        %5977 = vmatpush1.xpose.msra.mxu0 0.0
        %5978 = vmatprep.subr.mxu0 0.0
        %5979 = vmatpush1.xpose.msra.mxu0 0.0
        %5980 = vmatprep.subr.mxu0 0.0
        %5981 = vmatpush1.xpose.msra.mxu0 0.0
        %5982 = vmatprep.subr.mxu0 0.0
        %5983 = vmatpush1.xpose.msra.mxu0 0.0
        %5984 = vmatprep.subr.mxu0 0.0
        %5985 = vmatpush1.xpose.msra.mxu0 0.0
        %5986 = vmatprep.subr.mxu0 0.0
        %5987 = vmatpush1.xpose.msra.mxu0 0.0
        %5988 = vmatprep.mubr.f32.mxu0 0.0
        %v5989 = vand.u32 %v5692, 4294901760
        %v5990 = vsub.f32 %v5692, %v5989
        %v5991 = vand.u32 %v5990, 4294901760
        %5992 = vmatmul.mubr.f32.gmra.mrb[0].mxu0 %v5991
        %v5993 = vpop.f32.mrb[0].mxu0
        %v5994 = vadd.f32 %v5920, %v5993
        %v5995 = vpop.f32.mrb[0].mxu0
        %5996 = vdwg.mxu0
        %5997 = vmatprep.subr.mxu0 0.0
        %v5998 = vand.u32 %v5695, 4294901760
        %v5999 = vsub.f32 %v5695, %v5998
        %v6000 = vand.u32 %v5999, 4294901760
        %6001 = vmatpush1.xpose.msra.mxu0 %v6000
        %6002 = vmatprep.subr.mxu0 0.0
        %6003 = vmatpush1.xpose.msra.mxu0 0.0
        %6004 = vmatprep.subr.mxu0 0.0
        %6005 = vmatpush1.xpose.msra.mxu0 0.0
        %6006 = vmatprep.subr.mxu0 0.0
        %6007 = vmatpush1.xpose.msra.mxu0 0.0
        %6008 = vmatprep.subr.mxu0 0.0
        %6009 = vmatpush1.xpose.msra.mxu0 0.0
        %6010 = vmatprep.subr.mxu0 0.0
        %6011 = vmatpush1.xpose.msra.mxu0 0.0
        %6012 = vmatprep.subr.mxu0 0.0
        %6013 = vmatpush1.xpose.msra.mxu0 0.0
        %6014 = vmatprep.subr.mxu0 0.0
        %6015 = vmatpush1.xpose.msra.mxu0 0.0
        %6016 = vmatprep.subr.mxu0 0.0
        %6017 = vmatpush1.xpose.msra.mxu0 0.0
        %6018 = vmatprep.subr.mxu0 0.0
        %6019 = vmatpush1.xpose.msra.mxu0 0.0
        %6020 = vmatprep.subr.mxu0 0.0
        %6021 = vmatpush1.xpose.msra.mxu0 0.0
        %6022 = vmatprep.subr.mxu0 0.0
        %6023 = vmatpush1.xpose.msra.mxu0 0.0
        %6024 = vmatprep.subr.mxu0 0.0
        %6025 = vmatpush1.xpose.msra.mxu0 0.0
        %6026 = vmatprep.subr.mxu0 0.0
        %6027 = vmatpush1.xpose.msra.mxu0 0.0
        %6028 = vmatprep.subr.mxu0 0.0
        %6029 = vmatpush1.xpose.msra.mxu0 0.0
        %6030 = vmatprep.subr.mxu0 0.0
        %6031 = vmatpush1.xpose.msra.mxu0 0.0
        %6032 = vmatprep.subr.mxu0 0.0
        %6033 = vmatpush1.xpose.msra.mxu0 0.0
        %6034 = vmatprep.subr.mxu0 0.0
        %6035 = vmatpush1.xpose.msra.mxu0 0.0
        %6036 = vmatprep.subr.mxu0 0.0
        %6037 = vmatpush1.xpose.msra.mxu0 0.0
        %6038 = vmatprep.subr.mxu0 0.0
        %6039 = vmatpush1.xpose.msra.mxu0 0.0
        %6040 = vmatprep.subr.mxu0 0.0
        %6041 = vmatpush1.xpose.msra.mxu0 0.0
        %6042 = vmatprep.subr.mxu0 0.0
        %6043 = vmatpush1.xpose.msra.mxu0 0.0
        %6044 = vmatprep.subr.mxu0 0.0
        %6045 = vmatpush1.xpose.msra.mxu0 0.0
        %6046 = vmatprep.subr.mxu0 0.0
        %6047 = vmatpush1.xpose.msra.mxu0 0.0
        %6048 = vmatprep.subr.mxu0 0.0
        %6049 = vmatpush1.xpose.msra.mxu0 0.0
        %6050 = vmatprep.subr.mxu0 0.0
        %6051 = vmatpush1.xpose.msra.mxu0 0.0
        %6052 = vmatprep.subr.mxu0 0.0
        %6053 = vmatpush1.xpose.msra.mxu0 0.0
        %6054 = vmatprep.subr.mxu0 0.0
        %6055 = vmatpush1.xpose.msra.mxu0 0.0
        %6056 = vmatprep.subr.mxu0 0.0
        %6057 = vmatpush1.xpose.msra.mxu0 0.0
        %6058 = vmatprep.subr.mxu0 0.0
        %6059 = vmatpush1.xpose.msra.mxu0 0.0
        %6060 = vmatprep.subr.mxu0 0.0
        %6061 = vmatpush1.xpose.msra.mxu0 0.0
        %6062 = vmatprep.subr.mxu0 0.0
        %6063 = vmatpush1.xpose.msra.mxu0 0.0
        %6064 = vmatprep.mubr.f32.mxu0 0.0
        %v6065 = vand.u32 %v5692, 4294901760
        %6066 = vmatmul.mubr.f32.gmra.mrb[0].mxu0 %v6065
        %v6067 = vpop.f32.mrb[0].mxu0
        %v6068 = vadd.f32 %v5994, %v6067
        %v6069 = vpop.f32.mrb[0].mxu0
        %6070 = vdwg.mxu0
        %6071 = vmatprep.subr.mxu0 0.0
        %v6072 = vand.u32 %v5695, 4294901760
        %6073 = vmatpush1.xpose.msra.mxu0 %v6072
        %6074 = vmatprep.subr.mxu0 0.0
        %6075 = vmatpush1.xpose.msra.mxu0 0.0
        %6076 = vmatprep.subr.mxu0 0.0
        %6077 = vmatpush1.xpose.msra.mxu0 0.0
        %6078 = vmatprep.subr.mxu0 0.0
        %6079 = vmatpush1.xpose.msra.mxu0 0.0
        %6080 = vmatprep.subr.mxu0 0.0
        %6081 = vmatpush1.xpose.msra.mxu0 0.0
        %6082 = vmatprep.subr.mxu0 0.0
        %6083 = vmatpush1.xpose.msra.mxu0 0.0
        %6084 = vmatprep.subr.mxu0 0.0
        %6085 = vmatpush1.xpose.msra.mxu0 0.0
        %6086 = vmatprep.subr.mxu0 0.0
        %6087 = vmatpush1.xpose.msra.mxu0 0.0
        %6088 = vmatprep.subr.mxu0 0.0
        %6089 = vmatpush1.xpose.msra.mxu0 0.0
        %6090 = vmatprep.subr.mxu0 0.0
        %6091 = vmatpush1.xpose.msra.mxu0 0.0
        %6092 = vmatprep.subr.mxu0 0.0
        %6093 = vmatpush1.xpose.msra.mxu0 0.0
        %6094 = vmatprep.subr.mxu0 0.0
        %6095 = vmatpush1.xpose.msra.mxu0 0.0
        %6096 = vmatprep.subr.mxu0 0.0
        %6097 = vmatpush1.xpose.msra.mxu0 0.0
        %6098 = vmatprep.subr.mxu0 0.0
        %6099 = vmatpush1.xpose.msra.mxu0 0.0
        %6100 = vmatprep.subr.mxu0 0.0
        %6101 = vmatpush1.xpose.msra.mxu0 0.0
        %6102 = vmatprep.subr.mxu0 0.0
        %6103 = vmatpush1.xpose.msra.mxu0 0.0
        %6104 = vmatprep.subr.mxu0 0.0
        %6105 = vmatpush1.xpose.msra.mxu0 0.0
        %6106 = vmatprep.subr.mxu0 0.0
        %6107 = vmatpush1.xpose.msra.mxu0 0.0
        %6108 = vmatprep.subr.mxu0 0.0
        %6109 = vmatpush1.xpose.msra.mxu0 0.0
        %6110 = vmatprep.subr.mxu0 0.0
        %6111 = vmatpush1.xpose.msra.mxu0 0.0
        %6112 = vmatprep.subr.mxu0 0.0
        %6113 = vmatpush1.xpose.msra.mxu0 0.0
        %6114 = vmatprep.subr.mxu0 0.0
        %6115 = vmatpush1.xpose.msra.mxu0 0.0
        %6116 = vmatprep.subr.mxu0 0.0
        %6117 = vmatpush1.xpose.msra.mxu0 0.0
        %6118 = vmatprep.subr.mxu0 0.0
        %6119 = vmatpush1.xpose.msra.mxu0 0.0
        %6120 = vmatprep.subr.mxu0 0.0
        %6121 = vmatpush1.xpose.msra.mxu0 0.0
        %6122 = vmatprep.subr.mxu0 0.0
        %6123 = vmatpush1.xpose.msra.mxu0 0.0
        %6124 = vmatprep.subr.mxu0 0.0
        %6125 = vmatpush1.xpose.msra.mxu0 0.0
        %6126 = vmatprep.subr.mxu0 0.0
        %6127 = vmatpush1.xpose.msra.mxu0 0.0
        %6128 = vmatprep.subr.mxu0 0.0
        %6129 = vmatpush1.xpose.msra.mxu0 0.0
        %6130 = vmatprep.subr.mxu0 0.0
        %6131 = vmatpush1.xpose.msra.mxu0 0.0
        %6132 = vmatprep.subr.mxu0 0.0
        %6133 = vmatpush1.xpose.msra.mxu0 0.0
        %6134 = vmatprep.subr.mxu0 0.0
        %6135 = vmatpush1.xpose.msra.mxu0 0.0
        %6136 = vmatprep.mubr.f32.mxu0 0.0
        %v6137 = vand.u32 %v5692, 4294901760
        %6138 = vmatmul.mubr.f32.gmra.mrb[0].mxu0 %v6137
        %v6139 = vpop.f32.mrb[0].mxu0
        %v6140 = vadd.f32 %v6068, %v6139
        %v6141 = vpop.f32.mrb[0].mxu0
        %6142 = vdwg.mxu0
        %v6143 = vsel %vm2966, %v6140, -inf
        %6144 = vmax.xlane.f32.xlu0 %v6143
        %v6145 = vpop.xlane.xlu0 %6144
        %v6146 = vsub.f32 %v6140, %v6145
        %v6147 = vmul.f32 %v6146, 1.442695
        %v6148 = vpow.pop %v6147
        %v6149 = vsel %vm2966, %v6148, 0.0
        %6150 = vadd.xlane.f32.xlu0 %v6149
        %v6151 = vpop.xlane.xlu0 %6150
        %v6152 = vrcp.pop %v6151
        %v6153 = vmul.f32 %v6148, %v6152
        %v6155 = vsel %vm2966, %v6153, 0
        %6157 = vmatprep.subr.mxu0 0.0
        %v6158 = vand.u32 %v2957, 4294901760
        %6159 = vmatpush1.msra.mxu0 %v6158
        %6160 = vmatprep.subr.mxu0 0.0
        %6161 = vmatpush1.msra.mxu0 0.0
        %6162 = vmatprep.subr.mxu0 0.0
        %6163 = vmatpush1.msra.mxu0 0.0
        %6164 = vmatprep.subr.mxu0 0.0
        %6165 = vmatpush1.msra.mxu0 0.0
        %6166 = vmatprep.subr.mxu0 0.0
        %6167 = vmatpush1.msra.mxu0 0.0
        %6168 = vmatprep.subr.mxu0 0.0
        %6169 = vmatpush1.msra.mxu0 0.0
        %6170 = vmatprep.subr.mxu0 0.0
        %6171 = vmatpush1.msra.mxu0 0.0
        %6172 = vmatprep.subr.mxu0 0.0
        %6173 = vmatpush1.msra.mxu0 0.0
        %6174 = vmatprep.subr.mxu0 0.0
        %6175 = vmatpush1.msra.mxu0 0.0
        %6176 = vmatprep.subr.mxu0 0.0
        %6177 = vmatpush1.msra.mxu0 0.0
        %6178 = vmatprep.subr.mxu0 0.0
        %6179 = vmatpush1.msra.mxu0 0.0
        %6180 = vmatprep.subr.mxu0 0.0
        %6181 = vmatpush1.msra.mxu0 0.0
        %6182 = vmatprep.subr.mxu0 0.0
        %6183 = vmatpush1.msra.mxu0 0.0
        %6184 = vmatprep.subr.mxu0 0.0
        %6185 = vmatpush1.msra.mxu0 0.0
        %6186 = vmatprep.subr.mxu0 0.0
        %6187 = vmatpush1.msra.mxu0 0.0
        %6188 = vmatprep.subr.mxu0 0.0
        %6189 = vmatpush1.msra.mxu0 0.0
        %6190 = vmatprep.subr.mxu0 0.0
        %6191 = vmatpush1.msra.mxu0 0.0
        %6192 = vmatprep.subr.mxu0 0.0
        %6193 = vmatpush1.msra.mxu0 0.0
        %6194 = vmatprep.subr.mxu0 0.0
        %6195 = vmatpush1.msra.mxu0 0.0
        %6196 = vmatprep.subr.mxu0 0.0
        %6197 = vmatpush1.msra.mxu0 0.0
        %6198 = vmatprep.subr.mxu0 0.0
        %6199 = vmatpush1.msra.mxu0 0.0
        %6200 = vmatprep.subr.mxu0 0.0
        %6201 = vmatpush1.msra.mxu0 0.0
        %6202 = vmatprep.subr.mxu0 0.0
        %6203 = vmatpush1.msra.mxu0 0.0
        %6204 = vmatprep.subr.mxu0 0.0
        %6205 = vmatpush1.msra.mxu0 0.0
        %6206 = vmatprep.subr.mxu0 0.0
        %6207 = vmatpush1.msra.mxu0 0.0
        %6208 = vmatprep.subr.mxu0 0.0
        %6209 = vmatpush1.msra.mxu0 0.0
        %6210 = vmatprep.subr.mxu0 0.0
        %6211 = vmatpush1.msra.mxu0 0.0
        %6212 = vmatprep.subr.mxu0 0.0
        %6213 = vmatpush1.msra.mxu0 0.0
        %6214 = vmatprep.subr.mxu0 0.0
        %6215 = vmatpush1.msra.mxu0 0.0
        %6216 = vmatprep.subr.mxu0 0.0
        %6217 = vmatpush1.msra.mxu0 0.0
        %6218 = vmatprep.subr.mxu0 0.0
        %6219 = vmatpush1.msra.mxu0 0.0
        %6220 = vmatprep.subr.mxu0 0.0
        %6221 = vmatpush1.msra.mxu0 0.0
        %6222 = vmatprep.mubr.f32.mxu0 0.0
        %v6223 = vand.u32 %v6155, 4294901760
        %v6224 = vsub.f32 %v6155, %v6223
        %v6225 = vand.u32 %v6224, 4294901760
        %v6226 = vsub.f32 %v6224, %v6225
        %v6227 = vand.u32 %v6226, 4294901760
        %6228 = vmatmul.mubr.f32.gmra.mrb[0].mxu0 %v6227
        %v6229 = vpop.f32.mrb[0].mxu0
        %v6230 = vadd.f32 0.0, %v6229
        %v6231 = vpop.f32.mrb[0].mxu0
        %6232 = vdwg.mxu0
        %6233 = vmatprep.subr.mxu0 0.0
        %v6234 = vand.u32 %v2957, 4294901760
        %v6235 = vsub.f32 %v2957, %v6234
        %v6236 = vand.u32 %v6235, 4294901760
        %v6237 = vsub.f32 %v6235, %v6236
        %v6238 = vand.u32 %v6237, 4294901760
        %6239 = vmatpush1.msra.mxu0 %v6238
        %6240 = vmatprep.subr.mxu0 0.0
        %6241 = vmatpush1.msra.mxu0 0.0
        %6242 = vmatprep.subr.mxu0 0.0
        %6243 = vmatpush1.msra.mxu0 0.0
        %6244 = vmatprep.subr.mxu0 0.0
        %6245 = vmatpush1.msra.mxu0 0.0
        %6246 = vmatprep.subr.mxu0 0.0
        %6247 = vmatpush1.msra.mxu0 0.0
        %6248 = vmatprep.subr.mxu0 0.0
        %6249 = vmatpush1.msra.mxu0 0.0
        %6250 = vmatprep.subr.mxu0 0.0
        %6251 = vmatpush1.msra.mxu0 0.0
        %6252 = vmatprep.subr.mxu0 0.0
        %6253 = vmatpush1.msra.mxu0 0.0
        %6254 = vmatprep.subr.mxu0 0.0
        %6255 = vmatpush1.msra.mxu0 0.0
        %6256 = vmatprep.subr.mxu0 0.0
        %6257 = vmatpush1.msra.mxu0 0.0
        %6258 = vmatprep.subr.mxu0 0.0
        %6259 = vmatpush1.msra.mxu0 0.0
        %6260 = vmatprep.subr.mxu0 0.0
        %6261 = vmatpush1.msra.mxu0 0.0
        %6262 = vmatprep.subr.mxu0 0.0
        %6263 = vmatpush1.msra.mxu0 0.0
        %6264 = vmatprep.subr.mxu0 0.0
        %6265 = vmatpush1.msra.mxu0 0.0
        %6266 = vmatprep.subr.mxu0 0.0
        %6267 = vmatpush1.msra.mxu0 0.0
        %6268 = vmatprep.subr.mxu0 0.0
        %6269 = vmatpush1.msra.mxu0 0.0
        %6270 = vmatprep.subr.mxu0 0.0
        %6271 = vmatpush1.msra.mxu0 0.0
        %6272 = vmatprep.subr.mxu0 0.0
        %6273 = vmatpush1.msra.mxu0 0.0
        %6274 = vmatprep.subr.mxu0 0.0
        %6275 = vmatpush1.msra.mxu0 0.0
        %6276 = vmatprep.subr.mxu0 0.0
        %6277 = vmatpush1.msra.mxu0 0.0
        %6278 = vmatprep.subr.mxu0 0.0
        %6279 = vmatpush1.msra.mxu0 0.0
        %6280 = vmatprep.subr.mxu0 0.0
        %6281 = vmatpush1.msra.mxu0 0.0
        %6282 = vmatprep.subr.mxu0 0.0
        %6283 = vmatpush1.msra.mxu0 0.0
        %6284 = vmatprep.subr.mxu0 0.0
        %6285 = vmatpush1.msra.mxu0 0.0
        %6286 = vmatprep.subr.mxu0 0.0
        %6287 = vmatpush1.msra.mxu0 0.0
        %6288 = vmatprep.subr.mxu0 0.0
        %6289 = vmatpush1.msra.mxu0 0.0
        %6290 = vmatprep.subr.mxu0 0.0
        %6291 = vmatpush1.msra.mxu0 0.0
        %6292 = vmatprep.subr.mxu0 0.0
        %6293 = vmatpush1.msra.mxu0 0.0
        %6294 = vmatprep.subr.mxu0 0.0
        %6295 = vmatpush1.msra.mxu0 0.0
        %6296 = vmatprep.subr.mxu0 0.0
        %6297 = vmatpush1.msra.mxu0 0.0
        %6298 = vmatprep.subr.mxu0 0.0
        %6299 = vmatpush1.msra.mxu0 0.0
        %6300 = vmatprep.subr.mxu0 0.0
        %6301 = vmatpush1.msra.mxu0 0.0
        %6302 = vmatprep.mubr.f32.mxu0 0.0
        %v6303 = vand.u32 %v6155, 4294901760
        %6304 = vmatmul.mubr.f32.gmra.mrb[0].mxu0 %v6303
        %v6305 = vpop.f32.mrb[0].mxu0
        %v6306 = vadd.f32 %v6230, %v6305
        %v6307 = vpop.f32.mrb[0].mxu0
        %6308 = vdwg.mxu0
        %6309 = vmatprep.subr.mxu0 0.0
        %v6310 = vand.u32 %v2957, 4294901760
        %v6311 = vsub.f32 %v2957, %v6310
        %6312 = vmatpush1.msra.mxu0 %v6311
        %6313 = vmatprep.subr.mxu0 0.0
        %6314 = vmatpush1.msra.mxu0 0.0
        %6315 = vmatprep.subr.mxu0 0.0
        %6316 = vmatpush1.msra.mxu0 0.0
        %6317 = vmatprep.subr.mxu0 0.0
        %6318 = vmatpush1.msra.mxu0 0.0
        %6319 = vmatprep.subr.mxu0 0.0
        %6320 = vmatpush1.msra.mxu0 0.0
        %6321 = vmatprep.subr.mxu0 0.0
        %6322 = vmatpush1.msra.mxu0 0.0
        %6323 = vmatprep.subr.mxu0 0.0
        %6324 = vmatpush1.msra.mxu0 0.0
        %6325 = vmatprep.subr.mxu0 0.0
        %6326 = vmatpush1.msra.mxu0 0.0
        %6327 = vmatprep.subr.mxu0 0.0
        %6328 = vmatpush1.msra.mxu0 0.0
        %6329 = vmatprep.subr.mxu0 0.0
        %6330 = vmatpush1.msra.mxu0 0.0
        %6331 = vmatprep.subr.mxu0 0.0
        %6332 = vmatpush1.msra.mxu0 0.0
        %6333 = vmatprep.subr.mxu0 0.0
        %6334 = vmatpush1.msra.mxu0 0.0
        %6335 = vmatprep.subr.mxu0 0.0
        %6336 = vmatpush1.msra.mxu0 0.0
        %6337 = vmatprep.subr.mxu0 0.0
        %6338 = vmatpush1.msra.mxu0 0.0
        %6339 = vmatprep.subr.mxu0 0.0
        %6340 = vmatpush1.msra.mxu0 0.0
        %6341 = vmatprep.subr.mxu0 0.0
        %6342 = vmatpush1.msra.mxu0 0.0
        %6343 = vmatprep.subr.mxu0 0.0
        %6344 = vmatpush1.msra.mxu0 0.0
        %6345 = vmatprep.subr.mxu0 0.0
        %6346 = vmatpush1.msra.mxu0 0.0
        %6347 = vmatprep.subr.mxu0 0.0
        %6348 = vmatpush1.msra.mxu0 0.0
        %6349 = vmatprep.subr.mxu0 0.0
        %6350 = vmatpush1.msra.mxu0 0.0
        %6351 = vmatprep.subr.mxu0 0.0
        %6352 = vmatpush1.msra.mxu0 0.0
        %6353 = vmatprep.subr.mxu0 0.0
        %6354 = vmatpush1.msra.mxu0 0.0
        %6355 = vmatprep.subr.mxu0 0.0
        %6356 = vmatpush1.msra.mxu0 0.0
        %6357 = vmatprep.subr.mxu0 0.0
        %6358 = vmatpush1.msra.mxu0 0.0
        %6359 = vmatprep.subr.mxu0 0.0
        %6360 = vmatpush1.msra.mxu0 0.0
        %6361 = vmatprep.subr.mxu0 0.0
        %6362 = vmatpush1.msra.mxu0 0.0
        %6363 = vmatprep.subr.mxu0 0.0
        %6364 = vmatpush1.msra.mxu0 0.0
        %6365 = vmatprep.subr.mxu0 0.0
        %6366 = vmatpush1.msra.mxu0 0.0
        %6367 = vmatprep.subr.mxu0 0.0
        %6368 = vmatpush1.msra.mxu0 0.0
        %6369 = vmatprep.subr.mxu0 0.0
        %6370 = vmatpush1.msra.mxu0 0.0
        %6371 = vmatprep.subr.mxu0 0.0
        %6372 = vmatpush1.msra.mxu0 0.0
        %6373 = vmatprep.subr.mxu0 0.0
        %6374 = vmatpush1.msra.mxu0 0.0
        %6375 = vmatprep.mubr.f32.mxu0 0.0
        %v6376 = vand.u32 %v6155, 4294901760
        %v6377 = vsub.f32 %v6155, %v6376
        %6378 = vmatmul.mubr.f32.gmra.mrb[0].mxu0 %v6377
        %v6379 = vpop.f32.mrb[0].mxu0
        %v6380 = vadd.f32 %v6306, %v6379
        %v6381 = vpop.f32.mrb[0].mxu0
        %6382 = vdwg.mxu0
        %6383 = vmatprep.subr.mxu0 0.0
        %v6384 = vand.u32 %v2957, 4294901760
        %6385 = vmatpush1.msra.mxu0 %v6384
        %6386 = vmatprep.subr.mxu0 0.0
        %6387 = vmatpush1.msra.mxu0 0.0
        %6388 = vmatprep.subr.mxu0 0.0
        %6389 = vmatpush1.msra.mxu0 0.0
        %6390 = vmatprep.subr.mxu0 0.0
        %6391 = vmatpush1.msra.mxu0 0.0
        %6392 = vmatprep.subr.mxu0 0.0
        %6393 = vmatpush1.msra.mxu0 0.0
        %6394 = vmatprep.subr.mxu0 0.0
        %6395 = vmatpush1.msra.mxu0 0.0
        %6396 = vmatprep.subr.mxu0 0.0
        %6397 = vmatpush1.msra.mxu0 0.0
        %6398 = vmatprep.subr.mxu0 0.0
        %6399 = vmatpush1.msra.mxu0 0.0
        %6400 = vmatprep.subr.mxu0 0.0
        %6401 = vmatpush1.msra.mxu0 0.0
        %6402 = vmatprep.subr.mxu0 0.0
        %6403 = vmatpush1.msra.mxu0 0.0
        %6404 = vmatprep.subr.mxu0 0.0
        %6405 = vmatpush1.msra.mxu0 0.0
        %6406 = vmatprep.subr.mxu0 0.0
        %6407 = vmatpush1.msra.mxu0 0.0
        %6408 = vmatprep.subr.mxu0 0.0
        %6409 = vmatpush1.msra.mxu0 0.0
        %6410 = vmatprep.subr.mxu0 0.0
        %6411 = vmatpush1.msra.mxu0 0.0
        %6412 = vmatprep.subr.mxu0 0.0
        %6413 = vmatpush1.msra.mxu0 0.0
        %6414 = vmatprep.subr.mxu0 0.0
        %6415 = vmatpush1.msra.mxu0 0.0
        %6416 = vmatprep.subr.mxu0 0.0
        %6417 = vmatpush1.msra.mxu0 0.0
        %6418 = vmatprep.subr.mxu0 0.0
        %6419 = vmatpush1.msra.mxu0 0.0
        %6420 = vmatprep.subr.mxu0 0.0
        %6421 = vmatpush1.msra.mxu0 0.0
        %6422 = vmatprep.subr.mxu0 0.0
        %6423 = vmatpush1.msra.mxu0 0.0
        %6424 = vmatprep.subr.mxu0 0.0
        %6425 = vmatpush1.msra.mxu0 0.0
        %6426 = vmatprep.subr.mxu0 0.0
        %6427 = vmatpush1.msra.mxu0 0.0
        %6428 = vmatprep.subr.mxu0 0.0
        %6429 = vmatpush1.msra.mxu0 0.0
        %6430 = vmatprep.subr.mxu0 0.0
        %6431 = vmatpush1.msra.mxu0 0.0
        %6432 = vmatprep.subr.mxu0 0.0
        %6433 = vmatpush1.msra.mxu0 0.0
        %6434 = vmatprep.subr.mxu0 0.0
        %6435 = vmatpush1.msra.mxu0 0.0
        %6436 = vmatprep.subr.mxu0 0.0
        %6437 = vmatpush1.msra.mxu0 0.0
        %6438 = vmatprep.subr.mxu0 0.0
        %6439 = vmatpush1.msra.mxu0 0.0
        %6440 = vmatprep.subr.mxu0 0.0
        %6441 = vmatpush1.msra.mxu0 0.0
        %6442 = vmatprep.subr.mxu0 0.0
        %6443 = vmatpush1.msra.mxu0 0.0
        %6444 = vmatprep.subr.mxu0 0.0
        %6445 = vmatpush1.msra.mxu0 0.0
        %6446 = vmatprep.subr.mxu0 0.0
        %6447 = vmatpush1.msra.mxu0 0.0
        %6448 = vmatprep.mubr.f32.mxu0 0.0
        %v6449 = vand.u32 %v6155, 4294901760
        %v6450 = vsub.f32 %v6155, %v6449
        %v6451 = vand.u32 %v6450, 4294901760
        %6452 = vmatmul.mubr.f32.gmra.mrb[0].mxu0 %v6451
        %v6453 = vpop.f32.mrb[0].mxu0
        %v6454 = vadd.f32 %v6380, %v6453
        %v6455 = vpop.f32.mrb[0].mxu0
        %6456 = vdwg.mxu0
        %6457 = vmatprep.subr.mxu0 0.0
        %v6458 = vand.u32 %v2957, 4294901760
        %v6459 = vsub.f32 %v2957, %v6458
        %v6460 = vand.u32 %v6459, 4294901760
        %6461 = vmatpush1.msra.mxu0 %v6460
        %6462 = vmatprep.subr.mxu0 0.0
        %6463 = vmatpush1.msra.mxu0 0.0
        %6464 = vmatprep.subr.mxu0 0.0
        %6465 = vmatpush1.msra.mxu0 0.0
        %6466 = vmatprep.subr.mxu0 0.0
        %6467 = vmatpush1.msra.mxu0 0.0
        %6468 = vmatprep.subr.mxu0 0.0
        %6469 = vmatpush1.msra.mxu0 0.0
        %6470 = vmatprep.subr.mxu0 0.0
        %6471 = vmatpush1.msra.mxu0 0.0
        %6472 = vmatprep.subr.mxu0 0.0
        %6473 = vmatpush1.msra.mxu0 0.0
        %6474 = vmatprep.subr.mxu0 0.0
        %6475 = vmatpush1.msra.mxu0 0.0
        %6476 = vmatprep.subr.mxu0 0.0
        %6477 = vmatpush1.msra.mxu0 0.0
        %6478 = vmatprep.subr.mxu0 0.0
        %6479 = vmatpush1.msra.mxu0 0.0
        %6480 = vmatprep.subr.mxu0 0.0
        %6481 = vmatpush1.msra.mxu0 0.0
        %6482 = vmatprep.subr.mxu0 0.0
        %6483 = vmatpush1.msra.mxu0 0.0
        %6484 = vmatprep.subr.mxu0 0.0
        %6485 = vmatpush1.msra.mxu0 0.0
        %6486 = vmatprep.subr.mxu0 0.0
        %6487 = vmatpush1.msra.mxu0 0.0
        %6488 = vmatprep.subr.mxu0 0.0
        %6489 = vmatpush1.msra.mxu0 0.0
        %6490 = vmatprep.subr.mxu0 0.0
        %6491 = vmatpush1.msra.mxu0 0.0
        %6492 = vmatprep.subr.mxu0 0.0
        %6493 = vmatpush1.msra.mxu0 0.0
        %6494 = vmatprep.subr.mxu0 0.0
        %6495 = vmatpush1.msra.mxu0 0.0
        %6496 = vmatprep.subr.mxu0 0.0
        %6497 = vmatpush1.msra.mxu0 0.0
        %6498 = vmatprep.subr.mxu0 0.0
        %6499 = vmatpush1.msra.mxu0 0.0
        %6500 = vmatprep.subr.mxu0 0.0
        %6501 = vmatpush1.msra.mxu0 0.0
        %6502 = vmatprep.subr.mxu0 0.0
        %6503 = vmatpush1.msra.mxu0 0.0
        %6504 = vmatprep.subr.mxu0 0.0
        %6505 = vmatpush1.msra.mxu0 0.0
        %6506 = vmatprep.subr.mxu0 0.0
        %6507 = vmatpush1.msra.mxu0 0.0
        %6508 = vmatprep.subr.mxu0 0.0
        %6509 = vmatpush1.msra.mxu0 0.0
        %6510 = vmatprep.subr.mxu0 0.0
        %6511 = vmatpush1.msra.mxu0 0.0
        %6512 = vmatprep.subr.mxu0 0.0
        %6513 = vmatpush1.msra.mxu0 0.0
        %6514 = vmatprep.subr.mxu0 0.0
        %6515 = vmatpush1.msra.mxu0 0.0
        %6516 = vmatprep.subr.mxu0 0.0
        %6517 = vmatpush1.msra.mxu0 0.0
        %6518 = vmatprep.subr.mxu0 0.0
        %6519 = vmatpush1.msra.mxu0 0.0
        %6520 = vmatprep.subr.mxu0 0.0
        %6521 = vmatpush1.msra.mxu0 0.0
        %6522 = vmatprep.subr.mxu0 0.0
        %6523 = vmatpush1.msra.mxu0 0.0
        %6524 = vmatprep.mubr.f32.mxu0 0.0
        %v6525 = vand.u32 %v6155, 4294901760
        %6526 = vmatmul.mubr.f32.gmra.mrb[0].mxu0 %v6525
        %v6527 = vpop.f32.mrb[0].mxu0
        %v6528 = vadd.f32 %v6454, %v6527
        %v6529 = vpop.f32.mrb[0].mxu0
        %6530 = vdwg.mxu0
        %6531 = vmatprep.subr.mxu0 0.0
        %v6532 = vand.u32 %v2957, 4294901760
        %6533 = vmatpush1.msra.mxu0 %v6532
        %6534 = vmatprep.subr.mxu0 0.0
        %6535 = vmatpush1.msra.mxu0 0.0
        %6536 = vmatprep.subr.mxu0 0.0
        %6537 = vmatpush1.msra.mxu0 0.0
        %6538 = vmatprep.subr.mxu0 0.0
        %6539 = vmatpush1.msra.mxu0 0.0
        %6540 = vmatprep.subr.mxu0 0.0
        %6541 = vmatpush1.msra.mxu0 0.0
        %6542 = vmatprep.subr.mxu0 0.0
        %6543 = vmatpush1.msra.mxu0 0.0
        %6544 = vmatprep.subr.mxu0 0.0
        %6545 = vmatpush1.msra.mxu0 0.0
        %6546 = vmatprep.subr.mxu0 0.0
        %6547 = vmatpush1.msra.mxu0 0.0
        %6548 = vmatprep.subr.mxu0 0.0
        %6549 = vmatpush1.msra.mxu0 0.0
        %6550 = vmatprep.subr.mxu0 0.0
        %6551 = vmatpush1.msra.mxu0 0.0
        %6552 = vmatprep.subr.mxu0 0.0
        %6553 = vmatpush1.msra.mxu0 0.0
        %6554 = vmatprep.subr.mxu0 0.0
        %6555 = vmatpush1.msra.mxu0 0.0
        %6556 = vmatprep.subr.mxu0 0.0
        %6557 = vmatpush1.msra.mxu0 0.0
        %6558 = vmatprep.subr.mxu0 0.0
        %6559 = vmatpush1.msra.mxu0 0.0
        %6560 = vmatprep.subr.mxu0 0.0
        %6561 = vmatpush1.msra.mxu0 0.0
        %6562 = vmatprep.subr.mxu0 0.0
        %6563 = vmatpush1.msra.mxu0 0.0
        %6564 = vmatprep.subr.mxu0 0.0
        %6565 = vmatpush1.msra.mxu0 0.0
        %6566 = vmatprep.subr.mxu0 0.0
        %6567 = vmatpush1.msra.mxu0 0.0
        %6568 = vmatprep.subr.mxu0 0.0
        %6569 = vmatpush1.msra.mxu0 0.0
        %6570 = vmatprep.subr.mxu0 0.0
        %6571 = vmatpush1.msra.mxu0 0.0
        %6572 = vmatprep.subr.mxu0 0.0
        %6573 = vmatpush1.msra.mxu0 0.0
        %6574 = vmatprep.subr.mxu0 0.0
        %6575 = vmatpush1.msra.mxu0 0.0
        %6576 = vmatprep.subr.mxu0 0.0
        %6577 = vmatpush1.msra.mxu0 0.0
        %6578 = vmatprep.subr.mxu0 0.0
        %6579 = vmatpush1.msra.mxu0 0.0
        %6580 = vmatprep.subr.mxu0 0.0
        %6581 = vmatpush1.msra.mxu0 0.0
        %6582 = vmatprep.subr.mxu0 0.0
        %6583 = vmatpush1.msra.mxu0 0.0
        %6584 = vmatprep.subr.mxu0 0.0
        %6585 = vmatpush1.msra.mxu0 0.0
        %6586 = vmatprep.subr.mxu0 0.0
        %6587 = vmatpush1.msra.mxu0 0.0
        %6588 = vmatprep.subr.mxu0 0.0
        %6589 = vmatpush1.msra.mxu0 0.0
        %6590 = vmatprep.subr.mxu0 0.0
        %6591 = vmatpush1.msra.mxu0 0.0
        %6592 = vmatprep.subr.mxu0 0.0
        %6593 = vmatpush1.msra.mxu0 0.0
        %6594 = vmatprep.subr.mxu0 0.0
        %6595 = vmatpush1.msra.mxu0 0.0
        %6596 = vmatprep.mubr.f32.mxu0 0.0
        %v6597 = vand.u32 %v6155, 4294901760
        %6598 = vmatmul.mubr.f32.gmra.mrb[0].mxu0 %v6597
        %v6599 = vpop.f32.mrb[0].mxu0
        %v6600 = vadd.f32 %v6528, %v6599
        %v6601 = vpop.f32.mrb[0].mxu0
        %6602 = vdwg.mxu0
        %v6603 = vld [vmem:[%s8 + $0x10] sm:$0xff]
        %v6605 = vsel %vm2966, %v6600, 0
        %6607 = vmatprep.subr.mxu0 0.0
        %v6608 = vand.u32 %v6603, 4294901760
        %6609 = vmatpush1.msra.mxu0 %v6608
        %6610 = vmatprep.subr.mxu0 0.0
        %6611 = vmatpush1.msra.mxu0 0.0
        %6612 = vmatprep.subr.mxu0 0.0
        %6613 = vmatpush1.msra.mxu0 0.0
        %6614 = vmatprep.subr.mxu0 0.0
        %6615 = vmatpush1.msra.mxu0 0.0
        %6616 = vmatprep.subr.mxu0 0.0
        %6617 = vmatpush1.msra.mxu0 0.0
        %6618 = vmatprep.subr.mxu0 0.0
        %6619 = vmatpush1.msra.mxu0 0.0
        %6620 = vmatprep.subr.mxu0 0.0
        %6621 = vmatpush1.msra.mxu0 0.0
        %6622 = vmatprep.subr.mxu0 0.0
        %6623 = vmatpush1.msra.mxu0 0.0
        %6624 = vmatprep.subr.mxu0 0.0
        %6625 = vmatpush1.msra.mxu0 0.0
        %6626 = vmatprep.subr.mxu0 0.0
        %6627 = vmatpush1.msra.mxu0 0.0
        %6628 = vmatprep.subr.mxu0 0.0
        %6629 = vmatpush1.msra.mxu0 0.0
        %6630 = vmatprep.subr.mxu0 0.0
        %6631 = vmatpush1.msra.mxu0 0.0
        %6632 = vmatprep.subr.mxu0 0.0
        %6633 = vmatpush1.msra.mxu0 0.0
        %6634 = vmatprep.subr.mxu0 0.0
        %6635 = vmatpush1.msra.mxu0 0.0
        %6636 = vmatprep.subr.mxu0 0.0
        %6637 = vmatpush1.msra.mxu0 0.0
        %6638 = vmatprep.subr.mxu0 0.0
        %6639 = vmatpush1.msra.mxu0 0.0
        %6640 = vmatprep.subr.mxu0 0.0
        %6641 = vmatpush1.msra.mxu0 0.0
        %6642 = vmatprep.subr.mxu0 0.0
        %6643 = vmatpush1.msra.mxu0 0.0
        %6644 = vmatprep.subr.mxu0 0.0
        %6645 = vmatpush1.msra.mxu0 0.0
        %6646 = vmatprep.subr.mxu0 0.0
        %6647 = vmatpush1.msra.mxu0 0.0
        %6648 = vmatprep.subr.mxu0 0.0
        %6649 = vmatpush1.msra.mxu0 0.0
        %6650 = vmatprep.subr.mxu0 0.0
        %6651 = vmatpush1.msra.mxu0 0.0
        %6652 = vmatprep.subr.mxu0 0.0
        %6653 = vmatpush1.msra.mxu0 0.0
        %6654 = vmatprep.subr.mxu0 0.0
        %6655 = vmatpush1.msra.mxu0 0.0
        %6656 = vmatprep.subr.mxu0 0.0
        %6657 = vmatpush1.msra.mxu0 0.0
        %6658 = vmatprep.subr.mxu0 0.0
        %6659 = vmatpush1.msra.mxu0 0.0
        %6660 = vmatprep.subr.mxu0 0.0
        %6661 = vmatpush1.msra.mxu0 0.0
        %6662 = vmatprep.subr.mxu0 0.0
        %6663 = vmatpush1.msra.mxu0 0.0
        %6664 = vmatprep.subr.mxu0 0.0
        %6665 = vmatpush1.msra.mxu0 0.0
        %6666 = vmatprep.subr.mxu0 0.0
        %6667 = vmatpush1.msra.mxu0 0.0
        %6668 = vmatprep.subr.mxu0 0.0
        %6669 = vmatpush1.msra.mxu0 0.0
        %6670 = vmatprep.subr.mxu0 0.0
        %6671 = vmatpush1.msra.mxu0 0.0
        %6672 = vmatprep.mubr.f32.mxu0 0.0
        %v6673 = vand.u32 %v6605, 4294901760
        %v6674 = vsub.f32 %v6605, %v6673
        %v6675 = vand.u32 %v6674, 4294901760
        %v6676 = vsub.f32 %v6674, %v6675
        %v6677 = vand.u32 %v6676, 4294901760
        %6678 = vmatmul.mubr.f32.gmra.mrb[0].mxu0 %v6677
        %v6679 = vpop.f32.mrb[0].mxu0
        %v6680 = vadd.f32 0.0, %v6679
        %v6681 = vpop.f32.mrb[0].mxu0
        %6682 = vdwg.mxu0
        %6683 = vmatprep.subr.mxu0 0.0
        %v6684 = vand.u32 %v6603, 4294901760
        %v6685 = vsub.f32 %v6603, %v6684
        %v6686 = vand.u32 %v6685, 4294901760
        %v6687 = vsub.f32 %v6685, %v6686
        %v6688 = vand.u32 %v6687, 4294901760
        %6689 = vmatpush1.msra.mxu0 %v6688
        %6690 = vmatprep.subr.mxu0 0.0
        %6691 = vmatpush1.msra.mxu0 0.0
        %6692 = vmatprep.subr.mxu0 0.0
        %6693 = vmatpush1.msra.mxu0 0.0
        %6694 = vmatprep.subr.mxu0 0.0
        %6695 = vmatpush1.msra.mxu0 0.0
        %6696 = vmatprep.subr.mxu0 0.0
        %6697 = vmatpush1.msra.mxu0 0.0
        %6698 = vmatprep.subr.mxu0 0.0
        %6699 = vmatpush1.msra.mxu0 0.0
        %6700 = vmatprep.subr.mxu0 0.0
        %6701 = vmatpush1.msra.mxu0 0.0
        %6702 = vmatprep.subr.mxu0 0.0
        %6703 = vmatpush1.msra.mxu0 0.0
        %6704 = vmatprep.subr.mxu0 0.0
        %6705 = vmatpush1.msra.mxu0 0.0
        %6706 = vmatprep.subr.mxu0 0.0
        %6707 = vmatpush1.msra.mxu0 0.0
        %6708 = vmatprep.subr.mxu0 0.0
        %6709 = vmatpush1.msra.mxu0 0.0
        %6710 = vmatprep.subr.mxu0 0.0
        %6711 = vmatpush1.msra.mxu0 0.0
        %6712 = vmatprep.subr.mxu0 0.0
        %6713 = vmatpush1.msra.mxu0 0.0
        %6714 = vmatprep.subr.mxu0 0.0
        %6715 = vmatpush1.msra.mxu0 0.0
        %6716 = vmatprep.subr.mxu0 0.0
        %6717 = vmatpush1.msra.mxu0 0.0
        %6718 = vmatprep.subr.mxu0 0.0
        %6719 = vmatpush1.msra.mxu0 0.0
        %6720 = vmatprep.subr.mxu0 0.0
        %6721 = vmatpush1.msra.mxu0 0.0
        %6722 = vmatprep.subr.mxu0 0.0
        %6723 = vmatpush1.msra.mxu0 0.0
        %6724 = vmatprep.subr.mxu0 0.0
        %6725 = vmatpush1.msra.mxu0 0.0
        %6726 = vmatprep.subr.mxu0 0.0
        %6727 = vmatpush1.msra.mxu0 0.0
        %6728 = vmatprep.subr.mxu0 0.0
        %6729 = vmatpush1.msra.mxu0 0.0
        %6730 = vmatprep.subr.mxu0 0.0
        %6731 = vmatpush1.msra.mxu0 0.0
        %6732 = vmatprep.subr.mxu0 0.0
        %6733 = vmatpush1.msra.mxu0 0.0
        %6734 = vmatprep.subr.mxu0 0.0
        %6735 = vmatpush1.msra.mxu0 0.0
        %6736 = vmatprep.subr.mxu0 0.0
        %6737 = vmatpush1.msra.mxu0 0.0
        %6738 = vmatprep.subr.mxu0 0.0
        %6739 = vmatpush1.msra.mxu0 0.0
        %6740 = vmatprep.subr.mxu0 0.0
        %6741 = vmatpush1.msra.mxu0 0.0
        %6742 = vmatprep.subr.mxu0 0.0
        %6743 = vmatpush1.msra.mxu0 0.0
        %6744 = vmatprep.subr.mxu0 0.0
        %6745 = vmatpush1.msra.mxu0 0.0
        %6746 = vmatprep.subr.mxu0 0.0
        %6747 = vmatpush1.msra.mxu0 0.0
        %6748 = vmatprep.subr.mxu0 0.0
        %6749 = vmatpush1.msra.mxu0 0.0
        %6750 = vmatprep.subr.mxu0 0.0
        %6751 = vmatpush1.msra.mxu0 0.0
        %6752 = vmatprep.mubr.f32.mxu0 0.0
        %v6753 = vand.u32 %v6605, 4294901760
        %6754 = vmatmul.mubr.f32.gmra.mrb[0].mxu0 %v6753
        %v6755 = vpop.f32.mrb[0].mxu0
        %v6756 = vadd.f32 %v6680, %v6755
        %v6757 = vpop.f32.mrb[0].mxu0
        %6758 = vdwg.mxu0
        %6759 = vmatprep.subr.mxu0 0.0
        %v6760 = vand.u32 %v6603, 4294901760
        %v6761 = vsub.f32 %v6603, %v6760
        %6762 = vmatpush1.msra.mxu0 %v6761
        %6763 = vmatprep.subr.mxu0 0.0
        %6764 = vmatpush1.msra.mxu0 0.0
        %6765 = vmatprep.subr.mxu0 0.0
        %6766 = vmatpush1.msra.mxu0 0.0
        %6767 = vmatprep.subr.mxu0 0.0
        %6768 = vmatpush1.msra.mxu0 0.0
        %6769 = vmatprep.subr.mxu0 0.0
        %6770 = vmatpush1.msra.mxu0 0.0
        %6771 = vmatprep.subr.mxu0 0.0
        %6772 = vmatpush1.msra.mxu0 0.0
        %6773 = vmatprep.subr.mxu0 0.0
        %6774 = vmatpush1.msra.mxu0 0.0
        %6775 = vmatprep.subr.mxu0 0.0
        %6776 = vmatpush1.msra.mxu0 0.0
        %6777 = vmatprep.subr.mxu0 0.0
        %6778 = vmatpush1.msra.mxu0 0.0
        %6779 = vmatprep.subr.mxu0 0.0
        %6780 = vmatpush1.msra.mxu0 0.0
        %6781 = vmatprep.subr.mxu0 0.0
        %6782 = vmatpush1.msra.mxu0 0.0
        %6783 = vmatprep.subr.mxu0 0.0
        %6784 = vmatpush1.msra.mxu0 0.0
        %6785 = vmatprep.subr.mxu0 0.0
        %6786 = vmatpush1.msra.mxu0 0.0
        %6787 = vmatprep.subr.mxu0 0.0
        %6788 = vmatpush1.msra.mxu0 0.0
        %6789 = vmatprep.subr.mxu0 0.0
        %6790 = vmatpush1.msra.mxu0 0.0
        %6791 = vmatprep.subr.mxu0 0.0
        %6792 = vmatpush1.msra.mxu0 0.0
        %6793 = vmatprep.subr.mxu0 0.0
        %6794 = vmatpush1.msra.mxu0 0.0
        %6795 = vmatprep.subr.mxu0 0.0
        %6796 = vmatpush1.msra.mxu0 0.0
        %6797 = vmatprep.subr.mxu0 0.0
        %6798 = vmatpush1.msra.mxu0 0.0
        %6799 = vmatprep.subr.mxu0 0.0
        %6800 = vmatpush1.msra.mxu0 0.0
        %6801 = vmatprep.subr.mxu0 0.0
        %6802 = vmatpush1.msra.mxu0 0.0
        %6803 = vmatprep.subr.mxu0 0.0
        %6804 = vmatpush1.msra.mxu0 0.0
        %6805 = vmatprep.subr.mxu0 0.0
        %6806 = vmatpush1.msra.mxu0 0.0
        %6807 = vmatprep.subr.mxu0 0.0
        %6808 = vmatpush1.msra.mxu0 0.0
        %6809 = vmatprep.subr.mxu0 0.0
        %6810 = vmatpush1.msra.mxu0 0.0
        %6811 = vmatprep.subr.mxu0 0.0
        %6812 = vmatpush1.msra.mxu0 0.0
        %6813 = vmatprep.subr.mxu0 0.0
        %6814 = vmatpush1.msra.mxu0 0.0
        %6815 = vmatprep.subr.mxu0 0.0
        %6816 = vmatpush1.msra.mxu0 0.0
        %6817 = vmatprep.subr.mxu0 0.0
        %6818 = vmatpush1.msra.mxu0 0.0
        %6819 = vmatprep.subr.mxu0 0.0
        %6820 = vmatpush1.msra.mxu0 0.0
        %6821 = vmatprep.subr.mxu0 0.0
        %6822 = vmatpush1.msra.mxu0 0.0
        %6823 = vmatprep.subr.mxu0 0.0
        %6824 = vmatpush1.msra.mxu0 0.0
        %6825 = vmatprep.mubr.f32.mxu0 0.0
        %v6826 = vand.u32 %v6605, 4294901760
        %v6827 = vsub.f32 %v6605, %v6826
        %6828 = vmatmul.mubr.f32.gmra.mrb[0].mxu0 %v6827
        %v6829 = vpop.f32.mrb[0].mxu0
        %v6830 = vadd.f32 %v6756, %v6829
        %v6831 = vpop.f32.mrb[0].mxu0
        %6832 = vdwg.mxu0
        %6833 = vmatprep.subr.mxu0 0.0
        %v6834 = vand.u32 %v6603, 4294901760
        %6835 = vmatpush1.msra.mxu0 %v6834
        %6836 = vmatprep.subr.mxu0 0.0
        %6837 = vmatpush1.msra.mxu0 0.0
        %6838 = vmatprep.subr.mxu0 0.0
        %6839 = vmatpush1.msra.mxu0 0.0
        %6840 = vmatprep.subr.mxu0 0.0
        %6841 = vmatpush1.msra.mxu0 0.0
        %6842 = vmatprep.subr.mxu0 0.0
        %6843 = vmatpush1.msra.mxu0 0.0
        %6844 = vmatprep.subr.mxu0 0.0
        %6845 = vmatpush1.msra.mxu0 0.0
        %6846 = vmatprep.subr.mxu0 0.0
        %6847 = vmatpush1.msra.mxu0 0.0
        %6848 = vmatprep.subr.mxu0 0.0
        %6849 = vmatpush1.msra.mxu0 0.0
        %6850 = vmatprep.subr.mxu0 0.0
        %6851 = vmatpush1.msra.mxu0 0.0
        %6852 = vmatprep.subr.mxu0 0.0
        %6853 = vmatpush1.msra.mxu0 0.0
        %6854 = vmatprep.subr.mxu0 0.0
        %6855 = vmatpush1.msra.mxu0 0.0
        %6856 = vmatprep.subr.mxu0 0.0
        %6857 = vmatpush1.msra.mxu0 0.0
        %6858 = vmatprep.subr.mxu0 0.0
        %6859 = vmatpush1.msra.mxu0 0.0
        %6860 = vmatprep.subr.mxu0 0.0
        %6861 = vmatpush1.msra.mxu0 0.0
        %6862 = vmatprep.subr.mxu0 0.0
        %6863 = vmatpush1.msra.mxu0 0.0
        %6864 = vmatprep.subr.mxu0 0.0
        %6865 = vmatpush1.msra.mxu0 0.0
        %6866 = vmatprep.subr.mxu0 0.0
        %6867 = vmatpush1.msra.mxu0 0.0
        %6868 = vmatprep.subr.mxu0 0.0
        %6869 = vmatpush1.msra.mxu0 0.0
        %6870 = vmatprep.subr.mxu0 0.0
        %6871 = vmatpush1.msra.mxu0 0.0
        %6872 = vmatprep.subr.mxu0 0.0
        %6873 = vmatpush1.msra.mxu0 0.0
        %6874 = vmatprep.subr.mxu0 0.0
        %6875 = vmatpush1.msra.mxu0 0.0
        %6876 = vmatprep.subr.mxu0 0.0
        %6877 = vmatpush1.msra.mxu0 0.0
        %6878 = vmatprep.subr.mxu0 0.0
        %6879 = vmatpush1.msra.mxu0 0.0
        %6880 = vmatprep.subr.mxu0 0.0
        %6881 = vmatpush1.msra.mxu0 0.0
        %6882 = vmatprep.subr.mxu0 0.0
        %6883 = vmatpush1.msra.mxu0 0.0
        %6884 = vmatprep.subr.mxu0 0.0
        %6885 = vmatpush1.msra.mxu0 0.0
        %6886 = vmatprep.subr.mxu0 0.0
        %6887 = vmatpush1.msra.mxu0 0.0
        %6888 = vmatprep.subr.mxu0 0.0
        %6889 = vmatpush1.msra.mxu0 0.0
        %6890 = vmatprep.subr.mxu0 0.0
        %6891 = vmatpush1.msra.mxu0 0.0
        %6892 = vmatprep.subr.mxu0 0.0
        %6893 = vmatpush1.msra.mxu0 0.0
        %6894 = vmatprep.subr.mxu0 0.0
        %6895 = vmatpush1.msra.mxu0 0.0
        %6896 = vmatprep.subr.mxu0 0.0
        %6897 = vmatpush1.msra.mxu0 0.0
        %6898 = vmatprep.mubr.f32.mxu0 0.0
        %v6899 = vand.u32 %v6605, 4294901760
        %v6900 = vsub.f32 %v6605, %v6899
        %v6901 = vand.u32 %v6900, 4294901760
        %6902 = vmatmul.mubr.f32.gmra.mrb[0].mxu0 %v6901
        %v6903 = vpop.f32.mrb[0].mxu0
        %v6904 = vadd.f32 %v6830, %v6903
        %v6905 = vpop.f32.mrb[0].mxu0
        %6906 = vdwg.mxu0
        %6907 = vmatprep.subr.mxu0 0.0
        %v6908 = vand.u32 %v6603, 4294901760
        %v6909 = vsub.f32 %v6603, %v6908
        %v6910 = vand.u32 %v6909, 4294901760
        %6911 = vmatpush1.msra.mxu0 %v6910
        %6912 = vmatprep.subr.mxu0 0.0
        %6913 = vmatpush1.msra.mxu0 0.0
        %6914 = vmatprep.subr.mxu0 0.0
        %6915 = vmatpush1.msra.mxu0 0.0
        %6916 = vmatprep.subr.mxu0 0.0
        %6917 = vmatpush1.msra.mxu0 0.0
        %6918 = vmatprep.subr.mxu0 0.0
        %6919 = vmatpush1.msra.mxu0 0.0
        %6920 = vmatprep.subr.mxu0 0.0
        %6921 = vmatpush1.msra.mxu0 0.0
        %6922 = vmatprep.subr.mxu0 0.0
        %6923 = vmatpush1.msra.mxu0 0.0
        %6924 = vmatprep.subr.mxu0 0.0
        %6925 = vmatpush1.msra.mxu0 0.0
        %6926 = vmatprep.subr.mxu0 0.0
        %6927 = vmatpush1.msra.mxu0 0.0
        %6928 = vmatprep.subr.mxu0 0.0
        %6929 = vmatpush1.msra.mxu0 0.0
        %6930 = vmatprep.subr.mxu0 0.0
        %6931 = vmatpush1.msra.mxu0 0.0
        %6932 = vmatprep.subr.mxu0 0.0
        %6933 = vmatpush1.msra.mxu0 0.0
        %6934 = vmatprep.subr.mxu0 0.0
        %6935 = vmatpush1.msra.mxu0 0.0
        %6936 = vmatprep.subr.mxu0 0.0
        %6937 = vmatpush1.msra.mxu0 0.0
        %6938 = vmatprep.subr.mxu0 0.0
        %6939 = vmatpush1.msra.mxu0 0.0
        %6940 = vmatprep.subr.mxu0 0.0
        %6941 = vmatpush1.msra.mxu0 0.0
        %6942 = vmatprep.subr.mxu0 0.0
        %6943 = vmatpush1.msra.mxu0 0.0
        %6944 = vmatprep.subr.mxu0 0.0
        %6945 = vmatpush1.msra.mxu0 0.0
        %6946 = vmatprep.subr.mxu0 0.0
        %6947 = vmatpush1.msra.mxu0 0.0
        %6948 = vmatprep.subr.mxu0 0.0
        %6949 = vmatpush1.msra.mxu0 0.0
        %6950 = vmatprep.subr.mxu0 0.0
        %6951 = vmatpush1.msra.mxu0 0.0
        %6952 = vmatprep.subr.mxu0 0.0
        %6953 = vmatpush1.msra.mxu0 0.0
        %6954 = vmatprep.subr.mxu0 0.0
        %6955 = vmatpush1.msra.mxu0 0.0
        %6956 = vmatprep.subr.mxu0 0.0
        %6957 = vmatpush1.msra.mxu0 0.0
        %6958 = vmatprep.subr.mxu0 0.0
        %6959 = vmatpush1.msra.mxu0 0.0
        %6960 = vmatprep.subr.mxu0 0.0
        %6961 = vmatpush1.msra.mxu0 0.0
        %6962 = vmatprep.subr.mxu0 0.0
        %6963 = vmatpush1.msra.mxu0 0.0
        %6964 = vmatprep.subr.mxu0 0.0
        %6965 = vmatpush1.msra.mxu0 0.0
        %6966 = vmatprep.subr.mxu0 0.0
        %6967 = vmatpush1.msra.mxu0 0.0
        %6968 = vmatprep.subr.mxu0 0.0
        %6969 = vmatpush1.msra.mxu0 0.0
        %6970 = vmatprep.subr.mxu0 0.0
        %6971 = vmatpush1.msra.mxu0 0.0
        %6972 = vmatprep.subr.mxu0 0.0
        %6973 = vmatpush1.msra.mxu0 0.0
        %6974 = vmatprep.mubr.f32.mxu0 0.0
        %v6975 = vand.u32 %v6605, 4294901760
        %6976 = vmatmul.mubr.f32.gmra.mrb[0].mxu0 %v6975
        %v6977 = vpop.f32.mrb[0].mxu0
        %v6978 = vadd.f32 %v6904, %v6977
        %v6979 = vpop.f32.mrb[0].mxu0
        %6980 = vdwg.mxu0
        %6981 = vmatprep.subr.mxu0 0.0
        %v6982 = vand.u32 %v6603, 4294901760
        %6983 = vmatpush1.msra.mxu0 %v6982
        %6984 = vmatprep.subr.mxu0 0.0
        %6985 = vmatpush1.msra.mxu0 0.0
        %6986 = vmatprep.subr.mxu0 0.0
        %6987 = vmatpush1.msra.mxu0 0.0
        %6988 = vmatprep.subr.mxu0 0.0
        %6989 = vmatpush1.msra.mxu0 0.0
        %6990 = vmatprep.subr.mxu0 0.0
        %6991 = vmatpush1.msra.mxu0 0.0
        %6992 = vmatprep.subr.mxu0 0.0
        %6993 = vmatpush1.msra.mxu0 0.0
        %6994 = vmatprep.subr.mxu0 0.0
        %6995 = vmatpush1.msra.mxu0 0.0
        %6996 = vmatprep.subr.mxu0 0.0
        %6997 = vmatpush1.msra.mxu0 0.0
        %6998 = vmatprep.subr.mxu0 0.0
        %6999 = vmatpush1.msra.mxu0 0.0
        %7000 = vmatprep.subr.mxu0 0.0
        %7001 = vmatpush1.msra.mxu0 0.0
        %7002 = vmatprep.subr.mxu0 0.0
        %7003 = vmatpush1.msra.mxu0 0.0
        %7004 = vmatprep.subr.mxu0 0.0
        %7005 = vmatpush1.msra.mxu0 0.0
        %7006 = vmatprep.subr.mxu0 0.0
        %7007 = vmatpush1.msra.mxu0 0.0
        %7008 = vmatprep.subr.mxu0 0.0
        %7009 = vmatpush1.msra.mxu0 0.0
        %7010 = vmatprep.subr.mxu0 0.0
        %7011 = vmatpush1.msra.mxu0 0.0
        %7012 = vmatprep.subr.mxu0 0.0
        %7013 = vmatpush1.msra.mxu0 0.0
        %7014 = vmatprep.subr.mxu0 0.0
        %7015 = vmatpush1.msra.mxu0 0.0
        %7016 = vmatprep.subr.mxu0 0.0
        %7017 = vmatpush1.msra.mxu0 0.0
        %7018 = vmatprep.subr.mxu0 0.0
        %7019 = vmatpush1.msra.mxu0 0.0
        %7020 = vmatprep.subr.mxu0 0.0
        %7021 = vmatpush1.msra.mxu0 0.0
        %7022 = vmatprep.subr.mxu0 0.0
        %7023 = vmatpush1.msra.mxu0 0.0
        %7024 = vmatprep.subr.mxu0 0.0
        %7025 = vmatpush1.msra.mxu0 0.0
        %7026 = vmatprep.subr.mxu0 0.0
        %7027 = vmatpush1.msra.mxu0 0.0
        %7028 = vmatprep.subr.mxu0 0.0
        %7029 = vmatpush1.msra.mxu0 0.0
        %7030 = vmatprep.subr.mxu0 0.0
        %7031 = vmatpush1.msra.mxu0 0.0
        %7032 = vmatprep.subr.mxu0 0.0
        %7033 = vmatpush1.msra.mxu0 0.0
        %7034 = vmatprep.subr.mxu0 0.0
        %7035 = vmatpush1.msra.mxu0 0.0
        %7036 = vmatprep.subr.mxu0 0.0
        %7037 = vmatpush1.msra.mxu0 0.0
        %7038 = vmatprep.subr.mxu0 0.0
        %7039 = vmatpush1.msra.mxu0 0.0
        %7040 = vmatprep.subr.mxu0 0.0
        %7041 = vmatpush1.msra.mxu0 0.0
        %7042 = vmatprep.subr.mxu0 0.0
        %7043 = vmatpush1.msra.mxu0 0.0
        %7044 = vmatprep.subr.mxu0 0.0
        %7045 = vmatpush1.msra.mxu0 0.0
        %7046 = vmatprep.mubr.f32.mxu0 0.0
        %v7047 = vand.u32 %v6605, 4294901760
        %7048 = vmatmul.mubr.f32.gmra.mrb[0].mxu0 %v7047
        %v7049 = vpop.f32.mrb[0].mxu0
        %v7050 = vadd.f32 %v6978, %v7049
        %v7051 = vpop.f32.mrb[0].mxu0
        %7052 = vdwg.mxu0
        %v7053 = vadd.f32 %v5688, %v7050
        %v7055 = vsel %vm2966, %v1383, 0
        %v7058 = vsel %vm2966, %v2173, 0
        %7060 = vmatprep.subr.mxu0 0.0
        %v7061 = vand.u32 %v7058, 4294901760
        %7062 = vmatpush1.xpose.msra.mxu0 %v7061
        %7063 = vmatprep.subr.mxu0 0.0
        %7064 = vmatpush1.xpose.msra.mxu0 0.0
        %7065 = vmatprep.subr.mxu0 0.0
        %7066 = vmatpush1.xpose.msra.mxu0 0.0
        %7067 = vmatprep.subr.mxu0 0.0
        %7068 = vmatpush1.xpose.msra.mxu0 0.0
        %7069 = vmatprep.subr.mxu0 0.0
        %7070 = vmatpush1.xpose.msra.mxu0 0.0
        %7071 = vmatprep.subr.mxu0 0.0
        %7072 = vmatpush1.xpose.msra.mxu0 0.0
        %7073 = vmatprep.subr.mxu0 0.0
        %7074 = vmatpush1.xpose.msra.mxu0 0.0
        %7075 = vmatprep.subr.mxu0 0.0
        %7076 = vmatpush1.xpose.msra.mxu0 0.0
        %7077 = vmatprep.subr.mxu0 0.0
        %7078 = vmatpush1.xpose.msra.mxu0 0.0
        %7079 = vmatprep.subr.mxu0 0.0
        %7080 = vmatpush1.xpose.msra.mxu0 0.0
        %7081 = vmatprep.subr.mxu0 0.0
        %7082 = vmatpush1.xpose.msra.mxu0 0.0
        %7083 = vmatprep.subr.mxu0 0.0
        %7084 = vmatpush1.xpose.msra.mxu0 0.0
        %7085 = vmatprep.subr.mxu0 0.0
        %7086 = vmatpush1.xpose.msra.mxu0 0.0
        %7087 = vmatprep.subr.mxu0 0.0
        %7088 = vmatpush1.xpose.msra.mxu0 0.0
        %7089 = vmatprep.subr.mxu0 0.0
        %7090 = vmatpush1.xpose.msra.mxu0 0.0
        %7091 = vmatprep.subr.mxu0 0.0
        %7092 = vmatpush1.xpose.msra.mxu0 0.0
        %7093 = vmatprep.subr.mxu0 0.0
        %7094 = vmatpush1.xpose.msra.mxu0 0.0
        %7095 = vmatprep.subr.mxu0 0.0
        %7096 = vmatpush1.xpose.msra.mxu0 0.0
        %7097 = vmatprep.subr.mxu0 0.0
        %7098 = vmatpush1.xpose.msra.mxu0 0.0
        %7099 = vmatprep.subr.mxu0 0.0
        %7100 = vmatpush1.xpose.msra.mxu0 0.0
        %7101 = vmatprep.subr.mxu0 0.0
        %7102 = vmatpush1.xpose.msra.mxu0 0.0
        %7103 = vmatprep.subr.mxu0 0.0
        %7104 = vmatpush1.xpose.msra.mxu0 0.0
        %7105 = vmatprep.subr.mxu0 0.0
        %7106 = vmatpush1.xpose.msra.mxu0 0.0
        %7107 = vmatprep.subr.mxu0 0.0
        %7108 = vmatpush1.xpose.msra.mxu0 0.0
        %7109 = vmatprep.subr.mxu0 0.0
        %7110 = vmatpush1.xpose.msra.mxu0 0.0
        %7111 = vmatprep.subr.mxu0 0.0
        %7112 = vmatpush1.xpose.msra.mxu0 0.0
        %7113 = vmatprep.subr.mxu0 0.0
        %7114 = vmatpush1.xpose.msra.mxu0 0.0
        %7115 = vmatprep.subr.mxu0 0.0
        %7116 = vmatpush1.xpose.msra.mxu0 0.0
        %7117 = vmatprep.subr.mxu0 0.0
        %7118 = vmatpush1.xpose.msra.mxu0 0.0
        %7119 = vmatprep.subr.mxu0 0.0
        %7120 = vmatpush1.xpose.msra.mxu0 0.0
        %7121 = vmatprep.subr.mxu0 0.0
        %7122 = vmatpush1.xpose.msra.mxu0 0.0
        %7123 = vmatprep.subr.mxu0 0.0
        %7124 = vmatpush1.xpose.msra.mxu0 0.0
        %7125 = vmatprep.mubr.f32.mxu0 0.0
        %v7126 = vand.u32 %v7055, 4294901760
        %v7127 = vsub.f32 %v7055, %v7126
        %v7128 = vand.u32 %v7127, 4294901760
        %v7129 = vsub.f32 %v7127, %v7128
        %v7130 = vand.u32 %v7129, 4294901760
        %7131 = vmatmul.mubr.f32.gmra.mrb[0].mxu0 %v7130
        %v7132 = vpop.f32.mrb[0].mxu0
        %v7133 = vadd.f32 0.0, %v7132
        %v7134 = vpop.f32.mrb[0].mxu0
        %7135 = vdwg.mxu0
        %7136 = vmatprep.subr.mxu0 0.0
        %v7137 = vand.u32 %v7058, 4294901760
        %v7138 = vsub.f32 %v7058, %v7137
        %v7139 = vand.u32 %v7138, 4294901760
        %v7140 = vsub.f32 %v7138, %v7139
        %v7141 = vand.u32 %v7140, 4294901760
        %7142 = vmatpush1.xpose.msra.mxu0 %v7141
        %7143 = vmatprep.subr.mxu0 0.0
        %7144 = vmatpush1.xpose.msra.mxu0 0.0
        %7145 = vmatprep.subr.mxu0 0.0
        %7146 = vmatpush1.xpose.msra.mxu0 0.0
        %7147 = vmatprep.subr.mxu0 0.0
        %7148 = vmatpush1.xpose.msra.mxu0 0.0
        %7149 = vmatprep.subr.mxu0 0.0
        %7150 = vmatpush1.xpose.msra.mxu0 0.0
        %7151 = vmatprep.subr.mxu0 0.0
        %7152 = vmatpush1.xpose.msra.mxu0 0.0
        %7153 = vmatprep.subr.mxu0 0.0
        %7154 = vmatpush1.xpose.msra.mxu0 0.0
        %7155 = vmatprep.subr.mxu0 0.0
        %7156 = vmatpush1.xpose.msra.mxu0 0.0
        %7157 = vmatprep.subr.mxu0 0.0
        %7158 = vmatpush1.xpose.msra.mxu0 0.0
        %7159 = vmatprep.subr.mxu0 0.0
        %7160 = vmatpush1.xpose.msra.mxu0 0.0
        %7161 = vmatprep.subr.mxu0 0.0
        %7162 = vmatpush1.xpose.msra.mxu0 0.0
        %7163 = vmatprep.subr.mxu0 0.0
        %7164 = vmatpush1.xpose.msra.mxu0 0.0
        %7165 = vmatprep.subr.mxu0 0.0
        %7166 = vmatpush1.xpose.msra.mxu0 0.0
        %7167 = vmatprep.subr.mxu0 0.0
        %7168 = vmatpush1.xpose.msra.mxu0 0.0
        %7169 = vmatprep.subr.mxu0 0.0
        %7170 = vmatpush1.xpose.msra.mxu0 0.0
        %7171 = vmatprep.subr.mxu0 0.0
        %7172 = vmatpush1.xpose.msra.mxu0 0.0
        %7173 = vmatprep.subr.mxu0 0.0
        %7174 = vmatpush1.xpose.msra.mxu0 0.0
        %7175 = vmatprep.subr.mxu0 0.0
        %7176 = vmatpush1.xpose.msra.mxu0 0.0
        %7177 = vmatprep.subr.mxu0 0.0
        %7178 = vmatpush1.xpose.msra.mxu0 0.0
        %7179 = vmatprep.subr.mxu0 0.0
        %7180 = vmatpush1.xpose.msra.mxu0 0.0
        %7181 = vmatprep.subr.mxu0 0.0
        %7182 = vmatpush1.xpose.msra.mxu0 0.0
        %7183 = vmatprep.subr.mxu0 0.0
        %7184 = vmatpush1.xpose.msra.mxu0 0.0
        %7185 = vmatprep.subr.mxu0 0.0
        %7186 = vmatpush1.xpose.msra.mxu0 0.0
        %7187 = vmatprep.subr.mxu0 0.0
        %7188 = vmatpush1.xpose.msra.mxu0 0.0
        %7189 = vmatprep.subr.mxu0 0.0
        %7190 = vmatpush1.xpose.msra.mxu0 0.0
        %7191 = vmatprep.subr.mxu0 0.0
        %7192 = vmatpush1.xpose.msra.mxu0 0.0
        %7193 = vmatprep.subr.mxu0 0.0
        %7194 = vmatpush1.xpose.msra.mxu0 0.0
        %7195 = vmatprep.subr.mxu0 0.0
        %7196 = vmatpush1.xpose.msra.mxu0 0.0
        %7197 = vmatprep.subr.mxu0 0.0
        %7198 = vmatpush1.xpose.msra.mxu0 0.0
        %7199 = vmatprep.subr.mxu0 0.0
        %7200 = vmatpush1.xpose.msra.mxu0 0.0
        %7201 = vmatprep.subr.mxu0 0.0
        %7202 = vmatpush1.xpose.msra.mxu0 0.0
        %7203 = vmatprep.subr.mxu0 0.0
        %7204 = vmatpush1.xpose.msra.mxu0 0.0
        %7205 = vmatprep.mubr.f32.mxu0 0.0
        %v7206 = vand.u32 %v7055, 4294901760
        %7207 = vmatmul.mubr.f32.gmra.mrb[0].mxu0 %v7206
        %v7208 = vpop.f32.mrb[0].mxu0
        %v7209 = vadd.f32 %v7133, %v7208
        %v7210 = vpop.f32.mrb[0].mxu0
        %7211 = vdwg.mxu0
        %7212 = vmatprep.subr.mxu0 0.0
        %v7213 = vand.u32 %v7058, 4294901760
        %v7214 = vsub.f32 %v7058, %v7213
        %7215 = vmatpush1.xpose.msra.mxu0 %v7214
        %7216 = vmatprep.subr.mxu0 0.0
        %7217 = vmatpush1.xpose.msra.mxu0 0.0
        %7218 = vmatprep.subr.mxu0 0.0
        %7219 = vmatpush1.xpose.msra.mxu0 0.0
        %7220 = vmatprep.subr.mxu0 0.0
        %7221 = vmatpush1.xpose.msra.mxu0 0.0
        %7222 = vmatprep.subr.mxu0 0.0
        %7223 = vmatpush1.xpose.msra.mxu0 0.0
        %7224 = vmatprep.subr.mxu0 0.0
        %7225 = vmatpush1.xpose.msra.mxu0 0.0
        %7226 = vmatprep.subr.mxu0 0.0
        %7227 = vmatpush1.xpose.msra.mxu0 0.0
        %7228 = vmatprep.subr.mxu0 0.0
        %7229 = vmatpush1.xpose.msra.mxu0 0.0
        %7230 = vmatprep.subr.mxu0 0.0
        %7231 = vmatpush1.xpose.msra.mxu0 0.0
        %7232 = vmatprep.subr.mxu0 0.0
        %7233 = vmatpush1.xpose.msra.mxu0 0.0
        %7234 = vmatprep.subr.mxu0 0.0
        %7235 = vmatpush1.xpose.msra.mxu0 0.0
        %7236 = vmatprep.subr.mxu0 0.0
        %7237 = vmatpush1.xpose.msra.mxu0 0.0
        %7238 = vmatprep.subr.mxu0 0.0
        %7239 = vmatpush1.xpose.msra.mxu0 0.0
        %7240 = vmatprep.subr.mxu0 0.0
        %7241 = vmatpush1.xpose.msra.mxu0 0.0
        %7242 = vmatprep.subr.mxu0 0.0
        %7243 = vmatpush1.xpose.msra.mxu0 0.0
        %7244 = vmatprep.subr.mxu0 0.0
        %7245 = vmatpush1.xpose.msra.mxu0 0.0
        %7246 = vmatprep.subr.mxu0 0.0
        %7247 = vmatpush1.xpose.msra.mxu0 0.0
        %7248 = vmatprep.subr.mxu0 0.0
        %7249 = vmatpush1.xpose.msra.mxu0 0.0
        %7250 = vmatprep.subr.mxu0 0.0
        %7251 = vmatpush1.xpose.msra.mxu0 0.0
        %7252 = vmatprep.subr.mxu0 0.0
        %7253 = vmatpush1.xpose.msra.mxu0 0.0
        %7254 = vmatprep.subr.mxu0 0.0
        %7255 = vmatpush1.xpose.msra.mxu0 0.0
        %7256 = vmatprep.subr.mxu0 0.0
        %7257 = vmatpush1.xpose.msra.mxu0 0.0
        %7258 = vmatprep.subr.mxu0 0.0
        %7259 = vmatpush1.xpose.msra.mxu0 0.0
        %7260 = vmatprep.subr.mxu0 0.0
        %7261 = vmatpush1.xpose.msra.mxu0 0.0
        %7262 = vmatprep.subr.mxu0 0.0
        %7263 = vmatpush1.xpose.msra.mxu0 0.0
        %7264 = vmatprep.subr.mxu0 0.0
        %7265 = vmatpush1.xpose.msra.mxu0 0.0
        %7266 = vmatprep.subr.mxu0 0.0
        %7267 = vmatpush1.xpose.msra.mxu0 0.0
        %7268 = vmatprep.subr.mxu0 0.0
        %7269 = vmatpush1.xpose.msra.mxu0 0.0
        %7270 = vmatprep.subr.mxu0 0.0
        %7271 = vmatpush1.xpose.msra.mxu0 0.0
        %7272 = vmatprep.subr.mxu0 0.0
        %7273 = vmatpush1.xpose.msra.mxu0 0.0
        %7274 = vmatprep.subr.mxu0 0.0
        %7275 = vmatpush1.xpose.msra.mxu0 0.0
        %7276 = vmatprep.subr.mxu0 0.0
        %7277 = vmatpush1.xpose.msra.mxu0 0.0
        %7278 = vmatprep.mubr.f32.mxu0 0.0
        %v7279 = vand.u32 %v7055, 4294901760
        %v7280 = vsub.f32 %v7055, %v7279
        %7281 = vmatmul.mubr.f32.gmra.mrb[0].mxu0 %v7280
        %v7282 = vpop.f32.mrb[0].mxu0
        %v7283 = vadd.f32 %v7209, %v7282
        %v7284 = vpop.f32.mrb[0].mxu0
        %7285 = vdwg.mxu0
        %7286 = vmatprep.subr.mxu0 0.0
        %v7287 = vand.u32 %v7058, 4294901760
        %7288 = vmatpush1.xpose.msra.mxu0 %v7287
        %7289 = vmatprep.subr.mxu0 0.0
        %7290 = vmatpush1.xpose.msra.mxu0 0.0
        %7291 = vmatprep.subr.mxu0 0.0
        %7292 = vmatpush1.xpose.msra.mxu0 0.0
        %7293 = vmatprep.subr.mxu0 0.0
        %7294 = vmatpush1.xpose.msra.mxu0 0.0
        %7295 = vmatprep.subr.mxu0 0.0
        %7296 = vmatpush1.xpose.msra.mxu0 0.0
        %7297 = vmatprep.subr.mxu0 0.0
        %7298 = vmatpush1.xpose.msra.mxu0 0.0
        %7299 = vmatprep.subr.mxu0 0.0
        %7300 = vmatpush1.xpose.msra.mxu0 0.0
        %7301 = vmatprep.subr.mxu0 0.0
        %7302 = vmatpush1.xpose.msra.mxu0 0.0
        %7303 = vmatprep.subr.mxu0 0.0
        %7304 = vmatpush1.xpose.msra.mxu0 0.0
        %7305 = vmatprep.subr.mxu0 0.0
        %7306 = vmatpush1.xpose.msra.mxu0 0.0
        %7307 = vmatprep.subr.mxu0 0.0
        %7308 = vmatpush1.xpose.msra.mxu0 0.0
        %7309 = vmatprep.subr.mxu0 0.0
        %7310 = vmatpush1.xpose.msra.mxu0 0.0
        %7311 = vmatprep.subr.mxu0 0.0
        %7312 = vmatpush1.xpose.msra.mxu0 0.0
        %7313 = vmatprep.subr.mxu0 0.0
        %7314 = vmatpush1.xpose.msra.mxu0 0.0
        %7315 = vmatprep.subr.mxu0 0.0
        %7316 = vmatpush1.xpose.msra.mxu0 0.0
        %7317 = vmatprep.subr.mxu0 0.0
        %7318 = vmatpush1.xpose.msra.mxu0 0.0
        %7319 = vmatprep.subr.mxu0 0.0
        %7320 = vmatpush1.xpose.msra.mxu0 0.0
        %7321 = vmatprep.subr.mxu0 0.0
        %7322 = vmatpush1.xpose.msra.mxu0 0.0
        %7323 = vmatprep.subr.mxu0 0.0
        %7324 = vmatpush1.xpose.msra.mxu0 0.0
        %7325 = vmatprep.subr.mxu0 0.0
        %7326 = vmatpush1.xpose.msra.mxu0 0.0
        %7327 = vmatprep.subr.mxu0 0.0
        %7328 = vmatpush1.xpose.msra.mxu0 0.0
        %7329 = vmatprep.subr.mxu0 0.0
        %7330 = vmatpush1.xpose.msra.mxu0 0.0
        %7331 = vmatprep.subr.mxu0 0.0
        %7332 = vmatpush1.xpose.msra.mxu0 0.0
        %7333 = vmatprep.subr.mxu0 0.0
        %7334 = vmatpush1.xpose.msra.mxu0 0.0
        %7335 = vmatprep.subr.mxu0 0.0
        %7336 = vmatpush1.xpose.msra.mxu0 0.0
        %7337 = vmatprep.subr.mxu0 0.0
        %7338 = vmatpush1.xpose.msra.mxu0 0.0
        %7339 = vmatprep.subr.mxu0 0.0
        %7340 = vmatpush1.xpose.msra.mxu0 0.0
        %7341 = vmatprep.subr.mxu0 0.0
        %7342 = vmatpush1.xpose.msra.mxu0 0.0
        %7343 = vmatprep.subr.mxu0 0.0
        %7344 = vmatpush1.xpose.msra.mxu0 0.0
        %7345 = vmatprep.subr.mxu0 0.0
        %7346 = vmatpush1.xpose.msra.mxu0 0.0
        %7347 = vmatprep.subr.mxu0 0.0
        %7348 = vmatpush1.xpose.msra.mxu0 0.0
        %7349 = vmatprep.subr.mxu0 0.0
        %7350 = vmatpush1.xpose.msra.mxu0 0.0
        %7351 = vmatprep.mubr.f32.mxu0 0.0
        %v7352 = vand.u32 %v7055, 4294901760
        %v7353 = vsub.f32 %v7055, %v7352
        %v7354 = vand.u32 %v7353, 4294901760
        %7355 = vmatmul.mubr.f32.gmra.mrb[0].mxu0 %v7354
        %v7356 = vpop.f32.mrb[0].mxu0
        %v7357 = vadd.f32 %v7283, %v7356
        %v7358 = vpop.f32.mrb[0].mxu0
        %7359 = vdwg.mxu0
        %7360 = vmatprep.subr.mxu0 0.0
        %v7361 = vand.u32 %v7058, 4294901760
        %v7362 = vsub.f32 %v7058, %v7361
        %v7363 = vand.u32 %v7362, 4294901760
        %7364 = vmatpush1.xpose.msra.mxu0 %v7363
        %7365 = vmatprep.subr.mxu0 0.0
        %7366 = vmatpush1.xpose.msra.mxu0 0.0
        %7367 = vmatprep.subr.mxu0 0.0
        %7368 = vmatpush1.xpose.msra.mxu0 0.0
        %7369 = vmatprep.subr.mxu0 0.0
        %7370 = vmatpush1.xpose.msra.mxu0 0.0
        %7371 = vmatprep.subr.mxu0 0.0
        %7372 = vmatpush1.xpose.msra.mxu0 0.0
        %7373 = vmatprep.subr.mxu0 0.0
        %7374 = vmatpush1.xpose.msra.mxu0 0.0
        %7375 = vmatprep.subr.mxu0 0.0
        %7376 = vmatpush1.xpose.msra.mxu0 0.0
        %7377 = vmatprep.subr.mxu0 0.0
        %7378 = vmatpush1.xpose.msra.mxu0 0.0
        %7379 = vmatprep.subr.mxu0 0.0
        %7380 = vmatpush1.xpose.msra.mxu0 0.0
        %7381 = vmatprep.subr.mxu0 0.0
        %7382 = vmatpush1.xpose.msra.mxu0 0.0
        %7383 = vmatprep.subr.mxu0 0.0
        %7384 = vmatpush1.xpose.msra.mxu0 0.0
        %7385 = vmatprep.subr.mxu0 0.0
        %7386 = vmatpush1.xpose.msra.mxu0 0.0
        %7387 = vmatprep.subr.mxu0 0.0
        %7388 = vmatpush1.xpose.msra.mxu0 0.0
        %7389 = vmatprep.subr.mxu0 0.0
        %7390 = vmatpush1.xpose.msra.mxu0 0.0
        %7391 = vmatprep.subr.mxu0 0.0
        %7392 = vmatpush1.xpose.msra.mxu0 0.0
        %7393 = vmatprep.subr.mxu0 0.0
        %7394 = vmatpush1.xpose.msra.mxu0 0.0
        %7395 = vmatprep.subr.mxu0 0.0
        %7396 = vmatpush1.xpose.msra.mxu0 0.0
        %7397 = vmatprep.subr.mxu0 0.0
        %7398 = vmatpush1.xpose.msra.mxu0 0.0
        %7399 = vmatprep.subr.mxu0 0.0
        %7400 = vmatpush1.xpose.msra.mxu0 0.0
        %7401 = vmatprep.subr.mxu0 0.0
        %7402 = vmatpush1.xpose.msra.mxu0 0.0
        %7403 = vmatprep.subr.mxu0 0.0
        %7404 = vmatpush1.xpose.msra.mxu0 0.0
        %7405 = vmatprep.subr.mxu0 0.0
        %7406 = vmatpush1.xpose.msra.mxu0 0.0
        %7407 = vmatprep.subr.mxu0 0.0
        %7408 = vmatpush1.xpose.msra.mxu0 0.0
        %7409 = vmatprep.subr.mxu0 0.0
        %7410 = vmatpush1.xpose.msra.mxu0 0.0
        %7411 = vmatprep.subr.mxu0 0.0
        %7412 = vmatpush1.xpose.msra.mxu0 0.0
        %7413 = vmatprep.subr.mxu0 0.0
        %7414 = vmatpush1.xpose.msra.mxu0 0.0
        %7415 = vmatprep.subr.mxu0 0.0
        %7416 = vmatpush1.xpose.msra.mxu0 0.0
        %7417 = vmatprep.subr.mxu0 0.0
        %7418 = vmatpush1.xpose.msra.mxu0 0.0
        %7419 = vmatprep.subr.mxu0 0.0
        %7420 = vmatpush1.xpose.msra.mxu0 0.0
        %7421 = vmatprep.subr.mxu0 0.0
        %7422 = vmatpush1.xpose.msra.mxu0 0.0
        %7423 = vmatprep.subr.mxu0 0.0
        %7424 = vmatpush1.xpose.msra.mxu0 0.0
        %7425 = vmatprep.subr.mxu0 0.0
        %7426 = vmatpush1.xpose.msra.mxu0 0.0
        %7427 = vmatprep.mubr.f32.mxu0 0.0
        %v7428 = vand.u32 %v7055, 4294901760
        %7429 = vmatmul.mubr.f32.gmra.mrb[0].mxu0 %v7428
        %v7430 = vpop.f32.mrb[0].mxu0
        %v7431 = vadd.f32 %v7357, %v7430
        %v7432 = vpop.f32.mrb[0].mxu0
        %7433 = vdwg.mxu0
        %7434 = vmatprep.subr.mxu0 0.0
        %v7435 = vand.u32 %v7058, 4294901760
        %7436 = vmatpush1.xpose.msra.mxu0 %v7435
        %7437 = vmatprep.subr.mxu0 0.0
        %7438 = vmatpush1.xpose.msra.mxu0 0.0
        %7439 = vmatprep.subr.mxu0 0.0
        %7440 = vmatpush1.xpose.msra.mxu0 0.0
        %7441 = vmatprep.subr.mxu0 0.0
        %7442 = vmatpush1.xpose.msra.mxu0 0.0
        %7443 = vmatprep.subr.mxu0 0.0
        %7444 = vmatpush1.xpose.msra.mxu0 0.0
        %7445 = vmatprep.subr.mxu0 0.0
        %7446 = vmatpush1.xpose.msra.mxu0 0.0
        %7447 = vmatprep.subr.mxu0 0.0
        %7448 = vmatpush1.xpose.msra.mxu0 0.0
        %7449 = vmatprep.subr.mxu0 0.0
        %7450 = vmatpush1.xpose.msra.mxu0 0.0
        %7451 = vmatprep.subr.mxu0 0.0
        %7452 = vmatpush1.xpose.msra.mxu0 0.0
        %7453 = vmatprep.subr.mxu0 0.0
        %7454 = vmatpush1.xpose.msra.mxu0 0.0
        %7455 = vmatprep.subr.mxu0 0.0
        %7456 = vmatpush1.xpose.msra.mxu0 0.0
        %7457 = vmatprep.subr.mxu0 0.0
        %7458 = vmatpush1.xpose.msra.mxu0 0.0
        %7459 = vmatprep.subr.mxu0 0.0
        %7460 = vmatpush1.xpose.msra.mxu0 0.0
        %7461 = vmatprep.subr.mxu0 0.0
        %7462 = vmatpush1.xpose.msra.mxu0 0.0
        %7463 = vmatprep.subr.mxu0 0.0
        %7464 = vmatpush1.xpose.msra.mxu0 0.0
        %7465 = vmatprep.subr.mxu0 0.0
        %7466 = vmatpush1.xpose.msra.mxu0 0.0
        %7467 = vmatprep.subr.mxu0 0.0
        %7468 = vmatpush1.xpose.msra.mxu0 0.0
        %7469 = vmatprep.subr.mxu0 0.0
        %7470 = vmatpush1.xpose.msra.mxu0 0.0
        %7471 = vmatprep.subr.mxu0 0.0
        %7472 = vmatpush1.xpose.msra.mxu0 0.0
        %7473 = vmatprep.subr.mxu0 0.0
        %7474 = vmatpush1.xpose.msra.mxu0 0.0
        %7475 = vmatprep.subr.mxu0 0.0
        %7476 = vmatpush1.xpose.msra.mxu0 0.0
        %7477 = vmatprep.subr.mxu0 0.0
        %7478 = vmatpush1.xpose.msra.mxu0 0.0
        %7479 = vmatprep.subr.mxu0 0.0
        %7480 = vmatpush1.xpose.msra.mxu0 0.0
        %7481 = vmatprep.subr.mxu0 0.0
        %7482 = vmatpush1.xpose.msra.mxu0 0.0
        %7483 = vmatprep.subr.mxu0 0.0
        %7484 = vmatpush1.xpose.msra.mxu0 0.0
        %7485 = vmatprep.subr.mxu0 0.0
        %7486 = vmatpush1.xpose.msra.mxu0 0.0
        %7487 = vmatprep.subr.mxu0 0.0
        %7488 = vmatpush1.xpose.msra.mxu0 0.0
        %7489 = vmatprep.subr.mxu0 0.0
        %7490 = vmatpush1.xpose.msra.mxu0 0.0
        %7491 = vmatprep.subr.mxu0 0.0
        %7492 = vmatpush1.xpose.msra.mxu0 0.0
        %7493 = vmatprep.subr.mxu0 0.0
        %7494 = vmatpush1.xpose.msra.mxu0 0.0
        %7495 = vmatprep.subr.mxu0 0.0
        %7496 = vmatpush1.xpose.msra.mxu0 0.0
        %7497 = vmatprep.subr.mxu0 0.0
        %7498 = vmatpush1.xpose.msra.mxu0 0.0
        %7499 = vmatprep.mubr.f32.mxu0 0.0
        %v7500 = vand.u32 %v7055, 4294901760
        %7501 = vmatmul.mubr.f32.gmra.mrb[0].mxu0 %v7500
        %v7502 = vpop.f32.mrb[0].mxu0
        %v7503 = vadd.f32 %v7431, %v7502
        %v7504 = vpop.f32.mrb[0].mxu0
        %7505 = vdwg.mxu0
        %v7506 = vsel %vm2966, %v7503, -inf
        %7507 = vmax.xlane.f32.xlu0 %v7506
        %v7508 = vpop.xlane.xlu0 %7507
        %v7509 = vsub.f32 %v7503, %v7508
        %v7510 = vmul.f32 %v7509, 1.442695
        %v7511 = vpow.pop %v7510
        %v7512 = vsel %vm2966, %v7511, 0.0
        %7513 = vadd.xlane.f32.xlu0 %v7512
        %v7514 = vpop.xlane.xlu0 %7513
        %v7515 = vrcp.pop %v7514
        %v7516 = vmul.f32 %v7511, %v7515
        %v7518 = vsel %vm2966, %v7516, 0
        %7520 = vmatprep.subr.mxu0 0.0
        %v7521 = vand.u32 %v2963, 4294901760
        %7522 = vmatpush1.msra.mxu0 %v7521
        %7523 = vmatprep.subr.mxu0 0.0
        %7524 = vmatpush1.msra.mxu0 0.0
        %7525 = vmatprep.subr.mxu0 0.0
        %7526 = vmatpush1.msra.mxu0 0.0
        %7527 = vmatprep.subr.mxu0 0.0
        %7528 = vmatpush1.msra.mxu0 0.0
        %7529 = vmatprep.subr.mxu0 0.0
        %7530 = vmatpush1.msra.mxu0 0.0
        %7531 = vmatprep.subr.mxu0 0.0
        %7532 = vmatpush1.msra.mxu0 0.0
        %7533 = vmatprep.subr.mxu0 0.0
        %7534 = vmatpush1.msra.mxu0 0.0
        %7535 = vmatprep.subr.mxu0 0.0
        %7536 = vmatpush1.msra.mxu0 0.0
        %7537 = vmatprep.subr.mxu0 0.0
        %7538 = vmatpush1.msra.mxu0 0.0
        %7539 = vmatprep.subr.mxu0 0.0
        %7540 = vmatpush1.msra.mxu0 0.0
        %7541 = vmatprep.subr.mxu0 0.0
        %7542 = vmatpush1.msra.mxu0 0.0
        %7543 = vmatprep.subr.mxu0 0.0
        %7544 = vmatpush1.msra.mxu0 0.0
        %7545 = vmatprep.subr.mxu0 0.0
        %7546 = vmatpush1.msra.mxu0 0.0
        %7547 = vmatprep.subr.mxu0 0.0
        %7548 = vmatpush1.msra.mxu0 0.0
        %7549 = vmatprep.subr.mxu0 0.0
        %7550 = vmatpush1.msra.mxu0 0.0
        %7551 = vmatprep.subr.mxu0 0.0
        %7552 = vmatpush1.msra.mxu0 0.0
        %7553 = vmatprep.subr.mxu0 0.0
        %7554 = vmatpush1.msra.mxu0 0.0
        %7555 = vmatprep.subr.mxu0 0.0
        %7556 = vmatpush1.msra.mxu0 0.0
        %7557 = vmatprep.subr.mxu0 0.0
        %7558 = vmatpush1.msra.mxu0 0.0
        %7559 = vmatprep.subr.mxu0 0.0
        %7560 = vmatpush1.msra.mxu0 0.0
        %7561 = vmatprep.subr.mxu0 0.0
        %7562 = vmatpush1.msra.mxu0 0.0
        %7563 = vmatprep.subr.mxu0 0.0
        %7564 = vmatpush1.msra.mxu0 0.0
        %7565 = vmatprep.subr.mxu0 0.0
        %7566 = vmatpush1.msra.mxu0 0.0
        %7567 = vmatprep.subr.mxu0 0.0
        %7568 = vmatpush1.msra.mxu0 0.0
        %7569 = vmatprep.subr.mxu0 0.0
        %7570 = vmatpush1.msra.mxu0 0.0
        %7571 = vmatprep.subr.mxu0 0.0
        %7572 = vmatpush1.msra.mxu0 0.0
        %7573 = vmatprep.subr.mxu0 0.0
        %7574 = vmatpush1.msra.mxu0 0.0
        %7575 = vmatprep.subr.mxu0 0.0
        %7576 = vmatpush1.msra.mxu0 0.0
        %7577 = vmatprep.subr.mxu0 0.0
        %7578 = vmatpush1.msra.mxu0 0.0
        %7579 = vmatprep.subr.mxu0 0.0
        %7580 = vmatpush1.msra.mxu0 0.0
        %7581 = vmatprep.subr.mxu0 0.0
        %7582 = vmatpush1.msra.mxu0 0.0
        %7583 = vmatprep.subr.mxu0 0.0
        %7584 = vmatpush1.msra.mxu0 0.0
        %7585 = vmatprep.mubr.f32.mxu0 0.0
        %v7586 = vand.u32 %v7518, 4294901760
        %v7587 = vsub.f32 %v7518, %v7586
        %v7588 = vand.u32 %v7587, 4294901760
        %v7589 = vsub.f32 %v7587, %v7588
        %v7590 = vand.u32 %v7589, 4294901760
        %7591 = vmatmul.mubr.f32.gmra.mrb[0].mxu0 %v7590
        %v7592 = vpop.f32.mrb[0].mxu0
        %v7593 = vadd.f32 0.0, %v7592
        %v7594 = vpop.f32.mrb[0].mxu0
        %7595 = vdwg.mxu0
        %7596 = vmatprep.subr.mxu0 0.0
        %v7597 = vand.u32 %v2963, 4294901760
        %v7598 = vsub.f32 %v2963, %v7597
        %v7599 = vand.u32 %v7598, 4294901760
        %v7600 = vsub.f32 %v7598, %v7599
        %v7601 = vand.u32 %v7600, 4294901760
        %7602 = vmatpush1.msra.mxu0 %v7601
        %7603 = vmatprep.subr.mxu0 0.0
        %7604 = vmatpush1.msra.mxu0 0.0
        %7605 = vmatprep.subr.mxu0 0.0
        %7606 = vmatpush1.msra.mxu0 0.0
        %7607 = vmatprep.subr.mxu0 0.0
        %7608 = vmatpush1.msra.mxu0 0.0
        %7609 = vmatprep.subr.mxu0 0.0
        %7610 = vmatpush1.msra.mxu0 0.0
        %7611 = vmatprep.subr.mxu0 0.0
        %7612 = vmatpush1.msra.mxu0 0.0
        %7613 = vmatprep.subr.mxu0 0.0
        %7614 = vmatpush1.msra.mxu0 0.0
        %7615 = vmatprep.subr.mxu0 0.0
        %7616 = vmatpush1.msra.mxu0 0.0
        %7617 = vmatprep.subr.mxu0 0.0
        %7618 = vmatpush1.msra.mxu0 0.0
        %7619 = vmatprep.subr.mxu0 0.0
        %7620 = vmatpush1.msra.mxu0 0.0
        %7621 = vmatprep.subr.mxu0 0.0
        %7622 = vmatpush1.msra.mxu0 0.0
        %7623 = vmatprep.subr.mxu0 0.0
        %7624 = vmatpush1.msra.mxu0 0.0
        %7625 = vmatprep.subr.mxu0 0.0
        %7626 = vmatpush1.msra.mxu0 0.0
        %7627 = vmatprep.subr.mxu0 0.0
        %7628 = vmatpush1.msra.mxu0 0.0
        %7629 = vmatprep.subr.mxu0 0.0
        %7630 = vmatpush1.msra.mxu0 0.0
        %7631 = vmatprep.subr.mxu0 0.0
        %7632 = vmatpush1.msra.mxu0 0.0
        %7633 = vmatprep.subr.mxu0 0.0
        %7634 = vmatpush1.msra.mxu0 0.0
        %7635 = vmatprep.subr.mxu0 0.0
        %7636 = vmatpush1.msra.mxu0 0.0
        %7637 = vmatprep.subr.mxu0 0.0
        %7638 = vmatpush1.msra.mxu0 0.0
        %7639 = vmatprep.subr.mxu0 0.0
        %7640 = vmatpush1.msra.mxu0 0.0
        %7641 = vmatprep.subr.mxu0 0.0
        %7642 = vmatpush1.msra.mxu0 0.0
        %7643 = vmatprep.subr.mxu0 0.0
        %7644 = vmatpush1.msra.mxu0 0.0
        %7645 = vmatprep.subr.mxu0 0.0
        %7646 = vmatpush1.msra.mxu0 0.0
        %7647 = vmatprep.subr.mxu0 0.0
        %7648 = vmatpush1.msra.mxu0 0.0
        %7649 = vmatprep.subr.mxu0 0.0
        %7650 = vmatpush1.msra.mxu0 0.0
        %7651 = vmatprep.subr.mxu0 0.0
        %7652 = vmatpush1.msra.mxu0 0.0
        %7653 = vmatprep.subr.mxu0 0.0
        %7654 = vmatpush1.msra.mxu0 0.0
        %7655 = vmatprep.subr.mxu0 0.0
        %7656 = vmatpush1.msra.mxu0 0.0
        %7657 = vmatprep.subr.mxu0 0.0
        %7658 = vmatpush1.msra.mxu0 0.0
        %7659 = vmatprep.subr.mxu0 0.0
        %7660 = vmatpush1.msra.mxu0 0.0
        %7661 = vmatprep.subr.mxu0 0.0
        %7662 = vmatpush1.msra.mxu0 0.0
        %7663 = vmatprep.subr.mxu0 0.0
        %7664 = vmatpush1.msra.mxu0 0.0
        %7665 = vmatprep.mubr.f32.mxu0 0.0
        %v7666 = vand.u32 %v7518, 4294901760
        %7667 = vmatmul.mubr.f32.gmra.mrb[0].mxu0 %v7666
        %v7668 = vpop.f32.mrb[0].mxu0
        %v7669 = vadd.f32 %v7593, %v7668
        %v7670 = vpop.f32.mrb[0].mxu0
        %7671 = vdwg.mxu0
        %7672 = vmatprep.subr.mxu0 0.0
        %v7673 = vand.u32 %v2963, 4294901760
        %v7674 = vsub.f32 %v2963, %v7673
        %7675 = vmatpush1.msra.mxu0 %v7674
        %7676 = vmatprep.subr.mxu0 0.0
        %7677 = vmatpush1.msra.mxu0 0.0
        %7678 = vmatprep.subr.mxu0 0.0
        %7679 = vmatpush1.msra.mxu0 0.0
        %7680 = vmatprep.subr.mxu0 0.0
        %7681 = vmatpush1.msra.mxu0 0.0
        %7682 = vmatprep.subr.mxu0 0.0
        %7683 = vmatpush1.msra.mxu0 0.0
        %7684 = vmatprep.subr.mxu0 0.0
        %7685 = vmatpush1.msra.mxu0 0.0
        %7686 = vmatprep.subr.mxu0 0.0
        %7687 = vmatpush1.msra.mxu0 0.0
        %7688 = vmatprep.subr.mxu0 0.0
        %7689 = vmatpush1.msra.mxu0 0.0
        %7690 = vmatprep.subr.mxu0 0.0
        %7691 = vmatpush1.msra.mxu0 0.0
        %7692 = vmatprep.subr.mxu0 0.0
        %7693 = vmatpush1.msra.mxu0 0.0
        %7694 = vmatprep.subr.mxu0 0.0
        %7695 = vmatpush1.msra.mxu0 0.0
        %7696 = vmatprep.subr.mxu0 0.0
        %7697 = vmatpush1.msra.mxu0 0.0
        %7698 = vmatprep.subr.mxu0 0.0
        %7699 = vmatpush1.msra.mxu0 0.0
        %7700 = vmatprep.subr.mxu0 0.0
        %7701 = vmatpush1.msra.mxu0 0.0
        %7702 = vmatprep.subr.mxu0 0.0
        %7703 = vmatpush1.msra.mxu0 0.0
        %7704 = vmatprep.subr.mxu0 0.0
        %7705 = vmatpush1.msra.mxu0 0.0
        %7706 = vmatprep.subr.mxu0 0.0
        %7707 = vmatpush1.msra.mxu0 0.0
        %7708 = vmatprep.subr.mxu0 0.0
        %7709 = vmatpush1.msra.mxu0 0.0
        %7710 = vmatprep.subr.mxu0 0.0
        %7711 = vmatpush1.msra.mxu0 0.0
        %7712 = vmatprep.subr.mxu0 0.0
        %7713 = vmatpush1.msra.mxu0 0.0
        %7714 = vmatprep.subr.mxu0 0.0
        %7715 = vmatpush1.msra.mxu0 0.0
        %7716 = vmatprep.subr.mxu0 0.0
        %7717 = vmatpush1.msra.mxu0 0.0
        %7718 = vmatprep.subr.mxu0 0.0
        %7719 = vmatpush1.msra.mxu0 0.0
        %7720 = vmatprep.subr.mxu0 0.0
        %7721 = vmatpush1.msra.mxu0 0.0
        %7722 = vmatprep.subr.mxu0 0.0
        %7723 = vmatpush1.msra.mxu0 0.0
        %7724 = vmatprep.subr.mxu0 0.0
        %7725 = vmatpush1.msra.mxu0 0.0
        %7726 = vmatprep.subr.mxu0 0.0
        %7727 = vmatpush1.msra.mxu0 0.0
        %7728 = vmatprep.subr.mxu0 0.0
        %7729 = vmatpush1.msra.mxu0 0.0
        %7730 = vmatprep.subr.mxu0 0.0
        %7731 = vmatpush1.msra.mxu0 0.0
        %7732 = vmatprep.subr.mxu0 0.0
        %7733 = vmatpush1.msra.mxu0 0.0
        %7734 = vmatprep.subr.mxu0 0.0
        %7735 = vmatpush1.msra.mxu0 0.0
        %7736 = vmatprep.subr.mxu0 0.0
        %7737 = vmatpush1.msra.mxu0 0.0
        %7738 = vmatprep.mubr.f32.mxu0 0.0
        %v7739 = vand.u32 %v7518, 4294901760
        %v7740 = vsub.f32 %v7518, %v7739
        %7741 = vmatmul.mubr.f32.gmra.mrb[0].mxu0 %v7740
        %v7742 = vpop.f32.mrb[0].mxu0
        %v7743 = vadd.f32 %v7669, %v7742
        %v7744 = vpop.f32.mrb[0].mxu0
        %7745 = vdwg.mxu0
        %7746 = vmatprep.subr.mxu0 0.0
        %v7747 = vand.u32 %v2963, 4294901760
        %7748 = vmatpush1.msra.mxu0 %v7747
        %7749 = vmatprep.subr.mxu0 0.0
        %7750 = vmatpush1.msra.mxu0 0.0
        %7751 = vmatprep.subr.mxu0 0.0
        %7752 = vmatpush1.msra.mxu0 0.0
        %7753 = vmatprep.subr.mxu0 0.0
        %7754 = vmatpush1.msra.mxu0 0.0
        %7755 = vmatprep.subr.mxu0 0.0
        %7756 = vmatpush1.msra.mxu0 0.0
        %7757 = vmatprep.subr.mxu0 0.0
        %7758 = vmatpush1.msra.mxu0 0.0
        %7759 = vmatprep.subr.mxu0 0.0
        %7760 = vmatpush1.msra.mxu0 0.0
        %7761 = vmatprep.subr.mxu0 0.0
        %7762 = vmatpush1.msra.mxu0 0.0
        %7763 = vmatprep.subr.mxu0 0.0
        %7764 = vmatpush1.msra.mxu0 0.0
        %7765 = vmatprep.subr.mxu0 0.0
        %7766 = vmatpush1.msra.mxu0 0.0
        %7767 = vmatprep.subr.mxu0 0.0
        %7768 = vmatpush1.msra.mxu0 0.0
        %7769 = vmatprep.subr.mxu0 0.0
        %7770 = vmatpush1.msra.mxu0 0.0
        %7771 = vmatprep.subr.mxu0 0.0
        %7772 = vmatpush1.msra.mxu0 0.0
        %7773 = vmatprep.subr.mxu0 0.0
        %7774 = vmatpush1.msra.mxu0 0.0
        %7775 = vmatprep.subr.mxu0 0.0
        %7776 = vmatpush1.msra.mxu0 0.0
        %7777 = vmatprep.subr.mxu0 0.0
        %7778 = vmatpush1.msra.mxu0 0.0
        %7779 = vmatprep.subr.mxu0 0.0
        %7780 = vmatpush1.msra.mxu0 0.0
        %7781 = vmatprep.subr.mxu0 0.0
        %7782 = vmatpush1.msra.mxu0 0.0
        %7783 = vmatprep.subr.mxu0 0.0
        %7784 = vmatpush1.msra.mxu0 0.0
        %7785 = vmatprep.subr.mxu0 0.0
        %7786 = vmatpush1.msra.mxu0 0.0
        %7787 = vmatprep.subr.mxu0 0.0
        %7788 = vmatpush1.msra.mxu0 0.0
        %7789 = vmatprep.subr.mxu0 0.0
        %7790 = vmatpush1.msra.mxu0 0.0
        %7791 = vmatprep.subr.mxu0 0.0
        %7792 = vmatpush1.msra.mxu0 0.0
        %7793 = vmatprep.subr.mxu0 0.0
        %7794 = vmatpush1.msra.mxu0 0.0
        %7795 = vmatprep.subr.mxu0 0.0
        %7796 = vmatpush1.msra.mxu0 0.0
        %7797 = vmatprep.subr.mxu0 0.0
        %7798 = vmatpush1.msra.mxu0 0.0
        %7799 = vmatprep.subr.mxu0 0.0
        %7800 = vmatpush1.msra.mxu0 0.0
        %7801 = vmatprep.subr.mxu0 0.0
        %7802 = vmatpush1.msra.mxu0 0.0
        %7803 = vmatprep.subr.mxu0 0.0
        %7804 = vmatpush1.msra.mxu0 0.0
        %7805 = vmatprep.subr.mxu0 0.0
        %7806 = vmatpush1.msra.mxu0 0.0
        %7807 = vmatprep.subr.mxu0 0.0
        %7808 = vmatpush1.msra.mxu0 0.0
        %7809 = vmatprep.subr.mxu0 0.0
        %7810 = vmatpush1.msra.mxu0 0.0
        %7811 = vmatprep.mubr.f32.mxu0 0.0
        %v7812 = vand.u32 %v7518, 4294901760
        %v7813 = vsub.f32 %v7518, %v7812
        %v7814 = vand.u32 %v7813, 4294901760
        %7815 = vmatmul.mubr.f32.gmra.mrb[0].mxu0 %v7814
        %v7816 = vpop.f32.mrb[0].mxu0
        %v7817 = vadd.f32 %v7743, %v7816
        %v7818 = vpop.f32.mrb[0].mxu0
        %7819 = vdwg.mxu0
        %7820 = vmatprep.subr.mxu0 0.0
        %v7821 = vand.u32 %v2963, 4294901760
        %v7822 = vsub.f32 %v2963, %v7821
        %v7823 = vand.u32 %v7822, 4294901760
        %7824 = vmatpush1.msra.mxu0 %v7823
        %7825 = vmatprep.subr.mxu0 0.0
        %7826 = vmatpush1.msra.mxu0 0.0
        %7827 = vmatprep.subr.mxu0 0.0
        %7828 = vmatpush1.msra.mxu0 0.0
        %7829 = vmatprep.subr.mxu0 0.0
        %7830 = vmatpush1.msra.mxu0 0.0
        %7831 = vmatprep.subr.mxu0 0.0
        %7832 = vmatpush1.msra.mxu0 0.0
        %7833 = vmatprep.subr.mxu0 0.0
        %7834 = vmatpush1.msra.mxu0 0.0
        %7835 = vmatprep.subr.mxu0 0.0
        %7836 = vmatpush1.msra.mxu0 0.0
        %7837 = vmatprep.subr.mxu0 0.0
        %7838 = vmatpush1.msra.mxu0 0.0
        %7839 = vmatprep.subr.mxu0 0.0
        %7840 = vmatpush1.msra.mxu0 0.0
        %7841 = vmatprep.subr.mxu0 0.0
        %7842 = vmatpush1.msra.mxu0 0.0
        %7843 = vmatprep.subr.mxu0 0.0
        %7844 = vmatpush1.msra.mxu0 0.0
        %7845 = vmatprep.subr.mxu0 0.0
        %7846 = vmatpush1.msra.mxu0 0.0
        %7847 = vmatprep.subr.mxu0 0.0
        %7848 = vmatpush1.msra.mxu0 0.0
        %7849 = vmatprep.subr.mxu0 0.0
        %7850 = vmatpush1.msra.mxu0 0.0
        %7851 = vmatprep.subr.mxu0 0.0
        %7852 = vmatpush1.msra.mxu0 0.0
        %7853 = vmatprep.subr.mxu0 0.0
        %7854 = vmatpush1.msra.mxu0 0.0
        %7855 = vmatprep.subr.mxu0 0.0
        %7856 = vmatpush1.msra.mxu0 0.0
        %7857 = vmatprep.subr.mxu0 0.0
        %7858 = vmatpush1.msra.mxu0 0.0
        %7859 = vmatprep.subr.mxu0 0.0
        %7860 = vmatpush1.msra.mxu0 0.0
        %7861 = vmatprep.subr.mxu0 0.0
        %7862 = vmatpush1.msra.mxu0 0.0
        %7863 = vmatprep.subr.mxu0 0.0
        %7864 = vmatpush1.msra.mxu0 0.0
        %7865 = vmatprep.subr.mxu0 0.0
        %7866 = vmatpush1.msra.mxu0 0.0
        %7867 = vmatprep.subr.mxu0 0.0
        %7868 = vmatpush1.msra.mxu0 0.0
        %7869 = vmatprep.subr.mxu0 0.0
        %7870 = vmatpush1.msra.mxu0 0.0
        %7871 = vmatprep.subr.mxu0 0.0
        %7872 = vmatpush1.msra.mxu0 0.0
        %7873 = vmatprep.subr.mxu0 0.0
        %7874 = vmatpush1.msra.mxu0 0.0
        %7875 = vmatprep.subr.mxu0 0.0
        %7876 = vmatpush1.msra.mxu0 0.0
        %7877 = vmatprep.subr.mxu0 0.0
        %7878 = vmatpush1.msra.mxu0 0.0
        %7879 = vmatprep.subr.mxu0 0.0
        %7880 = vmatpush1.msra.mxu0 0.0
        %7881 = vmatprep.subr.mxu0 0.0
        %7882 = vmatpush1.msra.mxu0 0.0
        %7883 = vmatprep.subr.mxu0 0.0
        %7884 = vmatpush1.msra.mxu0 0.0
        %7885 = vmatprep.subr.mxu0 0.0
        %7886 = vmatpush1.msra.mxu0 0.0
        %7887 = vmatprep.mubr.f32.mxu0 0.0
        %v7888 = vand.u32 %v7518, 4294901760
        %7889 = vmatmul.mubr.f32.gmra.mrb[0].mxu0 %v7888
        %v7890 = vpop.f32.mrb[0].mxu0
        %v7891 = vadd.f32 %v7817, %v7890
        %v7892 = vpop.f32.mrb[0].mxu0
        %7893 = vdwg.mxu0
        %7894 = vmatprep.subr.mxu0 0.0
        %v7895 = vand.u32 %v2963, 4294901760
        %7896 = vmatpush1.msra.mxu0 %v7895
        %7897 = vmatprep.subr.mxu0 0.0
        %7898 = vmatpush1.msra.mxu0 0.0
        %7899 = vmatprep.subr.mxu0 0.0
        %7900 = vmatpush1.msra.mxu0 0.0
        %7901 = vmatprep.subr.mxu0 0.0
        %7902 = vmatpush1.msra.mxu0 0.0
        %7903 = vmatprep.subr.mxu0 0.0
        %7904 = vmatpush1.msra.mxu0 0.0
        %7905 = vmatprep.subr.mxu0 0.0
        %7906 = vmatpush1.msra.mxu0 0.0
        %7907 = vmatprep.subr.mxu0 0.0
        %7908 = vmatpush1.msra.mxu0 0.0
        %7909 = vmatprep.subr.mxu0 0.0
        %7910 = vmatpush1.msra.mxu0 0.0
        %7911 = vmatprep.subr.mxu0 0.0
        %7912 = vmatpush1.msra.mxu0 0.0
        %7913 = vmatprep.subr.mxu0 0.0
        %7914 = vmatpush1.msra.mxu0 0.0
        %7915 = vmatprep.subr.mxu0 0.0
        %7916 = vmatpush1.msra.mxu0 0.0
        %7917 = vmatprep.subr.mxu0 0.0
        %7918 = vmatpush1.msra.mxu0 0.0
        %7919 = vmatprep.subr.mxu0 0.0
        %7920 = vmatpush1.msra.mxu0 0.0
        %7921 = vmatprep.subr.mxu0 0.0
        %7922 = vmatpush1.msra.mxu0 0.0
        %7923 = vmatprep.subr.mxu0 0.0
        %7924 = vmatpush1.msra.mxu0 0.0
        %7925 = vmatprep.subr.mxu0 0.0
        %7926 = vmatpush1.msra.mxu0 0.0
        %7927 = vmatprep.subr.mxu0 0.0
        %7928 = vmatpush1.msra.mxu0 0.0
        %7929 = vmatprep.subr.mxu0 0.0
        %7930 = vmatpush1.msra.mxu0 0.0
        %7931 = vmatprep.subr.mxu0 0.0
        %7932 = vmatpush1.msra.mxu0 0.0
        %7933 = vmatprep.subr.mxu0 0.0
        %7934 = vmatpush1.msra.mxu0 0.0
        %7935 = vmatprep.subr.mxu0 0.0
        %7936 = vmatpush1.msra.mxu0 0.0
        %7937 = vmatprep.subr.mxu0 0.0
        %7938 = vmatpush1.msra.mxu0 0.0
        %7939 = vmatprep.subr.mxu0 0.0
        %7940 = vmatpush1.msra.mxu0 0.0
        %7941 = vmatprep.subr.mxu0 0.0
        %7942 = vmatpush1.msra.mxu0 0.0
        %7943 = vmatprep.subr.mxu0 0.0
        %7944 = vmatpush1.msra.mxu0 0.0
        %7945 = vmatprep.subr.mxu0 0.0
        %7946 = vmatpush1.msra.mxu0 0.0
        %7947 = vmatprep.subr.mxu0 0.0
        %7948 = vmatpush1.msra.mxu0 0.0
        %7949 = vmatprep.subr.mxu0 0.0
        %7950 = vmatpush1.msra.mxu0 0.0
        %7951 = vmatprep.subr.mxu0 0.0
        %7952 = vmatpush1.msra.mxu0 0.0
        %7953 = vmatprep.subr.mxu0 0.0
        %7954 = vmatpush1.msra.mxu0 0.0
        %7955 = vmatprep.subr.mxu0 0.0
        %7956 = vmatpush1.msra.mxu0 0.0
        %7957 = vmatprep.subr.mxu0 0.0
        %7958 = vmatpush1.msra.mxu0 0.0
        %7959 = vmatprep.mubr.f32.mxu0 0.0
        %v7960 = vand.u32 %v7518, 4294901760
        %7961 = vmatmul.mubr.f32.gmra.mrb[0].mxu0 %v7960
        %v7962 = vpop.f32.mrb[0].mxu0
        %v7963 = vadd.f32 %v7891, %v7962
        %v7964 = vpop.f32.mrb[0].mxu0
        %7965 = vdwg.mxu0
        %v7966 = vld [vmem:[%s8 + $0x18] sm:$0xff]
        %v7968 = vsel %vm2966, %v7963, 0
        %7970 = vmatprep.subr.mxu0 0.0
        %v7971 = vand.u32 %v7966, 4294901760
        %7972 = vmatpush1.msra.mxu0 %v7971
        %7973 = vmatprep.subr.mxu0 0.0
        %7974 = vmatpush1.msra.mxu0 0.0
        %7975 = vmatprep.subr.mxu0 0.0
        %7976 = vmatpush1.msra.mxu0 0.0
        %7977 = vmatprep.subr.mxu0 0.0
        %7978 = vmatpush1.msra.mxu0 0.0
        %7979 = vmatprep.subr.mxu0 0.0
        %7980 = vmatpush1.msra.mxu0 0.0
        %7981 = vmatprep.subr.mxu0 0.0
        %7982 = vmatpush1.msra.mxu0 0.0
        %7983 = vmatprep.subr.mxu0 0.0
        %7984 = vmatpush1.msra.mxu0 0.0
        %7985 = vmatprep.subr.mxu0 0.0
        %7986 = vmatpush1.msra.mxu0 0.0
        %7987 = vmatprep.subr.mxu0 0.0
        %7988 = vmatpush1.msra.mxu0 0.0
        %7989 = vmatprep.subr.mxu0 0.0
        %7990 = vmatpush1.msra.mxu0 0.0
        %7991 = vmatprep.subr.mxu0 0.0
        %7992 = vmatpush1.msra.mxu0 0.0
        %7993 = vmatprep.subr.mxu0 0.0
        %7994 = vmatpush1.msra.mxu0 0.0
        %7995 = vmatprep.subr.mxu0 0.0
        %7996 = vmatpush1.msra.mxu0 0.0
        %7997 = vmatprep.subr.mxu0 0.0
        %7998 = vmatpush1.msra.mxu0 0.0
        %7999 = vmatprep.subr.mxu0 0.0
        %8000 = vmatpush1.msra.mxu0 0.0
        %8001 = vmatprep.subr.mxu0 0.0
        %8002 = vmatpush1.msra.mxu0 0.0
        %8003 = vmatprep.subr.mxu0 0.0
        %8004 = vmatpush1.msra.mxu0 0.0
        %8005 = vmatprep.subr.mxu0 0.0
        %8006 = vmatpush1.msra.mxu0 0.0
        %8007 = vmatprep.subr.mxu0 0.0
        %8008 = vmatpush1.msra.mxu0 0.0
        %8009 = vmatprep.subr.mxu0 0.0
        %8010 = vmatpush1.msra.mxu0 0.0
        %8011 = vmatprep.subr.mxu0 0.0
        %8012 = vmatpush1.msra.mxu0 0.0
        %8013 = vmatprep.subr.mxu0 0.0
        %8014 = vmatpush1.msra.mxu0 0.0
        %8015 = vmatprep.subr.mxu0 0.0
        %8016 = vmatpush1.msra.mxu0 0.0
        %8017 = vmatprep.subr.mxu0 0.0
        %8018 = vmatpush1.msra.mxu0 0.0
        %8019 = vmatprep.subr.mxu0 0.0
        %8020 = vmatpush1.msra.mxu0 0.0
        %8021 = vmatprep.subr.mxu0 0.0
        %8022 = vmatpush1.msra.mxu0 0.0
        %8023 = vmatprep.subr.mxu0 0.0
        %8024 = vmatpush1.msra.mxu0 0.0
        %8025 = vmatprep.subr.mxu0 0.0
        %8026 = vmatpush1.msra.mxu0 0.0
        %8027 = vmatprep.subr.mxu0 0.0
        %8028 = vmatpush1.msra.mxu0 0.0
        %8029 = vmatprep.subr.mxu0 0.0
        %8030 = vmatpush1.msra.mxu0 0.0
        %8031 = vmatprep.subr.mxu0 0.0
        %8032 = vmatpush1.msra.mxu0 0.0
        %8033 = vmatprep.subr.mxu0 0.0
        %8034 = vmatpush1.msra.mxu0 0.0
        %8035 = vmatprep.mubr.f32.mxu0 0.0
        %v8036 = vand.u32 %v7968, 4294901760
        %v8037 = vsub.f32 %v7968, %v8036
        %v8038 = vand.u32 %v8037, 4294901760
        %v8039 = vsub.f32 %v8037, %v8038
        %v8040 = vand.u32 %v8039, 4294901760
        %8041 = vmatmul.mubr.f32.gmra.mrb[0].mxu0 %v8040
        %v8042 = vpop.f32.mrb[0].mxu0
        %v8043 = vadd.f32 0.0, %v8042
        %v8044 = vpop.f32.mrb[0].mxu0
        %8045 = vdwg.mxu0
        %8046 = vmatprep.subr.mxu0 0.0
        %v8047 = vand.u32 %v7966, 4294901760
        %v8048 = vsub.f32 %v7966, %v8047
        %v8049 = vand.u32 %v8048, 4294901760
        %v8050 = vsub.f32 %v8048, %v8049
        %v8051 = vand.u32 %v8050, 4294901760
        %8052 = vmatpush1.msra.mxu0 %v8051
        %8053 = vmatprep.subr.mxu0 0.0
        %8054 = vmatpush1.msra.mxu0 0.0
        %8055 = vmatprep.subr.mxu0 0.0
        %8056 = vmatpush1.msra.mxu0 0.0
        %8057 = vmatprep.subr.mxu0 0.0
        %8058 = vmatpush1.msra.mxu0 0.0
        %8059 = vmatprep.subr.mxu0 0.0
        %8060 = vmatpush1.msra.mxu0 0.0
        %8061 = vmatprep.subr.mxu0 0.0
        %8062 = vmatpush1.msra.mxu0 0.0
        %8063 = vmatprep.subr.mxu0 0.0
        %8064 = vmatpush1.msra.mxu0 0.0
        %8065 = vmatprep.subr.mxu0 0.0
        %8066 = vmatpush1.msra.mxu0 0.0
        %8067 = vmatprep.subr.mxu0 0.0
        %8068 = vmatpush1.msra.mxu0 0.0
        %8069 = vmatprep.subr.mxu0 0.0
        %8070 = vmatpush1.msra.mxu0 0.0
        %8071 = vmatprep.subr.mxu0 0.0
        %8072 = vmatpush1.msra.mxu0 0.0
        %8073 = vmatprep.subr.mxu0 0.0
        %8074 = vmatpush1.msra.mxu0 0.0
        %8075 = vmatprep.subr.mxu0 0.0
        %8076 = vmatpush1.msra.mxu0 0.0
        %8077 = vmatprep.subr.mxu0 0.0
        %8078 = vmatpush1.msra.mxu0 0.0
        %8079 = vmatprep.subr.mxu0 0.0
        %8080 = vmatpush1.msra.mxu0 0.0
        %8081 = vmatprep.subr.mxu0 0.0
        %8082 = vmatpush1.msra.mxu0 0.0
        %8083 = vmatprep.subr.mxu0 0.0
        %8084 = vmatpush1.msra.mxu0 0.0
        %8085 = vmatprep.subr.mxu0 0.0
        %8086 = vmatpush1.msra.mxu0 0.0
        %8087 = vmatprep.subr.mxu0 0.0
        %8088 = vmatpush1.msra.mxu0 0.0
        %8089 = vmatprep.subr.mxu0 0.0
        %8090 = vmatpush1.msra.mxu0 0.0
        %8091 = vmatprep.subr.mxu0 0.0
        %8092 = vmatpush1.msra.mxu0 0.0
        %8093 = vmatprep.subr.mxu0 0.0
        %8094 = vmatpush1.msra.mxu0 0.0
        %8095 = vmatprep.subr.mxu0 0.0
        %8096 = vmatpush1.msra.mxu0 0.0
        %8097 = vmatprep.subr.mxu0 0.0
        %8098 = vmatpush1.msra.mxu0 0.0
        %8099 = vmatprep.subr.mxu0 0.0
        %8100 = vmatpush1.msra.mxu0 0.0
        %8101 = vmatprep.subr.mxu0 0.0
        %8102 = vmatpush1.msra.mxu0 0.0
        %8103 = vmatprep.subr.mxu0 0.0
        %8104 = vmatpush1.msra.mxu0 0.0
        %8105 = vmatprep.subr.mxu0 0.0
        %8106 = vmatpush1.msra.mxu0 0.0
        %8107 = vmatprep.subr.mxu0 0.0
        %8108 = vmatpush1.msra.mxu0 0.0
        %8109 = vmatprep.subr.mxu0 0.0
        %8110 = vmatpush1.msra.mxu0 0.0
        %8111 = vmatprep.subr.mxu0 0.0
        %8112 = vmatpush1.msra.mxu0 0.0
        %8113 = vmatprep.subr.mxu0 0.0
        %8114 = vmatpush1.msra.mxu0 0.0
        %8115 = vmatprep.mubr.f32.mxu0 0.0
        %v8116 = vand.u32 %v7968, 4294901760
        %8117 = vmatmul.mubr.f32.gmra.mrb[0].mxu0 %v8116
        %v8118 = vpop.f32.mrb[0].mxu0
        %v8119 = vadd.f32 %v8043, %v8118
        %v8120 = vpop.f32.mrb[0].mxu0
        %8121 = vdwg.mxu0
        %8122 = vmatprep.subr.mxu0 0.0
        %v8123 = vand.u32 %v7966, 4294901760
        %v8124 = vsub.f32 %v7966, %v8123
        %8125 = vmatpush1.msra.mxu0 %v8124
        %8126 = vmatprep.subr.mxu0 0.0
        %8127 = vmatpush1.msra.mxu0 0.0
        %8128 = vmatprep.subr.mxu0 0.0
        %8129 = vmatpush1.msra.mxu0 0.0
        %8130 = vmatprep.subr.mxu0 0.0
        %8131 = vmatpush1.msra.mxu0 0.0
        %8132 = vmatprep.subr.mxu0 0.0
        %8133 = vmatpush1.msra.mxu0 0.0
        %8134 = vmatprep.subr.mxu0 0.0
        %8135 = vmatpush1.msra.mxu0 0.0
        %8136 = vmatprep.subr.mxu0 0.0
        %8137 = vmatpush1.msra.mxu0 0.0
        %8138 = vmatprep.subr.mxu0 0.0
        %8139 = vmatpush1.msra.mxu0 0.0
        %8140 = vmatprep.subr.mxu0 0.0
        %8141 = vmatpush1.msra.mxu0 0.0
        %8142 = vmatprep.subr.mxu0 0.0
        %8143 = vmatpush1.msra.mxu0 0.0
        %8144 = vmatprep.subr.mxu0 0.0
        %8145 = vmatpush1.msra.mxu0 0.0
        %8146 = vmatprep.subr.mxu0 0.0
        %8147 = vmatpush1.msra.mxu0 0.0
        %8148 = vmatprep.subr.mxu0 0.0
        %8149 = vmatpush1.msra.mxu0 0.0
        %8150 = vmatprep.subr.mxu0 0.0
        %8151 = vmatpush1.msra.mxu0 0.0
        %8152 = vmatprep.subr.mxu0 0.0
        %8153 = vmatpush1.msra.mxu0 0.0
        %8154 = vmatprep.subr.mxu0 0.0
        %8155 = vmatpush1.msra.mxu0 0.0
        %8156 = vmatprep.subr.mxu0 0.0
        %8157 = vmatpush1.msra.mxu0 0.0
        %8158 = vmatprep.subr.mxu0 0.0
        %8159 = vmatpush1.msra.mxu0 0.0
        %8160 = vmatprep.subr.mxu0 0.0
        %8161 = vmatpush1.msra.mxu0 0.0
        %8162 = vmatprep.subr.mxu0 0.0
        %8163 = vmatpush1.msra.mxu0 0.0
        %8164 = vmatprep.subr.mxu0 0.0
        %8165 = vmatpush1.msra.mxu0 0.0
        %8166 = vmatprep.subr.mxu0 0.0
        %8167 = vmatpush1.msra.mxu0 0.0
        %8168 = vmatprep.subr.mxu0 0.0
        %8169 = vmatpush1.msra.mxu0 0.0
        %8170 = vmatprep.subr.mxu0 0.0
        %8171 = vmatpush1.msra.mxu0 0.0
        %8172 = vmatprep.subr.mxu0 0.0
        %8173 = vmatpush1.msra.mxu0 0.0
        %8174 = vmatprep.subr.mxu0 0.0
        %8175 = vmatpush1.msra.mxu0 0.0
        %8176 = vmatprep.subr.mxu0 0.0
        %8177 = vmatpush1.msra.mxu0 0.0
        %8178 = vmatprep.subr.mxu0 0.0
        %8179 = vmatpush1.msra.mxu0 0.0
        %8180 = vmatprep.subr.mxu0 0.0
        %8181 = vmatpush1.msra.mxu0 0.0
        %8182 = vmatprep.subr.mxu0 0.0
        %8183 = vmatpush1.msra.mxu0 0.0
        %8184 = vmatprep.subr.mxu0 0.0
        %8185 = vmatpush1.msra.mxu0 0.0
        %8186 = vmatprep.subr.mxu0 0.0
        %8187 = vmatpush1.msra.mxu0 0.0
        %8188 = vmatprep.mubr.f32.mxu0 0.0
        %v8189 = vand.u32 %v7968, 4294901760
        %v8190 = vsub.f32 %v7968, %v8189
        %8191 = vmatmul.mubr.f32.gmra.mrb[0].mxu0 %v8190
        %v8192 = vpop.f32.mrb[0].mxu0
        %v8193 = vadd.f32 %v8119, %v8192
        %v8194 = vpop.f32.mrb[0].mxu0
        %8195 = vdwg.mxu0
        %8196 = vmatprep.subr.mxu0 0.0
        %v8197 = vand.u32 %v7966, 4294901760
        %8198 = vmatpush1.msra.mxu0 %v8197
        %8199 = vmatprep.subr.mxu0 0.0
        %8200 = vmatpush1.msra.mxu0 0.0
        %8201 = vmatprep.subr.mxu0 0.0
        %8202 = vmatpush1.msra.mxu0 0.0
        %8203 = vmatprep.subr.mxu0 0.0
        %8204 = vmatpush1.msra.mxu0 0.0
        %8205 = vmatprep.subr.mxu0 0.0
        %8206 = vmatpush1.msra.mxu0 0.0
        %8207 = vmatprep.subr.mxu0 0.0
        %8208 = vmatpush1.msra.mxu0 0.0
        %8209 = vmatprep.subr.mxu0 0.0
        %8210 = vmatpush1.msra.mxu0 0.0
        %8211 = vmatprep.subr.mxu0 0.0
        %8212 = vmatpush1.msra.mxu0 0.0
        %8213 = vmatprep.subr.mxu0 0.0
        %8214 = vmatpush1.msra.mxu0 0.0
        %8215 = vmatprep.subr.mxu0 0.0
        %8216 = vmatpush1.msra.mxu0 0.0
        %8217 = vmatprep.subr.mxu0 0.0
        %8218 = vmatpush1.msra.mxu0 0.0
        %8219 = vmatprep.subr.mxu0 0.0
        %8220 = vmatpush1.msra.mxu0 0.0
        %8221 = vmatprep.subr.mxu0 0.0
        %8222 = vmatpush1.msra.mxu0 0.0
        %8223 = vmatprep.subr.mxu0 0.0
        %8224 = vmatpush1.msra.mxu0 0.0
        %8225 = vmatprep.subr.mxu0 0.0
        %8226 = vmatpush1.msra.mxu0 0.0
        %8227 = vmatprep.subr.mxu0 0.0
        %8228 = vmatpush1.msra.mxu0 0.0
        %8229 = vmatprep.subr.mxu0 0.0
        %8230 = vmatpush1.msra.mxu0 0.0
        %8231 = vmatprep.subr.mxu0 0.0
        %8232 = vmatpush1.msra.mxu0 0.0
        %8233 = vmatprep.subr.mxu0 0.0
        %8234 = vmatpush1.msra.mxu0 0.0
        %8235 = vmatprep.subr.mxu0 0.0
        %8236 = vmatpush1.msra.mxu0 0.0
        %8237 = vmatprep.subr.mxu0 0.0
        %8238 = vmatpush1.msra.mxu0 0.0
        %8239 = vmatprep.subr.mxu0 0.0
        %8240 = vmatpush1.msra.mxu0 0.0
        %8241 = vmatprep.subr.mxu0 0.0
        %8242 = vmatpush1.msra.mxu0 0.0
        %8243 = vmatprep.subr.mxu0 0.0
        %8244 = vmatpush1.msra.mxu0 0.0
        %8245 = vmatprep.subr.mxu0 0.0
        %8246 = vmatpush1.msra.mxu0 0.0
        %8247 = vmatprep.subr.mxu0 0.0
        %8248 = vmatpush1.msra.mxu0 0.0
        %8249 = vmatprep.subr.mxu0 0.0
        %8250 = vmatpush1.msra.mxu0 0.0
        %8251 = vmatprep.subr.mxu0 0.0
        %8252 = vmatpush1.msra.mxu0 0.0
        %8253 = vmatprep.subr.mxu0 0.0
        %8254 = vmatpush1.msra.mxu0 0.0
        %8255 = vmatprep.subr.mxu0 0.0
        %8256 = vmatpush1.msra.mxu0 0.0
        %8257 = vmatprep.subr.mxu0 0.0
        %8258 = vmatpush1.msra.mxu0 0.0
        %8259 = vmatprep.subr.mxu0 0.0
        %8260 = vmatpush1.msra.mxu0 0.0
        %8261 = vmatprep.mubr.f32.mxu0 0.0
        %v8262 = vand.u32 %v7968, 4294901760
        %v8263 = vsub.f32 %v7968, %v8262
        %v8264 = vand.u32 %v8263, 4294901760
        %8265 = vmatmul.mubr.f32.gmra.mrb[0].mxu0 %v8264
        %v8266 = vpop.f32.mrb[0].mxu0
        %v8267 = vadd.f32 %v8193, %v8266
        %v8268 = vpop.f32.mrb[0].mxu0
        %8269 = vdwg.mxu0
        %8270 = vmatprep.subr.mxu0 0.0
        %v8271 = vand.u32 %v7966, 4294901760
        %v8272 = vsub.f32 %v7966, %v8271
        %v8273 = vand.u32 %v8272, 4294901760
        %8274 = vmatpush1.msra.mxu0 %v8273
        %8275 = vmatprep.subr.mxu0 0.0
        %8276 = vmatpush1.msra.mxu0 0.0
        %8277 = vmatprep.subr.mxu0 0.0
        %8278 = vmatpush1.msra.mxu0 0.0
        %8279 = vmatprep.subr.mxu0 0.0
        %8280 = vmatpush1.msra.mxu0 0.0
        %8281 = vmatprep.subr.mxu0 0.0
        %8282 = vmatpush1.msra.mxu0 0.0
        %8283 = vmatprep.subr.mxu0 0.0
        %8284 = vmatpush1.msra.mxu0 0.0
        %8285 = vmatprep.subr.mxu0 0.0
        %8286 = vmatpush1.msra.mxu0 0.0
        %8287 = vmatprep.subr.mxu0 0.0
        %8288 = vmatpush1.msra.mxu0 0.0
        %8289 = vmatprep.subr.mxu0 0.0
        %8290 = vmatpush1.msra.mxu0 0.0
        %8291 = vmatprep.subr.mxu0 0.0
        %8292 = vmatpush1.msra.mxu0 0.0
        %8293 = vmatprep.subr.mxu0 0.0
        %8294 = vmatpush1.msra.mxu0 0.0
        %8295 = vmatprep.subr.mxu0 0.0
        %8296 = vmatpush1.msra.mxu0 0.0
        %8297 = vmatprep.subr.mxu0 0.0
        %8298 = vmatpush1.msra.mxu0 0.0
        %8299 = vmatprep.subr.mxu0 0.0
        %8300 = vmatpush1.msra.mxu0 0.0
        %8301 = vmatprep.subr.mxu0 0.0
        %8302 = vmatpush1.msra.mxu0 0.0
        %8303 = vmatprep.subr.mxu0 0.0
        %8304 = vmatpush1.msra.mxu0 0.0
        %8305 = vmatprep.subr.mxu0 0.0
        %8306 = vmatpush1.msra.mxu0 0.0
        %8307 = vmatprep.subr.mxu0 0.0
        %8308 = vmatpush1.msra.mxu0 0.0
        %8309 = vmatprep.subr.mxu0 0.0
        %8310 = vmatpush1.msra.mxu0 0.0
        %8311 = vmatprep.subr.mxu0 0.0
        %8312 = vmatpush1.msra.mxu0 0.0
        %8313 = vmatprep.subr.mxu0 0.0
        %8314 = vmatpush1.msra.mxu0 0.0
        %8315 = vmatprep.subr.mxu0 0.0
        %8316 = vmatpush1.msra.mxu0 0.0
        %8317 = vmatprep.subr.mxu0 0.0
        %8318 = vmatpush1.msra.mxu0 0.0
        %8319 = vmatprep.subr.mxu0 0.0
        %8320 = vmatpush1.msra.mxu0 0.0
        %8321 = vmatprep.subr.mxu0 0.0
        %8322 = vmatpush1.msra.mxu0 0.0
        %8323 = vmatprep.subr.mxu0 0.0
        %8324 = vmatpush1.msra.mxu0 0.0
        %8325 = vmatprep.subr.mxu0 0.0
        %8326 = vmatpush1.msra.mxu0 0.0
        %8327 = vmatprep.subr.mxu0 0.0
        %8328 = vmatpush1.msra.mxu0 0.0
        %8329 = vmatprep.subr.mxu0 0.0
        %8330 = vmatpush1.msra.mxu0 0.0
        %8331 = vmatprep.subr.mxu0 0.0
        %8332 = vmatpush1.msra.mxu0 0.0
        %8333 = vmatprep.subr.mxu0 0.0
        %8334 = vmatpush1.msra.mxu0 0.0
        %8335 = vmatprep.subr.mxu0 0.0
        %8336 = vmatpush1.msra.mxu0 0.0
        %8337 = vmatprep.mubr.f32.mxu0 0.0
        %v8338 = vand.u32 %v7968, 4294901760
        %8339 = vmatmul.mubr.f32.gmra.mrb[0].mxu0 %v8338
        %v8340 = vpop.f32.mrb[0].mxu0
        %v8341 = vadd.f32 %v8267, %v8340
        %v8342 = vpop.f32.mrb[0].mxu0
        %8343 = vdwg.mxu0
        %8344 = vmatprep.subr.mxu0 0.0
        %v8345 = vand.u32 %v7966, 4294901760
        %8346 = vmatpush1.msra.mxu0 %v8345
        %8347 = vmatprep.subr.mxu0 0.0
        %8348 = vmatpush1.msra.mxu0 0.0
        %8349 = vmatprep.subr.mxu0 0.0
        %8350 = vmatpush1.msra.mxu0 0.0
        %8351 = vmatprep.subr.mxu0 0.0
        %8352 = vmatpush1.msra.mxu0 0.0
        %8353 = vmatprep.subr.mxu0 0.0
        %8354 = vmatpush1.msra.mxu0 0.0
        %8355 = vmatprep.subr.mxu0 0.0
        %8356 = vmatpush1.msra.mxu0 0.0
        %8357 = vmatprep.subr.mxu0 0.0
        %8358 = vmatpush1.msra.mxu0 0.0
        %8359 = vmatprep.subr.mxu0 0.0
        %8360 = vmatpush1.msra.mxu0 0.0
        %8361 = vmatprep.subr.mxu0 0.0
        %8362 = vmatpush1.msra.mxu0 0.0
        %8363 = vmatprep.subr.mxu0 0.0
        %8364 = vmatpush1.msra.mxu0 0.0
        %8365 = vmatprep.subr.mxu0 0.0
        %8366 = vmatpush1.msra.mxu0 0.0
        %8367 = vmatprep.subr.mxu0 0.0
        %8368 = vmatpush1.msra.mxu0 0.0
        %8369 = vmatprep.subr.mxu0 0.0
        %8370 = vmatpush1.msra.mxu0 0.0
        %8371 = vmatprep.subr.mxu0 0.0
        %8372 = vmatpush1.msra.mxu0 0.0
        %8373 = vmatprep.subr.mxu0 0.0
        %8374 = vmatpush1.msra.mxu0 0.0
        %8375 = vmatprep.subr.mxu0 0.0
        %8376 = vmatpush1.msra.mxu0 0.0
        %8377 = vmatprep.subr.mxu0 0.0
        %8378 = vmatpush1.msra.mxu0 0.0
        %8379 = vmatprep.subr.mxu0 0.0
        %8380 = vmatpush1.msra.mxu0 0.0
        %8381 = vmatprep.subr.mxu0 0.0
        %8382 = vmatpush1.msra.mxu0 0.0
        %8383 = vmatprep.subr.mxu0 0.0
        %8384 = vmatpush1.msra.mxu0 0.0
        %8385 = vmatprep.subr.mxu0 0.0
        %8386 = vmatpush1.msra.mxu0 0.0
        %8387 = vmatprep.subr.mxu0 0.0
        %8388 = vmatpush1.msra.mxu0 0.0
        %8389 = vmatprep.subr.mxu0 0.0
        %8390 = vmatpush1.msra.mxu0 0.0
        %8391 = vmatprep.subr.mxu0 0.0
        %8392 = vmatpush1.msra.mxu0 0.0
        %8393 = vmatprep.subr.mxu0 0.0
        %8394 = vmatpush1.msra.mxu0 0.0
        %8395 = vmatprep.subr.mxu0 0.0
        %8396 = vmatpush1.msra.mxu0 0.0
        %8397 = vmatprep.subr.mxu0 0.0
        %8398 = vmatpush1.msra.mxu0 0.0
        %8399 = vmatprep.subr.mxu0 0.0
        %8400 = vmatpush1.msra.mxu0 0.0
        %8401 = vmatprep.subr.mxu0 0.0
        %8402 = vmatpush1.msra.mxu0 0.0
        %8403 = vmatprep.subr.mxu0 0.0
        %8404 = vmatpush1.msra.mxu0 0.0
        %8405 = vmatprep.subr.mxu0 0.0
        %8406 = vmatpush1.msra.mxu0 0.0
        %8407 = vmatprep.subr.mxu0 0.0
        %8408 = vmatpush1.msra.mxu0 0.0
        %8409 = vmatprep.mubr.f32.mxu0 0.0
        %v8410 = vand.u32 %v7968, 4294901760
        %8411 = vmatmul.mubr.f32.gmra.mrb[0].mxu0 %v8410
        %v8412 = vpop.f32.mrb[0].mxu0
        %v8413 = vadd.f32 %v8341, %v8412
        %v8414 = vpop.f32.mrb[0].mxu0
        %8415 = vdwg.mxu0
        %v8416 = vadd.f32 %v7053, %v8413
        %v8417 = vld [vmem:[%s9] sm:$0x1]
        %v8419 = vlaneseq
        %v8420 = vshrl.u32 %v8419, 7
        %v8421 = vsub.s32 0, %v8420
        %v8422 = vrot.slane %v8417, %v8421
        %v8424 = vadd.f32 %v8416, %v8422
        %v8425 = vadd.f32 %v8424, %v595
        %v8426 = vld [vmem:[%s10] sm:$0x1]
        %v8427 = vld [vmem:[%s11] sm:$0x1]
        %vm8428 = vcmask 261120
        %v8429 = vsel %vm8428, %v8425, 0.0
        %8430 = vadd.xlane.f32.xlu0 %v8429
        %v8431 = vpop.xlane.xlu0 %8430
        %v8432 = vrcp.pop 32.0
        %v8433 = vmul.f32 %v8431, %v8432
        %v8434 = vsub.f32 %v8425, %v8433
        %v8435 = vmul.f32 %v8434, %v8434
        %v8436 = vsel %vm8428, %v8435, 0.0
        %8437 = vadd.xlane.f32.xlu0 %v8436
        %v8438 = vpop.xlane.xlu0 %8437
        %v8439 = vmul.f32 %v8438, %v8432
        %v8440 = vadd.f32 %v8439, 1e-05
        %v8441 = vrsqrt.pop %v8440
        %v8442 = vmul.f32 %v8434, %v8441
        %v8444 = vlaneseq
        %v8445 = vshrl.u32 %v8444, 7
        %v8446 = vsub.s32 0, %v8445
        %v8447 = vrot.slane %v8426, %v8446
        %v8449 = vmul.f32 %v8442, %v8447
        %v8451 = vlaneseq
        %v8452 = vshrl.u32 %v8451, 7
        %v8453 = vsub.s32 0, %v8452
        %v8454 = vrot.slane %v8427, %v8453
        %v8456 = vadd.f32 %v8449, %v8454
        %v8457 = vld [vmem:[%s12] sm:$0xff]
        %v8458 = vld [vmem:[%s12 + $0x8] sm:$0xff]
        %v8459 = vld [vmem:[%s12 + $0x10] sm:$0xff]
        %v8460 = vld [vmem:[%s12 + $0x18] sm:$0xff]
        %v8461 = vld [vmem:[%s13] sm:$0x1]
        %v8463 = vlaneseq
        %v8464 = vshrl.u32 %v8463, 7
        %v8465 = vsub.s32 0, %v8464
        %v8466 = vrot.slane %v8461, %v8465
        %v8469 = vsel %vm8428, %v8456, 0
        %8471 = vmatprep.subr.mxu0 0.0
        %v8472 = vand.u32 %v8457, 4294901760
        %8473 = vmatpush1.msra.mxu0 %v8472
        %8474 = vmatprep.subr.mxu0 0.0
        %v8475 = vand.u32 %v8458, 4294901760
        %8476 = vmatpush1.msra.mxu0 %v8475
        %8477 = vmatprep.subr.mxu0 0.0
        %v8478 = vand.u32 %v8459, 4294901760
        %8479 = vmatpush1.msra.mxu0 %v8478
        %8480 = vmatprep.subr.mxu0 0.0
        %v8481 = vand.u32 %v8460, 4294901760
        %8482 = vmatpush1.msra.mxu0 %v8481
        %8483 = vmatprep.subr.mxu0 0.0
        %8484 = vmatpush1.msra.mxu0 0.0
        %8485 = vmatprep.subr.mxu0 0.0
        %8486 = vmatpush1.msra.mxu0 0.0
        %8487 = vmatprep.subr.mxu0 0.0
        %8488 = vmatpush1.msra.mxu0 0.0
        %8489 = vmatprep.subr.mxu0 0.0
        %8490 = vmatpush1.msra.mxu0 0.0
        %8491 = vmatprep.subr.mxu0 0.0
        %8492 = vmatpush1.msra.mxu0 0.0
        %8493 = vmatprep.subr.mxu0 0.0
        %8494 = vmatpush1.msra.mxu0 0.0
        %8495 = vmatprep.subr.mxu0 0.0
        %8496 = vmatpush1.msra.mxu0 0.0
        %8497 = vmatprep.subr.mxu0 0.0
        %8498 = vmatpush1.msra.mxu0 0.0
        %8499 = vmatprep.subr.mxu0 0.0
        %8500 = vmatpush1.msra.mxu0 0.0
        %8501 = vmatprep.subr.mxu0 0.0
        %8502 = vmatpush1.msra.mxu0 0.0
        %8503 = vmatprep.subr.mxu0 0.0
        %8504 = vmatpush1.msra.mxu0 0.0
        %8505 = vmatprep.subr.mxu0 0.0
        %8506 = vmatpush1.msra.mxu0 0.0
        %8507 = vmatprep.subr.mxu0 0.0
        %8508 = vmatpush1.msra.mxu0 0.0
        %8509 = vmatprep.subr.mxu0 0.0
        %8510 = vmatpush1.msra.mxu0 0.0
        %8511 = vmatprep.subr.mxu0 0.0
        %8512 = vmatpush1.msra.mxu0 0.0
        %8513 = vmatprep.subr.mxu0 0.0
        %8514 = vmatpush1.msra.mxu0 0.0
        %8515 = vmatprep.subr.mxu0 0.0
        %8516 = vmatpush1.msra.mxu0 0.0
        %8517 = vmatprep.subr.mxu0 0.0
        %8518 = vmatpush1.msra.mxu0 0.0
        %8519 = vmatprep.subr.mxu0 0.0
        %8520 = vmatpush1.msra.mxu0 0.0
        %8521 = vmatprep.subr.mxu0 0.0
        %8522 = vmatpush1.msra.mxu0 0.0
        %8523 = vmatprep.subr.mxu0 0.0
        %8524 = vmatpush1.msra.mxu0 0.0
        %8525 = vmatprep.subr.mxu0 0.0
        %8526 = vmatpush1.msra.mxu0 0.0
        %8527 = vmatprep.subr.mxu0 0.0
        %8528 = vmatpush1.msra.mxu0 0.0
        %8529 = vmatprep.subr.mxu0 0.0
        %8530 = vmatpush1.msra.mxu0 0.0
        %8531 = vmatprep.subr.mxu0 0.0
        %8532 = vmatpush1.msra.mxu0 0.0
        %8533 = vmatprep.subr.mxu0 0.0
        %8534 = vmatpush1.msra.mxu0 0.0
        %8535 = vmatprep.subr.mxu0 0.0
        %8536 = vmatpush1.msra.mxu0 0.0
        %8537 = vmatprep.subr.mxu0 0.0
        %8538 = vmatpush1.msra.mxu0 0.0
        %8539 = vmatprep.mubr.f32.mxu0 0.0
        %v8540 = vand.u32 %v8469, 4294901760
        %v8541 = vsub.f32 %v8469, %v8540
        %v8542 = vand.u32 %v8541, 4294901760
        %v8543 = vsub.f32 %v8541, %v8542
        %v8544 = vand.u32 %v8543, 4294901760
        %8545 = vmatmul.mubr.f32.gmra.mrb[0].mxu0 %v8544
        %v8546 = vpop.f32.mrb[0].mxu0
        %v8547 = vadd.f32 %v8466, %v8546
        %v8548 = vpop.f32.mrb[0].mxu0
        %8549 = vdwg.mxu0
        %8550 = vmatprep.subr.mxu0 0.0
        %v8551 = vand.u32 %v8457, 4294901760
        %v8552 = vsub.f32 %v8457, %v8551
        %v8553 = vand.u32 %v8552, 4294901760
        %v8554 = vsub.f32 %v8552, %v8553
        %v8555 = vand.u32 %v8554, 4294901760
        %8556 = vmatpush1.msra.mxu0 %v8555
        %8557 = vmatprep.subr.mxu0 0.0
        %v8558 = vand.u32 %v8458, 4294901760
        %v8559 = vsub.f32 %v8458, %v8558
        %v8560 = vand.u32 %v8559, 4294901760
        %v8561 = vsub.f32 %v8559, %v8560
        %v8562 = vand.u32 %v8561, 4294901760
        %8563 = vmatpush1.msra.mxu0 %v8562
        %8564 = vmatprep.subr.mxu0 0.0
        %v8565 = vand.u32 %v8459, 4294901760
        %v8566 = vsub.f32 %v8459, %v8565
        %v8567 = vand.u32 %v8566, 4294901760
        %v8568 = vsub.f32 %v8566, %v8567
        %v8569 = vand.u32 %v8568, 4294901760
        %8570 = vmatpush1.msra.mxu0 %v8569
        %8571 = vmatprep.subr.mxu0 0.0
        %v8572 = vand.u32 %v8460, 4294901760
        %v8573 = vsub.f32 %v8460, %v8572
        %v8574 = vand.u32 %v8573, 4294901760
        %v8575 = vsub.f32 %v8573, %v8574
        %v8576 = vand.u32 %v8575, 4294901760
        %8577 = vmatpush1.msra.mxu0 %v8576
        %8578 = vmatprep.subr.mxu0 0.0
        %8579 = vmatpush1.msra.mxu0 0.0
        %8580 = vmatprep.subr.mxu0 0.0
        %8581 = vmatpush1.msra.mxu0 0.0
        %8582 = vmatprep.subr.mxu0 0.0
        %8583 = vmatpush1.msra.mxu0 0.0
        %8584 = vmatprep.subr.mxu0 0.0
        %8585 = vmatpush1.msra.mxu0 0.0
        %8586 = vmatprep.subr.mxu0 0.0
        %8587 = vmatpush1.msra.mxu0 0.0
        %8588 = vmatprep.subr.mxu0 0.0
        %8589 = vmatpush1.msra.mxu0 0.0
        %8590 = vmatprep.subr.mxu0 0.0
        %8591 = vmatpush1.msra.mxu0 0.0
        %8592 = vmatprep.subr.mxu0 0.0
        %8593 = vmatpush1.msra.mxu0 0.0
        %8594 = vmatprep.subr.mxu0 0.0
        %8595 = vmatpush1.msra.mxu0 0.0
        %8596 = vmatprep.subr.mxu0 0.0
        %8597 = vmatpush1.msra.mxu0 0.0
        %8598 = vmatprep.subr.mxu0 0.0
        %8599 = vmatpush1.msra.mxu0 0.0
        %8600 = vmatprep.subr.mxu0 0.0
        %8601 = vmatpush1.msra.mxu0 0.0
        %8602 = vmatprep.subr.mxu0 0.0
        %8603 = vmatpush1.msra.mxu0 0.0
        %8604 = vmatprep.subr.mxu0 0.0
        %8605 = vmatpush1.msra.mxu0 0.0
        %8606 = vmatprep.subr.mxu0 0.0
        %8607 = vmatpush1.msra.mxu0 0.0
        %8608 = vmatprep.subr.mxu0 0.0
        %8609 = vmatpush1.msra.mxu0 0.0
        %8610 = vmatprep.subr.mxu0 0.0
        %8611 = vmatpush1.msra.mxu0 0.0
        %8612 = vmatprep.subr.mxu0 0.0
        %8613 = vmatpush1.msra.mxu0 0.0
        %8614 = vmatprep.subr.mxu0 0.0
        %8615 = vmatpush1.msra.mxu0 0.0
        %8616 = vmatprep.subr.mxu0 0.0
        %8617 = vmatpush1.msra.mxu0 0.0
        %8618 = vmatprep.subr.mxu0 0.0
        %8619 = vmatpush1.msra.mxu0 0.0
        %8620 = vmatprep.subr.mxu0 0.0
        %8621 = vmatpush1.msra.mxu0 0.0
        %8622 = vmatprep.subr.mxu0 0.0
        %8623 = vmatpush1.msra.mxu0 0.0
        %8624 = vmatprep.subr.mxu0 0.0
        %8625 = vmatpush1.msra.mxu0 0.0
        %8626 = vmatprep.subr.mxu0 0.0
        %8627 = vmatpush1.msra.mxu0 0.0
        %8628 = vmatprep.subr.mxu0 0.0
        %8629 = vmatpush1.msra.mxu0 0.0
        %8630 = vmatprep.subr.mxu0 0.0
        %8631 = vmatpush1.msra.mxu0 0.0
        %8632 = vmatprep.subr.mxu0 0.0
        %8633 = vmatpush1.msra.mxu0 0.0
        %8634 = vmatprep.mubr.f32.mxu0 0.0
        %v8635 = vand.u32 %v8469, 4294901760
        %8636 = vmatmul.mubr.f32.gmra.mrb[0].mxu0 %v8635
        %v8637 = vpop.f32.mrb[0].mxu0
        %v8638 = vadd.f32 %v8547, %v8637
        %v8639 = vpop.f32.mrb[0].mxu0
        %8640 = vdwg.mxu0
        %8641 = vmatprep.subr.mxu0 0.0
        %v8642 = vand.u32 %v8457, 4294901760
        %v8643 = vsub.f32 %v8457, %v8642
        %8644 = vmatpush1.msra.mxu0 %v8643
        %8645 = vmatprep.subr.mxu0 0.0
        %v8646 = vand.u32 %v8458, 4294901760
        %v8647 = vsub.f32 %v8458, %v8646
        %8648 = vmatpush1.msra.mxu0 %v8647
        %8649 = vmatprep.subr.mxu0 0.0
        %v8650 = vand.u32 %v8459, 4294901760
        %v8651 = vsub.f32 %v8459, %v8650
        %8652 = vmatpush1.msra.mxu0 %v8651
        %8653 = vmatprep.subr.mxu0 0.0
        %v8654 = vand.u32 %v8460, 4294901760
        %v8655 = vsub.f32 %v8460, %v8654
        %8656 = vmatpush1.msra.mxu0 %v8655
        %8657 = vmatprep.subr.mxu0 0.0
        %8658 = vmatpush1.msra.mxu0 0.0
        %8659 = vmatprep.subr.mxu0 0.0
        %8660 = vmatpush1.msra.mxu0 0.0
        %8661 = vmatprep.subr.mxu0 0.0
        %8662 = vmatpush1.msra.mxu0 0.0
        %8663 = vmatprep.subr.mxu0 0.0
        %8664 = vmatpush1.msra.mxu0 0.0
        %8665 = vmatprep.subr.mxu0 0.0
        %8666 = vmatpush1.msra.mxu0 0.0
        %8667 = vmatprep.subr.mxu0 0.0
        %8668 = vmatpush1.msra.mxu0 0.0
        %8669 = vmatprep.subr.mxu0 0.0
        %8670 = vmatpush1.msra.mxu0 0.0
        %8671 = vmatprep.subr.mxu0 0.0
        %8672 = vmatpush1.msra.mxu0 0.0
        %8673 = vmatprep.subr.mxu0 0.0
        %8674 = vmatpush1.msra.mxu0 0.0
        %8675 = vmatprep.subr.mxu0 0.0
        %8676 = vmatpush1.msra.mxu0 0.0
        %8677 = vmatprep.subr.mxu0 0.0
        %8678 = vmatpush1.msra.mxu0 0.0
        %8679 = vmatprep.subr.mxu0 0.0
        %8680 = vmatpush1.msra.mxu0 0.0
        %8681 = vmatprep.subr.mxu0 0.0
        %8682 = vmatpush1.msra.mxu0 0.0
        %8683 = vmatprep.subr.mxu0 0.0
        %8684 = vmatpush1.msra.mxu0 0.0
        %8685 = vmatprep.subr.mxu0 0.0
        %8686 = vmatpush1.msra.mxu0 0.0
        %8687 = vmatprep.subr.mxu0 0.0
        %8688 = vmatpush1.msra.mxu0 0.0
        %8689 = vmatprep.subr.mxu0 0.0
        %8690 = vmatpush1.msra.mxu0 0.0
        %8691 = vmatprep.subr.mxu0 0.0
        %8692 = vmatpush1.msra.mxu0 0.0
        %8693 = vmatprep.subr.mxu0 0.0
        %8694 = vmatpush1.msra.mxu0 0.0
        %8695 = vmatprep.subr.mxu0 0.0
        %8696 = vmatpush1.msra.mxu0 0.0
        %8697 = vmatprep.subr.mxu0 0.0
        %8698 = vmatpush1.msra.mxu0 0.0
        %8699 = vmatprep.subr.mxu0 0.0
        %8700 = vmatpush1.msra.mxu0 0.0
        %8701 = vmatprep.subr.mxu0 0.0
        %8702 = vmatpush1.msra.mxu0 0.0
        %8703 = vmatprep.subr.mxu0 0.0
        %8704 = vmatpush1.msra.mxu0 0.0
        %8705 = vmatprep.subr.mxu0 0.0
        %8706 = vmatpush1.msra.mxu0 0.0
        %8707 = vmatprep.subr.mxu0 0.0
        %8708 = vmatpush1.msra.mxu0 0.0
        %8709 = vmatprep.subr.mxu0 0.0
        %8710 = vmatpush1.msra.mxu0 0.0
        %8711 = vmatprep.subr.mxu0 0.0
        %8712 = vmatpush1.msra.mxu0 0.0
        %8713 = vmatprep.mubr.f32.mxu0 0.0
        %v8714 = vand.u32 %v8469, 4294901760
        %v8715 = vsub.f32 %v8469, %v8714
        %8716 = vmatmul.mubr.f32.gmra.mrb[0].mxu0 %v8715
        %v8717 = vpop.f32.mrb[0].mxu0
        %v8718 = vadd.f32 %v8638, %v8717
        %v8719 = vpop.f32.mrb[0].mxu0
        %8720 = vdwg.mxu0
        %8721 = vmatprep.subr.mxu0 0.0
        %v8722 = vand.u32 %v8457, 4294901760
        %8723 = vmatpush1.msra.mxu0 %v8722
        %8724 = vmatprep.subr.mxu0 0.0
        %v8725 = vand.u32 %v8458, 4294901760
        %8726 = vmatpush1.msra.mxu0 %v8725
        %8727 = vmatprep.subr.mxu0 0.0
        %v8728 = vand.u32 %v8459, 4294901760
        %8729 = vmatpush1.msra.mxu0 %v8728
        %8730 = vmatprep.subr.mxu0 0.0
        %v8731 = vand.u32 %v8460, 4294901760
        %8732 = vmatpush1.msra.mxu0 %v8731
        %8733 = vmatprep.subr.mxu0 0.0
        %8734 = vmatpush1.msra.mxu0 0.0
        %8735 = vmatprep.subr.mxu0 0.0
        %8736 = vmatpush1.msra.mxu0 0.0
        %8737 = vmatprep.subr.mxu0 0.0
        %8738 = vmatpush1.msra.mxu0 0.0
        %8739 = vmatprep.subr.mxu0 0.0
        %8740 = vmatpush1.msra.mxu0 0.0
        %8741 = vmatprep.subr.mxu0 0.0
        %8742 = vmatpush1.msra.mxu0 0.0
        %8743 = vmatprep.subr.mxu0 0.0
        %8744 = vmatpush1.msra.mxu0 0.0
        %8745 = vmatprep.subr.mxu0 0.0
        %8746 = vmatpush1.msra.mxu0 0.0
        %8747 = vmatprep.subr.mxu0 0.0
        %8748 = vmatpush1.msra.mxu0 0.0
        %8749 = vmatprep.subr.mxu0 0.0
        %8750 = vmatpush1.msra.mxu0 0.0
        %8751 = vmatprep.subr.mxu0 0.0
        %8752 = vmatpush1.msra.mxu0 0.0
        %8753 = vmatprep.subr.mxu0 0.0
        %8754 = vmatpush1.msra.mxu0 0.0
        %8755 = vmatprep.subr.mxu0 0.0
        %8756 = vmatpush1.msra.mxu0 0.0
        %8757 = vmatprep.subr.mxu0 0.0
        %8758 = vmatpush1.msra.mxu0 0.0
        %8759 = vmatprep.subr.mxu0 0.0
        %8760 = vmatpush1.msra.mxu0 0.0
        %8761 = vmatprep.subr.mxu0 0.0
        %8762 = vmatpush1.msra.mxu0 0.0
        %8763 = vmatprep.subr.mxu0 0.0
        %8764 = vmatpush1.msra.mxu0 0.0
        %8765 = vmatprep.subr.mxu0 0.0
        %8766 = vmatpush1.msra.mxu0 0.0
        %8767 = vmatprep.subr.mxu0 0.0
        %8768 = vmatpush1.msra.mxu0 0.0
        %8769 = vmatprep.subr.mxu0 0.0
        %8770 = vmatpush1.msra.mxu0 0.0
        %8771 = vmatprep.subr.mxu0 0.0
        %8772 = vmatpush1.msra.mxu0 0.0
        %8773 = vmatprep.subr.mxu0 0.0
        %8774 = vmatpush1.msra.mxu0 0.0
        %8775 = vmatprep.subr.mxu0 0.0
        %8776 = vmatpush1.msra.mxu0 0.0
        %8777 = vmatprep.subr.mxu0 0.0
        %8778 = vmatpush1.msra.mxu0 0.0
        %8779 = vmatprep.subr.mxu0 0.0
        %8780 = vmatpush1.msra.mxu0 0.0
        %8781 = vmatprep.subr.mxu0 0.0
        %8782 = vmatpush1.msra.mxu0 0.0
        %8783 = vmatprep.subr.mxu0 0.0
        %8784 = vmatpush1.msra.mxu0 0.0
        %8785 = vmatprep.subr.mxu0 0.0
        %8786 = vmatpush1.msra.mxu0 0.0
        %8787 = vmatprep.subr.mxu0 0.0
        %8788 = vmatpush1.msra.mxu0 0.0
        %8789 = vmatprep.mubr.f32.mxu0 0.0
        %v8790 = vand.u32 %v8469, 4294901760
        %v8791 = vsub.f32 %v8469, %v8790
        %v8792 = vand.u32 %v8791, 4294901760
        %8793 = vmatmul.mubr.f32.gmra.mrb[0].mxu0 %v8792
        %v8794 = vpop.f32.mrb[0].mxu0
        %v8795 = vadd.f32 %v8718, %v8794
        %v8796 = vpop.f32.mrb[0].mxu0
        %8797 = vdwg.mxu0
        %8798 = vmatprep.subr.mxu0 0.0
        %v8799 = vand.u32 %v8457, 4294901760
        %v8800 = vsub.f32 %v8457, %v8799
        %v8801 = vand.u32 %v8800, 4294901760
        %8802 = vmatpush1.msra.mxu0 %v8801
        %8803 = vmatprep.subr.mxu0 0.0
        %v8804 = vand.u32 %v8458, 4294901760
        %v8805 = vsub.f32 %v8458, %v8804
        %v8806 = vand.u32 %v8805, 4294901760
        %8807 = vmatpush1.msra.mxu0 %v8806
        %8808 = vmatprep.subr.mxu0 0.0
        %v8809 = vand.u32 %v8459, 4294901760
        %v8810 = vsub.f32 %v8459, %v8809
        %v8811 = vand.u32 %v8810, 4294901760
        %8812 = vmatpush1.msra.mxu0 %v8811
        %8813 = vmatprep.subr.mxu0 0.0
        %v8814 = vand.u32 %v8460, 4294901760
        %v8815 = vsub.f32 %v8460, %v8814
        %v8816 = vand.u32 %v8815, 4294901760
        %8817 = vmatpush1.msra.mxu0 %v8816
        %8818 = vmatprep.subr.mxu0 0.0
        %8819 = vmatpush1.msra.mxu0 0.0
        %8820 = vmatprep.subr.mxu0 0.0
        %8821 = vmatpush1.msra.mxu0 0.0
        %8822 = vmatprep.subr.mxu0 0.0
        %8823 = vmatpush1.msra.mxu0 0.0
        %8824 = vmatprep.subr.mxu0 0.0
        %8825 = vmatpush1.msra.mxu0 0.0
        %8826 = vmatprep.subr.mxu0 0.0
        %8827 = vmatpush1.msra.mxu0 0.0
        %8828 = vmatprep.subr.mxu0 0.0
        %8829 = vmatpush1.msra.mxu0 0.0
        %8830 = vmatprep.subr.mxu0 0.0
        %8831 = vmatpush1.msra.mxu0 0.0
        %8832 = vmatprep.subr.mxu0 0.0
        %8833 = vmatpush1.msra.mxu0 0.0
        %8834 = vmatprep.subr.mxu0 0.0
        %8835 = vmatpush1.msra.mxu0 0.0
        %8836 = vmatprep.subr.mxu0 0.0
        %8837 = vmatpush1.msra.mxu0 0.0
        %8838 = vmatprep.subr.mxu0 0.0
        %8839 = vmatpush1.msra.mxu0 0.0
        %8840 = vmatprep.subr.mxu0 0.0
        %8841 = vmatpush1.msra.mxu0 0.0
        %8842 = vmatprep.subr.mxu0 0.0
        %8843 = vmatpush1.msra.mxu0 0.0
        %8844 = vmatprep.subr.mxu0 0.0
        %8845 = vmatpush1.msra.mxu0 0.0
        %8846 = vmatprep.subr.mxu0 0.0
        %8847 = vmatpush1.msra.mxu0 0.0
        %8848 = vmatprep.subr.mxu0 0.0
        %8849 = vmatpush1.msra.mxu0 0.0
        %8850 = vmatprep.subr.mxu0 0.0
        %8851 = vmatpush1.msra.mxu0 0.0
        %8852 = vmatprep.subr.mxu0 0.0
        %8853 = vmatpush1.msra.mxu0 0.0
        %8854 = vmatprep.subr.mxu0 0.0
        %8855 = vmatpush1.msra.mxu0 0.0
        %8856 = vmatprep.subr.mxu0 0.0
        %8857 = vmatpush1.msra.mxu0 0.0
        %8858 = vmatprep.subr.mxu0 0.0
        %8859 = vmatpush1.msra.mxu0 0.0
        %8860 = vmatprep.subr.mxu0 0.0
        %8861 = vmatpush1.msra.mxu0 0.0
        %8862 = vmatprep.subr.mxu0 0.0
        %8863 = vmatpush1.msra.mxu0 0.0
        %8864 = vmatprep.subr.mxu0 0.0
        %8865 = vmatpush1.msra.mxu0 0.0
        %8866 = vmatprep.subr.mxu0 0.0
        %8867 = vmatpush1.msra.mxu0 0.0
        %8868 = vmatprep.subr.mxu0 0.0
        %8869 = vmatpush1.msra.mxu0 0.0
        %8870 = vmatprep.subr.mxu0 0.0
        %8871 = vmatpush1.msra.mxu0 0.0
        %8872 = vmatprep.subr.mxu0 0.0
        %8873 = vmatpush1.msra.mxu0 0.0
        %8874 = vmatprep.mubr.f32.mxu0 0.0
        %v8875 = vand.u32 %v8469, 4294901760
        %8876 = vmatmul.mubr.f32.gmra.mrb[0].mxu0 %v8875
        %v8877 = vpop.f32.mrb[0].mxu0
        %v8878 = vadd.f32 %v8795, %v8877
        %v8879 = vpop.f32.mrb[0].mxu0
        %8880 = vdwg.mxu0
        %8881 = vmatprep.subr.mxu0 0.0
        %v8882 = vand.u32 %v8457, 4294901760
        %8883 = vmatpush1.msra.mxu0 %v8882
        %8884 = vmatprep.subr.mxu0 0.0
        %v8885 = vand.u32 %v8458, 4294901760
        %8886 = vmatpush1.msra.mxu0 %v8885
        %8887 = vmatprep.subr.mxu0 0.0
        %v8888 = vand.u32 %v8459, 4294901760
        %8889 = vmatpush1.msra.mxu0 %v8888
        %8890 = vmatprep.subr.mxu0 0.0
        %v8891 = vand.u32 %v8460, 4294901760
        %8892 = vmatpush1.msra.mxu0 %v8891
        %8893 = vmatprep.subr.mxu0 0.0
        %8894 = vmatpush1.msra.mxu0 0.0
        %8895 = vmatprep.subr.mxu0 0.0
        %8896 = vmatpush1.msra.mxu0 0.0
        %8897 = vmatprep.subr.mxu0 0.0
        %8898 = vmatpush1.msra.mxu0 0.0
        %8899 = vmatprep.subr.mxu0 0.0
        %8900 = vmatpush1.msra.mxu0 0.0
        %8901 = vmatprep.subr.mxu0 0.0
        %8902 = vmatpush1.msra.mxu0 0.0
        %8903 = vmatprep.subr.mxu0 0.0
        %8904 = vmatpush1.msra.mxu0 0.0
        %8905 = vmatprep.subr.mxu0 0.0
        %8906 = vmatpush1.msra.mxu0 0.0
        %8907 = vmatprep.subr.mxu0 0.0
        %8908 = vmatpush1.msra.mxu0 0.0
        %8909 = vmatprep.subr.mxu0 0.0
        %8910 = vmatpush1.msra.mxu0 0.0
        %8911 = vmatprep.subr.mxu0 0.0
        %8912 = vmatpush1.msra.mxu0 0.0
        %8913 = vmatprep.subr.mxu0 0.0
        %8914 = vmatpush1.msra.mxu0 0.0
        %8915 = vmatprep.subr.mxu0 0.0
        %8916 = vmatpush1.msra.mxu0 0.0
        %8917 = vmatprep.subr.mxu0 0.0
        %8918 = vmatpush1.msra.mxu0 0.0
        %8919 = vmatprep.subr.mxu0 0.0
        %8920 = vmatpush1.msra.mxu0 0.0
        %8921 = vmatprep.subr.mxu0 0.0
        %8922 = vmatpush1.msra.mxu0 0.0
        %8923 = vmatprep.subr.mxu0 0.0
        %8924 = vmatpush1.msra.mxu0 0.0
        %8925 = vmatprep.subr.mxu0 0.0
        %8926 = vmatpush1.msra.mxu0 0.0
        %8927 = vmatprep.subr.mxu0 0.0
        %8928 = vmatpush1.msra.mxu0 0.0
        %8929 = vmatprep.subr.mxu0 0.0
        %8930 = vmatpush1.msra.mxu0 0.0
        %8931 = vmatprep.subr.mxu0 0.0
        %8932 = vmatpush1.msra.mxu0 0.0
        %8933 = vmatprep.subr.mxu0 0.0
        %8934 = vmatpush1.msra.mxu0 0.0
        %8935 = vmatprep.subr.mxu0 0.0
        %8936 = vmatpush1.msra.mxu0 0.0
        %8937 = vmatprep.subr.mxu0 0.0
        %8938 = vmatpush1.msra.mxu0 0.0
        %8939 = vmatprep.subr.mxu0 0.0
        %8940 = vmatpush1.msra.mxu0 0.0
        %8941 = vmatprep.subr.mxu0 0.0
        %8942 = vmatpush1.msra.mxu0 0.0
        %8943 = vmatprep.subr.mxu0 0.0
        %8944 = vmatpush1.msra.mxu0 0.0
        %8945 = vmatprep.subr.mxu0 0.0
        %8946 = vmatpush1.msra.mxu0 0.0
        %8947 = vmatprep.subr.mxu0 0.0
        %8948 = vmatpush1.msra.mxu0 0.0
        %8949 = vmatprep.mubr.f32.mxu0 0.0
        %v8950 = vand.u32 %v8469, 4294901760
        %8951 = vmatmul.mubr.f32.gmra.mrb[0].mxu0 %v8950
        %v8952 = vpop.f32.mrb[0].mxu0
        %v8953 = vadd.f32 %v8878, %v8952
        %v8954 = vpop.f32.mrb[0].mxu0
        %8955 = vdwg.mxu0
        %v8956 = vmul.f32 %v8953, 0.5
        %v8957 = vmul.f32 %v8953, 0.70710677
        %v8958 = verf.f32.pop %v8957
        %v8959 = vadd.f32 %v8958, 1.0
        %v8960 = vmul.f32 %v8956, %v8959
        %v8961 = vld [vmem:[%s14] sm:$0xff]
        %v8962 = vld [vmem:[%s14 + $0x8] sm:$0xff]
        %v8963 = vld [vmem:[%s14 + $0x10] sm:$0xff]
        %v8964 = vld [vmem:[%s14 + $0x18] sm:$0xff]
        %v8965 = vld [vmem:[%s14 + $0x20] sm:$0xff]
        %v8966 = vld [vmem:[%s14 + $0x28] sm:$0xff]
        %v8967 = vld [vmem:[%s14 + $0x30] sm:$0xff]
        %v8968 = vld [vmem:[%s14 + $0x38] sm:$0xff]
        %v8969 = vld [vmem:[%s14 + $0x40] sm:$0xff]
        %v8970 = vld [vmem:[%s14 + $0x48] sm:$0xff]
        %v8971 = vld [vmem:[%s14 + $0x50] sm:$0xff]
        %v8972 = vld [vmem:[%s14 + $0x58] sm:$0xff]
        %v8973 = vld [vmem:[%s14 + $0x60] sm:$0xff]
        %v8974 = vld [vmem:[%s14 + $0x68] sm:$0xff]
        %v8975 = vld [vmem:[%s14 + $0x70] sm:$0xff]
        %v8976 = vld [vmem:[%s14 + $0x78] sm:$0xff]
        %v8977 = vld [vmem:[%s15] sm:$0x1]
        %v8979 = vlaneseq
        %v8980 = vshrl.u32 %v8979, 7
        %v8981 = vsub.s32 0, %v8980
        %v8982 = vrot.slane %v8977, %v8981
        %8984 = vmatprep.subr.mxu0 0.0
        %v8985 = vand.u32 %v8961, 4294901760
        %8986 = vmatpush1.msra.mxu0 %v8985
        %8987 = vmatprep.subr.mxu0 0.0
        %v8988 = vand.u32 %v8962, 4294901760
        %8989 = vmatpush1.msra.mxu0 %v8988
        %8990 = vmatprep.subr.mxu0 0.0
        %v8991 = vand.u32 %v8963, 4294901760
        %8992 = vmatpush1.msra.mxu0 %v8991
        %8993 = vmatprep.subr.mxu0 0.0
        %v8994 = vand.u32 %v8964, 4294901760
        %8995 = vmatpush1.msra.mxu0 %v8994
        %8996 = vmatprep.subr.mxu0 0.0
        %v8997 = vand.u32 %v8965, 4294901760
        %8998 = vmatpush1.msra.mxu0 %v8997
        %8999 = vmatprep.subr.mxu0 0.0
        %v9000 = vand.u32 %v8966, 4294901760
        %9001 = vmatpush1.msra.mxu0 %v9000
        %9002 = vmatprep.subr.mxu0 0.0
        %v9003 = vand.u32 %v8967, 4294901760
        %9004 = vmatpush1.msra.mxu0 %v9003
        %9005 = vmatprep.subr.mxu0 0.0
        %v9006 = vand.u32 %v8968, 4294901760
        %9007 = vmatpush1.msra.mxu0 %v9006
        %9008 = vmatprep.subr.mxu0 0.0
        %v9009 = vand.u32 %v8969, 4294901760
        %9010 = vmatpush1.msra.mxu0 %v9009
        %9011 = vmatprep.subr.mxu0 0.0
        %v9012 = vand.u32 %v8970, 4294901760
        %9013 = vmatpush1.msra.mxu0 %v9012
        %9014 = vmatprep.subr.mxu0 0.0
        %v9015 = vand.u32 %v8971, 4294901760
        %9016 = vmatpush1.msra.mxu0 %v9015
        %9017 = vmatprep.subr.mxu0 0.0
        %v9018 = vand.u32 %v8972, 4294901760
        %9019 = vmatpush1.msra.mxu0 %v9018
        %9020 = vmatprep.subr.mxu0 0.0
        %v9021 = vand.u32 %v8973, 4294901760
        %9022 = vmatpush1.msra.mxu0 %v9021
        %9023 = vmatprep.subr.mxu0 0.0
        %v9024 = vand.u32 %v8974, 4294901760
        %9025 = vmatpush1.msra.mxu0 %v9024
        %9026 = vmatprep.subr.mxu0 0.0
        %v9027 = vand.u32 %v8975, 4294901760
        %9028 = vmatpush1.msra.mxu0 %v9027
        %9029 = vmatprep.subr.mxu0 0.0
        %v9030 = vand.u32 %v8976, 4294901760
        %9031 = vmatpush1.msra.mxu0 %v9030
        %9032 = vmatprep.subr.mxu0 0.0
        %9033 = vmatpush1.msra.mxu0 0.0
        %9034 = vmatprep.subr.mxu0 0.0
        %9035 = vmatpush1.msra.mxu0 0.0
        %9036 = vmatprep.subr.mxu0 0.0
        %9037 = vmatpush1.msra.mxu0 0.0
        %9038 = vmatprep.subr.mxu0 0.0
        %9039 = vmatpush1.msra.mxu0 0.0
        %9040 = vmatprep.subr.mxu0 0.0
        %9041 = vmatpush1.msra.mxu0 0.0
        %9042 = vmatprep.subr.mxu0 0.0
        %9043 = vmatpush1.msra.mxu0 0.0
        %9044 = vmatprep.subr.mxu0 0.0
        %9045 = vmatpush1.msra.mxu0 0.0
        %9046 = vmatprep.subr.mxu0 0.0
        %9047 = vmatpush1.msra.mxu0 0.0
        %9048 = vmatprep.subr.mxu0 0.0
        %9049 = vmatpush1.msra.mxu0 0.0
        %9050 = vmatprep.subr.mxu0 0.0
        %9051 = vmatpush1.msra.mxu0 0.0
        %9052 = vmatprep.subr.mxu0 0.0
        %9053 = vmatpush1.msra.mxu0 0.0
        %9054 = vmatprep.subr.mxu0 0.0
        %9055 = vmatpush1.msra.mxu0 0.0
        %9056 = vmatprep.subr.mxu0 0.0
        %9057 = vmatpush1.msra.mxu0 0.0
        %9058 = vmatprep.subr.mxu0 0.0
        %9059 = vmatpush1.msra.mxu0 0.0
        %9060 = vmatprep.subr.mxu0 0.0
        %9061 = vmatpush1.msra.mxu0 0.0
        %9062 = vmatprep.subr.mxu0 0.0
        %9063 = vmatpush1.msra.mxu0 0.0
        %9064 = vmatprep.mubr.f32.mxu0 0.0
        %v9065 = vand.u32 %v8960, 4294901760
        %v9066 = vsub.f32 %v8960, %v9065
        %v9067 = vand.u32 %v9066, 4294901760
        %v9068 = vsub.f32 %v9066, %v9067
        %v9069 = vand.u32 %v9068, 4294901760
        %9070 = vmatmul.mubr.f32.gmra.mrb[0].mxu0 %v9069
        %v9071 = vpop.f32.mrb[0].mxu0
        %v9072 = vadd.f32 %v8982, %v9071
        %v9073 = vpop.f32.mrb[0].mxu0
        %9074 = vdwg.mxu0
        %9075 = vmatprep.subr.mxu0 0.0
        %v9076 = vand.u32 %v8961, 4294901760
        %v9077 = vsub.f32 %v8961, %v9076
        %v9078 = vand.u32 %v9077, 4294901760
        %v9079 = vsub.f32 %v9077, %v9078
        %v9080 = vand.u32 %v9079, 4294901760
        %9081 = vmatpush1.msra.mxu0 %v9080
        %9082 = vmatprep.subr.mxu0 0.0
        %v9083 = vand.u32 %v8962, 4294901760
        %v9084 = vsub.f32 %v8962, %v9083
        %v9085 = vand.u32 %v9084, 4294901760
        %v9086 = vsub.f32 %v9084, %v9085
        %v9087 = vand.u32 %v9086, 4294901760
        %9088 = vmatpush1.msra.mxu0 %v9087
        %9089 = vmatprep.subr.mxu0 0.0
        %v9090 = vand.u32 %v8963, 4294901760
        %v9091 = vsub.f32 %v8963, %v9090
        %v9092 = vand.u32 %v9091, 4294901760
        %v9093 = vsub.f32 %v9091, %v9092
        %v9094 = vand.u32 %v9093, 4294901760
        %9095 = vmatpush1.msra.mxu0 %v9094
        %9096 = vmatprep.subr.mxu0 0.0
        %v9097 = vand.u32 %v8964, 4294901760
        %v9098 = vsub.f32 %v8964, %v9097
        %v9099 = vand.u32 %v9098, 4294901760
        %v9100 = vsub.f32 %v9098, %v9099
        %v9101 = vand.u32 %v9100, 4294901760
        %9102 = vmatpush1.msra.mxu0 %v9101
        %9103 = vmatprep.subr.mxu0 0.0
        %v9104 = vand.u32 %v8965, 4294901760
        %v9105 = vsub.f32 %v8965, %v9104
        %v9106 = vand.u32 %v9105, 4294901760
        %v9107 = vsub.f32 %v9105, %v9106
        %v9108 = vand.u32 %v9107, 4294901760
        %9109 = vmatpush1.msra.mxu0 %v9108
        %9110 = vmatprep.subr.mxu0 0.0
        %v9111 = vand.u32 %v8966, 4294901760
        %v9112 = vsub.f32 %v8966, %v9111
        %v9113 = vand.u32 %v9112, 4294901760
        %v9114 = vsub.f32 %v9112, %v9113
        %v9115 = vand.u32 %v9114, 4294901760
        %9116 = vmatpush1.msra.mxu0 %v9115
        %9117 = vmatprep.subr.mxu0 0.0
        %v9118 = vand.u32 %v8967, 4294901760
        %v9119 = vsub.f32 %v8967, %v9118
        %v9120 = vand.u32 %v9119, 4294901760
        %v9121 = vsub.f32 %v9119, %v9120
        %v9122 = vand.u32 %v9121, 4294901760
        %9123 = vmatpush1.msra.mxu0 %v9122
        %9124 = vmatprep.subr.mxu0 0.0
        %v9125 = vand.u32 %v8968, 4294901760
        %v9126 = vsub.f32 %v8968, %v9125
        %v9127 = vand.u32 %v9126, 4294901760
        %v9128 = vsub.f32 %v9126, %v9127
        %v9129 = vand.u32 %v9128, 4294901760
        %9130 = vmatpush1.msra.mxu0 %v9129
        %9131 = vmatprep.subr.mxu0 0.0
        %v9132 = vand.u32 %v8969, 4294901760
        %v9133 = vsub.f32 %v8969, %v9132
        %v9134 = vand.u32 %v9133, 4294901760
        %v9135 = vsub.f32 %v9133, %v9134
        %v9136 = vand.u32 %v9135, 4294901760
        %9137 = vmatpush1.msra.mxu0 %v9136
        %9138 = vmatprep.subr.mxu0 0.0
        %v9139 = vand.u32 %v8970, 4294901760
        %v9140 = vsub.f32 %v8970, %v9139
        %v9141 = vand.u32 %v9140, 4294901760
        %v9142 = vsub.f32 %v9140, %v9141
        %v9143 = vand.u32 %v9142, 4294901760
        %9144 = vmatpush1.msra.mxu0 %v9143
        %9145 = vmatprep.subr.mxu0 0.0
        %v9146 = vand.u32 %v8971, 4294901760
        %v9147 = vsub.f32 %v8971, %v9146
        %v9148 = vand.u32 %v9147, 4294901760
        %v9149 = vsub.f32 %v9147, %v9148
        %v9150 = vand.u32 %v9149, 4294901760
        %9151 = vmatpush1.msra.mxu0 %v9150
        %9152 = vmatprep.subr.mxu0 0.0
        %v9153 = vand.u32 %v8972, 4294901760
        %v9154 = vsub.f32 %v8972, %v9153
        %v9155 = vand.u32 %v9154, 4294901760
        %v9156 = vsub.f32 %v9154, %v9155
        %v9157 = vand.u32 %v9156, 4294901760
        %9158 = vmatpush1.msra.mxu0 %v9157
        %9159 = vmatprep.subr.mxu0 0.0
        %v9160 = vand.u32 %v8973, 4294901760
        %v9161 = vsub.f32 %v8973, %v9160
        %v9162 = vand.u32 %v9161, 4294901760
        %v9163 = vsub.f32 %v9161, %v9162
        %v9164 = vand.u32 %v9163, 4294901760
        %9165 = vmatpush1.msra.mxu0 %v9164
        %9166 = vmatprep.subr.mxu0 0.0
        %v9167 = vand.u32 %v8974, 4294901760
        %v9168 = vsub.f32 %v8974, %v9167
        %v9169 = vand.u32 %v9168, 4294901760
        %v9170 = vsub.f32 %v9168, %v9169
        %v9171 = vand.u32 %v9170, 4294901760
        %9172 = vmatpush1.msra.mxu0 %v9171
        %9173 = vmatprep.subr.mxu0 0.0
        %v9174 = vand.u32 %v8975, 4294901760
        %v9175 = vsub.f32 %v8975, %v9174
        %v9176 = vand.u32 %v9175, 4294901760
        %v9177 = vsub.f32 %v9175, %v9176
        %v9178 = vand.u32 %v9177, 4294901760
        %9179 = vmatpush1.msra.mxu0 %v9178
        %9180 = vmatprep.subr.mxu0 0.0
        %v9181 = vand.u32 %v8976, 4294901760
        %v9182 = vsub.f32 %v8976, %v9181
        %v9183 = vand.u32 %v9182, 4294901760
        %v9184 = vsub.f32 %v9182, %v9183
        %v9185 = vand.u32 %v9184, 4294901760
        %9186 = vmatpush1.msra.mxu0 %v9185
        %9187 = vmatprep.subr.mxu0 0.0
        %9188 = vmatpush1.msra.mxu0 0.0
        %9189 = vmatprep.subr.mxu0 0.0
        %9190 = vmatpush1.msra.mxu0 0.0
        %9191 = vmatprep.subr.mxu0 0.0
        %9192 = vmatpush1.msra.mxu0 0.0
        %9193 = vmatprep.subr.mxu0 0.0
        %9194 = vmatpush1.msra.mxu0 0.0
        %9195 = vmatprep.subr.mxu0 0.0
        %9196 = vmatpush1.msra.mxu0 0.0
        %9197 = vmatprep.subr.mxu0 0.0
        %9198 = vmatpush1.msra.mxu0 0.0
        %9199 = vmatprep.subr.mxu0 0.0
        %9200 = vmatpush1.msra.mxu0 0.0
        %9201 = vmatprep.subr.mxu0 0.0
        %9202 = vmatpush1.msra.mxu0 0.0
        %9203 = vmatprep.subr.mxu0 0.0
        %9204 = vmatpush1.msra.mxu0 0.0
        %9205 = vmatprep.subr.mxu0 0.0
        %9206 = vmatpush1.msra.mxu0 0.0
        %9207 = vmatprep.subr.mxu0 0.0
        %9208 = vmatpush1.msra.mxu0 0.0
        %9209 = vmatprep.subr.mxu0 0.0
        %9210 = vmatpush1.msra.mxu0 0.0
        %9211 = vmatprep.subr.mxu0 0.0
        %9212 = vmatpush1.msra.mxu0 0.0
        %9213 = vmatprep.subr.mxu0 0.0
        %9214 = vmatpush1.msra.mxu0 0.0
        %9215 = vmatprep.subr.mxu0 0.0
        %9216 = vmatpush1.msra.mxu0 0.0
        %9217 = vmatprep.subr.mxu0 0.0
        %9218 = vmatpush1.msra.mxu0 0.0
        %9219 = vmatprep.mubr.f32.mxu0 0.0
        %v9220 = vand.u32 %v8960, 4294901760
        %9221 = vmatmul.mubr.f32.gmra.mrb[0].mxu0 %v9220
        %v9222 = vpop.f32.mrb[0].mxu0
        %v9223 = vadd.f32 %v9072, %v9222
        %v9224 = vpop.f32.mrb[0].mxu0
        %9225 = vdwg.mxu0
        %9226 = vmatprep.subr.mxu0 0.0
        %v9227 = vand.u32 %v8961, 4294901760
        %v9228 = vsub.f32 %v8961, %v9227
        %9229 = vmatpush1.msra.mxu0 %v9228
        %9230 = vmatprep.subr.mxu0 0.0
        %v9231 = vand.u32 %v8962, 4294901760
        %v9232 = vsub.f32 %v8962, %v9231
        %9233 = vmatpush1.msra.mxu0 %v9232
        %9234 = vmatprep.subr.mxu0 0.0
        %v9235 = vand.u32 %v8963, 4294901760
        %v9236 = vsub.f32 %v8963, %v9235
        %9237 = vmatpush1.msra.mxu0 %v9236
        %9238 = vmatprep.subr.mxu0 0.0
        %v9239 = vand.u32 %v8964, 4294901760
        %v9240 = vsub.f32 %v8964, %v9239
        %9241 = vmatpush1.msra.mxu0 %v9240
        %9242 = vmatprep.subr.mxu0 0.0
        %v9243 = vand.u32 %v8965, 4294901760
        %v9244 = vsub.f32 %v8965, %v9243
        %9245 = vmatpush1.msra.mxu0 %v9244
        %9246 = vmatprep.subr.mxu0 0.0
        %v9247 = vand.u32 %v8966, 4294901760
        %v9248 = vsub.f32 %v8966, %v9247
        %9249 = vmatpush1.msra.mxu0 %v9248
        %9250 = vmatprep.subr.mxu0 0.0
        %v9251 = vand.u32 %v8967, 4294901760
        %v9252 = vsub.f32 %v8967, %v9251
        %9253 = vmatpush1.msra.mxu0 %v9252
        %9254 = vmatprep.subr.mxu0 0.0
        %v9255 = vand.u32 %v8968, 4294901760
        %v9256 = vsub.f32 %v8968, %v9255
        %9257 = vmatpush1.msra.mxu0 %v9256
        %9258 = vmatprep.subr.mxu0 0.0
        %v9259 = vand.u32 %v8969, 4294901760
        %v9260 = vsub.f32 %v8969, %v9259
        %9261 = vmatpush1.msra.mxu0 %v9260
        %9262 = vmatprep.subr.mxu0 0.0
        %v9263 = vand.u32 %v8970, 4294901760
        %v9264 = vsub.f32 %v8970, %v9263
        %9265 = vmatpush1.msra.mxu0 %v9264
        %9266 = vmatprep.subr.mxu0 0.0
        %v9267 = vand.u32 %v8971, 4294901760
        %v9268 = vsub.f32 %v8971, %v9267
        %9269 = vmatpush1.msra.mxu0 %v9268
        %9270 = vmatprep.subr.mxu0 0.0
        %v9271 = vand.u32 %v8972, 4294901760
        %v9272 = vsub.f32 %v8972, %v9271
        %9273 = vmatpush1.msra.mxu0 %v9272
        %9274 = vmatprep.subr.mxu0 0.0
        %v9275 = vand.u32 %v8973, 4294901760
        %v9276 = vsub.f32 %v8973, %v9275
        %9277 = vmatpush1.msra.mxu0 %v9276
        %9278 = vmatprep.subr.mxu0 0.0
        %v9279 = vand.u32 %v8974, 4294901760
        %v9280 = vsub.f32 %v8974, %v9279
        %9281 = vmatpush1.msra.mxu0 %v9280
        %9282 = vmatprep.subr.mxu0 0.0
        %v9283 = vand.u32 %v8975, 4294901760
        %v9284 = vsub.f32 %v8975, %v9283
        %9285 = vmatpush1.msra.mxu0 %v9284
        %9286 = vmatprep.subr.mxu0 0.0
        %v9287 = vand.u32 %v8976, 4294901760
        %v9288 = vsub.f32 %v8976, %v9287
        %9289 = vmatpush1.msra.mxu0 %v9288
        %9290 = vmatprep.subr.mxu0 0.0
        %9291 = vmatpush1.msra.mxu0 0.0
        %9292 = vmatprep.subr.mxu0 0.0
        %9293 = vmatpush1.msra.mxu0 0.0
        %9294 = vmatprep.subr.mxu0 0.0
        %9295 = vmatpush1.msra.mxu0 0.0
        %9296 = vmatprep.subr.mxu0 0.0
        %9297 = vmatpush1.msra.mxu0 0.0
        %9298 = vmatprep.subr.mxu0 0.0
        %9299 = vmatpush1.msra.mxu0 0.0
        %9300 = vmatprep.subr.mxu0 0.0
        %9301 = vmatpush1.msra.mxu0 0.0
        %9302 = vmatprep.subr.mxu0 0.0
        %9303 = vmatpush1.msra.mxu0 0.0
        %9304 = vmatprep.subr.mxu0 0.0
        %9305 = vmatpush1.msra.mxu0 0.0
        %9306 = vmatprep.subr.mxu0 0.0
        %9307 = vmatpush1.msra.mxu0 0.0
        %9308 = vmatprep.subr.mxu0 0.0
        %9309 = vmatpush1.msra.mxu0 0.0
        %9310 = vmatprep.subr.mxu0 0.0
        %9311 = vmatpush1.msra.mxu0 0.0
        %9312 = vmatprep.subr.mxu0 0.0
        %9313 = vmatpush1.msra.mxu0 0.0
        %9314 = vmatprep.subr.mxu0 0.0
        %9315 = vmatpush1.msra.mxu0 0.0
        %9316 = vmatprep.subr.mxu0 0.0
        %9317 = vmatpush1.msra.mxu0 0.0
        %9318 = vmatprep.subr.mxu0 0.0
        %9319 = vmatpush1.msra.mxu0 0.0
        %9320 = vmatprep.subr.mxu0 0.0
        %9321 = vmatpush1.msra.mxu0 0.0
        %9322 = vmatprep.mubr.f32.mxu0 0.0
        %v9323 = vand.u32 %v8960, 4294901760
        %v9324 = vsub.f32 %v8960, %v9323
        %9325 = vmatmul.mubr.f32.gmra.mrb[0].mxu0 %v9324
        %v9326 = vpop.f32.mrb[0].mxu0
        %v9327 = vadd.f32 %v9223, %v9326
        %v9328 = vpop.f32.mrb[0].mxu0
        %9329 = vdwg.mxu0
        %9330 = vmatprep.subr.mxu0 0.0
        %v9331 = vand.u32 %v8961, 4294901760
        %9332 = vmatpush1.msra.mxu0 %v9331
        %9333 = vmatprep.subr.mxu0 0.0
        %v9334 = vand.u32 %v8962, 4294901760
        %9335 = vmatpush1.msra.mxu0 %v9334
        %9336 = vmatprep.subr.mxu0 0.0
        %v9337 = vand.u32 %v8963, 4294901760
        %9338 = vmatpush1.msra.mxu0 %v9337
        %9339 = vmatprep.subr.mxu0 0.0
        %v9340 = vand.u32 %v8964, 4294901760
        %9341 = vmatpush1.msra.mxu0 %v9340
        %9342 = vmatprep.subr.mxu0 0.0
        %v9343 = vand.u32 %v8965, 4294901760
        %9344 = vmatpush1.msra.mxu0 %v9343
        %9345 = vmatprep.subr.mxu0 0.0
        %v9346 = vand.u32 %v8966, 4294901760
        %9347 = vmatpush1.msra.mxu0 %v9346
        %9348 = vmatprep.subr.mxu0 0.0
        %v9349 = vand.u32 %v8967, 4294901760
        %9350 = vmatpush1.msra.mxu0 %v9349
        %9351 = vmatprep.subr.mxu0 0.0
        %v9352 = vand.u32 %v8968, 4294901760
        %9353 = vmatpush1.msra.mxu0 %v9352
        %9354 = vmatprep.subr.mxu0 0.0
        %v9355 = vand.u32 %v8969, 4294901760
        %9356 = vmatpush1.msra.mxu0 %v9355
        %9357 = vmatprep.subr.mxu0 0.0
        %v9358 = vand.u32 %v8970, 4294901760
        %9359 = vmatpush1.msra.mxu0 %v9358
        %9360 = vmatprep.subr.mxu0 0.0
        %v9361 = vand.u32 %v8971, 4294901760
        %9362 = vmatpush1.msra.mxu0 %v9361
        %9363 = vmatprep.subr.mxu0 0.0
        %v9364 = vand.u32 %v8972, 4294901760
        %9365 = vmatpush1.msra.mxu0 %v9364
        %9366 = vmatprep.subr.mxu0 0.0
        %v9367 = vand.u32 %v8973, 4294901760
        %9368 = vmatpush1.msra.mxu0 %v9367
        %9369 = vmatprep.subr.mxu0 0.0
        %v9370 = vand.u32 %v8974, 4294901760
        %9371 = vmatpush1.msra.mxu0 %v9370
        %9372 = vmatprep.subr.mxu0 0.0
        %v9373 = vand.u32 %v8975, 4294901760
        %9374 = vmatpush1.msra.mxu0 %v9373
        %9375 = vmatprep.subr.mxu0 0.0
        %v9376 = vand.u32 %v8976, 4294901760
        %9377 = vmatpush1.msra.mxu0 %v9376
        %9378 = vmatprep.subr.mxu0 0.0
        %9379 = vmatpush1.msra.mxu0 0.0
        %9380 = vmatprep.subr.mxu0 0.0
        %9381 = vmatpush1.msra.mxu0 0.0
        %9382 = vmatprep.subr.mxu0 0.0
        %9383 = vmatpush1.msra.mxu0 0.0
        %9384 = vmatprep.subr.mxu0 0.0
        %9385 = vmatpush1.msra.mxu0 0.0
        %9386 = vmatprep.subr.mxu0 0.0
        %9387 = vmatpush1.msra.mxu0 0.0
        %9388 = vmatprep.subr.mxu0 0.0
        %9389 = vmatpush1.msra.mxu0 0.0
        %9390 = vmatprep.subr.mxu0 0.0
        %9391 = vmatpush1.msra.mxu0 0.0
        %9392 = vmatprep.subr.mxu0 0.0
        %9393 = vmatpush1.msra.mxu0 0.0
        %9394 = vmatprep.subr.mxu0 0.0
        %9395 = vmatpush1.msra.mxu0 0.0
        %9396 = vmatprep.subr.mxu0 0.0
        %9397 = vmatpush1.msra.mxu0 0.0
        %9398 = vmatprep.subr.mxu0 0.0
        %9399 = vmatpush1.msra.mxu0 0.0
        %9400 = vmatprep.subr.mxu0 0.0
        %9401 = vmatpush1.msra.mxu0 0.0
        %9402 = vmatprep.subr.mxu0 0.0
        %9403 = vmatpush1.msra.mxu0 0.0
        %9404 = vmatprep.subr.mxu0 0.0
        %9405 = vmatpush1.msra.mxu0 0.0
        %9406 = vmatprep.subr.mxu0 0.0
        %9407 = vmatpush1.msra.mxu0 0.0
        %9408 = vmatprep.subr.mxu0 0.0
        %9409 = vmatpush1.msra.mxu0 0.0
        %9410 = vmatprep.mubr.f32.mxu0 0.0
        %v9411 = vand.u32 %v8960, 4294901760
        %v9412 = vsub.f32 %v8960, %v9411
        %v9413 = vand.u32 %v9412, 4294901760
        %9414 = vmatmul.mubr.f32.gmra.mrb[0].mxu0 %v9413
        %v9415 = vpop.f32.mrb[0].mxu0
        %v9416 = vadd.f32 %v9327, %v9415
        %v9417 = vpop.f32.mrb[0].mxu0
        %9418 = vdwg.mxu0
        %9419 = vmatprep.subr.mxu0 0.0
        %v9420 = vand.u32 %v8961, 4294901760
        %v9421 = vsub.f32 %v8961, %v9420
        %v9422 = vand.u32 %v9421, 4294901760
        %9423 = vmatpush1.msra.mxu0 %v9422
        %9424 = vmatprep.subr.mxu0 0.0
        %v9425 = vand.u32 %v8962, 4294901760
        %v9426 = vsub.f32 %v8962, %v9425
        %v9427 = vand.u32 %v9426, 4294901760
        %9428 = vmatpush1.msra.mxu0 %v9427
        %9429 = vmatprep.subr.mxu0 0.0
        %v9430 = vand.u32 %v8963, 4294901760
        %v9431 = vsub.f32 %v8963, %v9430
        %v9432 = vand.u32 %v9431, 4294901760
        %9433 = vmatpush1.msra.mxu0 %v9432
        %9434 = vmatprep.subr.mxu0 0.0
        %v9435 = vand.u32 %v8964, 4294901760
        %v9436 = vsub.f32 %v8964, %v9435
        %v9437 = vand.u32 %v9436, 4294901760
        %9438 = vmatpush1.msra.mxu0 %v9437
        %9439 = vmatprep.subr.mxu0 0.0
        %v9440 = vand.u32 %v8965, 4294901760
        %v9441 = vsub.f32 %v8965, %v9440
        %v9442 = vand.u32 %v9441, 4294901760
        %9443 = vmatpush1.msra.mxu0 %v9442
        %9444 = vmatprep.subr.mxu0 0.0
        %v9445 = vand.u32 %v8966, 4294901760
        %v9446 = vsub.f32 %v8966, %v9445
        %v9447 = vand.u32 %v9446, 4294901760
        %9448 = vmatpush1.msra.mxu0 %v9447
        %9449 = vmatprep.subr.mxu0 0.0
        %v9450 = vand.u32 %v8967, 4294901760
        %v9451 = vsub.f32 %v8967, %v9450
        %v9452 = vand.u32 %v9451, 4294901760
        %9453 = vmatpush1.msra.mxu0 %v9452
        %9454 = vmatprep.subr.mxu0 0.0
        %v9455 = vand.u32 %v8968, 4294901760
        %v9456 = vsub.f32 %v8968, %v9455
        %v9457 = vand.u32 %v9456, 4294901760
        %9458 = vmatpush1.msra.mxu0 %v9457
        %9459 = vmatprep.subr.mxu0 0.0
        %v9460 = vand.u32 %v8969, 4294901760
        %v9461 = vsub.f32 %v8969, %v9460
        %v9462 = vand.u32 %v9461, 4294901760
        %9463 = vmatpush1.msra.mxu0 %v9462
        %9464 = vmatprep.subr.mxu0 0.0
        %v9465 = vand.u32 %v8970, 4294901760
        %v9466 = vsub.f32 %v8970, %v9465
        %v9467 = vand.u32 %v9466, 4294901760
        %9468 = vmatpush1.msra.mxu0 %v9467
        %9469 = vmatprep.subr.mxu0 0.0
        %v9470 = vand.u32 %v8971, 4294901760
        %v9471 = vsub.f32 %v8971, %v9470
        %v9472 = vand.u32 %v9471, 4294901760
        %9473 = vmatpush1.msra.mxu0 %v9472
        %9474 = vmatprep.subr.mxu0 0.0
        %v9475 = vand.u32 %v8972, 4294901760
        %v9476 = vsub.f32 %v8972, %v9475
        %v9477 = vand.u32 %v9476, 4294901760
        %9478 = vmatpush1.msra.mxu0 %v9477
        %9479 = vmatprep.subr.mxu0 0.0
        %v9480 = vand.u32 %v8973, 4294901760
        %v9481 = vsub.f32 %v8973, %v9480
        %v9482 = vand.u32 %v9481, 4294901760
        %9483 = vmatpush1.msra.mxu0 %v9482
        %9484 = vmatprep.subr.mxu0 0.0
        %v9485 = vand.u32 %v8974, 4294901760
        %v9486 = vsub.f32 %v8974, %v9485
        %v9487 = vand.u32 %v9486, 4294901760
        %9488 = vmatpush1.msra.mxu0 %v9487
        %9489 = vmatprep.subr.mxu0 0.0
        %v9490 = vand.u32 %v8975, 4294901760
        %v9491 = vsub.f32 %v8975, %v9490
        %v9492 = vand.u32 %v9491, 4294901760
        %9493 = vmatpush1.msra.mxu0 %v9492
        %9494 = vmatprep.subr.mxu0 0.0
        %v9495 = vand.u32 %v8976, 4294901760
        %v9496 = vsub.f32 %v8976, %v9495
        %v9497 = vand.u32 %v9496, 4294901760
        %9498 = vmatpush1.msra.mxu0 %v9497
        %9499 = vmatprep.subr.mxu0 0.0
        %9500 = vmatpush1.msra.mxu0 0.0
        %9501 = vmatprep.subr.mxu0 0.0
        %9502 = vmatpush1.msra.mxu0 0.0
        %9503 = vmatprep.subr.mxu0 0.0
        %9504 = vmatpush1.msra.mxu0 0.0
        %9505 = vmatprep.subr.mxu0 0.0
        %9506 = vmatpush1.msra.mxu0 0.0
        %9507 = vmatprep.subr.mxu0 0.0
        %9508 = vmatpush1.msra.mxu0 0.0
        %9509 = vmatprep.subr.mxu0 0.0
        %9510 = vmatpush1.msra.mxu0 0.0
        %9511 = vmatprep.subr.mxu0 0.0
        %9512 = vmatpush1.msra.mxu0 0.0
        %9513 = vmatprep.subr.mxu0 0.0
        %9514 = vmatpush1.msra.mxu0 0.0
        %9515 = vmatprep.subr.mxu0 0.0
        %9516 = vmatpush1.msra.mxu0 0.0
        %9517 = vmatprep.subr.mxu0 0.0
        %9518 = vmatpush1.msra.mxu0 0.0
        %9519 = vmatprep.subr.mxu0 0.0
        %9520 = vmatpush1.msra.mxu0 0.0
        %9521 = vmatprep.subr.mxu0 0.0
        %9522 = vmatpush1.msra.mxu0 0.0
        %9523 = vmatprep.subr.mxu0 0.0
        %9524 = vmatpush1.msra.mxu0 0.0
        %9525 = vmatprep.subr.mxu0 0.0
        %9526 = vmatpush1.msra.mxu0 0.0
        %9527 = vmatprep.subr.mxu0 0.0
        %9528 = vmatpush1.msra.mxu0 0.0
        %9529 = vmatprep.subr.mxu0 0.0
        %9530 = vmatpush1.msra.mxu0 0.0
        %9531 = vmatprep.mubr.f32.mxu0 0.0
        %v9532 = vand.u32 %v8960, 4294901760
        %9533 = vmatmul.mubr.f32.gmra.mrb[0].mxu0 %v9532
        %v9534 = vpop.f32.mrb[0].mxu0
        %v9535 = vadd.f32 %v9416, %v9534
        %v9536 = vpop.f32.mrb[0].mxu0
        %9537 = vdwg.mxu0
        %9538 = vmatprep.subr.mxu0 0.0
        %v9539 = vand.u32 %v8961, 4294901760
        %9540 = vmatpush1.msra.mxu0 %v9539
        %9541 = vmatprep.subr.mxu0 0.0
        %v9542 = vand.u32 %v8962, 4294901760
        %9543 = vmatpush1.msra.mxu0 %v9542
        %9544 = vmatprep.subr.mxu0 0.0
        %v9545 = vand.u32 %v8963, 4294901760
        %9546 = vmatpush1.msra.mxu0 %v9545
        %9547 = vmatprep.subr.mxu0 0.0
        %v9548 = vand.u32 %v8964, 4294901760
        %9549 = vmatpush1.msra.mxu0 %v9548
        %9550 = vmatprep.subr.mxu0 0.0
        %v9551 = vand.u32 %v8965, 4294901760
        %9552 = vmatpush1.msra.mxu0 %v9551
        %9553 = vmatprep.subr.mxu0 0.0
        %v9554 = vand.u32 %v8966, 4294901760
        %9555 = vmatpush1.msra.mxu0 %v9554
        %9556 = vmatprep.subr.mxu0 0.0
        %v9557 = vand.u32 %v8967, 4294901760
        %9558 = vmatpush1.msra.mxu0 %v9557
        %9559 = vmatprep.subr.mxu0 0.0
        %v9560 = vand.u32 %v8968, 4294901760
        %9561 = vmatpush1.msra.mxu0 %v9560
        %9562 = vmatprep.subr.mxu0 0.0
        %v9563 = vand.u32 %v8969, 4294901760
        %9564 = vmatpush1.msra.mxu0 %v9563
        %9565 = vmatprep.subr.mxu0 0.0
        %v9566 = vand.u32 %v8970, 4294901760
        %9567 = vmatpush1.msra.mxu0 %v9566
        %9568 = vmatprep.subr.mxu0 0.0
        %v9569 = vand.u32 %v8971, 4294901760
        %9570 = vmatpush1.msra.mxu0 %v9569
        %9571 = vmatprep.subr.mxu0 0.0
        %v9572 = vand.u32 %v8972, 4294901760
        %9573 = vmatpush1.msra.mxu0 %v9572
        %9574 = vmatprep.subr.mxu0 0.0
        %v9575 = vand.u32 %v8973, 4294901760
        %9576 = vmatpush1.msra.mxu0 %v9575
        %9577 = vmatprep.subr.mxu0 0.0
        %v9578 = vand.u32 %v8974, 4294901760
        %9579 = vmatpush1.msra.mxu0 %v9578
        %9580 = vmatprep.subr.mxu0 0.0
        %v9581 = vand.u32 %v8975, 4294901760
        %9582 = vmatpush1.msra.mxu0 %v9581
        %9583 = vmatprep.subr.mxu0 0.0
        %v9584 = vand.u32 %v8976, 4294901760
        %9585 = vmatpush1.msra.mxu0 %v9584
        %9586 = vmatprep.subr.mxu0 0.0
        %9587 = vmatpush1.msra.mxu0 0.0
        %9588 = vmatprep.subr.mxu0 0.0
        %9589 = vmatpush1.msra.mxu0 0.0
        %9590 = vmatprep.subr.mxu0 0.0
        %9591 = vmatpush1.msra.mxu0 0.0
        %9592 = vmatprep.subr.mxu0 0.0
        %9593 = vmatpush1.msra.mxu0 0.0
        %9594 = vmatprep.subr.mxu0 0.0
        %9595 = vmatpush1.msra.mxu0 0.0
        %9596 = vmatprep.subr.mxu0 0.0
        %9597 = vmatpush1.msra.mxu0 0.0
        %9598 = vmatprep.subr.mxu0 0.0
        %9599 = vmatpush1.msra.mxu0 0.0
        %9600 = vmatprep.subr.mxu0 0.0
        %9601 = vmatpush1.msra.mxu0 0.0
        %9602 = vmatprep.subr.mxu0 0.0
        %9603 = vmatpush1.msra.mxu0 0.0
        %9604 = vmatprep.subr.mxu0 0.0
        %9605 = vmatpush1.msra.mxu0 0.0
        %9606 = vmatprep.subr.mxu0 0.0
        %9607 = vmatpush1.msra.mxu0 0.0
        %9608 = vmatprep.subr.mxu0 0.0
        %9609 = vmatpush1.msra.mxu0 0.0
        %9610 = vmatprep.subr.mxu0 0.0
        %9611 = vmatpush1.msra.mxu0 0.0
        %9612 = vmatprep.subr.mxu0 0.0
        %9613 = vmatpush1.msra.mxu0 0.0
        %9614 = vmatprep.subr.mxu0 0.0
        %9615 = vmatpush1.msra.mxu0 0.0
        %9616 = vmatprep.subr.mxu0 0.0
        %9617 = vmatpush1.msra.mxu0 0.0
        %9618 = vmatprep.mubr.f32.mxu0 0.0
        %v9619 = vand.u32 %v8960, 4294901760
        %9620 = vmatmul.mubr.f32.gmra.mrb[0].mxu0 %v9619
        %v9621 = vpop.f32.mrb[0].mxu0
        %v9622 = vadd.f32 %v9535, %v9621
        %v9623 = vpop.f32.mrb[0].mxu0
        %9624 = vdwg.mxu0
        %v9625 = vadd.f32 %v9622, %v8456
        %v9626 = vld [vmem:[%s16] sm:$0x1]
        %v9627 = vld [vmem:[%s17] sm:$0x1]
        %v9628 = vsel %vm8428, %v9625, 0.0
        %9629 = vadd.xlane.f32.xlu0 %v9628
        %v9630 = vpop.xlane.xlu0 %9629
        %v9631 = vmul.f32 %v9630, %v8432
        %v9632 = vsub.f32 %v9625, %v9631
        %v9633 = vmul.f32 %v9632, %v9632
        %v9634 = vsel %vm8428, %v9633, 0.0
        %9635 = vadd.xlane.f32.xlu0 %v9634
        %v9636 = vpop.xlane.xlu0 %9635
        %v9637 = vmul.f32 %v9636, %v8432
        %v9638 = vadd.f32 %v9637, 1e-05
        %v9639 = vrsqrt.pop %v9638
        %v9640 = vmul.f32 %v9632, %v9639
        %v9642 = vlaneseq
        %v9643 = vshrl.u32 %v9642, 7
        %v9644 = vsub.s32 0, %v9643
        %v9645 = vrot.slane %v9626, %v9644
        %v9647 = vmul.f32 %v9640, %v9645
        %v9649 = vlaneseq
        %v9650 = vshrl.u32 %v9649, 7
        %v9651 = vsub.s32 0, %v9650
        %v9652 = vrot.slane %v9627, %v9651
        %v9654 = vadd.f32 %v9647, %v9652
        %9655 = vst.msk [vmem:[%s581] sm:$0xff] %vm8428, %v9654
        %s9656 = sand.u32 %s428, 1
        %s9657 = scalar_lea.sflag [#allocation3], %s9656
        %s9658 = sand.u32 %s428, 1
        %s9659 = smul.addr %s9658, 8
        %s9660 = scalar_lea.vmem [#allocation2], %s9659
        // Predicated region
        $region93: #{encoder_layer.1} parent=91 // pred_check
          %p9661 = pneg %p438
        $region94: #{encoder_layer.1} parent=91 // pred_check_branch
          %9663 = sbr.rel (%p9661) target = $region96
        $region95: #{encoder_layer.1} parent=91 // pred_region
          %s9665 = ssub.s32 128, 128
          %9666 = vsyncadd %s9657, %s9665
          %s9667 = smul.addr %s32, 128
          %s9668 = scalar_lea.hbm %s18, %s9667
          %s9670 = sshll.u32 %s9660, 4
          %s9671 = int_to_ptr.vmem [resolvable:$true] %s9670
          %9673 = dma.vmem_to_hbm [thread:$0]  %s9671, 128, %s9668, %s9657
        $region96: #{encoder_layer.1} parent=91 // pred_fallthru
          _
      $region92: #{encoder_layer.1} parent=5 // pred_fallthru
        _
      %p9674 = scmp.le.s32.totalorder 2, %s27
      // Predicated region
      $region97: #{encoder_layer.1} parent=5 // pred_check
        %p9675 = pneg %p9674
      $region98: #{encoder_layer.1} parent=5 // pred_check_branch
        %9677 = sbr.rel (%p9675) target = $region100
      $region99: #{encoder_layer.1} parent=5 // pred_region
        %s9678 = ssub.s32 %s27, 2
        // Predicated region
        $region101: #{encoder_layer.1} parent=99 // pred_check
          %p9679 = pneg %p444
        $region102: #{encoder_layer.1} parent=99 // pred_check_branch
          %9681 = sbr.rel (%p9679) target = $region104
        $region103: #{encoder_layer.1} parent=99 // pred_region
          %s9682 = sand.u32 %s429, 1
          %s9683 = scalar_lea.sflag [#allocation3], %s9682
          %s9684 = sand.u32 %s429, 1
          %s9685 = smul.addr %s9684, 8
          %s9686 = scalar_lea.vmem [#allocation2], %s9685
          %9687 = dma.done %s9683, 128
        $region104: #{encoder_layer.1} parent=99 // pred_fallthru
          _
      $region100: #{encoder_layer.1} parent=5 // pred_fallthru
        _
    $region6: #{encoder_layer.1} parent=1 // loop_footer
      %s31 = sadd.s32 1, %s27
    $region7: #{encoder_layer.1} parent=1 // loop_footer_branch
      %26 = sbr.rel target = $region3
    $region8: #{encoder_layer.1} parent=1 // loop_exit
      _
    %9688 = vsyncpa [#allocation3], 1
    %s9689 = scalar_lea.sflag [#allocation3], 1
    %9690 = vsyncpa %s9689, 1

</llo_original>
